<compile_context>
chip_gen: v6e
topology: v6e:2x2x1
jax: 0.10.0
libtpu: 0.0.40
codegen_flags: <defaults>
</compile_context>

<pallas_src>
import numpy as np
import jax
import jax.numpy as jnp
from jax import lax
from jax.experimental import pallas as pl
from jax.experimental.pallas import tpu as pltpu

B = 2
H = W = 16
HW = H * W
IMG_C = 3
CIN_PAD = 8                 # input channels zero-padded to one full sublane tile
WIDTH = 16                  # `width` in SPNet_MD
C2 = 2 * WIDTH              # large_kernel internal channel count
EPS = 1e-5                  # InstanceNorm2d default eps
_W_SHIFT = W.bit_length() - 1
assert W == 1 << _W_SHIFT, "W must be a power of two for the lane->(row,col) bit tricks"

# -----------------------------------------------------------------------------
# Packed-parameter slab layout: every weight/bias is a (rows, cols) f32 tile
# stored at a sublane-tile-aligned row offset, lane offset 0 (aligned slices).
# -----------------------------------------------------------------------------
_PACK_ENTRIES = (
    ("intro_w", WIDTH, 9 * CIN_PAD),   # intro 3x3, im2col layout (16, 72)
    ("intro_b", WIDTH, 1),
    ("conv1_w", C2, WIDTH),            # 1x1 (32, 16)
    ("conv1_b", C2, 1),
    ("lk_w",    C2, 9),                # dw3x3 (32, 9)
    ("lk_b",    C2, 1),
    ("conv2_w", C2, 9),                # dw3x3 (32, 9)
    ("conv2_b", C2, 1),
    ("sca_w",   C2, C2),               # 1x1 (32, 32)
    ("sca_b",   C2, 1),
    ("c0_w",    2, 25),                # CSA dw5x5 p=2 (2, 25)
    ("c0_b",    2, 1),
    ("cs_w",    2, 25),                # CSA dw5x5 p=6 d=3 (2, 25)
    ("cs_b",    2, 1),
    ("c1_w",    1, 2),                 # CSA 1x1 2->1 (1, 2)
    ("c1_b",    1, 1),
    ("conv3_w", C2, C2),               # 1x1 (32, 32)
    ("conv3_b", C2, 1),
    ("conv4_w", WIDTH, C2),            # 1x1 (16, 32)
    ("conv4_b", WIDTH, 1),
    ("beta",    WIDTH, 1),
    ("end_w",   IMG_C, 9 * WIDTH),     # ending 3x3, im2col layout (3, 144)
    ("end_b",   IMG_C, 1),
)
_PACK_LAYOUT = {}
_row = 0
for _n, _r, _c in _PACK_ENTRIES:
    _PACK_LAYOUT[_n] = (_row, _r, _c)
    _row += -(-_r // 8) * 8            # keep every entry sublane-tile aligned
PACK_ROWS = _row                        # multiple of 8
PACK_COLS = 9 * WIDTH                   # 144: widest entry; lane slices start at 0


# -----------------------------------------------------------------------------
# Pallas kernel
# -----------------------------------------------------------------------------
def spnet_md_kernel(x_ref, p_ref, out_ref):
    f32 = jnp.float32

    def param(name):
        r0, rows, cols = _PACK_LAYOUT[name]
        return p_ref[r0:r0 + rows, 0:cols]

    x_pad = x_ref[0]                        # (CIN_PAD, HW); rows >= IMG_C are zero
    x_rgb = x_pad[0:IMG_C, :]               # (3, HW)

    # flattened-spatial coordinates along the lane axis (iota + shift/and)
    lane = lax.broadcasted_iota(jnp.int32, (1, HW), 1)
    hh = lane >> _W_SHIFT                   # spatial row index
    ww = lane & (W - 1)                     # spatial col index

    mask_cache = {}                         # (dy, dx) -> (1, HW) f32, built once

    def tap_mask(dy, dx):
        if (dy, dx) not in mask_cache:
            ok = ((hh + dy >= 0) & (hh + dy < H) &
                  (ww + dx >= 0) & (ww + dx < W))
            mask_cache[(dy, dx)] = jnp.where(ok, 1.0, 0.0)
        return mask_cache[(dy, dx)]

    def shift(x, dy, dx):
        """out[:, i] = x[:, i + dy*W + dx] if inside the image else 0."""
        if dy == 0 and dx == 0:
            return x
        d = dy * W + dx
        rolled = pltpu.roll(x, (-d) % HW, axis=1)   # lane-axis rotate (XLU)
        return rolled * tap_mask(dy, dx)

    def conv3x3(x, w, b):
        """Dense 3x3 conv, pad 1, fused into one matmul (im2col in registers)."""
        patches = jnp.concatenate(
            [shift(x, ky - 1, kx - 1) for ky in range(3) for kx in range(3)],
            axis=0)                                          # (9*C, HW)
        return jnp.dot(w, patches, preferred_element_type=f32) + b

    def conv_dw(x, w, b, k, pad, dil):
        """Depthwise k x k conv (groups == channels); w: (C, k*k), b: (C, 1)."""
        acc = jnp.zeros(x.shape, f32)
        for ky in range(k):
            for kx in range(k):
                ti = ky * k + kx
                acc = acc + shift(x, ky * dil - pad, kx * dil - pad) * w[:, ti:ti + 1]
        return acc + b

    def instance_norm(x):
        # InstanceNorm2d(affine=False): per-channel mean/var over spatial lanes.
        mu = jnp.mean(x, axis=1, keepdims=True)
        xc = x - mu
        var = jnp.mean(xc * xc, axis=1, keepdims=True)
        return xc * lax.rsqrt(var + EPS)

    def erf(v):
        # Abramowitz & Stegun 7.1.26, |err| < 1.5e-7 (nn.GELU uses exact erf).
        a1, a2, a3, a4, a5 = (0.254829592, -0.284496736, 1.421413741,
                              -1.453152027, 1.061405429)
        pp = 0.3275911
        av = jnp.abs(v)
        s = 1.0 / (1.0 + pp * av)
        poly = ((((a5 * s + a4) * s + a3) * s + a2) * s + a1) * s
        y = 1.0 - poly * jnp.exp(-av * av)
        return jnp.where(v >= 0, y, -y)

    def gelu(v):
        return 0.5 * v * (1.0 + erf(v * 0.7071067811865476))

    # ---------------- intro: Conv2d(3, 16, 3, pad=1) ----------------
    x0 = conv3x3(x_pad, param("intro_w"), param("intro_b"))          # (16, HW)

    # ---------------- middle block: large_kernel(16) ----------------
    t = instance_norm(x0)                                            # bn
    t = jnp.dot(param("conv1_w"), t, preferred_element_type=f32) + param("conv1_b")
    t = conv_dw(t, param("lk_w"), param("lk_b"), 3, 1, 1)            # lk
    t = conv_dw(t, param("conv2_w"), param("conv2_b"), 3, 1, 1)      # conv2
    t = gelu(t)                                                      # nonlinear

    # --- CSA ---
    pooled = jnp.mean(t, axis=1, keepdims=True)                      # AdaptiveAvgPool2d(1)
    sca_vec = (jnp.dot(param("sca_w"), pooled, preferred_element_type=f32)
               + param("sca_b"))                                     # (32, 1)
    sca = sca_vec * t                                                # sca * x
    mx = jnp.max(sca, axis=0, keepdims=True)                         # channel max  (1, HW)
    mn = jnp.mean(sca, axis=0, keepdims=True)                        # channel mean (1, HW)
    sub = lax.broadcasted_iota(jnp.int32, (2, HW), 0)
    cat = jnp.where(sub == 0, mx, mn)                                # torch.cat dim=1
    c = conv_dw(cat, param("c0_w"), param("c0_b"), 5, 2, 1)          # conv0
    c = conv_dw(c, param("cs_w"), param("cs_b"), 5, 6, 3)            # conv_spatial
    c = jnp.dot(param("c1_w"), c, preferred_element_type=f32) + param("c1_b")
    t = c * sca                                                      # out * sca

    t = instance_norm(t)                                             # bn2
    t = jnp.dot(param("conv3_w"), t, preferred_element_type=f32) + param("conv3_b")
    t = gelu(t)
    t = jnp.dot(param("conv4_w"), t, preferred_element_type=f32) + param("conv4_b")
    t = x0 + t * param("beta")                                       # inp + out*beta

    # ---------------- ending + global residual + clamp ----------------
    y = conv3x3(t, param("end_w"), param("end_b"))                   # (3, HW)
    out_ref[0] = jnp.clip(y + x_rgb, -1.0, 1.0)                      # lane-dense store


# -----------------------------------------------------------------------------
# Wrapper: PyTorch-layout params -> packed slab, pallas_call
# -----------------------------------------------------------------------------
def _pack_params(p):
    """Pack all kernel-layout weights/biases into one (PACK_ROWS, PACK_COLS) slab."""
    def dense3(w, cin_pad):                 # (O, I, 3, 3) -> (O, 9*cin_pad) im2col
        o, i = w.shape[0], w.shape[1]
        w = jnp.transpose(w, (0, 2, 3, 1))  # (O, ky, kx, I)
        w = jnp.pad(w, ((0, 0), (0, 0), (0, 0), (0, cin_pad - i)))
        return w.reshape(o, 9 * cin_pad)

    def pw(w):                              # (O, I, 1, 1) -> (O, I)
        return w[:, :, 0, 0]

    def dw(w):                              # (C, 1, k, k) -> (C, k*k)
        c, _, k, _ = w.shape
        return w[:, 0].reshape(c, k * k)

    def col(v):                             # (C,) -> (C, 1)
        return v.reshape(-1, 1)

    mats = {
        "intro_w": dense3(p["intro_w"], CIN_PAD), "intro_b": col(p["intro_b"]),
        "conv1_w": pw(p["conv1_w"]), "conv1_b": col(p["conv1_b"]),
        "lk_w": dw(p["lk_w"]), "lk_b": col(p["lk_b"]),
        "conv2_w": dw(p["conv2_w"]), "conv2_b": col(p["conv2_b"]),
        "sca_w": pw(p["sca_w"]), "sca_b": col(p["sca_b"]),
        "c0_w": dw(p["c0_w"]), "c0_b": col(p["c0_b"]),
        "cs_w": dw(p["cs_w"]), "cs_b": col(p["cs_b"]),
        "c1_w": pw(p["c1_w"]), "c1_b": col(p["c1_b"]),
        "conv3_w": pw(p["conv3_w"]), "conv3_b": col(p["conv3_b"]),
        "conv4_w": pw(p["conv4_w"]), "conv4_b": col(p["conv4_b"]),
        "beta": p["beta"].reshape(-1, 1),
        "end_w": dense3(p["end_w"], WIDTH), "end_b": col(p["end_b"]),
    }
    buf = jnp.zeros((PACK_ROWS, PACK_COLS), jnp.float32)
    for name, (r0, rows, cols) in _PACK_LAYOUT.items():
        buf = buf.at[r0:r0 + rows, 0:cols].set(mats[name].astype(jnp.float32))
    return buf


def spnet_md_forward(x_nchw, params):
    """SPNet_MD forward.  x_nchw: (B, 3, H, W) float32."""
    b = x_nchw.shape[0]
    x_flat = x_nchw.reshape(b, IMG_C, HW)                             # NCHW, spatial on lanes
    x_flat = jnp.pad(x_flat, ((0, 0), (0, CIN_PAD - IMG_C), (0, 0)))  # (B, 8, HW)
    packed = _pack_params(params)

    out = pl.pallas_call(
        spnet_md_kernel,
        out_shape=jax.ShapeDtypeStruct((b, IMG_C, HW), jnp.float32),
        grid=(b,),
        in_specs=[
            pl.BlockSpec((1, CIN_PAD, HW), lambda i: (i, 0, 0)),
            pl.BlockSpec((PACK_ROWS, PACK_COLS), lambda i: (0, 0)),
        ],
        out_specs=pl.BlockSpec((1, IMG_C, HW), lambda i: (i, 0, 0)),
        compiler_params=pltpu.CompilerParams(
            dimension_semantics=("parallel",)),
    )(x_flat, packed)

    return out.reshape(b, IMG_C, H, W)


# -----------------------------------------------------------------------------
# Deterministic parameter init (PyTorch OIHW layout)
# -----------------------------------------------------------------------------
def init_params(key):
    shapes = {
        "intro_w": (WIDTH, IMG_C, 3, 3), "intro_b": (WIDTH,),
        "conv1_w": (C2, WIDTH, 1, 1),    "conv1_b": (C2,),
        "lk_w":    (C2, 1, 3, 3),        "lk_b":    (C2,),
        "conv2_w": (C2, 1, 3, 3),        "conv2_b": (C2,),
        "sca_w":   (C2, C2, 1, 1),       "sca_b":   (C2,),
        "c0_w":    (2, 1, 5, 5),         "c0_b":    (2,),
        "cs_w":    (2, 1, 5, 5),         "cs_b":    (2,),
        "c1_w":    (1, 2, 1, 1),         "c1_b":    (1,),
        "conv3_w": (C2, C2, 1, 1),       "conv3_b": (C2,),
        "conv4_w": (WIDTH, C2, 1, 1),    "conv4_b": (WIDTH,),
        "end_w":   (IMG_C, WIDTH, 3, 3), "end_b":   (IMG_C,),
    }
    keys = jax.random.split(key, len(shapes))
    p = {}
    for (name, shape), k in zip(shapes.items(), keys):
        if name.endswith("_w"):
            fan_in = int(np.prod(shape[1:]))
            p[name] = jax.random.normal(k, shape, jnp.float32) / np.sqrt(fan_in)
        else:
            p[name] = 0.05 * jax.random.normal(k, shape, jnp.float32)
    # NOTE: PyTorch initializes beta (and the unused gamma) to zeros; we use a
    # nonzero deterministic value so the large_kernel branch actually
    # contributes to the output in this synthetic test.
    p["beta"] = jnp.full((1, WIDTH, 1, 1), 0.3, jnp.float32)
    return p


# -----------------------------------------------------------------------------
# Pure-JAX reference (mirrors the PyTorch module, NCHW / OIHW)
# -----------------------------------------------------------------------------
def _ref_conv(x, w, bias, stride=1, padding=0, groups=1, dilation=1):
    out = lax.conv_general_dilated(
        x, w, window_strides=(stride, stride),
        padding=[(padding, padding), (padding, padding)],
        rhs_dilation=(dilation, dilation),
        dimension_numbers=("NCHW", "OIHW", "NCHW"),
        feature_group_count=groups)
    return out + bias.reshape(1, -1, 1, 1)


def _ref_inorm(x):
    mu = jnp.mean(x, axis=(2, 3), keepdims=True)
    var = jnp.mean((x - mu) ** 2, axis=(2, 3), keepdims=True)
    return (x - mu) * lax.rsqrt(var + EPS)


def _ref_csa(x, p):
    pooled = jnp.mean(x, axis=(2, 3), keepdims=True)
    sca = _ref_conv(pooled, p["sca_w"], p["sca_b"])
    sca = sca * x
    mx = jnp.max(sca, axis=1, keepdims=True)
    mn = jnp.mean(sca, axis=1, keepdims=True)
    out = jnp.concatenate([mx, mn], axis=1)
    out = _ref_conv(out, p["c0_w"], p["c0_b"], padding=2, groups=2)
    out = _ref_conv(out, p["cs_w"], p["cs_b"], padding=6, groups=2, dilation=3)
    out = _ref_conv(out, p["c1_w"], p["c1_b"])
    return out * sca


def _ref_large_kernel(x, p):
    inp = x
    out = _ref_inorm(x)
    out = _ref_conv(out, p["conv1_w"], p["conv1_b"])
    out = _ref_conv(out, p["lk_w"], p["lk_b"], padding=1, groups=C2)
    out = _ref_conv(out, p["conv2_w"], p["conv2_b"], padding=1, groups=C2)
    out = jax.nn.gelu(out, approximate=False)
    out = _ref_csa(out, p)
    out = _ref_inorm(out)
    out = _ref_conv(out, p["conv3_w"], p["conv3_b"])
    out = jax.nn.gelu(out, approximate=False)
    out = _ref_conv(out, p["conv4_w"], p["conv4_b"])
    return inp + out * p["beta"]


def spnet_md_reference(x, p):
    xi = _ref_conv(x, p["intro_w"], p["intro_b"], padding=1)
    xm = _ref_large_kernel(xi, p)
    y = _ref_conv(xm, p["end_w"], p["end_b"], padding=1)
    return jnp.clip(y + x, -1.0, 1.0)


# -----------------------------------------------------------------------------
if __name__ == "__main__":
    key = jax.random.PRNGKey(0)
    k_x, k_p = jax.random.split(key)
    x = jax.random.uniform(k_x, (B, IMG_C, H, W), jnp.float32,
                           minval=-1.0, maxval=1.0)
    params = init_params(k_p)

    y = jax.jit(spnet_md_forward)(x, params)
    y = jax.block_until_ready(y)
    assert y.shape == (B, IMG_C, H, W) and y.dtype == jnp.float32

    y_ref = jax.block_until_ready(spnet_md_reference(x, params))
    max_err = float(jnp.max(jnp.abs(y - y_ref)))
    if max_err > 3e-2:  # generous: default TPU matmul precision differs between paths
        raise AssertionError(f"Pallas kernel deviates from reference: max|diff|={max_err:.3e}")
    print("KERNEL_OK")
</pallas_src>

<mosaic_0001>
module attributes {stable_mosaic.version = 11 : i64} {
  func.func @spnet_md_kernel(%arg0: i32, %arg1: memref<1x8x256xf32, #tpu.memory_space<vmem>>, %arg2: memref<464x144xf32, #tpu.memory_space<vmem>>, %arg3: memref<1x3x256xf32, #tpu.memory_space<vmem>>) attributes {dimension_semantics = [#tpu.dimension_semantics<parallel>], iteration_bounds = array<i64: 2>, scalar_prefetch = 0 : i64, scratch_operands = 0 : i64, tpu.core_type = #tpu.core_type<tc>, window_params = [{transform_indices = @transform_0, window_bounds = array<i64: 1, 8, 256>}, {pipeline_mode = #tpu.pipeline_mode<synchronous>, transform_indices = @transform_1, window_bounds = array<i64: 464, 144>}, {transform_indices = @transform_2, window_bounds = array<i64: 1, 3, 256>}]} {
    %c0 = arith.constant 0 : index
    %c0_0 = arith.constant 0 : index
    %c0_1 = arith.constant 0 : index
    %0 = vector.load %arg1[%c0, %c0_0, %c0_1] : memref<1x8x256xf32, #tpu.memory_space<vmem>>, vector<1x8x256xf32>
    %1 = vector.shape_cast %0 : vector<1x8x256xf32> to vector<8x256xf32>
    %2 = vector.extract_strided_slice %1 {offsets = [0, 0], sizes = [3, 256], strides = [1, 1]} : vector<8x256xf32> to vector<3x256xf32>
    %3 = tpu.iota {dimensions = array<i32: 1>} : vector<1x256xi32>
    %c4_i32 = arith.constant 4 : i32
    %4 = vector.broadcast %c4_i32 : i32 to vector<1x256xi32>
    %5 = arith.shrsi %3, %4 : vector<1x256xi32>
    %c15_i32 = arith.constant 15 : i32
    %6 = vector.broadcast %c15_i32 : i32 to vector<1x256xi32>
    %7 = arith.andi %3, %6 : vector<1x256xi32>
    %c0_2 = arith.constant 0 : index
    %c0_3 = arith.constant 0 : index
    %8 = vector.load %arg2[%c0_2, %c0_3] : memref<464x144xf32, #tpu.memory_space<vmem>>, vector<16x72xf32>
    %c16 = arith.constant 16 : index
    %c0_4 = arith.constant 0 : index
    %9 = vector.load %arg2[%c16, %c0_4] : memref<464x144xf32, #tpu.memory_space<vmem>>, vector<16x1xf32>
    %c17_i32 = arith.constant 17 : i32
    %10 = tpu.dynamic_rotate %1 by %c17_i32 dim 1 : vector<8x256xf32>, i32 -> vector<8x256xf32>
    %c-1_i32 = arith.constant -1 : i32
    %11 = vector.broadcast %c-1_i32 : i32 to vector<1x256xi32>
    %12 = arith.addi %5, %11 : vector<1x256xi32>
    %c0_i32 = arith.constant 0 : i32
    %13 = vector.broadcast %c0_i32 : i32 to vector<1x256xi32>
    %14 = arith.cmpi sge, %12, %13 : vector<1x256xi32>
    %c-1_i32_5 = arith.constant -1 : i32
    %15 = vector.broadcast %c-1_i32_5 : i32 to vector<1x256xi32>
    %16 = arith.addi %5, %15 : vector<1x256xi32>
    %c16_i32 = arith.constant 16 : i32
    %17 = vector.broadcast %c16_i32 : i32 to vector<1x256xi32>
    %18 = arith.cmpi slt, %16, %17 : vector<1x256xi32>
    %19 = arith.andi %14, %18 : vector<1x256xi1>
    %c-1_i32_6 = arith.constant -1 : i32
    %20 = vector.broadcast %c-1_i32_6 : i32 to vector<1x256xi32>
    %21 = arith.addi %7, %20 : vector<1x256xi32>
    %c0_i32_7 = arith.constant 0 : i32
    %22 = vector.broadcast %c0_i32_7 : i32 to vector<1x256xi32>
    %23 = arith.cmpi sge, %21, %22 : vector<1x256xi32>
    %24 = arith.andi %19, %23 : vector<1x256xi1>
    %c-1_i32_8 = arith.constant -1 : i32
    %25 = vector.broadcast %c-1_i32_8 : i32 to vector<1x256xi32>
    %26 = arith.addi %7, %25 : vector<1x256xi32>
    %c16_i32_9 = arith.constant 16 : i32
    %27 = vector.broadcast %c16_i32_9 : i32 to vector<1x256xi32>
    %28 = arith.cmpi slt, %26, %27 : vector<1x256xi32>
    %29 = arith.andi %24, %28 : vector<1x256xi1>
    %cst = arith.constant 1.000000e+00 : f32
    %cst_10 = arith.constant 0.000000e+00 : f32
    %30 = vector.broadcast %cst : f32 to vector<1x256xf32>
    %31 = vector.broadcast %cst_10 : f32 to vector<1x256xf32>
    %32 = arith.select %29, %30, %31 : vector<1x256xi1>, vector<1x256xf32>
    %33 = vector.broadcast %32 : vector<1x256xf32> to vector<8x256xf32>
    %34 = arith.mulf %10, %33 : vector<8x256xf32>
    %c16_i32_11 = arith.constant 16 : i32
    %35 = tpu.dynamic_rotate %1 by %c16_i32_11 dim 1 : vector<8x256xf32>, i32 -> vector<8x256xf32>
    %c-1_i32_12 = arith.constant -1 : i32
    %36 = vector.broadcast %c-1_i32_12 : i32 to vector<1x256xi32>
    %37 = arith.addi %5, %36 : vector<1x256xi32>
    %c0_i32_13 = arith.constant 0 : i32
    %38 = vector.broadcast %c0_i32_13 : i32 to vector<1x256xi32>
    %39 = arith.cmpi sge, %37, %38 : vector<1x256xi32>
    %c-1_i32_14 = arith.constant -1 : i32
    %40 = vector.broadcast %c-1_i32_14 : i32 to vector<1x256xi32>
    %41 = arith.addi %5, %40 : vector<1x256xi32>
    %c16_i32_15 = arith.constant 16 : i32
    %42 = vector.broadcast %c16_i32_15 : i32 to vector<1x256xi32>
    %43 = arith.cmpi slt, %41, %42 : vector<1x256xi32>
    %44 = arith.andi %39, %43 : vector<1x256xi1>
    %c0_i32_16 = arith.constant 0 : i32
    %45 = vector.broadcast %c0_i32_16 : i32 to vector<1x256xi32>
    %46 = arith.addi %7, %45 : vector<1x256xi32>
    %c0_i32_17 = arith.constant 0 : i32
    %47 = vector.broadcast %c0_i32_17 : i32 to vector<1x256xi32>
    %48 = arith.cmpi sge, %46, %47 : vector<1x256xi32>
    %49 = arith.andi %44, %48 : vector<1x256xi1>
    %c0_i32_18 = arith.constant 0 : i32
    %50 = vector.broadcast %c0_i32_18 : i32 to vector<1x256xi32>
    %51 = arith.addi %7, %50 : vector<1x256xi32>
    %c16_i32_19 = arith.constant 16 : i32
    %52 = vector.broadcast %c16_i32_19 : i32 to vector<1x256xi32>
    %53 = arith.cmpi slt, %51, %52 : vector<1x256xi32>
    %54 = arith.andi %49, %53 : vector<1x256xi1>
    %cst_20 = arith.constant 1.000000e+00 : f32
    %cst_21 = arith.constant 0.000000e+00 : f32
    %55 = vector.broadcast %cst_20 : f32 to vector<1x256xf32>
    %56 = vector.broadcast %cst_21 : f32 to vector<1x256xf32>
    %57 = arith.select %54, %55, %56 : vector<1x256xi1>, vector<1x256xf32>
    %58 = vector.broadcast %57 : vector<1x256xf32> to vector<8x256xf32>
    %59 = arith.mulf %35, %58 : vector<8x256xf32>
    %c15_i32_22 = arith.constant 15 : i32
    %60 = tpu.dynamic_rotate %1 by %c15_i32_22 dim 1 : vector<8x256xf32>, i32 -> vector<8x256xf32>
    %c-1_i32_23 = arith.constant -1 : i32
    %61 = vector.broadcast %c-1_i32_23 : i32 to vector<1x256xi32>
    %62 = arith.addi %5, %61 : vector<1x256xi32>
    %c0_i32_24 = arith.constant 0 : i32
    %63 = vector.broadcast %c0_i32_24 : i32 to vector<1x256xi32>
    %64 = arith.cmpi sge, %62, %63 : vector<1x256xi32>
    %c-1_i32_25 = arith.constant -1 : i32
    %65 = vector.broadcast %c-1_i32_25 : i32 to vector<1x256xi32>
    %66 = arith.addi %5, %65 : vector<1x256xi32>
    %c16_i32_26 = arith.constant 16 : i32
    %67 = vector.broadcast %c16_i32_26 : i32 to vector<1x256xi32>
    %68 = arith.cmpi slt, %66, %67 : vector<1x256xi32>
    %69 = arith.andi %64, %68 : vector<1x256xi1>
    %c1_i32 = arith.constant 1 : i32
    %70 = vector.broadcast %c1_i32 : i32 to vector<1x256xi32>
    %71 = arith.addi %7, %70 : vector<1x256xi32>
    %c0_i32_27 = arith.constant 0 : i32
    %72 = vector.broadcast %c0_i32_27 : i32 to vector<1x256xi32>
    %73 = arith.cmpi sge, %71, %72 : vector<1x256xi32>
    %74 = arith.andi %69, %73 : vector<1x256xi1>
    %c1_i32_28 = arith.constant 1 : i32
    %75 = vector.broadcast %c1_i32_28 : i32 to vector<1x256xi32>
    %76 = arith.addi %7, %75 : vector<1x256xi32>
    %c16_i32_29 = arith.constant 16 : i32
    %77 = vector.broadcast %c16_i32_29 : i32 to vector<1x256xi32>
    %78 = arith.cmpi slt, %76, %77 : vector<1x256xi32>
    %79 = arith.andi %74, %78 : vector<1x256xi1>
    %cst_30 = arith.constant 1.000000e+00 : f32
    %cst_31 = arith.constant 0.000000e+00 : f32
    %80 = vector.broadcast %cst_30 : f32 to vector<1x256xf32>
    %81 = vector.broadcast %cst_31 : f32 to vector<1x256xf32>
    %82 = arith.select %79, %80, %81 : vector<1x256xi1>, vector<1x256xf32>
    %83 = vector.broadcast %82 : vector<1x256xf32> to vector<8x256xf32>
    %84 = arith.mulf %60, %83 : vector<8x256xf32>
    %c1_i32_32 = arith.constant 1 : i32
    %85 = tpu.dynamic_rotate %1 by %c1_i32_32 dim 1 : vector<8x256xf32>, i32 -> vector<8x256xf32>
    %c0_i32_33 = arith.constant 0 : i32
    %86 = vector.broadcast %c0_i32_33 : i32 to vector<1x256xi32>
    %87 = arith.addi %5, %86 : vector<1x256xi32>
    %c0_i32_34 = arith.constant 0 : i32
    %88 = vector.broadcast %c0_i32_34 : i32 to vector<1x256xi32>
    %89 = arith.cmpi sge, %87, %88 : vector<1x256xi32>
    %c0_i32_35 = arith.constant 0 : i32
    %90 = vector.broadcast %c0_i32_35 : i32 to vector<1x256xi32>
    %91 = arith.addi %5, %90 : vector<1x256xi32>
    %c16_i32_36 = arith.constant 16 : i32
    %92 = vector.broadcast %c16_i32_36 : i32 to vector<1x256xi32>
    %93 = arith.cmpi slt, %91, %92 : vector<1x256xi32>
    %94 = arith.andi %89, %93 : vector<1x256xi1>
    %c-1_i32_37 = arith.constant -1 : i32
    %95 = vector.broadcast %c-1_i32_37 : i32 to vector<1x256xi32>
    %96 = arith.addi %7, %95 : vector<1x256xi32>
    %c0_i32_38 = arith.constant 0 : i32
    %97 = vector.broadcast %c0_i32_38 : i32 to vector<1x256xi32>
    %98 = arith.cmpi sge, %96, %97 : vector<1x256xi32>
    %99 = arith.andi %94, %98 : vector<1x256xi1>
    %c-1_i32_39 = arith.constant -1 : i32
    %100 = vector.broadcast %c-1_i32_39 : i32 to vector<1x256xi32>
    %101 = arith.addi %7, %100 : vector<1x256xi32>
    %c16_i32_40 = arith.constant 16 : i32
    %102 = vector.broadcast %c16_i32_40 : i32 to vector<1x256xi32>
    %103 = arith.cmpi slt, %101, %102 : vector<1x256xi32>
    %104 = arith.andi %99, %103 : vector<1x256xi1>
    %cst_41 = arith.constant 1.000000e+00 : f32
    %cst_42 = arith.constant 0.000000e+00 : f32
    %105 = vector.broadcast %cst_41 : f32 to vector<1x256xf32>
    %106 = vector.broadcast %cst_42 : f32 to vector<1x256xf32>
    %107 = arith.select %104, %105, %106 : vector<1x256xi1>, vector<1x256xf32>
    %108 = vector.broadcast %107 : vector<1x256xf32> to vector<8x256xf32>
    %109 = arith.mulf %85, %108 : vector<8x256xf32>
    %c255_i32 = arith.constant 255 : i32
    %110 = tpu.dynamic_rotate %1 by %c255_i32 dim 1 : vector<8x256xf32>, i32 -> vector<8x256xf32>
    %c0_i32_43 = arith.constant 0 : i32
    %111 = vector.broadcast %c0_i32_43 : i32 to vector<1x256xi32>
    %112 = arith.addi %5, %111 : vector<1x256xi32>
    %c0_i32_44 = arith.constant 0 : i32
    %113 = vector.broadcast %c0_i32_44 : i32 to vector<1x256xi32>
    %114 = arith.cmpi sge, %112, %113 : vector<1x256xi32>
    %c0_i32_45 = arith.constant 0 : i32
    %115 = vector.broadcast %c0_i32_45 : i32 to vector<1x256xi32>
    %116 = arith.addi %5, %115 : vector<1x256xi32>
    %c16_i32_46 = arith.constant 16 : i32
    %117 = vector.broadcast %c16_i32_46 : i32 to vector<1x256xi32>
    %118 = arith.cmpi slt, %116, %117 : vector<1x256xi32>
    %119 = arith.andi %114, %118 : vector<1x256xi1>
    %c1_i32_47 = arith.constant 1 : i32
    %120 = vector.broadcast %c1_i32_47 : i32 to vector<1x256xi32>
    %121 = arith.addi %7, %120 : vector<1x256xi32>
    %c0_i32_48 = arith.constant 0 : i32
    %122 = vector.broadcast %c0_i32_48 : i32 to vector<1x256xi32>
    %123 = arith.cmpi sge, %121, %122 : vector<1x256xi32>
    %124 = arith.andi %119, %123 : vector<1x256xi1>
    %c1_i32_49 = arith.constant 1 : i32
    %125 = vector.broadcast %c1_i32_49 : i32 to vector<1x256xi32>
    %126 = arith.addi %7, %125 : vector<1x256xi32>
    %c16_i32_50 = arith.constant 16 : i32
    %127 = vector.broadcast %c16_i32_50 : i32 to vector<1x256xi32>
    %128 = arith.cmpi slt, %126, %127 : vector<1x256xi32>
    %129 = arith.andi %124, %128 : vector<1x256xi1>
    %cst_51 = arith.constant 1.000000e+00 : f32
    %cst_52 = arith.constant 0.000000e+00 : f32
    %130 = vector.broadcast %cst_51 : f32 to vector<1x256xf32>
    %131 = vector.broadcast %cst_52 : f32 to vector<1x256xf32>
    %132 = arith.select %129, %130, %131 : vector<1x256xi1>, vector<1x256xf32>
    %133 = vector.broadcast %132 : vector<1x256xf32> to vector<8x256xf32>
    %134 = arith.mulf %110, %133 : vector<8x256xf32>
    %c241_i32 = arith.constant 241 : i32
    %135 = tpu.dynamic_rotate %1 by %c241_i32 dim 1 : vector<8x256xf32>, i32 -> vector<8x256xf32>
    %c1_i32_53 = arith.constant 1 : i32
    %136 = vector.broadcast %c1_i32_53 : i32 to vector<1x256xi32>
    %137 = arith.addi %5, %136 : vector<1x256xi32>
    %c0_i32_54 = arith.constant 0 : i32
    %138 = vector.broadcast %c0_i32_54 : i32 to vector<1x256xi32>
    %139 = arith.cmpi sge, %137, %138 : vector<1x256xi32>
    %c1_i32_55 = arith.constant 1 : i32
    %140 = vector.broadcast %c1_i32_55 : i32 to vector<1x256xi32>
    %141 = arith.addi %5, %140 : vector<1x256xi32>
    %c16_i32_56 = arith.constant 16 : i32
    %142 = vector.broadcast %c16_i32_56 : i32 to vector<1x256xi32>
    %143 = arith.cmpi slt, %141, %142 : vector<1x256xi32>
    %144 = arith.andi %139, %143 : vector<1x256xi1>
    %c-1_i32_57 = arith.constant -1 : i32
    %145 = vector.broadcast %c-1_i32_57 : i32 to vector<1x256xi32>
    %146 = arith.addi %7, %145 : vector<1x256xi32>
    %c0_i32_58 = arith.constant 0 : i32
    %147 = vector.broadcast %c0_i32_58 : i32 to vector<1x256xi32>
    %148 = arith.cmpi sge, %146, %147 : vector<1x256xi32>
    %149 = arith.andi %144, %148 : vector<1x256xi1>
    %c-1_i32_59 = arith.constant -1 : i32
    %150 = vector.broadcast %c-1_i32_59 : i32 to vector<1x256xi32>
    %151 = arith.addi %7, %150 : vector<1x256xi32>
    %c16_i32_60 = arith.constant 16 : i32
    %152 = vector.broadcast %c16_i32_60 : i32 to vector<1x256xi32>
    %153 = arith.cmpi slt, %151, %152 : vector<1x256xi32>
    %154 = arith.andi %149, %153 : vector<1x256xi1>
    %cst_61 = arith.constant 1.000000e+00 : f32
    %cst_62 = arith.constant 0.000000e+00 : f32
    %155 = vector.broadcast %cst_61 : f32 to vector<1x256xf32>
    %156 = vector.broadcast %cst_62 : f32 to vector<1x256xf32>
    %157 = arith.select %154, %155, %156 : vector<1x256xi1>, vector<1x256xf32>
    %158 = vector.broadcast %157 : vector<1x256xf32> to vector<8x256xf32>
    %159 = arith.mulf %135, %158 : vector<8x256xf32>
    %c240_i32 = arith.constant 240 : i32
    %160 = tpu.dynamic_rotate %1 by %c240_i32 dim 1 : vector<8x256xf32>, i32 -> vector<8x256xf32>
    %c1_i32_63 = arith.constant 1 : i32
    %161 = vector.broadcast %c1_i32_63 : i32 to vector<1x256xi32>
    %162 = arith.addi %5, %161 : vector<1x256xi32>
    %c0_i32_64 = arith.constant 0 : i32
    %163 = vector.broadcast %c0_i32_64 : i32 to vector<1x256xi32>
    %164 = arith.cmpi sge, %162, %163 : vector<1x256xi32>
    %c1_i32_65 = arith.constant 1 : i32
    %165 = vector.broadcast %c1_i32_65 : i32 to vector<1x256xi32>
    %166 = arith.addi %5, %165 : vector<1x256xi32>
    %c16_i32_66 = arith.constant 16 : i32
    %167 = vector.broadcast %c16_i32_66 : i32 to vector<1x256xi32>
    %168 = arith.cmpi slt, %166, %167 : vector<1x256xi32>
    %169 = arith.andi %164, %168 : vector<1x256xi1>
    %c0_i32_67 = arith.constant 0 : i32
    %170 = vector.broadcast %c0_i32_67 : i32 to vector<1x256xi32>
    %171 = arith.addi %7, %170 : vector<1x256xi32>
    %c0_i32_68 = arith.constant 0 : i32
    %172 = vector.broadcast %c0_i32_68 : i32 to vector<1x256xi32>
    %173 = arith.cmpi sge, %171, %172 : vector<1x256xi32>
    %174 = arith.andi %169, %173 : vector<1x256xi1>
    %c0_i32_69 = arith.constant 0 : i32
    %175 = vector.broadcast %c0_i32_69 : i32 to vector<1x256xi32>
    %176 = arith.addi %7, %175 : vector<1x256xi32>
    %c16_i32_70 = arith.constant 16 : i32
    %177 = vector.broadcast %c16_i32_70 : i32 to vector<1x256xi32>
    %178 = arith.cmpi slt, %176, %177 : vector<1x256xi32>
    %179 = arith.andi %174, %178 : vector<1x256xi1>
    %cst_71 = arith.constant 1.000000e+00 : f32
    %cst_72 = arith.constant 0.000000e+00 : f32
    %180 = vector.broadcast %cst_71 : f32 to vector<1x256xf32>
    %181 = vector.broadcast %cst_72 : f32 to vector<1x256xf32>
    %182 = arith.select %179, %180, %181 : vector<1x256xi1>, vector<1x256xf32>
    %183 = vector.broadcast %182 : vector<1x256xf32> to vector<8x256xf32>
    %184 = arith.mulf %160, %183 : vector<8x256xf32>
    %c239_i32 = arith.constant 239 : i32
    %185 = tpu.dynamic_rotate %1 by %c239_i32 dim 1 : vector<8x256xf32>, i32 -> vector<8x256xf32>
    %c1_i32_73 = arith.constant 1 : i32
    %186 = vector.broadcast %c1_i32_73 : i32 to vector<1x256xi32>
    %187 = arith.addi %5, %186 : vector<1x256xi32>
    %c0_i32_74 = arith.constant 0 : i32
    %188 = vector.broadcast %c0_i32_74 : i32 to vector<1x256xi32>
    %189 = arith.cmpi sge, %187, %188 : vector<1x256xi32>
    %c1_i32_75 = arith.constant 1 : i32
    %190 = vector.broadcast %c1_i32_75 : i32 to vector<1x256xi32>
    %191 = arith.addi %5, %190 : vector<1x256xi32>
    %c16_i32_76 = arith.constant 16 : i32
    %192 = vector.broadcast %c16_i32_76 : i32 to vector<1x256xi32>
    %193 = arith.cmpi slt, %191, %192 : vector<1x256xi32>
    %194 = arith.andi %189, %193 : vector<1x256xi1>
    %c1_i32_77 = arith.constant 1 : i32
    %195 = vector.broadcast %c1_i32_77 : i32 to vector<1x256xi32>
    %196 = arith.addi %7, %195 : vector<1x256xi32>
    %c0_i32_78 = arith.constant 0 : i32
    %197 = vector.broadcast %c0_i32_78 : i32 to vector<1x256xi32>
    %198 = arith.cmpi sge, %196, %197 : vector<1x256xi32>
    %199 = arith.andi %194, %198 : vector<1x256xi1>
    %c1_i32_79 = arith.constant 1 : i32
    %200 = vector.broadcast %c1_i32_79 : i32 to vector<1x256xi32>
    %201 = arith.addi %7, %200 : vector<1x256xi32>
    %c16_i32_80 = arith.constant 16 : i32
    %202 = vector.broadcast %c16_i32_80 : i32 to vector<1x256xi32>
    %203 = arith.cmpi slt, %201, %202 : vector<1x256xi32>
    %204 = arith.andi %199, %203 : vector<1x256xi1>
    %cst_81 = arith.constant 1.000000e+00 : f32
    %cst_82 = arith.constant 0.000000e+00 : f32
    %205 = vector.broadcast %cst_81 : f32 to vector<1x256xf32>
    %206 = vector.broadcast %cst_82 : f32 to vector<1x256xf32>
    %207 = arith.select %204, %205, %206 : vector<1x256xi1>, vector<1x256xf32>
    %208 = vector.broadcast %207 : vector<1x256xf32> to vector<8x256xf32>
    %209 = arith.mulf %185, %208 : vector<8x256xf32>
    %210 = tpu.concatenate %34, %59, %84, %109, %1, %134, %159, %184, %209 in 0 : vector<8x256xf32>, vector<8x256xf32>, vector<8x256xf32>, vector<8x256xf32>, vector<8x256xf32>, vector<8x256xf32>, vector<8x256xf32>, vector<8x256xf32>, vector<8x256xf32> -> vector<72x256xf32>
    %cst_83 = arith.constant dense<0.000000e+00> : vector<16x256xf32>
    %211 = tpu.matmul %8, %210, %cst_83 {dimension_numbers = #tpu.dot_dimension_numbers<[1], [0], [0], [1], [0, 0, 1, 1], [], []>} : vector<16x72xf32>, vector<72x256xf32>, vector<16x256xf32> -> vector<16x256xf32>
    %212 = vector.broadcast %9 : vector<16x1xf32> to vector<16x256xf32>
    %213 = arith.addf %211, %212 : vector<16x256xf32>
    %cst_84 = arith.constant dense<0.000000e+00> : vector<16xf32>
    %214 = vector.multi_reduction <add>, %213, %cst_84 [1] : vector<16x256xf32> to vector<16xf32>
    %215 = vector.shape_cast %214 : vector<16xf32> to vector<16x1xf32>
    %cst_85 = arith.constant 2.560000e+02 : f32
    %216 = vector.broadcast %cst_85 : f32 to vector<16x1xf32>
    %217 = arith.divf %215, %216 : vector<16x1xf32>
    %218 = vector.broadcast %217 : vector<16x1xf32> to vector<16x256xf32>
    %219 = arith.subf %213, %218 : vector<16x256xf32>
    %220 = arith.mulf %219, %219 : vector<16x256xf32>
    %cst_86 = arith.constant dense<0.000000e+00> : vector<16xf32>
    %221 = vector.multi_reduction <add>, %220, %cst_86 [1] : vector<16x256xf32> to vector<16xf32>
    %222 = vector.shape_cast %221 : vector<16xf32> to vector<16x1xf32>
    %cst_87 = arith.constant 2.560000e+02 : f32
    %223 = vector.broadcast %cst_87 : f32 to vector<16x1xf32>
    %224 = arith.divf %222, %223 : vector<16x1xf32>
    %cst_88 = arith.constant 9.99999974E-6 : f32
    %225 = vector.broadcast %cst_88 : f32 to vector<16x1xf32>
    %226 = arith.addf %224, %225 : vector<16x1xf32>
    %227 = math.rsqrt %226 : vector<16x1xf32>
    %228 = vector.broadcast %227 : vector<16x1xf32> to vector<16x256xf32>
    %229 = arith.mulf %219, %228 : vector<16x256xf32>
    %c32 = arith.constant 32 : index
    %c0_89 = arith.constant 0 : index
    %230 = vector.load %arg2[%c32, %c0_89] : memref<464x144xf32, #tpu.memory_space<vmem>>, vector<32x16xf32>
    %cst_90 = arith.constant dense<0.000000e+00> : vector<32x256xf32>
    %231 = tpu.matmul %230, %229, %cst_90 {dimension_numbers = #tpu.dot_dimension_numbers<[1], [0], [0], [1], [0, 0, 1, 1], [], []>} : vector<32x16xf32>, vector<16x256xf32>, vector<32x256xf32> -> vector<32x256xf32>
    %c64 = arith.constant 64 : index
    %c0_91 = arith.constant 0 : index
    %232 = vector.load %arg2[%c64, %c0_91] : memref<464x144xf32, #tpu.memory_space<vmem>>, vector<32x1xf32>
    %233 = vector.broadcast %232 : vector<32x1xf32> to vector<32x256xf32>
    %234 = arith.addf %231, %233 : vector<32x256xf32>
    %c96 = arith.constant 96 : index
    %c0_92 = arith.constant 0 : index
    %235 = vector.load %arg2[%c96, %c0_92] : memref<464x144xf32, #tpu.memory_space<vmem>>, vector<32x9xf32>
    %c128 = arith.constant 128 : index
    %c0_93 = arith.constant 0 : index
    %236 = vector.load %arg2[%c128, %c0_93] : memref<464x144xf32, #tpu.memory_space<vmem>>, vector<32x1xf32>
    %cst_94 = arith.constant 0.000000e+00 : f32
    %237 = vector.broadcast %cst_94 : f32 to vector<32x256xf32>
    %c17_i32_95 = arith.constant 17 : i32
    %238 = tpu.dynamic_rotate %234 by %c17_i32_95 dim 1 : vector<32x256xf32>, i32 -> vector<32x256xf32>
    %239 = vector.broadcast %32 : vector<1x256xf32> to vector<32x256xf32>
    %240 = arith.mulf %238, %239 : vector<32x256xf32>
    %241 = vector.extract_strided_slice %235 {offsets = [0, 0], sizes = [32, 1], strides = [1, 1]} : vector<32x9xf32> to vector<32x1xf32>
    %242 = vector.broadcast %241 : vector<32x1xf32> to vector<32x256xf32>
    %243 = arith.mulf %240, %242 : vector<32x256xf32>
    %244 = arith.addf %237, %243 : vector<32x256xf32>
    %c16_i32_96 = arith.constant 16 : i32
    %245 = tpu.dynamic_rotate %234 by %c16_i32_96 dim 1 : vector<32x256xf32>, i32 -> vector<32x256xf32>
    %246 = vector.broadcast %57 : vector<1x256xf32> to vector<32x256xf32>
    %247 = arith.mulf %245, %246 : vector<32x256xf32>
    %248 = vector.extract_strided_slice %235 {offsets = [0, 1], sizes = [32, 1], strides = [1, 1]} : vector<32x9xf32> to vector<32x1xf32>
    %249 = vector.broadcast %248 : vector<32x1xf32> to vector<32x256xf32>
    %250 = arith.mulf %247, %249 : vector<32x256xf32>
    %251 = arith.addf %244, %250 : vector<32x256xf32>
    %c15_i32_97 = arith.constant 15 : i32
    %252 = tpu.dynamic_rotate %234 by %c15_i32_97 dim 1 : vector<32x256xf32>, i32 -> vector<32x256xf32>
    %253 = vector.broadcast %82 : vector<1x256xf32> to vector<32x256xf32>
    %254 = arith.mulf %252, %253 : vector<32x256xf32>
    %255 = vector.extract_strided_slice %235 {offsets = [0, 2], sizes = [32, 1], strides = [1, 1]} : vector<32x9xf32> to vector<32x1xf32>
    %256 = vector.broadcast %255 : vector<32x1xf32> to vector<32x256xf32>
    %257 = arith.mulf %254, %256 : vector<32x256xf32>
    %258 = arith.addf %251, %257 : vector<32x256xf32>
    %c1_i32_98 = arith.constant 1 : i32
    %259 = tpu.dynamic_rotate %234 by %c1_i32_98 dim 1 : vector<32x256xf32>, i32 -> vector<32x256xf32>
    %260 = vector.broadcast %107 : vector<1x256xf32> to vector<32x256xf32>
    %261 = arith.mulf %259, %260 : vector<32x256xf32>
    %262 = vector.extract_strided_slice %235 {offsets = [0, 3], sizes = [32, 1], strides = [1, 1]} : vector<32x9xf32> to vector<32x1xf32>
    %263 = vector.broadcast %262 : vector<32x1xf32> to vector<32x256xf32>
    %264 = arith.mulf %261, %263 : vector<32x256xf32>
    %265 = arith.addf %258, %264 : vector<32x256xf32>
    %266 = vector.extract_strided_slice %235 {offsets = [0, 4], sizes = [32, 1], strides = [1, 1]} : vector<32x9xf32> to vector<32x1xf32>
    %267 = vector.broadcast %266 : vector<32x1xf32> to vector<32x256xf32>
    %268 = arith.mulf %234, %267 : vector<32x256xf32>
    %269 = arith.addf %265, %268 : vector<32x256xf32>
    %c255_i32_99 = arith.constant 255 : i32
    %270 = tpu.dynamic_rotate %234 by %c255_i32_99 dim 1 : vector<32x256xf32>, i32 -> vector<32x256xf32>
    %271 = vector.broadcast %132 : vector<1x256xf32> to vector<32x256xf32>
    %272 = arith.mulf %270, %271 : vector<32x256xf32>
    %273 = vector.extract_strided_slice %235 {offsets = [0, 5], sizes = [32, 1], strides = [1, 1]} : vector<32x9xf32> to vector<32x1xf32>
    %274 = vector.broadcast %273 : vector<32x1xf32> to vector<32x256xf32>
    %275 = arith.mulf %272, %274 : vector<32x256xf32>
    %276 = arith.addf %269, %275 : vector<32x256xf32>
    %c241_i32_100 = arith.constant 241 : i32
    %277 = tpu.dynamic_rotate %234 by %c241_i32_100 dim 1 : vector<32x256xf32>, i32 -> vector<32x256xf32>
    %278 = vector.broadcast %157 : vector<1x256xf32> to vector<32x256xf32>
    %279 = arith.mulf %277, %278 : vector<32x256xf32>
    %280 = vector.extract_strided_slice %235 {offsets = [0, 6], sizes = [32, 1], strides = [1, 1]} : vector<32x9xf32> to vector<32x1xf32>
    %281 = vector.broadcast %280 : vector<32x1xf32> to vector<32x256xf32>
    %282 = arith.mulf %279, %281 : vector<32x256xf32>
    %283 = arith.addf %276, %282 : vector<32x256xf32>
    %c240_i32_101 = arith.constant 240 : i32
    %284 = tpu.dynamic_rotate %234 by %c240_i32_101 dim 1 : vector<32x256xf32>, i32 -> vector<32x256xf32>
    %285 = vector.broadcast %182 : vector<1x256xf32> to vector<32x256xf32>
    %286 = arith.mulf %284, %285 : vector<32x256xf32>
    %287 = vector.extract_strided_slice %235 {offsets = [0, 7], sizes = [32, 1], strides = [1, 1]} : vector<32x9xf32> to vector<32x1xf32>
    %288 = vector.broadcast %287 : vector<32x1xf32> to vector<32x256xf32>
    %289 = arith.mulf %286, %288 : vector<32x256xf32>
    %290 = arith.addf %283, %289 : vector<32x256xf32>
    %c239_i32_102 = arith.constant 239 : i32
    %291 = tpu.dynamic_rotate %234 by %c239_i32_102 dim 1 : vector<32x256xf32>, i32 -> vector<32x256xf32>
    %292 = vector.broadcast %207 : vector<1x256xf32> to vector<32x256xf32>
    %293 = arith.mulf %291, %292 : vector<32x256xf32>
    %294 = vector.extract_strided_slice %235 {offsets = [0, 8], sizes = [32, 1], strides = [1, 1]} : vector<32x9xf32> to vector<32x1xf32>
    %295 = vector.broadcast %294 : vector<32x1xf32> to vector<32x256xf32>
    %296 = arith.mulf %293, %295 : vector<32x256xf32>
    %297 = arith.addf %290, %296 : vector<32x256xf32>
    %298 = vector.broadcast %236 : vector<32x1xf32> to vector<32x256xf32>
    %299 = arith.addf %297, %298 : vector<32x256xf32>
    %c160 = arith.constant 160 : index
    %c0_103 = arith.constant 0 : index
    %300 = vector.load %arg2[%c160, %c0_103] : memref<464x144xf32, #tpu.memory_space<vmem>>, vector<32x9xf32>
    %c192 = arith.constant 192 : index
    %c0_104 = arith.constant 0 : index
    %301 = vector.load %arg2[%c192, %c0_104] : memref<464x144xf32, #tpu.memory_space<vmem>>, vector<32x1xf32>
    %cst_105 = arith.constant 0.000000e+00 : f32
    %302 = vector.broadcast %cst_105 : f32 to vector<32x256xf32>
    %c17_i32_106 = arith.constant 17 : i32
    %303 = tpu.dynamic_rotate %299 by %c17_i32_106 dim 1 : vector<32x256xf32>, i32 -> vector<32x256xf32>
    %304 = vector.broadcast %32 : vector<1x256xf32> to vector<32x256xf32>
    %305 = arith.mulf %303, %304 : vector<32x256xf32>
    %306 = vector.extract_strided_slice %300 {offsets = [0, 0], sizes = [32, 1], strides = [1, 1]} : vector<32x9xf32> to vector<32x1xf32>
    %307 = vector.broadcast %306 : vector<32x1xf32> to vector<32x256xf32>
    %308 = arith.mulf %305, %307 : vector<32x256xf32>
    %309 = arith.addf %302, %308 : vector<32x256xf32>
    %c16_i32_107 = arith.constant 16 : i32
    %310 = tpu.dynamic_rotate %299 by %c16_i32_107 dim 1 : vector<32x256xf32>, i32 -> vector<32x256xf32>
    %311 = vector.broadcast %57 : vector<1x256xf32> to vector<32x256xf32>
    %312 = arith.mulf %310, %311 : vector<32x256xf32>
    %313 = vector.extract_strided_slice %300 {offsets = [0, 1], sizes = [32, 1], strides = [1, 1]} : vector<32x9xf32> to vector<32x1xf32>
    %314 = vector.broadcast %313 : vector<32x1xf32> to vector<32x256xf32>
    %315 = arith.mulf %312, %314 : vector<32x256xf32>
    %316 = arith.addf %309, %315 : vector<32x256xf32>
    %c15_i32_108 = arith.constant 15 : i32
    %317 = tpu.dynamic_rotate %299 by %c15_i32_108 dim 1 : vector<32x256xf32>, i32 -> vector<32x256xf32>
    %318 = vector.broadcast %82 : vector<1x256xf32> to vector<32x256xf32>
    %319 = arith.mulf %317, %318 : vector<32x256xf32>
    %320 = vector.extract_strided_slice %300 {offsets = [0, 2], sizes = [32, 1], strides = [1, 1]} : vector<32x9xf32> to vector<32x1xf32>
    %321 = vector.broadcast %320 : vector<32x1xf32> to vector<32x256xf32>
    %322 = arith.mulf %319, %321 : vector<32x256xf32>
    %323 = arith.addf %316, %322 : vector<32x256xf32>
    %c1_i32_109 = arith.constant 1 : i32
    %324 = tpu.dynamic_rotate %299 by %c1_i32_109 dim 1 : vector<32x256xf32>, i32 -> vector<32x256xf32>
    %325 = vector.broadcast %107 : vector<1x256xf32> to vector<32x256xf32>
    %326 = arith.mulf %324, %325 : vector<32x256xf32>
    %327 = vector.extract_strided_slice %300 {offsets = [0, 3], sizes = [32, 1], strides = [1, 1]} : vector<32x9xf32> to vector<32x1xf32>
    %328 = vector.broadcast %327 : vector<32x1xf32> to vector<32x256xf32>
    %329 = arith.mulf %326, %328 : vector<32x256xf32>
    %330 = arith.addf %323, %329 : vector<32x256xf32>
    %331 = vector.extract_strided_slice %300 {offsets = [0, 4], sizes = [32, 1], strides = [1, 1]} : vector<32x9xf32> to vector<32x1xf32>
    %332 = vector.broadcast %331 : vector<32x1xf32> to vector<32x256xf32>
    %333 = arith.mulf %299, %332 : vector<32x256xf32>
    %334 = arith.addf %330, %333 : vector<32x256xf32>
    %c255_i32_110 = arith.constant 255 : i32
    %335 = tpu.dynamic_rotate %299 by %c255_i32_110 dim 1 : vector<32x256xf32>, i32 -> vector<32x256xf32>
    %336 = vector.broadcast %132 : vector<1x256xf32> to vector<32x256xf32>
    %337 = arith.mulf %335, %336 : vector<32x256xf32>
    %338 = vector.extract_strided_slice %300 {offsets = [0, 5], sizes = [32, 1], strides = [1, 1]} : vector<32x9xf32> to vector<32x1xf32>
    %339 = vector.broadcast %338 : vector<32x1xf32> to vector<32x256xf32>
    %340 = arith.mulf %337, %339 : vector<32x256xf32>
    %341 = arith.addf %334, %340 : vector<32x256xf32>
    %c241_i32_111 = arith.constant 241 : i32
    %342 = tpu.dynamic_rotate %299 by %c241_i32_111 dim 1 : vector<32x256xf32>, i32 -> vector<32x256xf32>
    %343 = vector.broadcast %157 : vector<1x256xf32> to vector<32x256xf32>
    %344 = arith.mulf %342, %343 : vector<32x256xf32>
    %345 = vector.extract_strided_slice %300 {offsets = [0, 6], sizes = [32, 1], strides = [1, 1]} : vector<32x9xf32> to vector<32x1xf32>
    %346 = vector.broadcast %345 : vector<32x1xf32> to vector<32x256xf32>
    %347 = arith.mulf %344, %346 : vector<32x256xf32>
    %348 = arith.addf %341, %347 : vector<32x256xf32>
    %c240_i32_112 = arith.constant 240 : i32
    %349 = tpu.dynamic_rotate %299 by %c240_i32_112 dim 1 : vector<32x256xf32>, i32 -> vector<32x256xf32>
    %350 = vector.broadcast %182 : vector<1x256xf32> to vector<32x256xf32>
    %351 = arith.mulf %349, %350 : vector<32x256xf32>
    %352 = vector.extract_strided_slice %300 {offsets = [0, 7], sizes = [32, 1], strides = [1, 1]} : vector<32x9xf32> to vector<32x1xf32>
    %353 = vector.broadcast %352 : vector<32x1xf32> to vector<32x256xf32>
    %354 = arith.mulf %351, %353 : vector<32x256xf32>
    %355 = arith.addf %348, %354 : vector<32x256xf32>
    %c239_i32_113 = arith.constant 239 : i32
    %356 = tpu.dynamic_rotate %299 by %c239_i32_113 dim 1 : vector<32x256xf32>, i32 -> vector<32x256xf32>
    %357 = vector.broadcast %207 : vector<1x256xf32> to vector<32x256xf32>
    %358 = arith.mulf %356, %357 : vector<32x256xf32>
    %359 = vector.extract_strided_slice %300 {offsets = [0, 8], sizes = [32, 1], strides = [1, 1]} : vector<32x9xf32> to vector<32x1xf32>
    %360 = vector.broadcast %359 : vector<32x1xf32> to vector<32x256xf32>
    %361 = arith.mulf %358, %360 : vector<32x256xf32>
    %362 = arith.addf %355, %361 : vector<32x256xf32>
    %363 = vector.broadcast %301 : vector<32x1xf32> to vector<32x256xf32>
    %364 = arith.addf %362, %363 : vector<32x256xf32>
    %cst_114 = arith.constant 5.000000e-01 : f32
    %365 = vector.broadcast %cst_114 : f32 to vector<32x256xf32>
    %366 = arith.mulf %365, %364 : vector<32x256xf32>
    %cst_115 = arith.constant 0.707106769 : f32
    %367 = vector.broadcast %cst_115 : f32 to vector<32x256xf32>
    %368 = arith.mulf %364, %367 : vector<32x256xf32>
    %369 = math.absf %368 : vector<32x256xf32>
    %cst_116 = arith.constant 0.327591091 : f32
    %370 = vector.broadcast %cst_116 : f32 to vector<32x256xf32>
    %371 = arith.mulf %370, %369 : vector<32x256xf32>
    %cst_117 = arith.constant 1.000000e+00 : f32
    %372 = vector.broadcast %cst_117 : f32 to vector<32x256xf32>
    %373 = arith.addf %372, %371 : vector<32x256xf32>
    %cst_118 = arith.constant 1.000000e+00 : f32
    %374 = vector.broadcast %cst_118 : f32 to vector<32x256xf32>
    %375 = arith.divf %374, %373 : vector<32x256xf32>
    %cst_119 = arith.constant 1.06140542 : f32
    %376 = vector.broadcast %cst_119 : f32 to vector<32x256xf32>
    %377 = arith.mulf %376, %375 : vector<32x256xf32>
    %cst_120 = arith.constant -1.45315206 : f32
    %378 = vector.broadcast %cst_120 : f32 to vector<32x256xf32>
    %379 = arith.addf %377, %378 : vector<32x256xf32>
    %380 = arith.mulf %379, %375 : vector<32x256xf32>
    %cst_121 = arith.constant 1.42141378 : f32
    %381 = vector.broadcast %cst_121 : f32 to vector<32x256xf32>
    %382 = arith.addf %380, %381 : vector<32x256xf32>
    %383 = arith.mulf %382, %375 : vector<32x256xf32>
    %cst_122 = arith.constant -0.284496725 : f32
    %384 = vector.broadcast %cst_122 : f32 to vector<32x256xf32>
    %385 = arith.addf %383, %384 : vector<32x256xf32>
    %386 = arith.mulf %385, %375 : vector<32x256xf32>
    %cst_123 = arith.constant 0.254829586 : f32
    %387 = vector.broadcast %cst_123 : f32 to vector<32x256xf32>
    %388 = arith.addf %386, %387 : vector<32x256xf32>
    %389 = arith.mulf %388, %375 : vector<32x256xf32>
    %cst_124 = arith.constant 0.000000e+00 : f32
    %390 = vector.broadcast %cst_124 : f32 to vector<32x256xf32>
    %391 = arith.subf %390, %369 : vector<32x256xf32>
    %392 = arith.mulf %391, %369 : vector<32x256xf32>
    %393 = math.exp %392 : vector<32x256xf32>
    %394 = arith.mulf %389, %393 : vector<32x256xf32>
    %cst_125 = arith.constant 1.000000e+00 : f32
    %395 = vector.broadcast %cst_125 : f32 to vector<32x256xf32>
    %396 = arith.subf %395, %394 : vector<32x256xf32>
    %cst_126 = arith.constant 0.000000e+00 : f32
    %397 = vector.broadcast %cst_126 : f32 to vector<32x256xf32>
    %398 = arith.cmpf oge, %368, %397 : vector<32x256xf32>
    %cst_127 = arith.constant 0.000000e+00 : f32
    %399 = vector.broadcast %cst_127 : f32 to vector<32x256xf32>
    %400 = arith.subf %399, %396 : vector<32x256xf32>
    %401 = arith.select %398, %396, %400 : vector<32x256xi1>, vector<32x256xf32>
    %cst_128 = arith.constant 1.000000e+00 : f32
    %402 = vector.broadcast %cst_128 : f32 to vector<32x256xf32>
    %403 = arith.addf %402, %401 : vector<32x256xf32>
    %404 = arith.mulf %366, %403 : vector<32x256xf32>
    %cst_129 = arith.constant dense<0.000000e+00> : vector<32xf32>
    %405 = vector.multi_reduction <add>, %404, %cst_129 [1] : vector<32x256xf32> to vector<32xf32>
    %406 = vector.shape_cast %405 : vector<32xf32> to vector<32x1xf32>
    %cst_130 = arith.constant 2.560000e+02 : f32
    %407 = vector.broadcast %cst_130 : f32 to vector<32x1xf32>
    %408 = arith.divf %406, %407 : vector<32x1xf32>
    %c224 = arith.constant 224 : index
    %c0_131 = arith.constant 0 : index
    %409 = vector.load %arg2[%c224, %c0_131] : memref<464x144xf32, #tpu.memory_space<vmem>>, vector<32x32xf32>
    %cst_132 = arith.constant dense<0.000000e+00> : vector<32x1xf32>
    %410 = tpu.matmul %409, %408, %cst_132 {dimension_numbers = #tpu.dot_dimension_numbers<[1], [0], [0], [1], [0, 0, 1, 1], [], []>} : vector<32x32xf32>, vector<32x1xf32>, vector<32x1xf32> -> vector<32x1xf32>
    %c256 = arith.constant 256 : index
    %c0_133 = arith.constant 0 : index
    %411 = vector.load %arg2[%c256, %c0_133] : memref<464x144xf32, #tpu.memory_space<vmem>>, vector<32x1xf32>
    %412 = arith.addf %410, %411 : vector<32x1xf32>
    %413 = vector.broadcast %412 : vector<32x1xf32> to vector<32x256xf32>
    %414 = arith.mulf %413, %404 : vector<32x256xf32>
    %cst_134 = arith.constant dense<0xFF800000> : vector<256xf32>
    %415 = vector.multi_reduction <maximumf>, %414, %cst_134 [0] : vector<32x256xf32> to vector<256xf32>
    %416 = vector.shape_cast %415 : vector<256xf32> to vector<1x256xf32>
    %cst_135 = arith.constant dense<0.000000e+00> : vector<256xf32>
    %417 = vector.multi_reduction <add>, %414, %cst_135 [0] : vector<32x256xf32> to vector<256xf32>
    %418 = vector.shape_cast %417 : vector<256xf32> to vector<1x256xf32>
    %cst_136 = arith.constant 3.200000e+01 : f32
    %419 = vector.broadcast %cst_136 : f32 to vector<1x256xf32>
    %420 = arith.divf %418, %419 : vector<1x256xf32>
    %421 = tpu.iota {dimensions = array<i32: 0>} : vector<2x256xi32>
    %c0_i32_137 = arith.constant 0 : i32
    %422 = vector.broadcast %c0_i32_137 : i32 to vector<2x256xi32>
    %423 = arith.cmpi eq, %421, %422 : vector<2x256xi32>
    %424 = vector.shape_cast %416 : vector<1x256xf32> to vector<1x256xf32>
    %425 = vector.broadcast %424 : vector<1x256xf32> to vector<2x256xf32>
    %426 = vector.shape_cast %420 : vector<1x256xf32> to vector<1x256xf32>
    %427 = vector.broadcast %426 : vector<1x256xf32> to vector<2x256xf32>
    %428 = arith.select %423, %425, %427 : vector<2x256xi1>, vector<2x256xf32>
    %c288 = arith.constant 288 : index
    %c0_138 = arith.constant 0 : index
    %429 = vector.load %arg2[%c288, %c0_138] : memref<464x144xf32, #tpu.memory_space<vmem>>, vector<2x25xf32>
    %c296 = arith.constant 296 : index
    %c0_139 = arith.constant 0 : index
    %430 = vector.load %arg2[%c296, %c0_139] : memref<464x144xf32, #tpu.memory_space<vmem>>, vector<2x1xf32>
    %cst_140 = arith.constant 0.000000e+00 : f32
    %431 = vector.broadcast %cst_140 : f32 to vector<2x256xf32>
    %c34_i32 = arith.constant 34 : i32
    %432 = tpu.dynamic_rotate %428 by %c34_i32 dim 1 : vector<2x256xf32>, i32 -> vector<2x256xf32>
    %c-2_i32 = arith.constant -2 : i32
    %433 = vector.broadcast %c-2_i32 : i32 to vector<1x256xi32>
    %434 = arith.addi %5, %433 : vector<1x256xi32>
    %c0_i32_141 = arith.constant 0 : i32
    %435 = vector.broadcast %c0_i32_141 : i32 to vector<1x256xi32>
    %436 = arith.cmpi sge, %434, %435 : vector<1x256xi32>
    %c-2_i32_142 = arith.constant -2 : i32
    %437 = vector.broadcast %c-2_i32_142 : i32 to vector<1x256xi32>
    %438 = arith.addi %5, %437 : vector<1x256xi32>
    %c16_i32_143 = arith.constant 16 : i32
    %439 = vector.broadcast %c16_i32_143 : i32 to vector<1x256xi32>
    %440 = arith.cmpi slt, %438, %439 : vector<1x256xi32>
    %441 = arith.andi %436, %440 : vector<1x256xi1>
    %c-2_i32_144 = arith.constant -2 : i32
    %442 = vector.broadcast %c-2_i32_144 : i32 to vector<1x256xi32>
    %443 = arith.addi %7, %442 : vector<1x256xi32>
    %c0_i32_145 = arith.constant 0 : i32
    %444 = vector.broadcast %c0_i32_145 : i32 to vector<1x256xi32>
    %445 = arith.cmpi sge, %443, %444 : vector<1x256xi32>
    %446 = arith.andi %441, %445 : vector<1x256xi1>
    %c-2_i32_146 = arith.constant -2 : i32
    %447 = vector.broadcast %c-2_i32_146 : i32 to vector<1x256xi32>
    %448 = arith.addi %7, %447 : vector<1x256xi32>
    %c16_i32_147 = arith.constant 16 : i32
    %449 = vector.broadcast %c16_i32_147 : i32 to vector<1x256xi32>
    %450 = arith.cmpi slt, %448, %449 : vector<1x256xi32>
    %451 = arith.andi %446, %450 : vector<1x256xi1>
    %cst_148 = arith.constant 1.000000e+00 : f32
    %cst_149 = arith.constant 0.000000e+00 : f32
    %452 = vector.broadcast %cst_148 : f32 to vector<1x256xf32>
    %453 = vector.broadcast %cst_149 : f32 to vector<1x256xf32>
    %454 = arith.select %451, %452, %453 : vector<1x256xi1>, vector<1x256xf32>
    %455 = vector.broadcast %454 : vector<1x256xf32> to vector<2x256xf32>
    %456 = arith.mulf %432, %455 : vector<2x256xf32>
    %457 = vector.extract_strided_slice %429 {offsets = [0, 0], sizes = [2, 1], strides = [1, 1]} : vector<2x25xf32> to vector<2x1xf32>
    %458 = vector.broadcast %457 : vector<2x1xf32> to vector<2x256xf32>
    %459 = arith.mulf %456, %458 : vector<2x256xf32>
    %460 = arith.addf %431, %459 : vector<2x256xf32>
    %c33_i32 = arith.constant 33 : i32
    %461 = tpu.dynamic_rotate %428 by %c33_i32 dim 1 : vector<2x256xf32>, i32 -> vector<2x256xf32>
    %c-2_i32_150 = arith.constant -2 : i32
    %462 = vector.broadcast %c-2_i32_150 : i32 to vector<1x256xi32>
    %463 = arith.addi %5, %462 : vector<1x256xi32>
    %c0_i32_151 = arith.constant 0 : i32
    %464 = vector.broadcast %c0_i32_151 : i32 to vector<1x256xi32>
    %465 = arith.cmpi sge, %463, %464 : vector<1x256xi32>
    %c-2_i32_152 = arith.constant -2 : i32
    %466 = vector.broadcast %c-2_i32_152 : i32 to vector<1x256xi32>
    %467 = arith.addi %5, %466 : vector<1x256xi32>
    %c16_i32_153 = arith.constant 16 : i32
    %468 = vector.broadcast %c16_i32_153 : i32 to vector<1x256xi32>
    %469 = arith.cmpi slt, %467, %468 : vector<1x256xi32>
    %470 = arith.andi %465, %469 : vector<1x256xi1>
    %c-1_i32_154 = arith.constant -1 : i32
    %471 = vector.broadcast %c-1_i32_154 : i32 to vector<1x256xi32>
    %472 = arith.addi %7, %471 : vector<1x256xi32>
    %c0_i32_155 = arith.constant 0 : i32
    %473 = vector.broadcast %c0_i32_155 : i32 to vector<1x256xi32>
    %474 = arith.cmpi sge, %472, %473 : vector<1x256xi32>
    %475 = arith.andi %470, %474 : vector<1x256xi1>
    %c-1_i32_156 = arith.constant -1 : i32
    %476 = vector.broadcast %c-1_i32_156 : i32 to vector<1x256xi32>
    %477 = arith.addi %7, %476 : vector<1x256xi32>
    %c16_i32_157 = arith.constant 16 : i32
    %478 = vector.broadcast %c16_i32_157 : i32 to vector<1x256xi32>
    %479 = arith.cmpi slt, %477, %478 : vector<1x256xi32>
    %480 = arith.andi %475, %479 : vector<1x256xi1>
    %cst_158 = arith.constant 1.000000e+00 : f32
    %cst_159 = arith.constant 0.000000e+00 : f32
    %481 = vector.broadcast %cst_158 : f32 to vector<1x256xf32>
    %482 = vector.broadcast %cst_159 : f32 to vector<1x256xf32>
    %483 = arith.select %480, %481, %482 : vector<1x256xi1>, vector<1x256xf32>
    %484 = vector.broadcast %483 : vector<1x256xf32> to vector<2x256xf32>
    %485 = arith.mulf %461, %484 : vector<2x256xf32>
    %486 = vector.extract_strided_slice %429 {offsets = [0, 1], sizes = [2, 1], strides = [1, 1]} : vector<2x25xf32> to vector<2x1xf32>
    %487 = vector.broadcast %486 : vector<2x1xf32> to vector<2x256xf32>
    %488 = arith.mulf %485, %487 : vector<2x256xf32>
    %489 = arith.addf %460, %488 : vector<2x256xf32>
    %c32_i32 = arith.constant 32 : i32
    %490 = tpu.dynamic_rotate %428 by %c32_i32 dim 1 : vector<2x256xf32>, i32 -> vector<2x256xf32>
    %c-2_i32_160 = arith.constant -2 : i32
    %491 = vector.broadcast %c-2_i32_160 : i32 to vector<1x256xi32>
    %492 = arith.addi %5, %491 : vector<1x256xi32>
    %c0_i32_161 = arith.constant 0 : i32
    %493 = vector.broadcast %c0_i32_161 : i32 to vector<1x256xi32>
    %494 = arith.cmpi sge, %492, %493 : vector<1x256xi32>
    %c-2_i32_162 = arith.constant -2 : i32
    %495 = vector.broadcast %c-2_i32_162 : i32 to vector<1x256xi32>
    %496 = arith.addi %5, %495 : vector<1x256xi32>
    %c16_i32_163 = arith.constant 16 : i32
    %497 = vector.broadcast %c16_i32_163 : i32 to vector<1x256xi32>
    %498 = arith.cmpi slt, %496, %497 : vector<1x256xi32>
    %499 = arith.andi %494, %498 : vector<1x256xi1>
    %c0_i32_164 = arith.constant 0 : i32
    %500 = vector.broadcast %c0_i32_164 : i32 to vector<1x256xi32>
    %501 = arith.addi %7, %500 : vector<1x256xi32>
    %c0_i32_165 = arith.constant 0 : i32
    %502 = vector.broadcast %c0_i32_165 : i32 to vector<1x256xi32>
    %503 = arith.cmpi sge, %501, %502 : vector<1x256xi32>
    %504 = arith.andi %499, %503 : vector<1x256xi1>
    %c0_i32_166 = arith.constant 0 : i32
    %505 = vector.broadcast %c0_i32_166 : i32 to vector<1x256xi32>
    %506 = arith.addi %7, %505 : vector<1x256xi32>
    %c16_i32_167 = arith.constant 16 : i32
    %507 = vector.broadcast %c16_i32_167 : i32 to vector<1x256xi32>
    %508 = arith.cmpi slt, %506, %507 : vector<1x256xi32>
    %509 = arith.andi %504, %508 : vector<1x256xi1>
    %cst_168 = arith.constant 1.000000e+00 : f32
    %cst_169 = arith.constant 0.000000e+00 : f32
    %510 = vector.broadcast %cst_168 : f32 to vector<1x256xf32>
    %511 = vector.broadcast %cst_169 : f32 to vector<1x256xf32>
    %512 = arith.select %509, %510, %511 : vector<1x256xi1>, vector<1x256xf32>
    %513 = vector.broadcast %512 : vector<1x256xf32> to vector<2x256xf32>
    %514 = arith.mulf %490, %513 : vector<2x256xf32>
    %515 = vector.extract_strided_slice %429 {offsets = [0, 2], sizes = [2, 1], strides = [1, 1]} : vector<2x25xf32> to vector<2x1xf32>
    %516 = vector.broadcast %515 : vector<2x1xf32> to vector<2x256xf32>
    %517 = arith.mulf %514, %516 : vector<2x256xf32>
    %518 = arith.addf %489, %517 : vector<2x256xf32>
    %c31_i32 = arith.constant 31 : i32
    %519 = tpu.dynamic_rotate %428 by %c31_i32 dim 1 : vector<2x256xf32>, i32 -> vector<2x256xf32>
    %c-2_i32_170 = arith.constant -2 : i32
    %520 = vector.broadcast %c-2_i32_170 : i32 to vector<1x256xi32>
    %521 = arith.addi %5, %520 : vector<1x256xi32>
    %c0_i32_171 = arith.constant 0 : i32
    %522 = vector.broadcast %c0_i32_171 : i32 to vector<1x256xi32>
    %523 = arith.cmpi sge, %521, %522 : vector<1x256xi32>
    %c-2_i32_172 = arith.constant -2 : i32
    %524 = vector.broadcast %c-2_i32_172 : i32 to vector<1x256xi32>
    %525 = arith.addi %5, %524 : vector<1x256xi32>
    %c16_i32_173 = arith.constant 16 : i32
    %526 = vector.broadcast %c16_i32_173 : i32 to vector<1x256xi32>
    %527 = arith.cmpi slt, %525, %526 : vector<1x256xi32>
    %528 = arith.andi %523, %527 : vector<1x256xi1>
    %c1_i32_174 = arith.constant 1 : i32
    %529 = vector.broadcast %c1_i32_174 : i32 to vector<1x256xi32>
    %530 = arith.addi %7, %529 : vector<1x256xi32>
    %c0_i32_175 = arith.constant 0 : i32
    %531 = vector.broadcast %c0_i32_175 : i32 to vector<1x256xi32>
    %532 = arith.cmpi sge, %530, %531 : vector<1x256xi32>
    %533 = arith.andi %528, %532 : vector<1x256xi1>
    %c1_i32_176 = arith.constant 1 : i32
    %534 = vector.broadcast %c1_i32_176 : i32 to vector<1x256xi32>
    %535 = arith.addi %7, %534 : vector<1x256xi32>
    %c16_i32_177 = arith.constant 16 : i32
    %536 = vector.broadcast %c16_i32_177 : i32 to vector<1x256xi32>
    %537 = arith.cmpi slt, %535, %536 : vector<1x256xi32>
    %538 = arith.andi %533, %537 : vector<1x256xi1>
    %cst_178 = arith.constant 1.000000e+00 : f32
    %cst_179 = arith.constant 0.000000e+00 : f32
    %539 = vector.broadcast %cst_178 : f32 to vector<1x256xf32>
    %540 = vector.broadcast %cst_179 : f32 to vector<1x256xf32>
    %541 = arith.select %538, %539, %540 : vector<1x256xi1>, vector<1x256xf32>
    %542 = vector.broadcast %541 : vector<1x256xf32> to vector<2x256xf32>
    %543 = arith.mulf %519, %542 : vector<2x256xf32>
    %544 = vector.extract_strided_slice %429 {offsets = [0, 3], sizes = [2, 1], strides = [1, 1]} : vector<2x25xf32> to vector<2x1xf32>
    %545 = vector.broadcast %544 : vector<2x1xf32> to vector<2x256xf32>
    %546 = arith.mulf %543, %545 : vector<2x256xf32>
    %547 = arith.addf %518, %546 : vector<2x256xf32>
    %c30_i32 = arith.constant 30 : i32
    %548 = tpu.dynamic_rotate %428 by %c30_i32 dim 1 : vector<2x256xf32>, i32 -> vector<2x256xf32>
    %c-2_i32_180 = arith.constant -2 : i32
    %549 = vector.broadcast %c-2_i32_180 : i32 to vector<1x256xi32>
    %550 = arith.addi %5, %549 : vector<1x256xi32>
    %c0_i32_181 = arith.constant 0 : i32
    %551 = vector.broadcast %c0_i32_181 : i32 to vector<1x256xi32>
    %552 = arith.cmpi sge, %550, %551 : vector<1x256xi32>
    %c-2_i32_182 = arith.constant -2 : i32
    %553 = vector.broadcast %c-2_i32_182 : i32 to vector<1x256xi32>
    %554 = arith.addi %5, %553 : vector<1x256xi32>
    %c16_i32_183 = arith.constant 16 : i32
    %555 = vector.broadcast %c16_i32_183 : i32 to vector<1x256xi32>
    %556 = arith.cmpi slt, %554, %555 : vector<1x256xi32>
    %557 = arith.andi %552, %556 : vector<1x256xi1>
    %c2_i32 = arith.constant 2 : i32
    %558 = vector.broadcast %c2_i32 : i32 to vector<1x256xi32>
    %559 = arith.addi %7, %558 : vector<1x256xi32>
    %c0_i32_184 = arith.constant 0 : i32
    %560 = vector.broadcast %c0_i32_184 : i32 to vector<1x256xi32>
    %561 = arith.cmpi sge, %559, %560 : vector<1x256xi32>
    %562 = arith.andi %557, %561 : vector<1x256xi1>
    %c2_i32_185 = arith.constant 2 : i32
    %563 = vector.broadcast %c2_i32_185 : i32 to vector<1x256xi32>
    %564 = arith.addi %7, %563 : vector<1x256xi32>
    %c16_i32_186 = arith.constant 16 : i32
    %565 = vector.broadcast %c16_i32_186 : i32 to vector<1x256xi32>
    %566 = arith.cmpi slt, %564, %565 : vector<1x256xi32>
    %567 = arith.andi %562, %566 : vector<1x256xi1>
    %cst_187 = arith.constant 1.000000e+00 : f32
    %cst_188 = arith.constant 0.000000e+00 : f32
    %568 = vector.broadcast %cst_187 : f32 to vector<1x256xf32>
    %569 = vector.broadcast %cst_188 : f32 to vector<1x256xf32>
    %570 = arith.select %567, %568, %569 : vector<1x256xi1>, vector<1x256xf32>
    %571 = vector.broadcast %570 : vector<1x256xf32> to vector<2x256xf32>
    %572 = arith.mulf %548, %571 : vector<2x256xf32>
    %573 = vector.extract_strided_slice %429 {offsets = [0, 4], sizes = [2, 1], strides = [1, 1]} : vector<2x25xf32> to vector<2x1xf32>
    %574 = vector.broadcast %573 : vector<2x1xf32> to vector<2x256xf32>
    %575 = arith.mulf %572, %574 : vector<2x256xf32>
    %576 = arith.addf %547, %575 : vector<2x256xf32>
    %c18_i32 = arith.constant 18 : i32
    %577 = tpu.dynamic_rotate %428 by %c18_i32 dim 1 : vector<2x256xf32>, i32 -> vector<2x256xf32>
    %c-1_i32_189 = arith.constant -1 : i32
    %578 = vector.broadcast %c-1_i32_189 : i32 to vector<1x256xi32>
    %579 = arith.addi %5, %578 : vector<1x256xi32>
    %c0_i32_190 = arith.constant 0 : i32
    %580 = vector.broadcast %c0_i32_190 : i32 to vector<1x256xi32>
    %581 = arith.cmpi sge, %579, %580 : vector<1x256xi32>
    %c-1_i32_191 = arith.constant -1 : i32
    %582 = vector.broadcast %c-1_i32_191 : i32 to vector<1x256xi32>
    %583 = arith.addi %5, %582 : vector<1x256xi32>
    %c16_i32_192 = arith.constant 16 : i32
    %584 = vector.broadcast %c16_i32_192 : i32 to vector<1x256xi32>
    %585 = arith.cmpi slt, %583, %584 : vector<1x256xi32>
    %586 = arith.andi %581, %585 : vector<1x256xi1>
    %c-2_i32_193 = arith.constant -2 : i32
    %587 = vector.broadcast %c-2_i32_193 : i32 to vector<1x256xi32>
    %588 = arith.addi %7, %587 : vector<1x256xi32>
    %c0_i32_194 = arith.constant 0 : i32
    %589 = vector.broadcast %c0_i32_194 : i32 to vector<1x256xi32>
    %590 = arith.cmpi sge, %588, %589 : vector<1x256xi32>
    %591 = arith.andi %586, %590 : vector<1x256xi1>
    %c-2_i32_195 = arith.constant -2 : i32
    %592 = vector.broadcast %c-2_i32_195 : i32 to vector<1x256xi32>
    %593 = arith.addi %7, %592 : vector<1x256xi32>
    %c16_i32_196 = arith.constant 16 : i32
    %594 = vector.broadcast %c16_i32_196 : i32 to vector<1x256xi32>
    %595 = arith.cmpi slt, %593, %594 : vector<1x256xi32>
    %596 = arith.andi %591, %595 : vector<1x256xi1>
    %cst_197 = arith.constant 1.000000e+00 : f32
    %cst_198 = arith.constant 0.000000e+00 : f32
    %597 = vector.broadcast %cst_197 : f32 to vector<1x256xf32>
    %598 = vector.broadcast %cst_198 : f32 to vector<1x256xf32>
    %599 = arith.select %596, %597, %598 : vector<1x256xi1>, vector<1x256xf32>
    %600 = vector.broadcast %599 : vector<1x256xf32> to vector<2x256xf32>
    %601 = arith.mulf %577, %600 : vector<2x256xf32>
    %602 = vector.extract_strided_slice %429 {offsets = [0, 5], sizes = [2, 1], strides = [1, 1]} : vector<2x25xf32> to vector<2x1xf32>
    %603 = vector.broadcast %602 : vector<2x1xf32> to vector<2x256xf32>
    %604 = arith.mulf %601, %603 : vector<2x256xf32>
    %605 = arith.addf %576, %604 : vector<2x256xf32>
    %c17_i32_199 = arith.constant 17 : i32
    %606 = tpu.dynamic_rotate %428 by %c17_i32_199 dim 1 : vector<2x256xf32>, i32 -> vector<2x256xf32>
    %607 = vector.broadcast %32 : vector<1x256xf32> to vector<2x256xf32>
    %608 = arith.mulf %606, %607 : vector<2x256xf32>
    %609 = vector.extract_strided_slice %429 {offsets = [0, 6], sizes = [2, 1], strides = [1, 1]} : vector<2x25xf32> to vector<2x1xf32>
    %610 = vector.broadcast %609 : vector<2x1xf32> to vector<2x256xf32>
    %611 = arith.mulf %608, %610 : vector<2x256xf32>
    %612 = arith.addf %605, %611 : vector<2x256xf32>
    %c16_i32_200 = arith.constant 16 : i32
    %613 = tpu.dynamic_rotate %428 by %c16_i32_200 dim 1 : vector<2x256xf32>, i32 -> vector<2x256xf32>
    %614 = vector.broadcast %57 : vector<1x256xf32> to vector<2x256xf32>
    %615 = arith.mulf %613, %614 : vector<2x256xf32>
    %616 = vector.extract_strided_slice %429 {offsets = [0, 7], sizes = [2, 1], strides = [1, 1]} : vector<2x25xf32> to vector<2x1xf32>
    %617 = vector.broadcast %616 : vector<2x1xf32> to vector<2x256xf32>
    %618 = arith.mulf %615, %617 : vector<2x256xf32>
    %619 = arith.addf %612, %618 : vector<2x256xf32>
    %c15_i32_201 = arith.constant 15 : i32
    %620 = tpu.dynamic_rotate %428 by %c15_i32_201 dim 1 : vector<2x256xf32>, i32 -> vector<2x256xf32>
    %621 = vector.broadcast %82 : vector<1x256xf32> to vector<2x256xf32>
    %622 = arith.mulf %620, %621 : vector<2x256xf32>
    %623 = vector.extract_strided_slice %429 {offsets = [0, 8], sizes = [2, 1], strides = [1, 1]} : vector<2x25xf32> to vector<2x1xf32>
    %624 = vector.broadcast %623 : vector<2x1xf32> to vector<2x256xf32>
    %625 = arith.mulf %622, %624 : vector<2x256xf32>
    %626 = arith.addf %619, %625 : vector<2x256xf32>
    %c14_i32 = arith.constant 14 : i32
    %627 = tpu.dynamic_rotate %428 by %c14_i32 dim 1 : vector<2x256xf32>, i32 -> vector<2x256xf32>
    %c-1_i32_202 = arith.constant -1 : i32
    %628 = vector.broadcast %c-1_i32_202 : i32 to vector<1x256xi32>
    %629 = arith.addi %5, %628 : vector<1x256xi32>
    %c0_i32_203 = arith.constant 0 : i32
    %630 = vector.broadcast %c0_i32_203 : i32 to vector<1x256xi32>
    %631 = arith.cmpi sge, %629, %630 : vector<1x256xi32>
    %c-1_i32_204 = arith.constant -1 : i32
    %632 = vector.broadcast %c-1_i32_204 : i32 to vector<1x256xi32>
    %633 = arith.addi %5, %632 : vector<1x256xi32>
    %c16_i32_205 = arith.constant 16 : i32
    %634 = vector.broadcast %c16_i32_205 : i32 to vector<1x256xi32>
    %635 = arith.cmpi slt, %633, %634 : vector<1x256xi32>
    %636 = arith.andi %631, %635 : vector<1x256xi1>
    %c2_i32_206 = arith.constant 2 : i32
    %637 = vector.broadcast %c2_i32_206 : i32 to vector<1x256xi32>
    %638 = arith.addi %7, %637 : vector<1x256xi32>
    %c0_i32_207 = arith.constant 0 : i32
    %639 = vector.broadcast %c0_i32_207 : i32 to vector<1x256xi32>
    %640 = arith.cmpi sge, %638, %639 : vector<1x256xi32>
    %641 = arith.andi %636, %640 : vector<1x256xi1>
    %c2_i32_208 = arith.constant 2 : i32
    %642 = vector.broadcast %c2_i32_208 : i32 to vector<1x256xi32>
    %643 = arith.addi %7, %642 : vector<1x256xi32>
    %c16_i32_209 = arith.constant 16 : i32
    %644 = vector.broadcast %c16_i32_209 : i32 to vector<1x256xi32>
    %645 = arith.cmpi slt, %643, %644 : vector<1x256xi32>
    %646 = arith.andi %641, %645 : vector<1x256xi1>
    %cst_210 = arith.constant 1.000000e+00 : f32
    %cst_211 = arith.constant 0.000000e+00 : f32
    %647 = vector.broadcast %cst_210 : f32 to vector<1x256xf32>
    %648 = vector.broadcast %cst_211 : f32 to vector<1x256xf32>
    %649 = arith.select %646, %647, %648 : vector<1x256xi1>, vector<1x256xf32>
    %650 = vector.broadcast %649 : vector<1x256xf32> to vector<2x256xf32>
    %651 = arith.mulf %627, %650 : vector<2x256xf32>
    %652 = vector.extract_strided_slice %429 {offsets = [0, 9], sizes = [2, 1], strides = [1, 1]} : vector<2x25xf32> to vector<2x1xf32>
    %653 = vector.broadcast %652 : vector<2x1xf32> to vector<2x256xf32>
    %654 = arith.mulf %651, %653 : vector<2x256xf32>
    %655 = arith.addf %626, %654 : vector<2x256xf32>
    %c2_i32_212 = arith.constant 2 : i32
    %656 = tpu.dynamic_rotate %428 by %c2_i32_212 dim 1 : vector<2x256xf32>, i32 -> vector<2x256xf32>
    %c0_i32_213 = arith.constant 0 : i32
    %657 = vector.broadcast %c0_i32_213 : i32 to vector<1x256xi32>
    %658 = arith.addi %5, %657 : vector<1x256xi32>
    %c0_i32_214 = arith.constant 0 : i32
    %659 = vector.broadcast %c0_i32_214 : i32 to vector<1x256xi32>
    %660 = arith.cmpi sge, %658, %659 : vector<1x256xi32>
    %c0_i32_215 = arith.constant 0 : i32
    %661 = vector.broadcast %c0_i32_215 : i32 to vector<1x256xi32>
    %662 = arith.addi %5, %661 : vector<1x256xi32>
    %c16_i32_216 = arith.constant 16 : i32
    %663 = vector.broadcast %c16_i32_216 : i32 to vector<1x256xi32>
    %664 = arith.cmpi slt, %662, %663 : vector<1x256xi32>
    %665 = arith.andi %660, %664 : vector<1x256xi1>
    %c-2_i32_217 = arith.constant -2 : i32
    %666 = vector.broadcast %c-2_i32_217 : i32 to vector<1x256xi32>
    %667 = arith.addi %7, %666 : vector<1x256xi32>
    %c0_i32_218 = arith.constant 0 : i32
    %668 = vector.broadcast %c0_i32_218 : i32 to vector<1x256xi32>
    %669 = arith.cmpi sge, %667, %668 : vector<1x256xi32>
    %670 = arith.andi %665, %669 : vector<1x256xi1>
    %c-2_i32_219 = arith.constant -2 : i32
    %671 = vector.broadcast %c-2_i32_219 : i32 to vector<1x256xi32>
    %672 = arith.addi %7, %671 : vector<1x256xi32>
    %c16_i32_220 = arith.constant 16 : i32
    %673 = vector.broadcast %c16_i32_220 : i32 to vector<1x256xi32>
    %674 = arith.cmpi slt, %672, %673 : vector<1x256xi32>
    %675 = arith.andi %670, %674 : vector<1x256xi1>
    %cst_221 = arith.constant 1.000000e+00 : f32
    %cst_222 = arith.constant 0.000000e+00 : f32
    %676 = vector.broadcast %cst_221 : f32 to vector<1x256xf32>
    %677 = vector.broadcast %cst_222 : f32 to vector<1x256xf32>
    %678 = arith.select %675, %676, %677 : vector<1x256xi1>, vector<1x256xf32>
    %679 = vector.broadcast %678 : vector<1x256xf32> to vector<2x256xf32>
    %680 = arith.mulf %656, %679 : vector<2x256xf32>
    %681 = vector.extract_strided_slice %429 {offsets = [0, 10], sizes = [2, 1], strides = [1, 1]} : vector<2x25xf32> to vector<2x1xf32>
    %682 = vector.broadcast %681 : vector<2x1xf32> to vector<2x256xf32>
    %683 = arith.mulf %680, %682 : vector<2x256xf32>
    %684 = arith.addf %655, %683 : vector<2x256xf32>
    %c1_i32_223 = arith.constant 1 : i32
    %685 = tpu.dynamic_rotate %428 by %c1_i32_223 dim 1 : vector<2x256xf32>, i32 -> vector<2x256xf32>
    %686 = vector.broadcast %107 : vector<1x256xf32> to vector<2x256xf32>
    %687 = arith.mulf %685, %686 : vector<2x256xf32>
    %688 = vector.extract_strided_slice %429 {offsets = [0, 11], sizes = [2, 1], strides = [1, 1]} : vector<2x25xf32> to vector<2x1xf32>
    %689 = vector.broadcast %688 : vector<2x1xf32> to vector<2x256xf32>
    %690 = arith.mulf %687, %689 : vector<2x256xf32>
    %691 = arith.addf %684, %690 : vector<2x256xf32>
    %692 = vector.extract_strided_slice %429 {offsets = [0, 12], sizes = [2, 1], strides = [1, 1]} : vector<2x25xf32> to vector<2x1xf32>
    %693 = vector.broadcast %692 : vector<2x1xf32> to vector<2x256xf32>
    %694 = arith.mulf %428, %693 : vector<2x256xf32>
    %695 = arith.addf %691, %694 : vector<2x256xf32>
    %c255_i32_224 = arith.constant 255 : i32
    %696 = tpu.dynamic_rotate %428 by %c255_i32_224 dim 1 : vector<2x256xf32>, i32 -> vector<2x256xf32>
    %697 = vector.broadcast %132 : vector<1x256xf32> to vector<2x256xf32>
    %698 = arith.mulf %696, %697 : vector<2x256xf32>
    %699 = vector.extract_strided_slice %429 {offsets = [0, 13], sizes = [2, 1], strides = [1, 1]} : vector<2x25xf32> to vector<2x1xf32>
    %700 = vector.broadcast %699 : vector<2x1xf32> to vector<2x256xf32>
    %701 = arith.mulf %698, %700 : vector<2x256xf32>
    %702 = arith.addf %695, %701 : vector<2x256xf32>
    %c254_i32 = arith.constant 254 : i32
    %703 = tpu.dynamic_rotate %428 by %c254_i32 dim 1 : vector<2x256xf32>, i32 -> vector<2x256xf32>
    %c0_i32_225 = arith.constant 0 : i32
    %704 = vector.broadcast %c0_i32_225 : i32 to vector<1x256xi32>
    %705 = arith.addi %5, %704 : vector<1x256xi32>
    %c0_i32_226 = arith.constant 0 : i32
    %706 = vector.broadcast %c0_i32_226 : i32 to vector<1x256xi32>
    %707 = arith.cmpi sge, %705, %706 : vector<1x256xi32>
    %c0_i32_227 = arith.constant 0 : i32
    %708 = vector.broadcast %c0_i32_227 : i32 to vector<1x256xi32>
    %709 = arith.addi %5, %708 : vector<1x256xi32>
    %c16_i32_228 = arith.constant 16 : i32
    %710 = vector.broadcast %c16_i32_228 : i32 to vector<1x256xi32>
    %711 = arith.cmpi slt, %709, %710 : vector<1x256xi32>
    %712 = arith.andi %707, %711 : vector<1x256xi1>
    %c2_i32_229 = arith.constant 2 : i32
    %713 = vector.broadcast %c2_i32_229 : i32 to vector<1x256xi32>
    %714 = arith.addi %7, %713 : vector<1x256xi32>
    %c0_i32_230 = arith.constant 0 : i32
    %715 = vector.broadcast %c0_i32_230 : i32 to vector<1x256xi32>
    %716 = arith.cmpi sge, %714, %715 : vector<1x256xi32>
    %717 = arith.andi %712, %716 : vector<1x256xi1>
    %c2_i32_231 = arith.constant 2 : i32
    %718 = vector.broadcast %c2_i32_231 : i32 to vector<1x256xi32>
    %719 = arith.addi %7, %718 : vector<1x256xi32>
    %c16_i32_232 = arith.constant 16 : i32
    %720 = vector.broadcast %c16_i32_232 : i32 to vector<1x256xi32>
    %721 = arith.cmpi slt, %719, %720 : vector<1x256xi32>
    %722 = arith.andi %717, %721 : vector<1x256xi1>
    %cst_233 = arith.constant 1.000000e+00 : f32
    %cst_234 = arith.constant 0.000000e+00 : f32
    %723 = vector.broadcast %cst_233 : f32 to vector<1x256xf32>
    %724 = vector.broadcast %cst_234 : f32 to vector<1x256xf32>
    %725 = arith.select %722, %723, %724 : vector<1x256xi1>, vector<1x256xf32>
    %726 = vector.broadcast %725 : vector<1x256xf32> to vector<2x256xf32>
    %727 = arith.mulf %703, %726 : vector<2x256xf32>
    %728 = vector.extract_strided_slice %429 {offsets = [0, 14], sizes = [2, 1], strides = [1, 1]} : vector<2x25xf32> to vector<2x1xf32>
    %729 = vector.broadcast %728 : vector<2x1xf32> to vector<2x256xf32>
    %730 = arith.mulf %727, %729 : vector<2x256xf32>
    %731 = arith.addf %702, %730 : vector<2x256xf32>
    %c242_i32 = arith.constant 242 : i32
    %732 = tpu.dynamic_rotate %428 by %c242_i32 dim 1 : vector<2x256xf32>, i32 -> vector<2x256xf32>
    %c1_i32_235 = arith.constant 1 : i32
    %733 = vector.broadcast %c1_i32_235 : i32 to vector<1x256xi32>
    %734 = arith.addi %5, %733 : vector<1x256xi32>
    %c0_i32_236 = arith.constant 0 : i32
    %735 = vector.broadcast %c0_i32_236 : i32 to vector<1x256xi32>
    %736 = arith.cmpi sge, %734, %735 : vector<1x256xi32>
    %c1_i32_237 = arith.constant 1 : i32
    %737 = vector.broadcast %c1_i32_237 : i32 to vector<1x256xi32>
    %738 = arith.addi %5, %737 : vector<1x256xi32>
    %c16_i32_238 = arith.constant 16 : i32
    %739 = vector.broadcast %c16_i32_238 : i32 to vector<1x256xi32>
    %740 = arith.cmpi slt, %738, %739 : vector<1x256xi32>
    %741 = arith.andi %736, %740 : vector<1x256xi1>
    %c-2_i32_239 = arith.constant -2 : i32
    %742 = vector.broadcast %c-2_i32_239 : i32 to vector<1x256xi32>
    %743 = arith.addi %7, %742 : vector<1x256xi32>
    %c0_i32_240 = arith.constant 0 : i32
    %744 = vector.broadcast %c0_i32_240 : i32 to vector<1x256xi32>
    %745 = arith.cmpi sge, %743, %744 : vector<1x256xi32>
    %746 = arith.andi %741, %745 : vector<1x256xi1>
    %c-2_i32_241 = arith.constant -2 : i32
    %747 = vector.broadcast %c-2_i32_241 : i32 to vector<1x256xi32>
    %748 = arith.addi %7, %747 : vector<1x256xi32>
    %c16_i32_242 = arith.constant 16 : i32
    %749 = vector.broadcast %c16_i32_242 : i32 to vector<1x256xi32>
    %750 = arith.cmpi slt, %748, %749 : vector<1x256xi32>
    %751 = arith.andi %746, %750 : vector<1x256xi1>
    %cst_243 = arith.constant 1.000000e+00 : f32
    %cst_244 = arith.constant 0.000000e+00 : f32
    %752 = vector.broadcast %cst_243 : f32 to vector<1x256xf32>
    %753 = vector.broadcast %cst_244 : f32 to vector<1x256xf32>
    %754 = arith.select %751, %752, %753 : vector<1x256xi1>, vector<1x256xf32>
    %755 = vector.broadcast %754 : vector<1x256xf32> to vector<2x256xf32>
    %756 = arith.mulf %732, %755 : vector<2x256xf32>
    %757 = vector.extract_strided_slice %429 {offsets = [0, 15], sizes = [2, 1], strides = [1, 1]} : vector<2x25xf32> to vector<2x1xf32>
    %758 = vector.broadcast %757 : vector<2x1xf32> to vector<2x256xf32>
    %759 = arith.mulf %756, %758 : vector<2x256xf32>
    %760 = arith.addf %731, %759 : vector<2x256xf32>
    %c241_i32_245 = arith.constant 241 : i32
    %761 = tpu.dynamic_rotate %428 by %c241_i32_245 dim 1 : vector<2x256xf32>, i32 -> vector<2x256xf32>
    %762 = vector.broadcast %157 : vector<1x256xf32> to vector<2x256xf32>
    %763 = arith.mulf %761, %762 : vector<2x256xf32>
    %764 = vector.extract_strided_slice %429 {offsets = [0, 16], sizes = [2, 1], strides = [1, 1]} : vector<2x25xf32> to vector<2x1xf32>
    %765 = vector.broadcast %764 : vector<2x1xf32> to vector<2x256xf32>
    %766 = arith.mulf %763, %765 : vector<2x256xf32>
    %767 = arith.addf %760, %766 : vector<2x256xf32>
    %c240_i32_246 = arith.constant 240 : i32
    %768 = tpu.dynamic_rotate %428 by %c240_i32_246 dim 1 : vector<2x256xf32>, i32 -> vector<2x256xf32>
    %769 = vector.broadcast %182 : vector<1x256xf32> to vector<2x256xf32>
    %770 = arith.mulf %768, %769 : vector<2x256xf32>
    %771 = vector.extract_strided_slice %429 {offsets = [0, 17], sizes = [2, 1], strides = [1, 1]} : vector<2x25xf32> to vector<2x1xf32>
    %772 = vector.broadcast %771 : vector<2x1xf32> to vector<2x256xf32>
    %773 = arith.mulf %770, %772 : vector<2x256xf32>
    %774 = arith.addf %767, %773 : vector<2x256xf32>
    %c239_i32_247 = arith.constant 239 : i32
    %775 = tpu.dynamic_rotate %428 by %c239_i32_247 dim 1 : vector<2x256xf32>, i32 -> vector<2x256xf32>
    %776 = vector.broadcast %207 : vector<1x256xf32> to vector<2x256xf32>
    %777 = arith.mulf %775, %776 : vector<2x256xf32>
    %778 = vector.extract_strided_slice %429 {offsets = [0, 18], sizes = [2, 1], strides = [1, 1]} : vector<2x25xf32> to vector<2x1xf32>
    %779 = vector.broadcast %778 : vector<2x1xf32> to vector<2x256xf32>
    %780 = arith.mulf %777, %779 : vector<2x256xf32>
    %781 = arith.addf %774, %780 : vector<2x256xf32>
    %c238_i32 = arith.constant 238 : i32
    %782 = tpu.dynamic_rotate %428 by %c238_i32 dim 1 : vector<2x256xf32>, i32 -> vector<2x256xf32>
    %c1_i32_248 = arith.constant 1 : i32
    %783 = vector.broadcast %c1_i32_248 : i32 to vector<1x256xi32>
    %784 = arith.addi %5, %783 : vector<1x256xi32>
    %c0_i32_249 = arith.constant 0 : i32
    %785 = vector.broadcast %c0_i32_249 : i32 to vector<1x256xi32>
    %786 = arith.cmpi sge, %784, %785 : vector<1x256xi32>
    %c1_i32_250 = arith.constant 1 : i32
    %787 = vector.broadcast %c1_i32_250 : i32 to vector<1x256xi32>
    %788 = arith.addi %5, %787 : vector<1x256xi32>
    %c16_i32_251 = arith.constant 16 : i32
    %789 = vector.broadcast %c16_i32_251 : i32 to vector<1x256xi32>
    %790 = arith.cmpi slt, %788, %789 : vector<1x256xi32>
    %791 = arith.andi %786, %790 : vector<1x256xi1>
    %c2_i32_252 = arith.constant 2 : i32
    %792 = vector.broadcast %c2_i32_252 : i32 to vector<1x256xi32>
    %793 = arith.addi %7, %792 : vector<1x256xi32>
    %c0_i32_253 = arith.constant 0 : i32
    %794 = vector.broadcast %c0_i32_253 : i32 to vector<1x256xi32>
    %795 = arith.cmpi sge, %793, %794 : vector<1x256xi32>
    %796 = arith.andi %791, %795 : vector<1x256xi1>
    %c2_i32_254 = arith.constant 2 : i32
    %797 = vector.broadcast %c2_i32_254 : i32 to vector<1x256xi32>
    %798 = arith.addi %7, %797 : vector<1x256xi32>
    %c16_i32_255 = arith.constant 16 : i32
    %799 = vector.broadcast %c16_i32_255 : i32 to vector<1x256xi32>
    %800 = arith.cmpi slt, %798, %799 : vector<1x256xi32>
    %801 = arith.andi %796, %800 : vector<1x256xi1>
    %cst_256 = arith.constant 1.000000e+00 : f32
    %cst_257 = arith.constant 0.000000e+00 : f32
    %802 = vector.broadcast %cst_256 : f32 to vector<1x256xf32>
    %803 = vector.broadcast %cst_257 : f32 to vector<1x256xf32>
    %804 = arith.select %801, %802, %803 : vector<1x256xi1>, vector<1x256xf32>
    %805 = vector.broadcast %804 : vector<1x256xf32> to vector<2x256xf32>
    %806 = arith.mulf %782, %805 : vector<2x256xf32>
    %807 = vector.extract_strided_slice %429 {offsets = [0, 19], sizes = [2, 1], strides = [1, 1]} : vector<2x25xf32> to vector<2x1xf32>
    %808 = vector.broadcast %807 : vector<2x1xf32> to vector<2x256xf32>
    %809 = arith.mulf %806, %808 : vector<2x256xf32>
    %810 = arith.addf %781, %809 : vector<2x256xf32>
    %c226_i32 = arith.constant 226 : i32
    %811 = tpu.dynamic_rotate %428 by %c226_i32 dim 1 : vector<2x256xf32>, i32 -> vector<2x256xf32>
    %c2_i32_258 = arith.constant 2 : i32
    %812 = vector.broadcast %c2_i32_258 : i32 to vector<1x256xi32>
    %813 = arith.addi %5, %812 : vector<1x256xi32>
    %c0_i32_259 = arith.constant 0 : i32
    %814 = vector.broadcast %c0_i32_259 : i32 to vector<1x256xi32>
    %815 = arith.cmpi sge, %813, %814 : vector<1x256xi32>
    %c2_i32_260 = arith.constant 2 : i32
    %816 = vector.broadcast %c2_i32_260 : i32 to vector<1x256xi32>
    %817 = arith.addi %5, %816 : vector<1x256xi32>
    %c16_i32_261 = arith.constant 16 : i32
    %818 = vector.broadcast %c16_i32_261 : i32 to vector<1x256xi32>
    %819 = arith.cmpi slt, %817, %818 : vector<1x256xi32>
    %820 = arith.andi %815, %819 : vector<1x256xi1>
    %c-2_i32_262 = arith.constant -2 : i32
    %821 = vector.broadcast %c-2_i32_262 : i32 to vector<1x256xi32>
    %822 = arith.addi %7, %821 : vector<1x256xi32>
    %c0_i32_263 = arith.constant 0 : i32
    %823 = vector.broadcast %c0_i32_263 : i32 to vector<1x256xi32>
    %824 = arith.cmpi sge, %822, %823 : vector<1x256xi32>
    %825 = arith.andi %820, %824 : vector<1x256xi1>
    %c-2_i32_264 = arith.constant -2 : i32
    %826 = vector.broadcast %c-2_i32_264 : i32 to vector<1x256xi32>
    %827 = arith.addi %7, %826 : vector<1x256xi32>
    %c16_i32_265 = arith.constant 16 : i32
    %828 = vector.broadcast %c16_i32_265 : i32 to vector<1x256xi32>
    %829 = arith.cmpi slt, %827, %828 : vector<1x256xi32>
    %830 = arith.andi %825, %829 : vector<1x256xi1>
    %cst_266 = arith.constant 1.000000e+00 : f32
    %cst_267 = arith.constant 0.000000e+00 : f32
    %831 = vector.broadcast %cst_266 : f32 to vector<1x256xf32>
    %832 = vector.broadcast %cst_267 : f32 to vector<1x256xf32>
    %833 = arith.select %830, %831, %832 : vector<1x256xi1>, vector<1x256xf32>
    %834 = vector.broadcast %833 : vector<1x256xf32> to vector<2x256xf32>
    %835 = arith.mulf %811, %834 : vector<2x256xf32>
    %836 = vector.extract_strided_slice %429 {offsets = [0, 20], sizes = [2, 1], strides = [1, 1]} : vector<2x25xf32> to vector<2x1xf32>
    %837 = vector.broadcast %836 : vector<2x1xf32> to vector<2x256xf32>
    %838 = arith.mulf %835, %837 : vector<2x256xf32>
    %839 = arith.addf %810, %838 : vector<2x256xf32>
    %c225_i32 = arith.constant 225 : i32
    %840 = tpu.dynamic_rotate %428 by %c225_i32 dim 1 : vector<2x256xf32>, i32 -> vector<2x256xf32>
    %c2_i32_268 = arith.constant 2 : i32
    %841 = vector.broadcast %c2_i32_268 : i32 to vector<1x256xi32>
    %842 = arith.addi %5, %841 : vector<1x256xi32>
    %c0_i32_269 = arith.constant 0 : i32
    %843 = vector.broadcast %c0_i32_269 : i32 to vector<1x256xi32>
    %844 = arith.cmpi sge, %842, %843 : vector<1x256xi32>
    %c2_i32_270 = arith.constant 2 : i32
    %845 = vector.broadcast %c2_i32_270 : i32 to vector<1x256xi32>
    %846 = arith.addi %5, %845 : vector<1x256xi32>
    %c16_i32_271 = arith.constant 16 : i32
    %847 = vector.broadcast %c16_i32_271 : i32 to vector<1x256xi32>
    %848 = arith.cmpi slt, %846, %847 : vector<1x256xi32>
    %849 = arith.andi %844, %848 : vector<1x256xi1>
    %c-1_i32_272 = arith.constant -1 : i32
    %850 = vector.broadcast %c-1_i32_272 : i32 to vector<1x256xi32>
    %851 = arith.addi %7, %850 : vector<1x256xi32>
    %c0_i32_273 = arith.constant 0 : i32
    %852 = vector.broadcast %c0_i32_273 : i32 to vector<1x256xi32>
    %853 = arith.cmpi sge, %851, %852 : vector<1x256xi32>
    %854 = arith.andi %849, %853 : vector<1x256xi1>
    %c-1_i32_274 = arith.constant -1 : i32
    %855 = vector.broadcast %c-1_i32_274 : i32 to vector<1x256xi32>
    %856 = arith.addi %7, %855 : vector<1x256xi32>
    %c16_i32_275 = arith.constant 16 : i32
    %857 = vector.broadcast %c16_i32_275 : i32 to vector<1x256xi32>
    %858 = arith.cmpi slt, %856, %857 : vector<1x256xi32>
    %859 = arith.andi %854, %858 : vector<1x256xi1>
    %cst_276 = arith.constant 1.000000e+00 : f32
    %cst_277 = arith.constant 0.000000e+00 : f32
    %860 = vector.broadcast %cst_276 : f32 to vector<1x256xf32>
    %861 = vector.broadcast %cst_277 : f32 to vector<1x256xf32>
    %862 = arith.select %859, %860, %861 : vector<1x256xi1>, vector<1x256xf32>
    %863 = vector.broadcast %862 : vector<1x256xf32> to vector<2x256xf32>
    %864 = arith.mulf %840, %863 : vector<2x256xf32>
    %865 = vector.extract_strided_slice %429 {offsets = [0, 21], sizes = [2, 1], strides = [1, 1]} : vector<2x25xf32> to vector<2x1xf32>
    %866 = vector.broadcast %865 : vector<2x1xf32> to vector<2x256xf32>
    %867 = arith.mulf %864, %866 : vector<2x256xf32>
    %868 = arith.addf %839, %867 : vector<2x256xf32>
    %c224_i32 = arith.constant 224 : i32
    %869 = tpu.dynamic_rotate %428 by %c224_i32 dim 1 : vector<2x256xf32>, i32 -> vector<2x256xf32>
    %c2_i32_278 = arith.constant 2 : i32
    %870 = vector.broadcast %c2_i32_278 : i32 to vector<1x256xi32>
    %871 = arith.addi %5, %870 : vector<1x256xi32>
    %c0_i32_279 = arith.constant 0 : i32
    %872 = vector.broadcast %c0_i32_279 : i32 to vector<1x256xi32>
    %873 = arith.cmpi sge, %871, %872 : vector<1x256xi32>
    %c2_i32_280 = arith.constant 2 : i32
    %874 = vector.broadcast %c2_i32_280 : i32 to vector<1x256xi32>
    %875 = arith.addi %5, %874 : vector<1x256xi32>
    %c16_i32_281 = arith.constant 16 : i32
    %876 = vector.broadcast %c16_i32_281 : i32 to vector<1x256xi32>
    %877 = arith.cmpi slt, %875, %876 : vector<1x256xi32>
    %878 = arith.andi %873, %877 : vector<1x256xi1>
    %c0_i32_282 = arith.constant 0 : i32
    %879 = vector.broadcast %c0_i32_282 : i32 to vector<1x256xi32>
    %880 = arith.addi %7, %879 : vector<1x256xi32>
    %c0_i32_283 = arith.constant 0 : i32
    %881 = vector.broadcast %c0_i32_283 : i32 to vector<1x256xi32>
    %882 = arith.cmpi sge, %880, %881 : vector<1x256xi32>
    %883 = arith.andi %878, %882 : vector<1x256xi1>
    %c0_i32_284 = arith.constant 0 : i32
    %884 = vector.broadcast %c0_i32_284 : i32 to vector<1x256xi32>
    %885 = arith.addi %7, %884 : vector<1x256xi32>
    %c16_i32_285 = arith.constant 16 : i32
    %886 = vector.broadcast %c16_i32_285 : i32 to vector<1x256xi32>
    %887 = arith.cmpi slt, %885, %886 : vector<1x256xi32>
    %888 = arith.andi %883, %887 : vector<1x256xi1>
    %cst_286 = arith.constant 1.000000e+00 : f32
    %cst_287 = arith.constant 0.000000e+00 : f32
    %889 = vector.broadcast %cst_286 : f32 to vector<1x256xf32>
    %890 = vector.broadcast %cst_287 : f32 to vector<1x256xf32>
    %891 = arith.select %888, %889, %890 : vector<1x256xi1>, vector<1x256xf32>
    %892 = vector.broadcast %891 : vector<1x256xf32> to vector<2x256xf32>
    %893 = arith.mulf %869, %892 : vector<2x256xf32>
    %894 = vector.extract_strided_slice %429 {offsets = [0, 22], sizes = [2, 1], strides = [1, 1]} : vector<2x25xf32> to vector<2x1xf32>
    %895 = vector.broadcast %894 : vector<2x1xf32> to vector<2x256xf32>
    %896 = arith.mulf %893, %895 : vector<2x256xf32>
    %897 = arith.addf %868, %896 : vector<2x256xf32>
    %c223_i32 = arith.constant 223 : i32
    %898 = tpu.dynamic_rotate %428 by %c223_i32 dim 1 : vector<2x256xf32>, i32 -> vector<2x256xf32>
    %c2_i32_288 = arith.constant 2 : i32
    %899 = vector.broadcast %c2_i32_288 : i32 to vector<1x256xi32>
    %900 = arith.addi %5, %899 : vector<1x256xi32>
    %c0_i32_289 = arith.constant 0 : i32
    %901 = vector.broadcast %c0_i32_289 : i32 to vector<1x256xi32>
    %902 = arith.cmpi sge, %900, %901 : vector<1x256xi32>
    %c2_i32_290 = arith.constant 2 : i32
    %903 = vector.broadcast %c2_i32_290 : i32 to vector<1x256xi32>
    %904 = arith.addi %5, %903 : vector<1x256xi32>
    %c16_i32_291 = arith.constant 16 : i32
    %905 = vector.broadcast %c16_i32_291 : i32 to vector<1x256xi32>
    %906 = arith.cmpi slt, %904, %905 : vector<1x256xi32>
    %907 = arith.andi %902, %906 : vector<1x256xi1>
    %c1_i32_292 = arith.constant 1 : i32
    %908 = vector.broadcast %c1_i32_292 : i32 to vector<1x256xi32>
    %909 = arith.addi %7, %908 : vector<1x256xi32>
    %c0_i32_293 = arith.constant 0 : i32
    %910 = vector.broadcast %c0_i32_293 : i32 to vector<1x256xi32>
    %911 = arith.cmpi sge, %909, %910 : vector<1x256xi32>
    %912 = arith.andi %907, %911 : vector<1x256xi1>
    %c1_i32_294 = arith.constant 1 : i32
    %913 = vector.broadcast %c1_i32_294 : i32 to vector<1x256xi32>
    %914 = arith.addi %7, %913 : vector<1x256xi32>
    %c16_i32_295 = arith.constant 16 : i32
    %915 = vector.broadcast %c16_i32_295 : i32 to vector<1x256xi32>
    %916 = arith.cmpi slt, %914, %915 : vector<1x256xi32>
    %917 = arith.andi %912, %916 : vector<1x256xi1>
    %cst_296 = arith.constant 1.000000e+00 : f32
    %cst_297 = arith.constant 0.000000e+00 : f32
    %918 = vector.broadcast %cst_296 : f32 to vector<1x256xf32>
    %919 = vector.broadcast %cst_297 : f32 to vector<1x256xf32>
    %920 = arith.select %917, %918, %919 : vector<1x256xi1>, vector<1x256xf32>
    %921 = vector.broadcast %920 : vector<1x256xf32> to vector<2x256xf32>
    %922 = arith.mulf %898, %921 : vector<2x256xf32>
    %923 = vector.extract_strided_slice %429 {offsets = [0, 23], sizes = [2, 1], strides = [1, 1]} : vector<2x25xf32> to vector<2x1xf32>
    %924 = vector.broadcast %923 : vector<2x1xf32> to vector<2x256xf32>
    %925 = arith.mulf %922, %924 : vector<2x256xf32>
    %926 = arith.addf %897, %925 : vector<2x256xf32>
    %c222_i32 = arith.constant 222 : i32
    %927 = tpu.dynamic_rotate %428 by %c222_i32 dim 1 : vector<2x256xf32>, i32 -> vector<2x256xf32>
    %c2_i32_298 = arith.constant 2 : i32
    %928 = vector.broadcast %c2_i32_298 : i32 to vector<1x256xi32>
    %929 = arith.addi %5, %928 : vector<1x256xi32>
    %c0_i32_299 = arith.constant 0 : i32
    %930 = vector.broadcast %c0_i32_299 : i32 to vector<1x256xi32>
    %931 = arith.cmpi sge, %929, %930 : vector<1x256xi32>
    %c2_i32_300 = arith.constant 2 : i32
    %932 = vector.broadcast %c2_i32_300 : i32 to vector<1x256xi32>
    %933 = arith.addi %5, %932 : vector<1x256xi32>
    %c16_i32_301 = arith.constant 16 : i32
    %934 = vector.broadcast %c16_i32_301 : i32 to vector<1x256xi32>
    %935 = arith.cmpi slt, %933, %934 : vector<1x256xi32>
    %936 = arith.andi %931, %935 : vector<1x256xi1>
    %c2_i32_302 = arith.constant 2 : i32
    %937 = vector.broadcast %c2_i32_302 : i32 to vector<1x256xi32>
    %938 = arith.addi %7, %937 : vector<1x256xi32>
    %c0_i32_303 = arith.constant 0 : i32
    %939 = vector.broadcast %c0_i32_303 : i32 to vector<1x256xi32>
    %940 = arith.cmpi sge, %938, %939 : vector<1x256xi32>
    %941 = arith.andi %936, %940 : vector<1x256xi1>
    %c2_i32_304 = arith.constant 2 : i32
    %942 = vector.broadcast %c2_i32_304 : i32 to vector<1x256xi32>
    %943 = arith.addi %7, %942 : vector<1x256xi32>
    %c16_i32_305 = arith.constant 16 : i32
    %944 = vector.broadcast %c16_i32_305 : i32 to vector<1x256xi32>
    %945 = arith.cmpi slt, %943, %944 : vector<1x256xi32>
    %946 = arith.andi %941, %945 : vector<1x256xi1>
    %cst_306 = arith.constant 1.000000e+00 : f32
    %cst_307 = arith.constant 0.000000e+00 : f32
    %947 = vector.broadcast %cst_306 : f32 to vector<1x256xf32>
    %948 = vector.broadcast %cst_307 : f32 to vector<1x256xf32>
    %949 = arith.select %946, %947, %948 : vector<1x256xi1>, vector<1x256xf32>
    %950 = vector.broadcast %949 : vector<1x256xf32> to vector<2x256xf32>
    %951 = arith.mulf %927, %950 : vector<2x256xf32>
    %952 = vector.extract_strided_slice %429 {offsets = [0, 24], sizes = [2, 1], strides = [1, 1]} : vector<2x25xf32> to vector<2x1xf32>
    %953 = vector.broadcast %952 : vector<2x1xf32> to vector<2x256xf32>
    %954 = arith.mulf %951, %953 : vector<2x256xf32>
    %955 = arith.addf %926, %954 : vector<2x256xf32>
    %956 = vector.broadcast %430 : vector<2x1xf32> to vector<2x256xf32>
    %957 = arith.addf %955, %956 : vector<2x256xf32>
    %c304 = arith.constant 304 : index
    %c0_308 = arith.constant 0 : index
    %958 = vector.load %arg2[%c304, %c0_308] : memref<464x144xf32, #tpu.memory_space<vmem>>, vector<2x25xf32>
    %c312 = arith.constant 312 : index
    %c0_309 = arith.constant 0 : index
    %959 = vector.load %arg2[%c312, %c0_309] : memref<464x144xf32, #tpu.memory_space<vmem>>, vector<2x1xf32>
    %cst_310 = arith.constant 0.000000e+00 : f32
    %960 = vector.broadcast %cst_310 : f32 to vector<2x256xf32>
    %c102_i32 = arith.constant 102 : i32
    %961 = tpu.dynamic_rotate %957 by %c102_i32 dim 1 : vector<2x256xf32>, i32 -> vector<2x256xf32>
    %c-6_i32 = arith.constant -6 : i32
    %962 = vector.broadcast %c-6_i32 : i32 to vector<1x256xi32>
    %963 = arith.addi %5, %962 : vector<1x256xi32>
    %c0_i32_311 = arith.constant 0 : i32
    %964 = vector.broadcast %c0_i32_311 : i32 to vector<1x256xi32>
    %965 = arith.cmpi sge, %963, %964 : vector<1x256xi32>
    %c-6_i32_312 = arith.constant -6 : i32
    %966 = vector.broadcast %c-6_i32_312 : i32 to vector<1x256xi32>
    %967 = arith.addi %5, %966 : vector<1x256xi32>
    %c16_i32_313 = arith.constant 16 : i32
    %968 = vector.broadcast %c16_i32_313 : i32 to vector<1x256xi32>
    %969 = arith.cmpi slt, %967, %968 : vector<1x256xi32>
    %970 = arith.andi %965, %969 : vector<1x256xi1>
    %c-6_i32_314 = arith.constant -6 : i32
    %971 = vector.broadcast %c-6_i32_314 : i32 to vector<1x256xi32>
    %972 = arith.addi %7, %971 : vector<1x256xi32>
    %c0_i32_315 = arith.constant 0 : i32
    %973 = vector.broadcast %c0_i32_315 : i32 to vector<1x256xi32>
    %974 = arith.cmpi sge, %972, %973 : vector<1x256xi32>
    %975 = arith.andi %970, %974 : vector<1x256xi1>
    %c-6_i32_316 = arith.constant -6 : i32
    %976 = vector.broadcast %c-6_i32_316 : i32 to vector<1x256xi32>
    %977 = arith.addi %7, %976 : vector<1x256xi32>
    %c16_i32_317 = arith.constant 16 : i32
    %978 = vector.broadcast %c16_i32_317 : i32 to vector<1x256xi32>
    %979 = arith.cmpi slt, %977, %978 : vector<1x256xi32>
    %980 = arith.andi %975, %979 : vector<1x256xi1>
    %cst_318 = arith.constant 1.000000e+00 : f32
    %cst_319 = arith.constant 0.000000e+00 : f32
    %981 = vector.broadcast %cst_318 : f32 to vector<1x256xf32>
    %982 = vector.broadcast %cst_319 : f32 to vector<1x256xf32>
    %983 = arith.select %980, %981, %982 : vector<1x256xi1>, vector<1x256xf32>
    %984 = vector.broadcast %983 : vector<1x256xf32> to vector<2x256xf32>
    %985 = arith.mulf %961, %984 : vector<2x256xf32>
    %986 = vector.extract_strided_slice %958 {offsets = [0, 0], sizes = [2, 1], strides = [1, 1]} : vector<2x25xf32> to vector<2x1xf32>
    %987 = vector.broadcast %986 : vector<2x1xf32> to vector<2x256xf32>
    %988 = arith.mulf %985, %987 : vector<2x256xf32>
    %989 = arith.addf %960, %988 : vector<2x256xf32>
    %c99_i32 = arith.constant 99 : i32
    %990 = tpu.dynamic_rotate %957 by %c99_i32 dim 1 : vector<2x256xf32>, i32 -> vector<2x256xf32>
    %c-6_i32_320 = arith.constant -6 : i32
    %991 = vector.broadcast %c-6_i32_320 : i32 to vector<1x256xi32>
    %992 = arith.addi %5, %991 : vector<1x256xi32>
    %c0_i32_321 = arith.constant 0 : i32
    %993 = vector.broadcast %c0_i32_321 : i32 to vector<1x256xi32>
    %994 = arith.cmpi sge, %992, %993 : vector<1x256xi32>
    %c-6_i32_322 = arith.constant -6 : i32
    %995 = vector.broadcast %c-6_i32_322 : i32 to vector<1x256xi32>
    %996 = arith.addi %5, %995 : vector<1x256xi32>
    %c16_i32_323 = arith.constant 16 : i32
    %997 = vector.broadcast %c16_i32_323 : i32 to vector<1x256xi32>
    %998 = arith.cmpi slt, %996, %997 : vector<1x256xi32>
    %999 = arith.andi %994, %998 : vector<1x256xi1>
    %c-3_i32 = arith.constant -3 : i32
    %1000 = vector.broadcast %c-3_i32 : i32 to vector<1x256xi32>
    %1001 = arith.addi %7, %1000 : vector<1x256xi32>
    %c0_i32_324 = arith.constant 0 : i32
    %1002 = vector.broadcast %c0_i32_324 : i32 to vector<1x256xi32>
    %1003 = arith.cmpi sge, %1001, %1002 : vector<1x256xi32>
    %1004 = arith.andi %999, %1003 : vector<1x256xi1>
    %c-3_i32_325 = arith.constant -3 : i32
    %1005 = vector.broadcast %c-3_i32_325 : i32 to vector<1x256xi32>
    %1006 = arith.addi %7, %1005 : vector<1x256xi32>
    %c16_i32_326 = arith.constant 16 : i32
    %1007 = vector.broadcast %c16_i32_326 : i32 to vector<1x256xi32>
    %1008 = arith.cmpi slt, %1006, %1007 : vector<1x256xi32>
    %1009 = arith.andi %1004, %1008 : vector<1x256xi1>
    %cst_327 = arith.constant 1.000000e+00 : f32
    %cst_328 = arith.constant 0.000000e+00 : f32
    %1010 = vector.broadcast %cst_327 : f32 to vector<1x256xf32>
    %1011 = vector.broadcast %cst_328 : f32 to vector<1x256xf32>
    %1012 = arith.select %1009, %1010, %1011 : vector<1x256xi1>, vector<1x256xf32>
    %1013 = vector.broadcast %1012 : vector<1x256xf32> to vector<2x256xf32>
    %1014 = arith.mulf %990, %1013 : vector<2x256xf32>
    %1015 = vector.extract_strided_slice %958 {offsets = [0, 1], sizes = [2, 1], strides = [1, 1]} : vector<2x25xf32> to vector<2x1xf32>
    %1016 = vector.broadcast %1015 : vector<2x1xf32> to vector<2x256xf32>
    %1017 = arith.mulf %1014, %1016 : vector<2x256xf32>
    %1018 = arith.addf %989, %1017 : vector<2x256xf32>
    %c96_i32 = arith.constant 96 : i32
    %1019 = tpu.dynamic_rotate %957 by %c96_i32 dim 1 : vector<2x256xf32>, i32 -> vector<2x256xf32>
    %c-6_i32_329 = arith.constant -6 : i32
    %1020 = vector.broadcast %c-6_i32_329 : i32 to vector<1x256xi32>
    %1021 = arith.addi %5, %1020 : vector<1x256xi32>
    %c0_i32_330 = arith.constant 0 : i32
    %1022 = vector.broadcast %c0_i32_330 : i32 to vector<1x256xi32>
    %1023 = arith.cmpi sge, %1021, %1022 : vector<1x256xi32>
    %c-6_i32_331 = arith.constant -6 : i32
    %1024 = vector.broadcast %c-6_i32_331 : i32 to vector<1x256xi32>
    %1025 = arith.addi %5, %1024 : vector<1x256xi32>
    %c16_i32_332 = arith.constant 16 : i32
    %1026 = vector.broadcast %c16_i32_332 : i32 to vector<1x256xi32>
    %1027 = arith.cmpi slt, %1025, %1026 : vector<1x256xi32>
    %1028 = arith.andi %1023, %1027 : vector<1x256xi1>
    %c0_i32_333 = arith.constant 0 : i32
    %1029 = vector.broadcast %c0_i32_333 : i32 to vector<1x256xi32>
    %1030 = arith.addi %7, %1029 : vector<1x256xi32>
    %c0_i32_334 = arith.constant 0 : i32
    %1031 = vector.broadcast %c0_i32_334 : i32 to vector<1x256xi32>
    %1032 = arith.cmpi sge, %1030, %1031 : vector<1x256xi32>
    %1033 = arith.andi %1028, %1032 : vector<1x256xi1>
    %c0_i32_335 = arith.constant 0 : i32
    %1034 = vector.broadcast %c0_i32_335 : i32 to vector<1x256xi32>
    %1035 = arith.addi %7, %1034 : vector<1x256xi32>
    %c16_i32_336 = arith.constant 16 : i32
    %1036 = vector.broadcast %c16_i32_336 : i32 to vector<1x256xi32>
    %1037 = arith.cmpi slt, %1035, %1036 : vector<1x256xi32>
    %1038 = arith.andi %1033, %1037 : vector<1x256xi1>
    %cst_337 = arith.constant 1.000000e+00 : f32
    %cst_338 = arith.constant 0.000000e+00 : f32
    %1039 = vector.broadcast %cst_337 : f32 to vector<1x256xf32>
    %1040 = vector.broadcast %cst_338 : f32 to vector<1x256xf32>
    %1041 = arith.select %1038, %1039, %1040 : vector<1x256xi1>, vector<1x256xf32>
    %1042 = vector.broadcast %1041 : vector<1x256xf32> to vector<2x256xf32>
    %1043 = arith.mulf %1019, %1042 : vector<2x256xf32>
    %1044 = vector.extract_strided_slice %958 {offsets = [0, 2], sizes = [2, 1], strides = [1, 1]} : vector<2x25xf32> to vector<2x1xf32>
    %1045 = vector.broadcast %1044 : vector<2x1xf32> to vector<2x256xf32>
    %1046 = arith.mulf %1043, %1045 : vector<2x256xf32>
    %1047 = arith.addf %1018, %1046 : vector<2x256xf32>
    %c93_i32 = arith.constant 93 : i32
    %1048 = tpu.dynamic_rotate %957 by %c93_i32 dim 1 : vector<2x256xf32>, i32 -> vector<2x256xf32>
    %c-6_i32_339 = arith.constant -6 : i32
    %1049 = vector.broadcast %c-6_i32_339 : i32 to vector<1x256xi32>
    %1050 = arith.addi %5, %1049 : vector<1x256xi32>
    %c0_i32_340 = arith.constant 0 : i32
    %1051 = vector.broadcast %c0_i32_340 : i32 to vector<1x256xi32>
    %1052 = arith.cmpi sge, %1050, %1051 : vector<1x256xi32>
    %c-6_i32_341 = arith.constant -6 : i32
    %1053 = vector.broadcast %c-6_i32_341 : i32 to vector<1x256xi32>
    %1054 = arith.addi %5, %1053 : vector<1x256xi32>
    %c16_i32_342 = arith.constant 16 : i32
    %1055 = vector.broadcast %c16_i32_342 : i32 to vector<1x256xi32>
    %1056 = arith.cmpi slt, %1054, %1055 : vector<1x256xi32>
    %1057 = arith.andi %1052, %1056 : vector<1x256xi1>
    %c3_i32 = arith.constant 3 : i32
    %1058 = vector.broadcast %c3_i32 : i32 to vector<1x256xi32>
    %1059 = arith.addi %7, %1058 : vector<1x256xi32>
    %c0_i32_343 = arith.constant 0 : i32
    %1060 = vector.broadcast %c0_i32_343 : i32 to vector<1x256xi32>
    %1061 = arith.cmpi sge, %1059, %1060 : vector<1x256xi32>
    %1062 = arith.andi %1057, %1061 : vector<1x256xi1>
    %c3_i32_344 = arith.constant 3 : i32
    %1063 = vector.broadcast %c3_i32_344 : i32 to vector<1x256xi32>
    %1064 = arith.addi %7, %1063 : vector<1x256xi32>
    %c16_i32_345 = arith.constant 16 : i32
    %1065 = vector.broadcast %c16_i32_345 : i32 to vector<1x256xi32>
    %1066 = arith.cmpi slt, %1064, %1065 : vector<1x256xi32>
    %1067 = arith.andi %1062, %1066 : vector<1x256xi1>
    %cst_346 = arith.constant 1.000000e+00 : f32
    %cst_347 = arith.constant 0.000000e+00 : f32
    %1068 = vector.broadcast %cst_346 : f32 to vector<1x256xf32>
    %1069 = vector.broadcast %cst_347 : f32 to vector<1x256xf32>
    %1070 = arith.select %1067, %1068, %1069 : vector<1x256xi1>, vector<1x256xf32>
    %1071 = vector.broadcast %1070 : vector<1x256xf32> to vector<2x256xf32>
    %1072 = arith.mulf %1048, %1071 : vector<2x256xf32>
    %1073 = vector.extract_strided_slice %958 {offsets = [0, 3], sizes = [2, 1], strides = [1, 1]} : vector<2x25xf32> to vector<2x1xf32>
    %1074 = vector.broadcast %1073 : vector<2x1xf32> to vector<2x256xf32>
    %1075 = arith.mulf %1072, %1074 : vector<2x256xf32>
    %1076 = arith.addf %1047, %1075 : vector<2x256xf32>
    %c90_i32 = arith.constant 90 : i32
    %1077 = tpu.dynamic_rotate %957 by %c90_i32 dim 1 : vector<2x256xf32>, i32 -> vector<2x256xf32>
    %c-6_i32_348 = arith.constant -6 : i32
    %1078 = vector.broadcast %c-6_i32_348 : i32 to vector<1x256xi32>
    %1079 = arith.addi %5, %1078 : vector<1x256xi32>
    %c0_i32_349 = arith.constant 0 : i32
    %1080 = vector.broadcast %c0_i32_349 : i32 to vector<1x256xi32>
    %1081 = arith.cmpi sge, %1079, %1080 : vector<1x256xi32>
    %c-6_i32_350 = arith.constant -6 : i32
    %1082 = vector.broadcast %c-6_i32_350 : i32 to vector<1x256xi32>
    %1083 = arith.addi %5, %1082 : vector<1x256xi32>
    %c16_i32_351 = arith.constant 16 : i32
    %1084 = vector.broadcast %c16_i32_351 : i32 to vector<1x256xi32>
    %1085 = arith.cmpi slt, %1083, %1084 : vector<1x256xi32>
    %1086 = arith.andi %1081, %1085 : vector<1x256xi1>
    %c6_i32 = arith.constant 6 : i32
    %1087 = vector.broadcast %c6_i32 : i32 to vector<1x256xi32>
    %1088 = arith.addi %7, %1087 : vector<1x256xi32>
    %c0_i32_352 = arith.constant 0 : i32
    %1089 = vector.broadcast %c0_i32_352 : i32 to vector<1x256xi32>
    %1090 = arith.cmpi sge, %1088, %1089 : vector<1x256xi32>
    %1091 = arith.andi %1086, %1090 : vector<1x256xi1>
    %c6_i32_353 = arith.constant 6 : i32
    %1092 = vector.broadcast %c6_i32_353 : i32 to vector<1x256xi32>
    %1093 = arith.addi %7, %1092 : vector<1x256xi32>
    %c16_i32_354 = arith.constant 16 : i32
    %1094 = vector.broadcast %c16_i32_354 : i32 to vector<1x256xi32>
    %1095 = arith.cmpi slt, %1093, %1094 : vector<1x256xi32>
    %1096 = arith.andi %1091, %1095 : vector<1x256xi1>
    %cst_355 = arith.constant 1.000000e+00 : f32
    %cst_356 = arith.constant 0.000000e+00 : f32
    %1097 = vector.broadcast %cst_355 : f32 to vector<1x256xf32>
    %1098 = vector.broadcast %cst_356 : f32 to vector<1x256xf32>
    %1099 = arith.select %1096, %1097, %1098 : vector<1x256xi1>, vector<1x256xf32>
    %1100 = vector.broadcast %1099 : vector<1x256xf32> to vector<2x256xf32>
    %1101 = arith.mulf %1077, %1100 : vector<2x256xf32>
    %1102 = vector.extract_strided_slice %958 {offsets = [0, 4], sizes = [2, 1], strides = [1, 1]} : vector<2x25xf32> to vector<2x1xf32>
    %1103 = vector.broadcast %1102 : vector<2x1xf32> to vector<2x256xf32>
    %1104 = arith.mulf %1101, %1103 : vector<2x256xf32>
    %1105 = arith.addf %1076, %1104 : vector<2x256xf32>
    %c54_i32 = arith.constant 54 : i32
    %1106 = tpu.dynamic_rotate %957 by %c54_i32 dim 1 : vector<2x256xf32>, i32 -> vector<2x256xf32>
    %c-3_i32_357 = arith.constant -3 : i32
    %1107 = vector.broadcast %c-3_i32_357 : i32 to vector<1x256xi32>
    %1108 = arith.addi %5, %1107 : vector<1x256xi32>
    %c0_i32_358 = arith.constant 0 : i32
    %1109 = vector.broadcast %c0_i32_358 : i32 to vector<1x256xi32>
    %1110 = arith.cmpi sge, %1108, %1109 : vector<1x256xi32>
    %c-3_i32_359 = arith.constant -3 : i32
    %1111 = vector.broadcast %c-3_i32_359 : i32 to vector<1x256xi32>
    %1112 = arith.addi %5, %1111 : vector<1x256xi32>
    %c16_i32_360 = arith.constant 16 : i32
    %1113 = vector.broadcast %c16_i32_360 : i32 to vector<1x256xi32>
    %1114 = arith.cmpi slt, %1112, %1113 : vector<1x256xi32>
    %1115 = arith.andi %1110, %1114 : vector<1x256xi1>
    %c-6_i32_361 = arith.constant -6 : i32
    %1116 = vector.broadcast %c-6_i32_361 : i32 to vector<1x256xi32>
    %1117 = arith.addi %7, %1116 : vector<1x256xi32>
    %c0_i32_362 = arith.constant 0 : i32
    %1118 = vector.broadcast %c0_i32_362 : i32 to vector<1x256xi32>
    %1119 = arith.cmpi sge, %1117, %1118 : vector<1x256xi32>
    %1120 = arith.andi %1115, %1119 : vector<1x256xi1>
    %c-6_i32_363 = arith.constant -6 : i32
    %1121 = vector.broadcast %c-6_i32_363 : i32 to vector<1x256xi32>
    %1122 = arith.addi %7, %1121 : vector<1x256xi32>
    %c16_i32_364 = arith.constant 16 : i32
    %1123 = vector.broadcast %c16_i32_364 : i32 to vector<1x256xi32>
    %1124 = arith.cmpi slt, %1122, %1123 : vector<1x256xi32>
    %1125 = arith.andi %1120, %1124 : vector<1x256xi1>
    %cst_365 = arith.constant 1.000000e+00 : f32
    %cst_366 = arith.constant 0.000000e+00 : f32
    %1126 = vector.broadcast %cst_365 : f32 to vector<1x256xf32>
    %1127 = vector.broadcast %cst_366 : f32 to vector<1x256xf32>
    %1128 = arith.select %1125, %1126, %1127 : vector<1x256xi1>, vector<1x256xf32>
    %1129 = vector.broadcast %1128 : vector<1x256xf32> to vector<2x256xf32>
    %1130 = arith.mulf %1106, %1129 : vector<2x256xf32>
    %1131 = vector.extract_strided_slice %958 {offsets = [0, 5], sizes = [2, 1], strides = [1, 1]} : vector<2x25xf32> to vector<2x1xf32>
    %1132 = vector.broadcast %1131 : vector<2x1xf32> to vector<2x256xf32>
    %1133 = arith.mulf %1130, %1132 : vector<2x256xf32>
    %1134 = arith.addf %1105, %1133 : vector<2x256xf32>
    %c51_i32 = arith.constant 51 : i32
    %1135 = tpu.dynamic_rotate %957 by %c51_i32 dim 1 : vector<2x256xf32>, i32 -> vector<2x256xf32>
    %c-3_i32_367 = arith.constant -3 : i32
    %1136 = vector.broadcast %c-3_i32_367 : i32 to vector<1x256xi32>
    %1137 = arith.addi %5, %1136 : vector<1x256xi32>
    %c0_i32_368 = arith.constant 0 : i32
    %1138 = vector.broadcast %c0_i32_368 : i32 to vector<1x256xi32>
    %1139 = arith.cmpi sge, %1137, %1138 : vector<1x256xi32>
    %c-3_i32_369 = arith.constant -3 : i32
    %1140 = vector.broadcast %c-3_i32_369 : i32 to vector<1x256xi32>
    %1141 = arith.addi %5, %1140 : vector<1x256xi32>
    %c16_i32_370 = arith.constant 16 : i32
    %1142 = vector.broadcast %c16_i32_370 : i32 to vector<1x256xi32>
    %1143 = arith.cmpi slt, %1141, %1142 : vector<1x256xi32>
    %1144 = arith.andi %1139, %1143 : vector<1x256xi1>
    %c-3_i32_371 = arith.constant -3 : i32
    %1145 = vector.broadcast %c-3_i32_371 : i32 to vector<1x256xi32>
    %1146 = arith.addi %7, %1145 : vector<1x256xi32>
    %c0_i32_372 = arith.constant 0 : i32
    %1147 = vector.broadcast %c0_i32_372 : i32 to vector<1x256xi32>
    %1148 = arith.cmpi sge, %1146, %1147 : vector<1x256xi32>
    %1149 = arith.andi %1144, %1148 : vector<1x256xi1>
    %c-3_i32_373 = arith.constant -3 : i32
    %1150 = vector.broadcast %c-3_i32_373 : i32 to vector<1x256xi32>
    %1151 = arith.addi %7, %1150 : vector<1x256xi32>
    %c16_i32_374 = arith.constant 16 : i32
    %1152 = vector.broadcast %c16_i32_374 : i32 to vector<1x256xi32>
    %1153 = arith.cmpi slt, %1151, %1152 : vector<1x256xi32>
    %1154 = arith.andi %1149, %1153 : vector<1x256xi1>
    %cst_375 = arith.constant 1.000000e+00 : f32
    %cst_376 = arith.constant 0.000000e+00 : f32
    %1155 = vector.broadcast %cst_375 : f32 to vector<1x256xf32>
    %1156 = vector.broadcast %cst_376 : f32 to vector<1x256xf32>
    %1157 = arith.select %1154, %1155, %1156 : vector<1x256xi1>, vector<1x256xf32>
    %1158 = vector.broadcast %1157 : vector<1x256xf32> to vector<2x256xf32>
    %1159 = arith.mulf %1135, %1158 : vector<2x256xf32>
    %1160 = vector.extract_strided_slice %958 {offsets = [0, 6], sizes = [2, 1], strides = [1, 1]} : vector<2x25xf32> to vector<2x1xf32>
    %1161 = vector.broadcast %1160 : vector<2x1xf32> to vector<2x256xf32>
    %1162 = arith.mulf %1159, %1161 : vector<2x256xf32>
    %1163 = arith.addf %1134, %1162 : vector<2x256xf32>
    %c48_i32 = arith.constant 48 : i32
    %1164 = tpu.dynamic_rotate %957 by %c48_i32 dim 1 : vector<2x256xf32>, i32 -> vector<2x256xf32>
    %c-3_i32_377 = arith.constant -3 : i32
    %1165 = vector.broadcast %c-3_i32_377 : i32 to vector<1x256xi32>
    %1166 = arith.addi %5, %1165 : vector<1x256xi32>
    %c0_i32_378 = arith.constant 0 : i32
    %1167 = vector.broadcast %c0_i32_378 : i32 to vector<1x256xi32>
    %1168 = arith.cmpi sge, %1166, %1167 : vector<1x256xi32>
    %c-3_i32_379 = arith.constant -3 : i32
    %1169 = vector.broadcast %c-3_i32_379 : i32 to vector<1x256xi32>
    %1170 = arith.addi %5, %1169 : vector<1x256xi32>
    %c16_i32_380 = arith.constant 16 : i32
    %1171 = vector.broadcast %c16_i32_380 : i32 to vector<1x256xi32>
    %1172 = arith.cmpi slt, %1170, %1171 : vector<1x256xi32>
    %1173 = arith.andi %1168, %1172 : vector<1x256xi1>
    %c0_i32_381 = arith.constant 0 : i32
    %1174 = vector.broadcast %c0_i32_381 : i32 to vector<1x256xi32>
    %1175 = arith.addi %7, %1174 : vector<1x256xi32>
    %c0_i32_382 = arith.constant 0 : i32
    %1176 = vector.broadcast %c0_i32_382 : i32 to vector<1x256xi32>
    %1177 = arith.cmpi sge, %1175, %1176 : vector<1x256xi32>
    %1178 = arith.andi %1173, %1177 : vector<1x256xi1>
    %c0_i32_383 = arith.constant 0 : i32
    %1179 = vector.broadcast %c0_i32_383 : i32 to vector<1x256xi32>
    %1180 = arith.addi %7, %1179 : vector<1x256xi32>
    %c16_i32_384 = arith.constant 16 : i32
    %1181 = vector.broadcast %c16_i32_384 : i32 to vector<1x256xi32>
    %1182 = arith.cmpi slt, %1180, %1181 : vector<1x256xi32>
    %1183 = arith.andi %1178, %1182 : vector<1x256xi1>
    %cst_385 = arith.constant 1.000000e+00 : f32
    %cst_386 = arith.constant 0.000000e+00 : f32
    %1184 = vector.broadcast %cst_385 : f32 to vector<1x256xf32>
    %1185 = vector.broadcast %cst_386 : f32 to vector<1x256xf32>
    %1186 = arith.select %1183, %1184, %1185 : vector<1x256xi1>, vector<1x256xf32>
    %1187 = vector.broadcast %1186 : vector<1x256xf32> to vector<2x256xf32>
    %1188 = arith.mulf %1164, %1187 : vector<2x256xf32>
    %1189 = vector.extract_strided_slice %958 {offsets = [0, 7], sizes = [2, 1], strides = [1, 1]} : vector<2x25xf32> to vector<2x1xf32>
    %1190 = vector.broadcast %1189 : vector<2x1xf32> to vector<2x256xf32>
    %1191 = arith.mulf %1188, %1190 : vector<2x256xf32>
    %1192 = arith.addf %1163, %1191 : vector<2x256xf32>
    %c45_i32 = arith.constant 45 : i32
    %1193 = tpu.dynamic_rotate %957 by %c45_i32 dim 1 : vector<2x256xf32>, i32 -> vector<2x256xf32>
    %c-3_i32_387 = arith.constant -3 : i32
    %1194 = vector.broadcast %c-3_i32_387 : i32 to vector<1x256xi32>
    %1195 = arith.addi %5, %1194 : vector<1x256xi32>
    %c0_i32_388 = arith.constant 0 : i32
    %1196 = vector.broadcast %c0_i32_388 : i32 to vector<1x256xi32>
    %1197 = arith.cmpi sge, %1195, %1196 : vector<1x256xi32>
    %c-3_i32_389 = arith.constant -3 : i32
    %1198 = vector.broadcast %c-3_i32_389 : i32 to vector<1x256xi32>
    %1199 = arith.addi %5, %1198 : vector<1x256xi32>
    %c16_i32_390 = arith.constant 16 : i32
    %1200 = vector.broadcast %c16_i32_390 : i32 to vector<1x256xi32>
    %1201 = arith.cmpi slt, %1199, %1200 : vector<1x256xi32>
    %1202 = arith.andi %1197, %1201 : vector<1x256xi1>
    %c3_i32_391 = arith.constant 3 : i32
    %1203 = vector.broadcast %c3_i32_391 : i32 to vector<1x256xi32>
    %1204 = arith.addi %7, %1203 : vector<1x256xi32>
    %c0_i32_392 = arith.constant 0 : i32
    %1205 = vector.broadcast %c0_i32_392 : i32 to vector<1x256xi32>
    %1206 = arith.cmpi sge, %1204, %1205 : vector<1x256xi32>
    %1207 = arith.andi %1202, %1206 : vector<1x256xi1>
    %c3_i32_393 = arith.constant 3 : i32
    %1208 = vector.broadcast %c3_i32_393 : i32 to vector<1x256xi32>
    %1209 = arith.addi %7, %1208 : vector<1x256xi32>
    %c16_i32_394 = arith.constant 16 : i32
    %1210 = vector.broadcast %c16_i32_394 : i32 to vector<1x256xi32>
    %1211 = arith.cmpi slt, %1209, %1210 : vector<1x256xi32>
    %1212 = arith.andi %1207, %1211 : vector<1x256xi1>
    %cst_395 = arith.constant 1.000000e+00 : f32
    %cst_396 = arith.constant 0.000000e+00 : f32
    %1213 = vector.broadcast %cst_395 : f32 to vector<1x256xf32>
    %1214 = vector.broadcast %cst_396 : f32 to vector<1x256xf32>
    %1215 = arith.select %1212, %1213, %1214 : vector<1x256xi1>, vector<1x256xf32>
    %1216 = vector.broadcast %1215 : vector<1x256xf32> to vector<2x256xf32>
    %1217 = arith.mulf %1193, %1216 : vector<2x256xf32>
    %1218 = vector.extract_strided_slice %958 {offsets = [0, 8], sizes = [2, 1], strides = [1, 1]} : vector<2x25xf32> to vector<2x1xf32>
    %1219 = vector.broadcast %1218 : vector<2x1xf32> to vector<2x256xf32>
    %1220 = arith.mulf %1217, %1219 : vector<2x256xf32>
    %1221 = arith.addf %1192, %1220 : vector<2x256xf32>
    %c42_i32 = arith.constant 42 : i32
    %1222 = tpu.dynamic_rotate %957 by %c42_i32 dim 1 : vector<2x256xf32>, i32 -> vector<2x256xf32>
    %c-3_i32_397 = arith.constant -3 : i32
    %1223 = vector.broadcast %c-3_i32_397 : i32 to vector<1x256xi32>
    %1224 = arith.addi %5, %1223 : vector<1x256xi32>
    %c0_i32_398 = arith.constant 0 : i32
    %1225 = vector.broadcast %c0_i32_398 : i32 to vector<1x256xi32>
    %1226 = arith.cmpi sge, %1224, %1225 : vector<1x256xi32>
    %c-3_i32_399 = arith.constant -3 : i32
    %1227 = vector.broadcast %c-3_i32_399 : i32 to vector<1x256xi32>
    %1228 = arith.addi %5, %1227 : vector<1x256xi32>
    %c16_i32_400 = arith.constant 16 : i32
    %1229 = vector.broadcast %c16_i32_400 : i32 to vector<1x256xi32>
    %1230 = arith.cmpi slt, %1228, %1229 : vector<1x256xi32>
    %1231 = arith.andi %1226, %1230 : vector<1x256xi1>
    %c6_i32_401 = arith.constant 6 : i32
    %1232 = vector.broadcast %c6_i32_401 : i32 to vector<1x256xi32>
    %1233 = arith.addi %7, %1232 : vector<1x256xi32>
    %c0_i32_402 = arith.constant 0 : i32
    %1234 = vector.broadcast %c0_i32_402 : i32 to vector<1x256xi32>
    %1235 = arith.cmpi sge, %1233, %1234 : vector<1x256xi32>
    %1236 = arith.andi %1231, %1235 : vector<1x256xi1>
    %c6_i32_403 = arith.constant 6 : i32
    %1237 = vector.broadcast %c6_i32_403 : i32 to vector<1x256xi32>
    %1238 = arith.addi %7, %1237 : vector<1x256xi32>
    %c16_i32_404 = arith.constant 16 : i32
    %1239 = vector.broadcast %c16_i32_404 : i32 to vector<1x256xi32>
    %1240 = arith.cmpi slt, %1238, %1239 : vector<1x256xi32>
    %1241 = arith.andi %1236, %1240 : vector<1x256xi1>
    %cst_405 = arith.constant 1.000000e+00 : f32
    %cst_406 = arith.constant 0.000000e+00 : f32
    %1242 = vector.broadcast %cst_405 : f32 to vector<1x256xf32>
    %1243 = vector.broadcast %cst_406 : f32 to vector<1x256xf32>
    %1244 = arith.select %1241, %1242, %1243 : vector<1x256xi1>, vector<1x256xf32>
    %1245 = vector.broadcast %1244 : vector<1x256xf32> to vector<2x256xf32>
    %1246 = arith.mulf %1222, %1245 : vector<2x256xf32>
    %1247 = vector.extract_strided_slice %958 {offsets = [0, 9], sizes = [2, 1], strides = [1, 1]} : vector<2x25xf32> to vector<2x1xf32>
    %1248 = vector.broadcast %1247 : vector<2x1xf32> to vector<2x256xf32>
    %1249 = arith.mulf %1246, %1248 : vector<2x256xf32>
    %1250 = arith.addf %1221, %1249 : vector<2x256xf32>
    %c6_i32_407 = arith.constant 6 : i32
    %1251 = tpu.dynamic_rotate %957 by %c6_i32_407 dim 1 : vector<2x256xf32>, i32 -> vector<2x256xf32>
    %c0_i32_408 = arith.constant 0 : i32
    %1252 = vector.broadcast %c0_i32_408 : i32 to vector<1x256xi32>
    %1253 = arith.addi %5, %1252 : vector<1x256xi32>
    %c0_i32_409 = arith.constant 0 : i32
    %1254 = vector.broadcast %c0_i32_409 : i32 to vector<1x256xi32>
    %1255 = arith.cmpi sge, %1253, %1254 : vector<1x256xi32>
    %c0_i32_410 = arith.constant 0 : i32
    %1256 = vector.broadcast %c0_i32_410 : i32 to vector<1x256xi32>
    %1257 = arith.addi %5, %1256 : vector<1x256xi32>
    %c16_i32_411 = arith.constant 16 : i32
    %1258 = vector.broadcast %c16_i32_411 : i32 to vector<1x256xi32>
    %1259 = arith.cmpi slt, %1257, %1258 : vector<1x256xi32>
    %1260 = arith.andi %1255, %1259 : vector<1x256xi1>
    %c-6_i32_412 = arith.constant -6 : i32
    %1261 = vector.broadcast %c-6_i32_412 : i32 to vector<1x256xi32>
    %1262 = arith.addi %7, %1261 : vector<1x256xi32>
    %c0_i32_413 = arith.constant 0 : i32
    %1263 = vector.broadcast %c0_i32_413 : i32 to vector<1x256xi32>
    %1264 = arith.cmpi sge, %1262, %1263 : vector<1x256xi32>
    %1265 = arith.andi %1260, %1264 : vector<1x256xi1>
    %c-6_i32_414 = arith.constant -6 : i32
    %1266 = vector.broadcast %c-6_i32_414 : i32 to vector<1x256xi32>
    %1267 = arith.addi %7, %1266 : vector<1x256xi32>
    %c16_i32_415 = arith.constant 16 : i32
    %1268 = vector.broadcast %c16_i32_415 : i32 to vector<1x256xi32>
    %1269 = arith.cmpi slt, %1267, %1268 : vector<1x256xi32>
    %1270 = arith.andi %1265, %1269 : vector<1x256xi1>
    %cst_416 = arith.constant 1.000000e+00 : f32
    %cst_417 = arith.constant 0.000000e+00 : f32
    %1271 = vector.broadcast %cst_416 : f32 to vector<1x256xf32>
    %1272 = vector.broadcast %cst_417 : f32 to vector<1x256xf32>
    %1273 = arith.select %1270, %1271, %1272 : vector<1x256xi1>, vector<1x256xf32>
    %1274 = vector.broadcast %1273 : vector<1x256xf32> to vector<2x256xf32>
    %1275 = arith.mulf %1251, %1274 : vector<2x256xf32>
    %1276 = vector.extract_strided_slice %958 {offsets = [0, 10], sizes = [2, 1], strides = [1, 1]} : vector<2x25xf32> to vector<2x1xf32>
    %1277 = vector.broadcast %1276 : vector<2x1xf32> to vector<2x256xf32>
    %1278 = arith.mulf %1275, %1277 : vector<2x256xf32>
    %1279 = arith.addf %1250, %1278 : vector<2x256xf32>
    %c3_i32_418 = arith.constant 3 : i32
    %1280 = tpu.dynamic_rotate %957 by %c3_i32_418 dim 1 : vector<2x256xf32>, i32 -> vector<2x256xf32>
    %c0_i32_419 = arith.constant 0 : i32
    %1281 = vector.broadcast %c0_i32_419 : i32 to vector<1x256xi32>
    %1282 = arith.addi %5, %1281 : vector<1x256xi32>
    %c0_i32_420 = arith.constant 0 : i32
    %1283 = vector.broadcast %c0_i32_420 : i32 to vector<1x256xi32>
    %1284 = arith.cmpi sge, %1282, %1283 : vector<1x256xi32>
    %c0_i32_421 = arith.constant 0 : i32
    %1285 = vector.broadcast %c0_i32_421 : i32 to vector<1x256xi32>
    %1286 = arith.addi %5, %1285 : vector<1x256xi32>
    %c16_i32_422 = arith.constant 16 : i32
    %1287 = vector.broadcast %c16_i32_422 : i32 to vector<1x256xi32>
    %1288 = arith.cmpi slt, %1286, %1287 : vector<1x256xi32>
    %1289 = arith.andi %1284, %1288 : vector<1x256xi1>
    %c-3_i32_423 = arith.constant -3 : i32
    %1290 = vector.broadcast %c-3_i32_423 : i32 to vector<1x256xi32>
    %1291 = arith.addi %7, %1290 : vector<1x256xi32>
    %c0_i32_424 = arith.constant 0 : i32
    %1292 = vector.broadcast %c0_i32_424 : i32 to vector<1x256xi32>
    %1293 = arith.cmpi sge, %1291, %1292 : vector<1x256xi32>
    %1294 = arith.andi %1289, %1293 : vector<1x256xi1>
    %c-3_i32_425 = arith.constant -3 : i32
    %1295 = vector.broadcast %c-3_i32_425 : i32 to vector<1x256xi32>
    %1296 = arith.addi %7, %1295 : vector<1x256xi32>
    %c16_i32_426 = arith.constant 16 : i32
    %1297 = vector.broadcast %c16_i32_426 : i32 to vector<1x256xi32>
    %1298 = arith.cmpi slt, %1296, %1297 : vector<1x256xi32>
    %1299 = arith.andi %1294, %1298 : vector<1x256xi1>
    %cst_427 = arith.constant 1.000000e+00 : f32
    %cst_428 = arith.constant 0.000000e+00 : f32
    %1300 = vector.broadcast %cst_427 : f32 to vector<1x256xf32>
    %1301 = vector.broadcast %cst_428 : f32 to vector<1x256xf32>
    %1302 = arith.select %1299, %1300, %1301 : vector<1x256xi1>, vector<1x256xf32>
    %1303 = vector.broadcast %1302 : vector<1x256xf32> to vector<2x256xf32>
    %1304 = arith.mulf %1280, %1303 : vector<2x256xf32>
    %1305 = vector.extract_strided_slice %958 {offsets = [0, 11], sizes = [2, 1], strides = [1, 1]} : vector<2x25xf32> to vector<2x1xf32>
    %1306 = vector.broadcast %1305 : vector<2x1xf32> to vector<2x256xf32>
    %1307 = arith.mulf %1304, %1306 : vector<2x256xf32>
    %1308 = arith.addf %1279, %1307 : vector<2x256xf32>
    %1309 = vector.extract_strided_slice %958 {offsets = [0, 12], sizes = [2, 1], strides = [1, 1]} : vector<2x25xf32> to vector<2x1xf32>
    %1310 = vector.broadcast %1309 : vector<2x1xf32> to vector<2x256xf32>
    %1311 = arith.mulf %957, %1310 : vector<2x256xf32>
    %1312 = arith.addf %1308, %1311 : vector<2x256xf32>
    %c253_i32 = arith.constant 253 : i32
    %1313 = tpu.dynamic_rotate %957 by %c253_i32 dim 1 : vector<2x256xf32>, i32 -> vector<2x256xf32>
    %c0_i32_429 = arith.constant 0 : i32
    %1314 = vector.broadcast %c0_i32_429 : i32 to vector<1x256xi32>
    %1315 = arith.addi %5, %1314 : vector<1x256xi32>
    %c0_i32_430 = arith.constant 0 : i32
    %1316 = vector.broadcast %c0_i32_430 : i32 to vector<1x256xi32>
    %1317 = arith.cmpi sge, %1315, %1316 : vector<1x256xi32>
    %c0_i32_431 = arith.constant 0 : i32
    %1318 = vector.broadcast %c0_i32_431 : i32 to vector<1x256xi32>
    %1319 = arith.addi %5, %1318 : vector<1x256xi32>
    %c16_i32_432 = arith.constant 16 : i32
    %1320 = vector.broadcast %c16_i32_432 : i32 to vector<1x256xi32>
    %1321 = arith.cmpi slt, %1319, %1320 : vector<1x256xi32>
    %1322 = arith.andi %1317, %1321 : vector<1x256xi1>
    %c3_i32_433 = arith.constant 3 : i32
    %1323 = vector.broadcast %c3_i32_433 : i32 to vector<1x256xi32>
    %1324 = arith.addi %7, %1323 : vector<1x256xi32>
    %c0_i32_434 = arith.constant 0 : i32
    %1325 = vector.broadcast %c0_i32_434 : i32 to vector<1x256xi32>
    %1326 = arith.cmpi sge, %1324, %1325 : vector<1x256xi32>
    %1327 = arith.andi %1322, %1326 : vector<1x256xi1>
    %c3_i32_435 = arith.constant 3 : i32
    %1328 = vector.broadcast %c3_i32_435 : i32 to vector<1x256xi32>
    %1329 = arith.addi %7, %1328 : vector<1x256xi32>
    %c16_i32_436 = arith.constant 16 : i32
    %1330 = vector.broadcast %c16_i32_436 : i32 to vector<1x256xi32>
    %1331 = arith.cmpi slt, %1329, %1330 : vector<1x256xi32>
    %1332 = arith.andi %1327, %1331 : vector<1x256xi1>
    %cst_437 = arith.constant 1.000000e+00 : f32
    %cst_438 = arith.constant 0.000000e+00 : f32
    %1333 = vector.broadcast %cst_437 : f32 to vector<1x256xf32>
    %1334 = vector.broadcast %cst_438 : f32 to vector<1x256xf32>
    %1335 = arith.select %1332, %1333, %1334 : vector<1x256xi1>, vector<1x256xf32>
    %1336 = vector.broadcast %1335 : vector<1x256xf32> to vector<2x256xf32>
    %1337 = arith.mulf %1313, %1336 : vector<2x256xf32>
    %1338 = vector.extract_strided_slice %958 {offsets = [0, 13], sizes = [2, 1], strides = [1, 1]} : vector<2x25xf32> to vector<2x1xf32>
    %1339 = vector.broadcast %1338 : vector<2x1xf32> to vector<2x256xf32>
    %1340 = arith.mulf %1337, %1339 : vector<2x256xf32>
    %1341 = arith.addf %1312, %1340 : vector<2x256xf32>
    %c250_i32 = arith.constant 250 : i32
    %1342 = tpu.dynamic_rotate %957 by %c250_i32 dim 1 : vector<2x256xf32>, i32 -> vector<2x256xf32>
    %c0_i32_439 = arith.constant 0 : i32
    %1343 = vector.broadcast %c0_i32_439 : i32 to vector<1x256xi32>
    %1344 = arith.addi %5, %1343 : vector<1x256xi32>
    %c0_i32_440 = arith.constant 0 : i32
    %1345 = vector.broadcast %c0_i32_440 : i32 to vector<1x256xi32>
    %1346 = arith.cmpi sge, %1344, %1345 : vector<1x256xi32>
    %c0_i32_441 = arith.constant 0 : i32
    %1347 = vector.broadcast %c0_i32_441 : i32 to vector<1x256xi32>
    %1348 = arith.addi %5, %1347 : vector<1x256xi32>
    %c16_i32_442 = arith.constant 16 : i32
    %1349 = vector.broadcast %c16_i32_442 : i32 to vector<1x256xi32>
    %1350 = arith.cmpi slt, %1348, %1349 : vector<1x256xi32>
    %1351 = arith.andi %1346, %1350 : vector<1x256xi1>
    %c6_i32_443 = arith.constant 6 : i32
    %1352 = vector.broadcast %c6_i32_443 : i32 to vector<1x256xi32>
    %1353 = arith.addi %7, %1352 : vector<1x256xi32>
    %c0_i32_444 = arith.constant 0 : i32
    %1354 = vector.broadcast %c0_i32_444 : i32 to vector<1x256xi32>
    %1355 = arith.cmpi sge, %1353, %1354 : vector<1x256xi32>
    %1356 = arith.andi %1351, %1355 : vector<1x256xi1>
    %c6_i32_445 = arith.constant 6 : i32
    %1357 = vector.broadcast %c6_i32_445 : i32 to vector<1x256xi32>
    %1358 = arith.addi %7, %1357 : vector<1x256xi32>
    %c16_i32_446 = arith.constant 16 : i32
    %1359 = vector.broadcast %c16_i32_446 : i32 to vector<1x256xi32>
    %1360 = arith.cmpi slt, %1358, %1359 : vector<1x256xi32>
    %1361 = arith.andi %1356, %1360 : vector<1x256xi1>
    %cst_447 = arith.constant 1.000000e+00 : f32
    %cst_448 = arith.constant 0.000000e+00 : f32
    %1362 = vector.broadcast %cst_447 : f32 to vector<1x256xf32>
    %1363 = vector.broadcast %cst_448 : f32 to vector<1x256xf32>
    %1364 = arith.select %1361, %1362, %1363 : vector<1x256xi1>, vector<1x256xf32>
    %1365 = vector.broadcast %1364 : vector<1x256xf32> to vector<2x256xf32>
    %1366 = arith.mulf %1342, %1365 : vector<2x256xf32>
    %1367 = vector.extract_strided_slice %958 {offsets = [0, 14], sizes = [2, 1], strides = [1, 1]} : vector<2x25xf32> to vector<2x1xf32>
    %1368 = vector.broadcast %1367 : vector<2x1xf32> to vector<2x256xf32>
    %1369 = arith.mulf %1366, %1368 : vector<2x256xf32>
    %1370 = arith.addf %1341, %1369 : vector<2x256xf32>
    %c214_i32 = arith.constant 214 : i32
    %1371 = tpu.dynamic_rotate %957 by %c214_i32 dim 1 : vector<2x256xf32>, i32 -> vector<2x256xf32>
    %c3_i32_449 = arith.constant 3 : i32
    %1372 = vector.broadcast %c3_i32_449 : i32 to vector<1x256xi32>
    %1373 = arith.addi %5, %1372 : vector<1x256xi32>
    %c0_i32_450 = arith.constant 0 : i32
    %1374 = vector.broadcast %c0_i32_450 : i32 to vector<1x256xi32>
    %1375 = arith.cmpi sge, %1373, %1374 : vector<1x256xi32>
    %c3_i32_451 = arith.constant 3 : i32
    %1376 = vector.broadcast %c3_i32_451 : i32 to vector<1x256xi32>
    %1377 = arith.addi %5, %1376 : vector<1x256xi32>
    %c16_i32_452 = arith.constant 16 : i32
    %1378 = vector.broadcast %c16_i32_452 : i32 to vector<1x256xi32>
    %1379 = arith.cmpi slt, %1377, %1378 : vector<1x256xi32>
    %1380 = arith.andi %1375, %1379 : vector<1x256xi1>
    %c-6_i32_453 = arith.constant -6 : i32
    %1381 = vector.broadcast %c-6_i32_453 : i32 to vector<1x256xi32>
    %1382 = arith.addi %7, %1381 : vector<1x256xi32>
    %c0_i32_454 = arith.constant 0 : i32
    %1383 = vector.broadcast %c0_i32_454 : i32 to vector<1x256xi32>
    %1384 = arith.cmpi sge, %1382, %1383 : vector<1x256xi32>
    %1385 = arith.andi %1380, %1384 : vector<1x256xi1>
    %c-6_i32_455 = arith.constant -6 : i32
    %1386 = vector.broadcast %c-6_i32_455 : i32 to vector<1x256xi32>
    %1387 = arith.addi %7, %1386 : vector<1x256xi32>
    %c16_i32_456 = arith.constant 16 : i32
    %1388 = vector.broadcast %c16_i32_456 : i32 to vector<1x256xi32>
    %1389 = arith.cmpi slt, %1387, %1388 : vector<1x256xi32>
    %1390 = arith.andi %1385, %1389 : vector<1x256xi1>
    %cst_457 = arith.constant 1.000000e+00 : f32
    %cst_458 = arith.constant 0.000000e+00 : f32
    %1391 = vector.broadcast %cst_457 : f32 to vector<1x256xf32>
    %1392 = vector.broadcast %cst_458 : f32 to vector<1x256xf32>
    %1393 = arith.select %1390, %1391, %1392 : vector<1x256xi1>, vector<1x256xf32>
    %1394 = vector.broadcast %1393 : vector<1x256xf32> to vector<2x256xf32>
    %1395 = arith.mulf %1371, %1394 : vector<2x256xf32>
    %1396 = vector.extract_strided_slice %958 {offsets = [0, 15], sizes = [2, 1], strides = [1, 1]} : vector<2x25xf32> to vector<2x1xf32>
    %1397 = vector.broadcast %1396 : vector<2x1xf32> to vector<2x256xf32>
    %1398 = arith.mulf %1395, %1397 : vector<2x256xf32>
    %1399 = arith.addf %1370, %1398 : vector<2x256xf32>
    %c211_i32 = arith.constant 211 : i32
    %1400 = tpu.dynamic_rotate %957 by %c211_i32 dim 1 : vector<2x256xf32>, i32 -> vector<2x256xf32>
    %c3_i32_459 = arith.constant 3 : i32
    %1401 = vector.broadcast %c3_i32_459 : i32 to vector<1x256xi32>
    %1402 = arith.addi %5, %1401 : vector<1x256xi32>
    %c0_i32_460 = arith.constant 0 : i32
    %1403 = vector.broadcast %c0_i32_460 : i32 to vector<1x256xi32>
    %1404 = arith.cmpi sge, %1402, %1403 : vector<1x256xi32>
    %c3_i32_461 = arith.constant 3 : i32
    %1405 = vector.broadcast %c3_i32_461 : i32 to vector<1x256xi32>
    %1406 = arith.addi %5, %1405 : vector<1x256xi32>
    %c16_i32_462 = arith.constant 16 : i32
    %1407 = vector.broadcast %c16_i32_462 : i32 to vector<1x256xi32>
    %1408 = arith.cmpi slt, %1406, %1407 : vector<1x256xi32>
    %1409 = arith.andi %1404, %1408 : vector<1x256xi1>
    %c-3_i32_463 = arith.constant -3 : i32
    %1410 = vector.broadcast %c-3_i32_463 : i32 to vector<1x256xi32>
    %1411 = arith.addi %7, %1410 : vector<1x256xi32>
    %c0_i32_464 = arith.constant 0 : i32
    %1412 = vector.broadcast %c0_i32_464 : i32 to vector<1x256xi32>
    %1413 = arith.cmpi sge, %1411, %1412 : vector<1x256xi32>
    %1414 = arith.andi %1409, %1413 : vector<1x256xi1>
    %c-3_i32_465 = arith.constant -3 : i32
    %1415 = vector.broadcast %c-3_i32_465 : i32 to vector<1x256xi32>
    %1416 = arith.addi %7, %1415 : vector<1x256xi32>
    %c16_i32_466 = arith.constant 16 : i32
    %1417 = vector.broadcast %c16_i32_466 : i32 to vector<1x256xi32>
    %1418 = arith.cmpi slt, %1416, %1417 : vector<1x256xi32>
    %1419 = arith.andi %1414, %1418 : vector<1x256xi1>
    %cst_467 = arith.constant 1.000000e+00 : f32
    %cst_468 = arith.constant 0.000000e+00 : f32
    %1420 = vector.broadcast %cst_467 : f32 to vector<1x256xf32>
    %1421 = vector.broadcast %cst_468 : f32 to vector<1x256xf32>
    %1422 = arith.select %1419, %1420, %1421 : vector<1x256xi1>, vector<1x256xf32>
    %1423 = vector.broadcast %1422 : vector<1x256xf32> to vector<2x256xf32>
    %1424 = arith.mulf %1400, %1423 : vector<2x256xf32>
    %1425 = vector.extract_strided_slice %958 {offsets = [0, 16], sizes = [2, 1], strides = [1, 1]} : vector<2x25xf32> to vector<2x1xf32>
    %1426 = vector.broadcast %1425 : vector<2x1xf32> to vector<2x256xf32>
    %1427 = arith.mulf %1424, %1426 : vector<2x256xf32>
    %1428 = arith.addf %1399, %1427 : vector<2x256xf32>
    %c208_i32 = arith.constant 208 : i32
    %1429 = tpu.dynamic_rotate %957 by %c208_i32 dim 1 : vector<2x256xf32>, i32 -> vector<2x256xf32>
    %c3_i32_469 = arith.constant 3 : i32
    %1430 = vector.broadcast %c3_i32_469 : i32 to vector<1x256xi32>
    %1431 = arith.addi %5, %1430 : vector<1x256xi32>
    %c0_i32_470 = arith.constant 0 : i32
    %1432 = vector.broadcast %c0_i32_470 : i32 to vector<1x256xi32>
    %1433 = arith.cmpi sge, %1431, %1432 : vector<1x256xi32>
    %c3_i32_471 = arith.constant 3 : i32
    %1434 = vector.broadcast %c3_i32_471 : i32 to vector<1x256xi32>
    %1435 = arith.addi %5, %1434 : vector<1x256xi32>
    %c16_i32_472 = arith.constant 16 : i32
    %1436 = vector.broadcast %c16_i32_472 : i32 to vector<1x256xi32>
    %1437 = arith.cmpi slt, %1435, %1436 : vector<1x256xi32>
    %1438 = arith.andi %1433, %1437 : vector<1x256xi1>
    %c0_i32_473 = arith.constant 0 : i32
    %1439 = vector.broadcast %c0_i32_473 : i32 to vector<1x256xi32>
    %1440 = arith.addi %7, %1439 : vector<1x256xi32>
    %c0_i32_474 = arith.constant 0 : i32
    %1441 = vector.broadcast %c0_i32_474 : i32 to vector<1x256xi32>
    %1442 = arith.cmpi sge, %1440, %1441 : vector<1x256xi32>
    %1443 = arith.andi %1438, %1442 : vector<1x256xi1>
    %c0_i32_475 = arith.constant 0 : i32
    %1444 = vector.broadcast %c0_i32_475 : i32 to vector<1x256xi32>
    %1445 = arith.addi %7, %1444 : vector<1x256xi32>
    %c16_i32_476 = arith.constant 16 : i32
    %1446 = vector.broadcast %c16_i32_476 : i32 to vector<1x256xi32>
    %1447 = arith.cmpi slt, %1445, %1446 : vector<1x256xi32>
    %1448 = arith.andi %1443, %1447 : vector<1x256xi1>
    %cst_477 = arith.constant 1.000000e+00 : f32
    %cst_478 = arith.constant 0.000000e+00 : f32
    %1449 = vector.broadcast %cst_477 : f32 to vector<1x256xf32>
    %1450 = vector.broadcast %cst_478 : f32 to vector<1x256xf32>
    %1451 = arith.select %1448, %1449, %1450 : vector<1x256xi1>, vector<1x256xf32>
    %1452 = vector.broadcast %1451 : vector<1x256xf32> to vector<2x256xf32>
    %1453 = arith.mulf %1429, %1452 : vector<2x256xf32>
    %1454 = vector.extract_strided_slice %958 {offsets = [0, 17], sizes = [2, 1], strides = [1, 1]} : vector<2x25xf32> to vector<2x1xf32>
    %1455 = vector.broadcast %1454 : vector<2x1xf32> to vector<2x256xf32>
    %1456 = arith.mulf %1453, %1455 : vector<2x256xf32>
    %1457 = arith.addf %1428, %1456 : vector<2x256xf32>
    %c205_i32 = arith.constant 205 : i32
    %1458 = tpu.dynamic_rotate %957 by %c205_i32 dim 1 : vector<2x256xf32>, i32 -> vector<2x256xf32>
    %c3_i32_479 = arith.constant 3 : i32
    %1459 = vector.broadcast %c3_i32_479 : i32 to vector<1x256xi32>
    %1460 = arith.addi %5, %1459 : vector<1x256xi32>
    %c0_i32_480 = arith.constant 0 : i32
    %1461 = vector.broadcast %c0_i32_480 : i32 to vector<1x256xi32>
    %1462 = arith.cmpi sge, %1460, %1461 : vector<1x256xi32>
    %c3_i32_481 = arith.constant 3 : i32
    %1463 = vector.broadcast %c3_i32_481 : i32 to vector<1x256xi32>
    %1464 = arith.addi %5, %1463 : vector<1x256xi32>
    %c16_i32_482 = arith.constant 16 : i32
    %1465 = vector.broadcast %c16_i32_482 : i32 to vector<1x256xi32>
    %1466 = arith.cmpi slt, %1464, %1465 : vector<1x256xi32>
    %1467 = arith.andi %1462, %1466 : vector<1x256xi1>
    %c3_i32_483 = arith.constant 3 : i32
    %1468 = vector.broadcast %c3_i32_483 : i32 to vector<1x256xi32>
    %1469 = arith.addi %7, %1468 : vector<1x256xi32>
    %c0_i32_484 = arith.constant 0 : i32
    %1470 = vector.broadcast %c0_i32_484 : i32 to vector<1x256xi32>
    %1471 = arith.cmpi sge, %1469, %1470 : vector<1x256xi32>
    %1472 = arith.andi %1467, %1471 : vector<1x256xi1>
    %c3_i32_485 = arith.constant 3 : i32
    %1473 = vector.broadcast %c3_i32_485 : i32 to vector<1x256xi32>
    %1474 = arith.addi %7, %1473 : vector<1x256xi32>
    %c16_i32_486 = arith.constant 16 : i32
    %1475 = vector.broadcast %c16_i32_486 : i32 to vector<1x256xi32>
    %1476 = arith.cmpi slt, %1474, %1475 : vector<1x256xi32>
    %1477 = arith.andi %1472, %1476 : vector<1x256xi1>
    %cst_487 = arith.constant 1.000000e+00 : f32
    %cst_488 = arith.constant 0.000000e+00 : f32
    %1478 = vector.broadcast %cst_487 : f32 to vector<1x256xf32>
    %1479 = vector.broadcast %cst_488 : f32 to vector<1x256xf32>
    %1480 = arith.select %1477, %1478, %1479 : vector<1x256xi1>, vector<1x256xf32>
    %1481 = vector.broadcast %1480 : vector<1x256xf32> to vector<2x256xf32>
    %1482 = arith.mulf %1458, %1481 : vector<2x256xf32>
    %1483 = vector.extract_strided_slice %958 {offsets = [0, 18], sizes = [2, 1], strides = [1, 1]} : vector<2x25xf32> to vector<2x1xf32>
    %1484 = vector.broadcast %1483 : vector<2x1xf32> to vector<2x256xf32>
    %1485 = arith.mulf %1482, %1484 : vector<2x256xf32>
    %1486 = arith.addf %1457, %1485 : vector<2x256xf32>
    %c202_i32 = arith.constant 202 : i32
    %1487 = tpu.dynamic_rotate %957 by %c202_i32 dim 1 : vector<2x256xf32>, i32 -> vector<2x256xf32>
    %c3_i32_489 = arith.constant 3 : i32
    %1488 = vector.broadcast %c3_i32_489 : i32 to vector<1x256xi32>
    %1489 = arith.addi %5, %1488 : vector<1x256xi32>
    %c0_i32_490 = arith.constant 0 : i32
    %1490 = vector.broadcast %c0_i32_490 : i32 to vector<1x256xi32>
    %1491 = arith.cmpi sge, %1489, %1490 : vector<1x256xi32>
    %c3_i32_491 = arith.constant 3 : i32
    %1492 = vector.broadcast %c3_i32_491 : i32 to vector<1x256xi32>
    %1493 = arith.addi %5, %1492 : vector<1x256xi32>
    %c16_i32_492 = arith.constant 16 : i32
    %1494 = vector.broadcast %c16_i32_492 : i32 to vector<1x256xi32>
    %1495 = arith.cmpi slt, %1493, %1494 : vector<1x256xi32>
    %1496 = arith.andi %1491, %1495 : vector<1x256xi1>
    %c6_i32_493 = arith.constant 6 : i32
    %1497 = vector.broadcast %c6_i32_493 : i32 to vector<1x256xi32>
    %1498 = arith.addi %7, %1497 : vector<1x256xi32>
    %c0_i32_494 = arith.constant 0 : i32
    %1499 = vector.broadcast %c0_i32_494 : i32 to vector<1x256xi32>
    %1500 = arith.cmpi sge, %1498, %1499 : vector<1x256xi32>
    %1501 = arith.andi %1496, %1500 : vector<1x256xi1>
    %c6_i32_495 = arith.constant 6 : i32
    %1502 = vector.broadcast %c6_i32_495 : i32 to vector<1x256xi32>
    %1503 = arith.addi %7, %1502 : vector<1x256xi32>
    %c16_i32_496 = arith.constant 16 : i32
    %1504 = vector.broadcast %c16_i32_496 : i32 to vector<1x256xi32>
    %1505 = arith.cmpi slt, %1503, %1504 : vector<1x256xi32>
    %1506 = arith.andi %1501, %1505 : vector<1x256xi1>
    %cst_497 = arith.constant 1.000000e+00 : f32
    %cst_498 = arith.constant 0.000000e+00 : f32
    %1507 = vector.broadcast %cst_497 : f32 to vector<1x256xf32>
    %1508 = vector.broadcast %cst_498 : f32 to vector<1x256xf32>
    %1509 = arith.select %1506, %1507, %1508 : vector<1x256xi1>, vector<1x256xf32>
    %1510 = vector.broadcast %1509 : vector<1x256xf32> to vector<2x256xf32>
    %1511 = arith.mulf %1487, %1510 : vector<2x256xf32>
    %1512 = vector.extract_strided_slice %958 {offsets = [0, 19], sizes = [2, 1], strides = [1, 1]} : vector<2x25xf32> to vector<2x1xf32>
    %1513 = vector.broadcast %1512 : vector<2x1xf32> to vector<2x256xf32>
    %1514 = arith.mulf %1511, %1513 : vector<2x256xf32>
    %1515 = arith.addf %1486, %1514 : vector<2x256xf32>
    %c166_i32 = arith.constant 166 : i32
    %1516 = tpu.dynamic_rotate %957 by %c166_i32 dim 1 : vector<2x256xf32>, i32 -> vector<2x256xf32>
    %c6_i32_499 = arith.constant 6 : i32
    %1517 = vector.broadcast %c6_i32_499 : i32 to vector<1x256xi32>
    %1518 = arith.addi %5, %1517 : vector<1x256xi32>
    %c0_i32_500 = arith.constant 0 : i32
    %1519 = vector.broadcast %c0_i32_500 : i32 to vector<1x256xi32>
    %1520 = arith.cmpi sge, %1518, %1519 : vector<1x256xi32>
    %c6_i32_501 = arith.constant 6 : i32
    %1521 = vector.broadcast %c6_i32_501 : i32 to vector<1x256xi32>
    %1522 = arith.addi %5, %1521 : vector<1x256xi32>
    %c16_i32_502 = arith.constant 16 : i32
    %1523 = vector.broadcast %c16_i32_502 : i32 to vector<1x256xi32>
    %1524 = arith.cmpi slt, %1522, %1523 : vector<1x256xi32>
    %1525 = arith.andi %1520, %1524 : vector<1x256xi1>
    %c-6_i32_503 = arith.constant -6 : i32
    %1526 = vector.broadcast %c-6_i32_503 : i32 to vector<1x256xi32>
    %1527 = arith.addi %7, %1526 : vector<1x256xi32>
    %c0_i32_504 = arith.constant 0 : i32
    %1528 = vector.broadcast %c0_i32_504 : i32 to vector<1x256xi32>
    %1529 = arith.cmpi sge, %1527, %1528 : vector<1x256xi32>
    %1530 = arith.andi %1525, %1529 : vector<1x256xi1>
    %c-6_i32_505 = arith.constant -6 : i32
    %1531 = vector.broadcast %c-6_i32_505 : i32 to vector<1x256xi32>
    %1532 = arith.addi %7, %1531 : vector<1x256xi32>
    %c16_i32_506 = arith.constant 16 : i32
    %1533 = vector.broadcast %c16_i32_506 : i32 to vector<1x256xi32>
    %1534 = arith.cmpi slt, %1532, %1533 : vector<1x256xi32>
    %1535 = arith.andi %1530, %1534 : vector<1x256xi1>
    %cst_507 = arith.constant 1.000000e+00 : f32
    %cst_508 = arith.constant 0.000000e+00 : f32
    %1536 = vector.broadcast %cst_507 : f32 to vector<1x256xf32>
    %1537 = vector.broadcast %cst_508 : f32 to vector<1x256xf32>
    %1538 = arith.select %1535, %1536, %1537 : vector<1x256xi1>, vector<1x256xf32>
    %1539 = vector.broadcast %1538 : vector<1x256xf32> to vector<2x256xf32>
    %1540 = arith.mulf %1516, %1539 : vector<2x256xf32>
    %1541 = vector.extract_strided_slice %958 {offsets = [0, 20], sizes = [2, 1], strides = [1, 1]} : vector<2x25xf32> to vector<2x1xf32>
    %1542 = vector.broadcast %1541 : vector<2x1xf32> to vector<2x256xf32>
    %1543 = arith.mulf %1540, %1542 : vector<2x256xf32>
    %1544 = arith.addf %1515, %1543 : vector<2x256xf32>
    %c163_i32 = arith.constant 163 : i32
    %1545 = tpu.dynamic_rotate %957 by %c163_i32 dim 1 : vector<2x256xf32>, i32 -> vector<2x256xf32>
    %c6_i32_509 = arith.constant 6 : i32
    %1546 = vector.broadcast %c6_i32_509 : i32 to vector<1x256xi32>
    %1547 = arith.addi %5, %1546 : vector<1x256xi32>
    %c0_i32_510 = arith.constant 0 : i32
    %1548 = vector.broadcast %c0_i32_510 : i32 to vector<1x256xi32>
    %1549 = arith.cmpi sge, %1547, %1548 : vector<1x256xi32>
    %c6_i32_511 = arith.constant 6 : i32
    %1550 = vector.broadcast %c6_i32_511 : i32 to vector<1x256xi32>
    %1551 = arith.addi %5, %1550 : vector<1x256xi32>
    %c16_i32_512 = arith.constant 16 : i32
    %1552 = vector.broadcast %c16_i32_512 : i32 to vector<1x256xi32>
    %1553 = arith.cmpi slt, %1551, %1552 : vector<1x256xi32>
    %1554 = arith.andi %1549, %1553 : vector<1x256xi1>
    %c-3_i32_513 = arith.constant -3 : i32
    %1555 = vector.broadcast %c-3_i32_513 : i32 to vector<1x256xi32>
    %1556 = arith.addi %7, %1555 : vector<1x256xi32>
    %c0_i32_514 = arith.constant 0 : i32
    %1557 = vector.broadcast %c0_i32_514 : i32 to vector<1x256xi32>
    %1558 = arith.cmpi sge, %1556, %1557 : vector<1x256xi32>
    %1559 = arith.andi %1554, %1558 : vector<1x256xi1>
    %c-3_i32_515 = arith.constant -3 : i32
    %1560 = vector.broadcast %c-3_i32_515 : i32 to vector<1x256xi32>
    %1561 = arith.addi %7, %1560 : vector<1x256xi32>
    %c16_i32_516 = arith.constant 16 : i32
    %1562 = vector.broadcast %c16_i32_516 : i32 to vector<1x256xi32>
    %1563 = arith.cmpi slt, %1561, %1562 : vector<1x256xi32>
    %1564 = arith.andi %1559, %1563 : vector<1x256xi1>
    %cst_517 = arith.constant 1.000000e+00 : f32
    %cst_518 = arith.constant 0.000000e+00 : f32
    %1565 = vector.broadcast %cst_517 : f32 to vector<1x256xf32>
    %1566 = vector.broadcast %cst_518 : f32 to vector<1x256xf32>
    %1567 = arith.select %1564, %1565, %1566 : vector<1x256xi1>, vector<1x256xf32>
    %1568 = vector.broadcast %1567 : vector<1x256xf32> to vector<2x256xf32>
    %1569 = arith.mulf %1545, %1568 : vector<2x256xf32>
    %1570 = vector.extract_strided_slice %958 {offsets = [0, 21], sizes = [2, 1], strides = [1, 1]} : vector<2x25xf32> to vector<2x1xf32>
    %1571 = vector.broadcast %1570 : vector<2x1xf32> to vector<2x256xf32>
    %1572 = arith.mulf %1569, %1571 : vector<2x256xf32>
    %1573 = arith.addf %1544, %1572 : vector<2x256xf32>
    %c160_i32 = arith.constant 160 : i32
    %1574 = tpu.dynamic_rotate %957 by %c160_i32 dim 1 : vector<2x256xf32>, i32 -> vector<2x256xf32>
    %c6_i32_519 = arith.constant 6 : i32
    %1575 = vector.broadcast %c6_i32_519 : i32 to vector<1x256xi32>
    %1576 = arith.addi %5, %1575 : vector<1x256xi32>
    %c0_i32_520 = arith.constant 0 : i32
    %1577 = vector.broadcast %c0_i32_520 : i32 to vector<1x256xi32>
    %1578 = arith.cmpi sge, %1576, %1577 : vector<1x256xi32>
    %c6_i32_521 = arith.constant 6 : i32
    %1579 = vector.broadcast %c6_i32_521 : i32 to vector<1x256xi32>
    %1580 = arith.addi %5, %1579 : vector<1x256xi32>
    %c16_i32_522 = arith.constant 16 : i32
    %1581 = vector.broadcast %c16_i32_522 : i32 to vector<1x256xi32>
    %1582 = arith.cmpi slt, %1580, %1581 : vector<1x256xi32>
    %1583 = arith.andi %1578, %1582 : vector<1x256xi1>
    %c0_i32_523 = arith.constant 0 : i32
    %1584 = vector.broadcast %c0_i32_523 : i32 to vector<1x256xi32>
    %1585 = arith.addi %7, %1584 : vector<1x256xi32>
    %c0_i32_524 = arith.constant 0 : i32
    %1586 = vector.broadcast %c0_i32_524 : i32 to vector<1x256xi32>
    %1587 = arith.cmpi sge, %1585, %1586 : vector<1x256xi32>
    %1588 = arith.andi %1583, %1587 : vector<1x256xi1>
    %c0_i32_525 = arith.constant 0 : i32
    %1589 = vector.broadcast %c0_i32_525 : i32 to vector<1x256xi32>
    %1590 = arith.addi %7, %1589 : vector<1x256xi32>
    %c16_i32_526 = arith.constant 16 : i32
    %1591 = vector.broadcast %c16_i32_526 : i32 to vector<1x256xi32>
    %1592 = arith.cmpi slt, %1590, %1591 : vector<1x256xi32>
    %1593 = arith.andi %1588, %1592 : vector<1x256xi1>
    %cst_527 = arith.constant 1.000000e+00 : f32
    %cst_528 = arith.constant 0.000000e+00 : f32
    %1594 = vector.broadcast %cst_527 : f32 to vector<1x256xf32>
    %1595 = vector.broadcast %cst_528 : f32 to vector<1x256xf32>
    %1596 = arith.select %1593, %1594, %1595 : vector<1x256xi1>, vector<1x256xf32>
    %1597 = vector.broadcast %1596 : vector<1x256xf32> to vector<2x256xf32>
    %1598 = arith.mulf %1574, %1597 : vector<2x256xf32>
    %1599 = vector.extract_strided_slice %958 {offsets = [0, 22], sizes = [2, 1], strides = [1, 1]} : vector<2x25xf32> to vector<2x1xf32>
    %1600 = vector.broadcast %1599 : vector<2x1xf32> to vector<2x256xf32>
    %1601 = arith.mulf %1598, %1600 : vector<2x256xf32>
    %1602 = arith.addf %1573, %1601 : vector<2x256xf32>
    %c157_i32 = arith.constant 157 : i32
    %1603 = tpu.dynamic_rotate %957 by %c157_i32 dim 1 : vector<2x256xf32>, i32 -> vector<2x256xf32>
    %c6_i32_529 = arith.constant 6 : i32
    %1604 = vector.broadcast %c6_i32_529 : i32 to vector<1x256xi32>
    %1605 = arith.addi %5, %1604 : vector<1x256xi32>
    %c0_i32_530 = arith.constant 0 : i32
    %1606 = vector.broadcast %c0_i32_530 : i32 to vector<1x256xi32>
    %1607 = arith.cmpi sge, %1605, %1606 : vector<1x256xi32>
    %c6_i32_531 = arith.constant 6 : i32
    %1608 = vector.broadcast %c6_i32_531 : i32 to vector<1x256xi32>
    %1609 = arith.addi %5, %1608 : vector<1x256xi32>
    %c16_i32_532 = arith.constant 16 : i32
    %1610 = vector.broadcast %c16_i32_532 : i32 to vector<1x256xi32>
    %1611 = arith.cmpi slt, %1609, %1610 : vector<1x256xi32>
    %1612 = arith.andi %1607, %1611 : vector<1x256xi1>
    %c3_i32_533 = arith.constant 3 : i32
    %1613 = vector.broadcast %c3_i32_533 : i32 to vector<1x256xi32>
    %1614 = arith.addi %7, %1613 : vector<1x256xi32>
    %c0_i32_534 = arith.constant 0 : i32
    %1615 = vector.broadcast %c0_i32_534 : i32 to vector<1x256xi32>
    %1616 = arith.cmpi sge, %1614, %1615 : vector<1x256xi32>
    %1617 = arith.andi %1612, %1616 : vector<1x256xi1>
    %c3_i32_535 = arith.constant 3 : i32
    %1618 = vector.broadcast %c3_i32_535 : i32 to vector<1x256xi32>
    %1619 = arith.addi %7, %1618 : vector<1x256xi32>
    %c16_i32_536 = arith.constant 16 : i32
    %1620 = vector.broadcast %c16_i32_536 : i32 to vector<1x256xi32>
    %1621 = arith.cmpi slt, %1619, %1620 : vector<1x256xi32>
    %1622 = arith.andi %1617, %1621 : vector<1x256xi1>
    %cst_537 = arith.constant 1.000000e+00 : f32
    %cst_538 = arith.constant 0.000000e+00 : f32
    %1623 = vector.broadcast %cst_537 : f32 to vector<1x256xf32>
    %1624 = vector.broadcast %cst_538 : f32 to vector<1x256xf32>
    %1625 = arith.select %1622, %1623, %1624 : vector<1x256xi1>, vector<1x256xf32>
    %1626 = vector.broadcast %1625 : vector<1x256xf32> to vector<2x256xf32>
    %1627 = arith.mulf %1603, %1626 : vector<2x256xf32>
    %1628 = vector.extract_strided_slice %958 {offsets = [0, 23], sizes = [2, 1], strides = [1, 1]} : vector<2x25xf32> to vector<2x1xf32>
    %1629 = vector.broadcast %1628 : vector<2x1xf32> to vector<2x256xf32>
    %1630 = arith.mulf %1627, %1629 : vector<2x256xf32>
    %1631 = arith.addf %1602, %1630 : vector<2x256xf32>
    %c154_i32 = arith.constant 154 : i32
    %1632 = tpu.dynamic_rotate %957 by %c154_i32 dim 1 : vector<2x256xf32>, i32 -> vector<2x256xf32>
    %c6_i32_539 = arith.constant 6 : i32
    %1633 = vector.broadcast %c6_i32_539 : i32 to vector<1x256xi32>
    %1634 = arith.addi %5, %1633 : vector<1x256xi32>
    %c0_i32_540 = arith.constant 0 : i32
    %1635 = vector.broadcast %c0_i32_540 : i32 to vector<1x256xi32>
    %1636 = arith.cmpi sge, %1634, %1635 : vector<1x256xi32>
    %c6_i32_541 = arith.constant 6 : i32
    %1637 = vector.broadcast %c6_i32_541 : i32 to vector<1x256xi32>
    %1638 = arith.addi %5, %1637 : vector<1x256xi32>
    %c16_i32_542 = arith.constant 16 : i32
    %1639 = vector.broadcast %c16_i32_542 : i32 to vector<1x256xi32>
    %1640 = arith.cmpi slt, %1638, %1639 : vector<1x256xi32>
    %1641 = arith.andi %1636, %1640 : vector<1x256xi1>
    %c6_i32_543 = arith.constant 6 : i32
    %1642 = vector.broadcast %c6_i32_543 : i32 to vector<1x256xi32>
    %1643 = arith.addi %7, %1642 : vector<1x256xi32>
    %c0_i32_544 = arith.constant 0 : i32
    %1644 = vector.broadcast %c0_i32_544 : i32 to vector<1x256xi32>
    %1645 = arith.cmpi sge, %1643, %1644 : vector<1x256xi32>
    %1646 = arith.andi %1641, %1645 : vector<1x256xi1>
    %c6_i32_545 = arith.constant 6 : i32
    %1647 = vector.broadcast %c6_i32_545 : i32 to vector<1x256xi32>
    %1648 = arith.addi %7, %1647 : vector<1x256xi32>
    %c16_i32_546 = arith.constant 16 : i32
    %1649 = vector.broadcast %c16_i32_546 : i32 to vector<1x256xi32>
    %1650 = arith.cmpi slt, %1648, %1649 : vector<1x256xi32>
    %1651 = arith.andi %1646, %1650 : vector<1x256xi1>
    %cst_547 = arith.constant 1.000000e+00 : f32
    %cst_548 = arith.constant 0.000000e+00 : f32
    %1652 = vector.broadcast %cst_547 : f32 to vector<1x256xf32>
    %1653 = vector.broadcast %cst_548 : f32 to vector<1x256xf32>
    %1654 = arith.select %1651, %1652, %1653 : vector<1x256xi1>, vector<1x256xf32>
    %1655 = vector.broadcast %1654 : vector<1x256xf32> to vector<2x256xf32>
    %1656 = arith.mulf %1632, %1655 : vector<2x256xf32>
    %1657 = vector.extract_strided_slice %958 {offsets = [0, 24], sizes = [2, 1], strides = [1, 1]} : vector<2x25xf32> to vector<2x1xf32>
    %1658 = vector.broadcast %1657 : vector<2x1xf32> to vector<2x256xf32>
    %1659 = arith.mulf %1656, %1658 : vector<2x256xf32>
    %1660 = arith.addf %1631, %1659 : vector<2x256xf32>
    %1661 = vector.broadcast %959 : vector<2x1xf32> to vector<2x256xf32>
    %1662 = arith.addf %1660, %1661 : vector<2x256xf32>
    %c320 = arith.constant 320 : index
    %c0_549 = arith.constant 0 : index
    %1663 = vector.load %arg2[%c320, %c0_549] : memref<464x144xf32, #tpu.memory_space<vmem>>, vector<1x2xf32>
    %cst_550 = arith.constant dense<0.000000e+00> : vector<1x256xf32>
    %1664 = tpu.matmul %1663, %1662, %cst_550 {dimension_numbers = #tpu.dot_dimension_numbers<[1], [0], [0], [1], [0, 0, 1, 1], [], []>} : vector<1x2xf32>, vector<2x256xf32>, vector<1x256xf32> -> vector<1x256xf32>
    %c328 = arith.constant 328 : index
    %c0_551 = arith.constant 0 : index
    %1665 = vector.load %arg2[%c328, %c0_551] : memref<464x144xf32, #tpu.memory_space<vmem>>, vector<1x1xf32>
    %1666 = vector.broadcast %1665 : vector<1x1xf32> to vector<1x256xf32>
    %1667 = arith.addf %1664, %1666 : vector<1x256xf32>
    %1668 = vector.broadcast %1667 : vector<1x256xf32> to vector<32x256xf32>
    %1669 = arith.mulf %1668, %414 : vector<32x256xf32>
    %cst_552 = arith.constant dense<0.000000e+00> : vector<32xf32>
    %1670 = vector.multi_reduction <add>, %1669, %cst_552 [1] : vector<32x256xf32> to vector<32xf32>
    %1671 = vector.shape_cast %1670 : vector<32xf32> to vector<32x1xf32>
    %cst_553 = arith.constant 2.560000e+02 : f32
    %1672 = vector.broadcast %cst_553 : f32 to vector<32x1xf32>
    %1673 = arith.divf %1671, %1672 : vector<32x1xf32>
    %1674 = vector.broadcast %1673 : vector<32x1xf32> to vector<32x256xf32>
    %1675 = arith.subf %1669, %1674 : vector<32x256xf32>
    %1676 = arith.mulf %1675, %1675 : vector<32x256xf32>
    %cst_554 = arith.constant dense<0.000000e+00> : vector<32xf32>
    %1677 = vector.multi_reduction <add>, %1676, %cst_554 [1] : vector<32x256xf32> to vector<32xf32>
    %1678 = vector.shape_cast %1677 : vector<32xf32> to vector<32x1xf32>
    %cst_555 = arith.constant 2.560000e+02 : f32
    %1679 = vector.broadcast %cst_555 : f32 to vector<32x1xf32>
    %1680 = arith.divf %1678, %1679 : vector<32x1xf32>
    %cst_556 = arith.constant 9.99999974E-6 : f32
    %1681 = vector.broadcast %cst_556 : f32 to vector<32x1xf32>
    %1682 = arith.addf %1680, %1681 : vector<32x1xf32>
    %1683 = math.rsqrt %1682 : vector<32x1xf32>
    %1684 = vector.broadcast %1683 : vector<32x1xf32> to vector<32x256xf32>
    %1685 = arith.mulf %1675, %1684 : vector<32x256xf32>
    %c336 = arith.constant 336 : index
    %c0_557 = arith.constant 0 : index
    %1686 = vector.load %arg2[%c336, %c0_557] : memref<464x144xf32, #tpu.memory_space<vmem>>, vector<32x32xf32>
    %cst_558 = arith.constant dense<0.000000e+00> : vector<32x256xf32>
    %1687 = tpu.matmul %1686, %1685, %cst_558 {dimension_numbers = #tpu.dot_dimension_numbers<[1], [0], [0], [1], [0, 0, 1, 1], [], []>} : vector<32x32xf32>, vector<32x256xf32>, vector<32x256xf32> -> vector<32x256xf32>
    %c368 = arith.constant 368 : index
    %c0_559 = arith.constant 0 : index
    %1688 = vector.load %arg2[%c368, %c0_559] : memref<464x144xf32, #tpu.memory_space<vmem>>, vector<32x1xf32>
    %1689 = vector.broadcast %1688 : vector<32x1xf32> to vector<32x256xf32>
    %1690 = arith.addf %1687, %1689 : vector<32x256xf32>
    %cst_560 = arith.constant 5.000000e-01 : f32
    %1691 = vector.broadcast %cst_560 : f32 to vector<32x256xf32>
    %1692 = arith.mulf %1691, %1690 : vector<32x256xf32>
    %cst_561 = arith.constant 0.707106769 : f32
    %1693 = vector.broadcast %cst_561 : f32 to vector<32x256xf32>
    %1694 = arith.mulf %1690, %1693 : vector<32x256xf32>
    %1695 = math.absf %1694 : vector<32x256xf32>
    %cst_562 = arith.constant 0.327591091 : f32
    %1696 = vector.broadcast %cst_562 : f32 to vector<32x256xf32>
    %1697 = arith.mulf %1696, %1695 : vector<32x256xf32>
    %cst_563 = arith.constant 1.000000e+00 : f32
    %1698 = vector.broadcast %cst_563 : f32 to vector<32x256xf32>
    %1699 = arith.addf %1698, %1697 : vector<32x256xf32>
    %cst_564 = arith.constant 1.000000e+00 : f32
    %1700 = vector.broadcast %cst_564 : f32 to vector<32x256xf32>
    %1701 = arith.divf %1700, %1699 : vector<32x256xf32>
    %cst_565 = arith.constant 1.06140542 : f32
    %1702 = vector.broadcast %cst_565 : f32 to vector<32x256xf32>
    %1703 = arith.mulf %1702, %1701 : vector<32x256xf32>
    %cst_566 = arith.constant -1.45315206 : f32
    %1704 = vector.broadcast %cst_566 : f32 to vector<32x256xf32>
    %1705 = arith.addf %1703, %1704 : vector<32x256xf32>
    %1706 = arith.mulf %1705, %1701 : vector<32x256xf32>
    %cst_567 = arith.constant 1.42141378 : f32
    %1707 = vector.broadcast %cst_567 : f32 to vector<32x256xf32>
    %1708 = arith.addf %1706, %1707 : vector<32x256xf32>
    %1709 = arith.mulf %1708, %1701 : vector<32x256xf32>
    %cst_568 = arith.constant -0.284496725 : f32
    %1710 = vector.broadcast %cst_568 : f32 to vector<32x256xf32>
    %1711 = arith.addf %1709, %1710 : vector<32x256xf32>
    %1712 = arith.mulf %1711, %1701 : vector<32x256xf32>
    %cst_569 = arith.constant 0.254829586 : f32
    %1713 = vector.broadcast %cst_569 : f32 to vector<32x256xf32>
    %1714 = arith.addf %1712, %1713 : vector<32x256xf32>
    %1715 = arith.mulf %1714, %1701 : vector<32x256xf32>
    %cst_570 = arith.constant 0.000000e+00 : f32
    %1716 = vector.broadcast %cst_570 : f32 to vector<32x256xf32>
    %1717 = arith.subf %1716, %1695 : vector<32x256xf32>
    %1718 = arith.mulf %1717, %1695 : vector<32x256xf32>
    %1719 = math.exp %1718 : vector<32x256xf32>
    %1720 = arith.mulf %1715, %1719 : vector<32x256xf32>
    %cst_571 = arith.constant 1.000000e+00 : f32
    %1721 = vector.broadcast %cst_571 : f32 to vector<32x256xf32>
    %1722 = arith.subf %1721, %1720 : vector<32x256xf32>
    %cst_572 = arith.constant 0.000000e+00 : f32
    %1723 = vector.broadcast %cst_572 : f32 to vector<32x256xf32>
    %1724 = arith.cmpf oge, %1694, %1723 : vector<32x256xf32>
    %cst_573 = arith.constant 0.000000e+00 : f32
    %1725 = vector.broadcast %cst_573 : f32 to vector<32x256xf32>
    %1726 = arith.subf %1725, %1722 : vector<32x256xf32>
    %1727 = arith.select %1724, %1722, %1726 : vector<32x256xi1>, vector<32x256xf32>
    %cst_574 = arith.constant 1.000000e+00 : f32
    %1728 = vector.broadcast %cst_574 : f32 to vector<32x256xf32>
    %1729 = arith.addf %1728, %1727 : vector<32x256xf32>
    %1730 = arith.mulf %1692, %1729 : vector<32x256xf32>
    %c400 = arith.constant 400 : index
    %c0_575 = arith.constant 0 : index
    %1731 = vector.load %arg2[%c400, %c0_575] : memref<464x144xf32, #tpu.memory_space<vmem>>, vector<16x32xf32>
    %cst_576 = arith.constant dense<0.000000e+00> : vector<16x256xf32>
    %1732 = tpu.matmul %1731, %1730, %cst_576 {dimension_numbers = #tpu.dot_dimension_numbers<[1], [0], [0], [1], [0, 0, 1, 1], [], []>} : vector<16x32xf32>, vector<32x256xf32>, vector<16x256xf32> -> vector<16x256xf32>
    %c416 = arith.constant 416 : index
    %c0_577 = arith.constant 0 : index
    %1733 = vector.load %arg2[%c416, %c0_577] : memref<464x144xf32, #tpu.memory_space<vmem>>, vector<16x1xf32>
    %1734 = vector.broadcast %1733 : vector<16x1xf32> to vector<16x256xf32>
    %1735 = arith.addf %1732, %1734 : vector<16x256xf32>
    %c432 = arith.constant 432 : index
    %c0_578 = arith.constant 0 : index
    %1736 = vector.load %arg2[%c432, %c0_578] : memref<464x144xf32, #tpu.memory_space<vmem>>, vector<16x1xf32>
    %1737 = vector.broadcast %1736 : vector<16x1xf32> to vector<16x256xf32>
    %1738 = arith.mulf %1735, %1737 : vector<16x256xf32>
    %1739 = arith.addf %213, %1738 : vector<16x256xf32>
    %c448 = arith.constant 448 : index
    %c0_579 = arith.constant 0 : index
    %1740 = vector.load %arg2[%c448, %c0_579] : memref<464x144xf32, #tpu.memory_space<vmem>>, vector<3x144xf32>
    %c456 = arith.constant 456 : index
    %c0_580 = arith.constant 0 : index
    %1741 = vector.load %arg2[%c456, %c0_580] : memref<464x144xf32, #tpu.memory_space<vmem>>, vector<3x1xf32>
    %c17_i32_581 = arith.constant 17 : i32
    %1742 = tpu.dynamic_rotate %1739 by %c17_i32_581 dim 1 : vector<16x256xf32>, i32 -> vector<16x256xf32>
    %1743 = vector.broadcast %32 : vector<1x256xf32> to vector<16x256xf32>
    %1744 = arith.mulf %1742, %1743 : vector<16x256xf32>
    %c16_i32_582 = arith.constant 16 : i32
    %1745 = tpu.dynamic_rotate %1739 by %c16_i32_582 dim 1 : vector<16x256xf32>, i32 -> vector<16x256xf32>
    %1746 = vector.broadcast %57 : vector<1x256xf32> to vector<16x256xf32>
    %1747 = arith.mulf %1745, %1746 : vector<16x256xf32>
    %c15_i32_583 = arith.constant 15 : i32
    %1748 = tpu.dynamic_rotate %1739 by %c15_i32_583 dim 1 : vector<16x256xf32>, i32 -> vector<16x256xf32>
    %1749 = vector.broadcast %82 : vector<1x256xf32> to vector<16x256xf32>
    %1750 = arith.mulf %1748, %1749 : vector<16x256xf32>
    %c1_i32_584 = arith.constant 1 : i32
    %1751 = tpu.dynamic_rotate %1739 by %c1_i32_584 dim 1 : vector<16x256xf32>, i32 -> vector<16x256xf32>
    %1752 = vector.broadcast %107 : vector<1x256xf32> to vector<16x256xf32>
    %1753 = arith.mulf %1751, %1752 : vector<16x256xf32>
    %c255_i32_585 = arith.constant 255 : i32
    %1754 = tpu.dynamic_rotate %1739 by %c255_i32_585 dim 1 : vector<16x256xf32>, i32 -> vector<16x256xf32>
    %1755 = vector.broadcast %132 : vector<1x256xf32> to vector<16x256xf32>
    %1756 = arith.mulf %1754, %1755 : vector<16x256xf32>
    %c241_i32_586 = arith.constant 241 : i32
    %1757 = tpu.dynamic_rotate %1739 by %c241_i32_586 dim 1 : vector<16x256xf32>, i32 -> vector<16x256xf32>
    %1758 = vector.broadcast %157 : vector<1x256xf32> to vector<16x256xf32>
    %1759 = arith.mulf %1757, %1758 : vector<16x256xf32>
    %c240_i32_587 = arith.constant 240 : i32
    %1760 = tpu.dynamic_rotate %1739 by %c240_i32_587 dim 1 : vector<16x256xf32>, i32 -> vector<16x256xf32>
    %1761 = vector.broadcast %182 : vector<1x256xf32> to vector<16x256xf32>
    %1762 = arith.mulf %1760, %1761 : vector<16x256xf32>
    %c239_i32_588 = arith.constant 239 : i32
    %1763 = tpu.dynamic_rotate %1739 by %c239_i32_588 dim 1 : vector<16x256xf32>, i32 -> vector<16x256xf32>
    %1764 = vector.broadcast %207 : vector<1x256xf32> to vector<16x256xf32>
    %1765 = arith.mulf %1763, %1764 : vector<16x256xf32>
    %1766 = tpu.concatenate %1744, %1747, %1750, %1753, %1739, %1756, %1759, %1762, %1765 in 0 : vector<16x256xf32>, vector<16x256xf32>, vector<16x256xf32>, vector<16x256xf32>, vector<16x256xf32>, vector<16x256xf32>, vector<16x256xf32>, vector<16x256xf32>, vector<16x256xf32> -> vector<144x256xf32>
    %cst_589 = arith.constant dense<0.000000e+00> : vector<3x256xf32>
    %1767 = tpu.matmul %1740, %1766, %cst_589 {dimension_numbers = #tpu.dot_dimension_numbers<[1], [0], [0], [1], [0, 0, 1, 1], [], []>} : vector<3x144xf32>, vector<144x256xf32>, vector<3x256xf32> -> vector<3x256xf32>
    %1768 = vector.broadcast %1741 : vector<3x1xf32> to vector<3x256xf32>
    %1769 = arith.addf %1767, %1768 : vector<3x256xf32>
    %1770 = arith.addf %1769, %2 : vector<3x256xf32>
    %cst_590 = arith.constant -1.000000e+00 : f32
    %cst_591 = arith.constant 1.000000e+00 : f32
    %1771 = vector.broadcast %cst_590 : f32 to vector<3x256xf32>
    %1772 = arith.maximumf %1771, %1770 : vector<3x256xf32>
    %1773 = vector.broadcast %cst_591 : f32 to vector<3x256xf32>
    %1774 = arith.minimumf %1773, %1772 : vector<3x256xf32>
    %c0_592 = arith.constant 0 : index
    %c0_593 = arith.constant 0 : index
    %c0_594 = arith.constant 0 : index
    %1775 = vector.load %arg3[%c0_592, %c0_593, %c0_594] : memref<1x3x256xf32, #tpu.memory_space<vmem>>, vector<1x3x256xf32>
    %1776 = vector.shape_cast %1775 : vector<1x3x256xf32> to vector<3x256xf32>
    %1777 = vector.shape_cast %1774 : vector<3x256xf32> to vector<1x3x256xf32>
    tpu.vector_store %arg3[%c0_592, %c0_593, %c0_594], %1777 {strides = array<i32>} : memref<1x3x256xf32, #tpu.memory_space<vmem>>, vector<1x3x256xf32>,
    return
  }
  func.func @transform_0(%arg0: i32) -> (i32, i32, i32) {
    %c0_i32 = arith.constant 0 : i32
    %c0_i32_0 = arith.constant 0 : i32
    %c0_i32_1 = arith.constant 0 : i32
    return %arg0, %c0_i32, %c0_i32_0 : i32, i32, i32
  }
  func.func @transform_1(%arg0: i32) -> (i32, i32) {
    %c0_i32 = arith.constant 0 : i32
    %c0_i32_0 = arith.constant 0 : i32
    %c0_i32_1 = arith.constant 0 : i32
    return %c0_i32, %c0_i32_0 : i32, i32
  }
  func.func @transform_2(%arg0: i32) -> (i32, i32, i32) {
    %c0_i32 = arith.constant 0 : i32
    %c0_i32_0 = arith.constant 0 : i32
    %c0_i32_1 = arith.constant 0 : i32
    return %arg0, %c0_i32, %c0_i32_0 : i32, i32, i32
  }
}

</mosaic_0001>

<llo_original>
// kernel: spnet_md_forward.1
$region0: #{spnet_md_forward.1}
  #allocation0 [shape = 'u32[]', space=smem, size = 0x4, offset = 0x4, fixed_abs, tag = 'smem constant byte address 0x4 - core index']
  #allocation1 [shape = 'u32[144,128]{1,0:T(1,128)}', space=vmem, size = 0x12000, scoped, tag = 'internal scratch']
  %s0 = inlined_call_operand.vmem [shape: f32[2,8,256], index: 0, kind: input, shape index: {}]
  %s1 = inlined_call_operand.vmem [shape: f32[464,144], index: 1, kind: input, shape index: {}]
  %s2 = inlined_call_operand.vmem [shape: f32[2,3,256], index: 2, kind: output, shape index: {}]
  %s3 = sld [smem:[#allocation0]]
  $region41: #{spnet_md_forward.1} parent=0
    _
  %s5 = ssub.s32 1, %s3
  %s6 = scalar_select 0, %s5, %s3
  loop: start=0, step=1, limit=4
  $region2: #{spnet_md_forward.1} parent=0 // loop_pre_header
    _
  $region3: #{spnet_md_forward.1} parent=0 // loop_header
    %s8 = sphi 0, %s12
    %p9 = scmp.ge.s32.totalorder %s8, 4
    %s18 = sphi 0, %s20
    %s21 = sphi 0, %s18
    %s22 = sphi 0, %s21
    %s38 = sphi 0, %s22
    %s42 = sphi 0, %s42
    %s44 = sphi 0, %s42
    %s45 = sphi 0, %s44
    %s59 = sphi 0, %s45
    %s65 = sphi 0, %s67
    %s68 = sphi 0, %s65
    %s69 = sphi 0, %s68
    %s85 = sphi 0, %s69
  $region4: #{spnet_md_forward.1} parent=0 // loop_header_branch
    %11 = sbr.rel (%p9) target = $region8
  $region5: #{spnet_md_forward.1} parent=0 // loop_body
    %s13 = ssub.s32 %s8, 1
    %s14 = ssub.s32 %s8, 2
    %s15 = sadd.s32 %s8, 1
    %s16 = ssub.s32 %s8, %s15
    %p17 = scmp.eq.s32.totalorder %s16, 0
    %s19 = sadd.s32 %s18, 1
    %s20 = scalar_select %p17, %s18, %s19
    %p23 = pneg %p17
    %p24 = scmp.eq.s32.totalorder %s8, 1
    %p25 = por %p23, %p24
    %p26 = scmp.ne.s32.totalorder %s18, %s21
    %p27 = scmp.eq.s32.totalorder %s8, 0
    %p28 = por %p26, %p27
    %p29 = scmp.ne.s32.totalorder %s18, %s21
    %p30 = scmp.eq.s32.totalorder %s13, 1
    %p31 = por %p29, %p30
    %p32 = scmp.ne.s32.totalorder %s21, %s22
    %p33 = scmp.eq.s32.totalorder %s13, 0
    %p34 = por %p32, %p33
    %p35 = scmp.ne.s32.totalorder %s21, %s22
    %p36 = scmp.eq.s32.totalorder %s14, 1
    %p37 = por %p35, %p36
    %p39 = scmp.ne.s32.totalorder %s22, %s38
    %p40 = scmp.eq.s32.totalorder %s14, 0
    %p41 = por %p39, %p40
    %s43 = sadd.s32 %s42, 1
    %p46 = scmp.eq.s32.totalorder %s8, 1
    %p47 = scmp.ne.s32.totalorder %s42, %s44
    %p48 = scmp.eq.s32.totalorder %s8, 0
    %p49 = por %p47, %p48
    %p50 = scmp.ne.s32.totalorder %s42, %s44
    %p51 = scmp.eq.s32.totalorder %s13, 1
    %p52 = por %p50, %p51
    %p53 = scmp.ne.s32.totalorder %s44, %s45
    %p54 = scmp.eq.s32.totalorder %s13, 0
    %p55 = por %p53, %p54
    %p56 = scmp.ne.s32.totalorder %s44, %s45
    %p57 = scmp.eq.s32.totalorder %s14, 1
    %p58 = por %p56, %p57
    %p60 = scmp.ne.s32.totalorder %s45, %s59
    %p61 = scmp.eq.s32.totalorder %s14, 0
    %p62 = por %p60, %p61
    %s63 = ssub.s32 %s8, %s15
    %p64 = scmp.eq.s32.totalorder %s63, 0
    %s66 = sadd.s32 %s65, 1
    %s67 = scalar_select %p64, %s65, %s66
    %p70 = pneg %p64
    %p71 = scmp.eq.s32.totalorder %s8, 1
    %p72 = por %p70, %p71
    %p73 = scmp.ne.s32.totalorder %s65, %s68
    %p74 = scmp.eq.s32.totalorder %s8, 0
    %p75 = por %p73, %p74
    %p76 = scmp.ne.s32.totalorder %s65, %s68
    %p77 = scmp.eq.s32.totalorder %s13, 1
    %p78 = por %p76, %p77
    %p79 = scmp.ne.s32.totalorder %s68, %s69
    %p80 = scmp.eq.s32.totalorder %s13, 0
    %p81 = por %p79, %p80
    %p82 = scmp.ne.s32.totalorder %s68, %s69
    %p83 = scmp.eq.s32.totalorder %s14, 1
    %p84 = por %p82, %p83
    %p86 = scmp.ne.s32.totalorder %s69, %s85
    %p87 = scmp.eq.s32.totalorder %s14, 0
    %p88 = por %p86, %p87
    %p89 = scmp.le.s32.totalorder 1, %s8
    %p90 = scmp.lt.s32.totalorder %s8, 3
    %p91 = pnand %p89, %p90
    %p92 = pneg %p91
    // Predicated region
    $region9: #{spnet_md_forward.1} parent=5 // pred_check
      _
    $region10: #{spnet_md_forward.1} parent=5 // pred_check_branch
      %94 = sbr.rel (%p91) target = $region12
    $region11: #{spnet_md_forward.1} parent=5 // pred_region
      %s95 = ssub.s32 %s8, 1
      // Predicated region
      $region13: #{spnet_md_forward.1} parent=11 // pred_check
        %p96 = pneg %p55
      $region14: #{spnet_md_forward.1} parent=11 // pred_check_branch
        %98 = sbr.rel (%p96) target = $region16
      $region15: #{spnet_md_forward.1} parent=11 // pred_region
        _
      $region16: #{spnet_md_forward.1} parent=11 // pred_fallthru
        _
    $region12: #{spnet_md_forward.1} parent=5 // pred_fallthru
      _
    %p99 = scmp.lt.s32.totalorder %s8, 2
    // Predicated region
    $region17: #{spnet_md_forward.1} parent=5 // pred_check
      %p100 = pneg %p99
    $region18: #{spnet_md_forward.1} parent=5 // pred_check_branch
      %102 = sbr.rel (%p100) target = $region20
    $region19: #{spnet_md_forward.1} parent=5 // pred_region
      // Predicated region
      $region21: #{spnet_md_forward.1} parent=19 // pred_check
        %p103 = pneg %p28
      $region22: #{spnet_md_forward.1} parent=19 // pred_check_branch
        %105 = sbr.rel (%p103) target = $region24
      $region23: #{spnet_md_forward.1} parent=19 // pred_region
        %p106 = scmp.lt.s32.totalorder %s8, 1
        %s107 = scalar_select %p106, %s8, 1
        %s108 = smul.addr %s107, 2
        %s109 = smul.addr %s108, 8
        %s110 = scalar_lea.vmem %s0, %s109
      $region24: #{spnet_md_forward.1} parent=19 // pred_fallthru
        _
    $region20: #{spnet_md_forward.1} parent=5 // pred_fallthru
      _
    %p111 = scmp.le.s32.totalorder 1, %s8
    %p112 = scmp.lt.s32.totalorder %s8, 3
    %p113 = pnand %p111, %p112
    %p114 = pneg %p113
    // Predicated region
    $region25: #{spnet_md_forward.1} parent=5 // pred_check
      _
    $region26: #{spnet_md_forward.1} parent=5 // pred_check_branch
      %116 = sbr.rel (%p113) target = $region28
    $region27: #{spnet_md_forward.1} parent=5 // pred_region
      %s117 = ssub.s32 %s8, 1
      %p118 = scmp.lt.s32.totalorder %s13, 1
      %s119 = scalar_select %p118, %s13, 1
      %s120 = smul.addr %s119, 2
      %s121 = smul.addr %s120, 8
      %s122 = scalar_lea.vmem %s0, %s121
      %p123 = pneg %p34
      %p124 = pneg %p31
      %p125 = pneg %p55
      %p126 = pneg %p52
      %p127 = pneg %p81
      %p128 = pneg %p78
      %p129 = scmp.lt.s32.totalorder %s13, 1
      %s130 = scalar_select %p129, %s13, 1
      %s131 = smul.addr %s130, 2
      %s132 = smul.addr %s131, 4
      %s133 = scalar_lea.vmem %s2, %s132
      %p134 = scmp.lt.s32.totalorder %s13, 1
      %s135 = scalar_select %p134, %s13, 1
      %s136 = smul.addr %s135, 2
      %s137 = smul.addr %s136, 8
      %s138 = scalar_lea.vmem %s0, %s137
      %p139 = scmp.lt.s32.totalorder %s13, 1
      %s140 = scalar_select %p139, %s13, 1
      %s141 = smul.addr %s140, 2
      %s142 = smul.addr %s141, 4
      %s143 = scalar_lea.vmem %s2, %s142
      %v144 = vld [vmem:[%s138] sm:$0xff]
      %v145 = vld [vmem:[%s138 + $0x8] sm:$0xff]
      %v146 = vlaneseq
      %v147 = vand.u32 %v146, 127
      %v148 = vadd.s32 %v147, 128
      %v149 = vshra.s32 %v147, 4
      %v150 = vshra.s32 %v148, 4
      %v151 = vand.u32 %v147, 15
      %v152 = vand.u32 %v148, 15
      %v153 = vld [vmem:[%s1] sm:$0xff]
      %v154 = vld [vmem:[%s1 + $0x10] sm:$0xff]
      %v155 = vld [vmem:[%s1 + $0x20] sm:$0xff]
      %v156 = vld [vmem:[%s1 + $0x30] sm:$0xff]
      %157 = vrot.lane.b32.xlu0 %v144, 17
      %v158 = vpop.permute.xlu0 %157
      %159 = vrot.lane.b32.xlu0 %v145, 17
      %v160 = vpop.permute.xlu0 %159
      %vm161 = vcmp.lt.s32.totalorder %v147, 17
      %v162 = vsel %vm161, %v158, %v160
      %v163 = vsel %vm161, %v160, %v158
      %v164 = vadd.s32 %v149, 4294967295
      %v165 = vadd.s32 %v150, 4294967295
      %vm166 = vcmp.ge.s32.totalorder %v164, 0
      %vm167 = vcmp.ge.s32.totalorder %v165, 0
      %vm168 = vcmp.lt.s32.totalorder %v164, 16
      %vm169 = vcmp.lt.s32.totalorder %v165, 16
      %vm170 = vmand %vm166, %vm168
      %vm171 = vmand %vm167, %vm169
      %v172 = vadd.s32 %v151, 4294967295
      %v173 = vadd.s32 %v152, 4294967295
      %vm174 = vcmp.ge.s32.totalorder %v172, 0
      %vm175 = vcmp.ge.s32.totalorder %v173, 0
      %vm176 = vmand %vm170, %vm174
      %vm177 = vmand %vm171, %vm175
      %vm178 = vcmp.lt.s32.totalorder %v172, 16
      %vm179 = vcmp.lt.s32.totalorder %v173, 16
      %vm180 = vmand %vm176, %vm178
      %vm181 = vmand %vm177, %vm179
      %v182 = vsel %vm180, 1.0, 0.0
      %v183 = vsel %vm181, 1.0, 0.0
      %v184 = vmul.f32 %v163, %v182
      %v185 = vmul.f32 %v162, %v183
      %186 = vrot.lane.b32.xlu0 %v144, 16
      %v187 = vpop.permute.xlu0 %186
      %188 = vrot.lane.b32.xlu0 %v145, 16
      %v189 = vpop.permute.xlu0 %188
      %vm190 = vcmp.lt.s32.totalorder %v147, 16
      %v191 = vsel %vm190, %v187, %v189
      %v192 = vsel %vm190, %v189, %v187
      %vm193 = vcmp.ge.s32.totalorder %v151, 0
      %vm194 = vcmp.ge.s32.totalorder %v152, 0
      %vm195 = vmand %vm170, %vm193
      %vm196 = vmand %vm171, %vm194
      %vm197 = vcmp.lt.s32.totalorder %v151, 16
      %vm198 = vcmp.lt.s32.totalorder %v152, 16
      %vm199 = vmand %vm195, %vm197
      %vm200 = vmand %vm196, %vm198
      %v201 = vsel %vm199, 1.0, 0.0
      %v202 = vsel %vm200, 1.0, 0.0
      %v203 = vmul.f32 %v192, %v201
      %v204 = vmul.f32 %v191, %v202
      %205 = vrot.lane.b32.xlu0 %v144, 15
      %v206 = vpop.permute.xlu0 %205
      %207 = vrot.lane.b32.xlu0 %v145, 15
      %v208 = vpop.permute.xlu0 %207
      %vm209 = vcmp.lt.s32.totalorder %v147, 15
      %v210 = vsel %vm209, %v206, %v208
      %v211 = vsel %vm209, %v208, %v206
      %v212 = vadd.s32 %v151, 1
      %v213 = vadd.s32 %v152, 1
      %vm214 = vcmp.ge.s32.totalorder %v212, 0
      %vm215 = vcmp.ge.s32.totalorder %v213, 0
      %vm216 = vmand %vm170, %vm214
      %vm217 = vmand %vm171, %vm215
      %vm218 = vcmp.lt.s32.totalorder %v212, 16
      %vm219 = vcmp.lt.s32.totalorder %v213, 16
      %vm220 = vmand %vm216, %vm218
      %vm221 = vmand %vm217, %vm219
      %v222 = vsel %vm220, 1.0, 0.0
      %v223 = vsel %vm221, 1.0, 0.0
      %v224 = vmul.f32 %v211, %v222
      %v225 = vmul.f32 %v210, %v223
      %226 = vrot.lane.b32.xlu0 %v144, 1
      %v227 = vpop.permute.xlu0 %226
      %228 = vrot.lane.b32.xlu0 %v145, 1
      %v229 = vpop.permute.xlu0 %228
      %vm230 = vcmp.lt.s32.totalorder %v147, 1
      %v231 = vsel %vm230, %v227, %v229
      %v232 = vsel %vm230, %v229, %v227
      %vm233 = vcmp.ge.s32.totalorder %v149, 0
      %vm234 = vcmp.ge.s32.totalorder %v150, 0
      %vm235 = vcmp.lt.s32.totalorder %v149, 16
      %vm236 = vcmp.lt.s32.totalorder %v150, 16
      %vm237 = vmand %vm233, %vm235
      %vm238 = vmand %vm234, %vm236
      %vm239 = vmand %vm237, %vm174
      %vm240 = vmand %vm238, %vm175
      %vm241 = vmand %vm239, %vm178
      %vm242 = vmand %vm240, %vm179
      %v243 = vsel %vm241, 1.0, 0.0
      %v244 = vsel %vm242, 1.0, 0.0
      %v245 = vmul.f32 %v232, %v243
      %v246 = vmul.f32 %v231, %v244
      %247 = vrot.lane.b32.xlu0 %v144, 127
      %v248 = vpop.permute.xlu0 %247
      %249 = vrot.lane.b32.xlu0 %v145, 127
      %v250 = vpop.permute.xlu0 %249
      %vm251 = vcmp.lt.s32.totalorder %v147, 127
      %v252 = vsel %vm251, %v248, %v250
      %v253 = vsel %vm251, %v250, %v248
      %vm254 = vmand %vm237, %vm214
      %vm255 = vmand %vm238, %vm215
      %vm256 = vmand %vm254, %vm218
      %vm257 = vmand %vm255, %vm219
      %v258 = vsel %vm256, 1.0, 0.0
      %v259 = vsel %vm257, 1.0, 0.0
      %v260 = vmul.f32 %v252, %v258
      %v261 = vmul.f32 %v253, %v259
      %262 = vrot.lane.b32.xlu0 %v144, 113
      %v263 = vpop.permute.xlu0 %262
      %264 = vrot.lane.b32.xlu0 %v145, 113
      %v265 = vpop.permute.xlu0 %264
      %vm266 = vcmp.lt.s32.totalorder %v147, 113
      %v267 = vsel %vm266, %v263, %v265
      %v268 = vsel %vm266, %v265, %v263
      %v269 = vadd.s32 %v149, 1
      %v270 = vadd.s32 %v150, 1
      %vm271 = vcmp.ge.s32.totalorder %v269, 0
      %vm272 = vcmp.ge.s32.totalorder %v270, 0
      %vm273 = vcmp.lt.s32.totalorder %v269, 16
      %vm274 = vcmp.lt.s32.totalorder %v270, 16
      %vm275 = vmand %vm271, %vm273
      %vm276 = vmand %vm272, %vm274
      %vm277 = vmand %vm275, %vm174
      %vm278 = vmand %vm276, %vm175
      %vm279 = vmand %vm277, %vm178
      %vm280 = vmand %vm278, %vm179
      %v281 = vsel %vm279, 1.0, 0.0
      %v282 = vsel %vm280, 1.0, 0.0
      %v283 = vmul.f32 %v267, %v281
      %v284 = vmul.f32 %v268, %v282
      %285 = vrot.lane.b32.xlu0 %v144, 112
      %v286 = vpop.permute.xlu0 %285
      %287 = vrot.lane.b32.xlu0 %v145, 112
      %v288 = vpop.permute.xlu0 %287
      %vm289 = vcmp.lt.s32.totalorder %v147, 112
      %v290 = vsel %vm289, %v286, %v288
      %v291 = vsel %vm289, %v288, %v286
      %vm292 = vmand %vm275, %vm193
      %vm293 = vmand %vm276, %vm194
      %vm294 = vmand %vm292, %vm197
      %vm295 = vmand %vm293, %vm198
      %v296 = vsel %vm294, 1.0, 0.0
      %v297 = vsel %vm295, 1.0, 0.0
      %v298 = vmul.f32 %v290, %v296
      %v299 = vmul.f32 %v291, %v297
      %300 = vrot.lane.b32.xlu0 %v144, 111
      %v301 = vpop.permute.xlu0 %300
      %302 = vrot.lane.b32.xlu0 %v145, 111
      %v303 = vpop.permute.xlu0 %302
      %vm304 = vcmp.lt.s32.totalorder %v147, 111
      %v305 = vsel %vm304, %v301, %v303
      %v306 = vsel %vm304, %v303, %v301
      %vm307 = vmand %vm275, %vm214
      %vm308 = vmand %vm276, %vm215
      %vm309 = vmand %vm307, %vm218
      %vm310 = vmand %vm308, %vm219
      %v311 = vsel %vm309, 1.0, 0.0
      %v312 = vsel %vm310, 1.0, 0.0
      %v313 = vmul.f32 %v305, %v311
      %v314 = vmul.f32 %v306, %v312
      %316 = vset.pattern.permute.xlu0 0
      %317 = vperm.xlu0 %316, %v155
      %v318 = vpop.permute.xlu0 %317
      %321 = vset.pattern.permute.xlu0 0
      %322 = vperm.xlu0 %321, %v156
      %v323 = vpop.permute.xlu0 %322
      %vm325 = vcmask 588800
      %v327 = vsel %vm325, %v153, 0
      %v330 = vsel %vm325, %v154, 0
      %332 = vmatprep.subr.mxu0 0.0
      %333 = vmatpush1.msra.mxu0 0.0
      %334 = vmatprep.subr.mxu0 0.0
      %335 = vmatpush1.msra.mxu0 0.0
      %336 = vmatprep.subr.mxu0 0.0
      %337 = vmatpush1.msra.mxu0 0.0
      %338 = vmatprep.subr.mxu0 0.0
      %339 = vmatpush1.msra.mxu0 0.0
      %340 = vmatprep.subr.mxu0 0.0
      %341 = vmatpush1.msra.mxu0 0.0
      %342 = vmatprep.subr.mxu0 0.0
      %343 = vmatpush1.msra.mxu0 0.0
      %344 = vmatprep.subr.mxu0 0.0
      %345 = vmatpush1.msra.mxu0 0.0
      %346 = vmatprep.subr.mxu0 %v314
      %347 = vmatpush1.msra.mxu0 %v313
      %348 = vmatprep.subr.mxu0 %v299
      %349 = vmatpush1.msra.mxu0 %v298
      %350 = vmatprep.subr.mxu0 %v284
      %351 = vmatpush1.msra.mxu0 %v283
      %352 = vmatprep.subr.mxu0 %v261
      %353 = vmatpush1.msra.mxu0 %v260
      %354 = vmatprep.subr.mxu0 %v145
      %355 = vmatpush1.msra.mxu0 %v144
      %356 = vmatprep.subr.mxu0 %v246
      %357 = vmatpush1.msra.mxu0 %v245
      %358 = vmatprep.subr.mxu0 %v225
      %359 = vmatpush1.msra.mxu0 %v224
      %360 = vmatprep.subr.mxu0 %v204
      %361 = vmatpush1.msra.mxu0 %v203
      %362 = vmatprep.subr.mxu0 %v185
      %363 = vmatpush1.msra.mxu0 %v184
      %364 = vmatprep.subr.mxu0 0.0
      %365 = vmatpush2.msra.mxu0 0.0
      %366 = vmatprep.subr.mxu0 0.0
      %367 = vmatpush2.msra.mxu0 0.0
      %368 = vmatprep.subr.mxu0 0.0
      %369 = vmatpush2.msra.mxu0 0.0
      %370 = vmatprep.subr.mxu0 0.0
      %371 = vmatpush2.msra.mxu0 0.0
      %372 = vmatprep.subr.mxu0 0.0
      %373 = vmatpush2.msra.mxu0 0.0
      %374 = vmatprep.subr.mxu0 0.0
      %375 = vmatpush2.msra.mxu0 0.0
      %376 = vmatprep.subr.mxu0 0.0
      %377 = vmatpush2.msra.mxu0 0.0
      %378 = vmatprep.subr.mxu0 0.0
      %379 = vmatpush2.msra.mxu0 0.0
      %380 = vmatprep.subr.mxu0 0.0
      %381 = vmatpush2.msra.mxu0 0.0
      %382 = vmatprep.subr.mxu0 0.0
      %383 = vmatpush2.msra.mxu0 0.0
      %384 = vmatprep.subr.mxu0 0.0
      %385 = vmatpush2.msra.mxu0 0.0
      %386 = vmatprep.subr.mxu0 0.0
      %387 = vmatpush2.msra.mxu0 0.0
      %388 = vmatprep.subr.mxu0 0.0
      %389 = vmatpush2.msra.mxu0 0.0
      %390 = vmatprep.subr.mxu0 0.0
      %391 = vmatpush2.msra.mxu0 0.0
      %392 = vmatprep.subr.mxu0 0.0
      %393 = vmatpush2.msra.mxu0 0.0
      %394 = vmatprep.subr.mxu0 0.0
      %395 = vmatpush2.msra.mxu0 0.0
      %396 = vmatprep.mubr.f32.mxu0 0.0
      %397 = vmatmul.mubr.f32.gmra.mxu0 %v327
      %v398 = vpop.f32.mrf.mxu0
      %v399 = vadd.f32 %v318, %v398
      %v400 = vpop.f32.mrf.mxu0
      %v401 = vadd.f32 %v318, %v400
      %402 = vmatprep.mubr.f32.mxu0 0.0
      %403 = vmatmul.mubr.f32.gmra.mxu0 %v330
      %v404 = vpop.f32.mrf.mxu0
      %v405 = vadd.f32 %v323, %v404
      %v406 = vpop.f32.mrf.mxu0
      %v407 = vadd.f32 %v323, %v406
      %408 = vdwg.mxu0
      %v409 = vadd.f32 %v399, %v401
      %410 = vadd.xlane.f32.xlu0 %v409
      %v411 = vpop.xlane.xlu0 %410
      %v412 = vadd.f32 %v405, %v407
      %413 = vadd.xlane.f32.xlu0 %v412
      %v414 = vpop.xlane.xlu0 %413
      %v415 = vrcp.pop 256.0
      %v416 = vmul.f32 %v411, %v415
      %v417 = vmul.f32 %v414, %v415
      %v418 = vsub.f32 %v399, %v416
      %v419 = vsub.f32 %v401, %v416
      %v420 = vsub.f32 %v405, %v417
      %v421 = vsub.f32 %v407, %v417
      %v422 = vmul.f32 %v418, %v418
      %v423 = vmul.f32 %v419, %v419
      %v424 = vmul.f32 %v420, %v420
      %v425 = vmul.f32 %v421, %v421
      %v426 = vadd.f32 %v422, %v423
      %427 = vadd.xlane.f32.xlu0 %v426
      %v428 = vpop.xlane.xlu0 %427
      %v429 = vadd.f32 %v424, %v425
      %430 = vadd.xlane.f32.xlu0 %v429
      %v431 = vpop.xlane.xlu0 %430
      %v432 = vmul.f32 %v428, %v415
      %v433 = vmul.f32 %v431, %v415
      %v434 = vadd.f32 %v432, 1e-05
      %v435 = vadd.f32 %v433, 1e-05
      %v436 = vrsqrt.pop %v434
      %v437 = vrsqrt.pop %v435
      %v438 = vmul.f32 %v418, %v436
      %v439 = vmul.f32 %v419, %v436
      %v440 = vmul.f32 %v420, %v437
      %v441 = vmul.f32 %v421, %v437
      %v442 = vld [vmem:[%s1 + $0x40] sm:$0xff]
      %v443 = vld [vmem:[%s1 + $0x50] sm:$0xff]
      %v444 = vld [vmem:[%s1 + $0x60] sm:$0xff]
      %v445 = vld [vmem:[%s1 + $0x70] sm:$0xff]
      %v446 = vld [vmem:[%s1 + $0x80] sm:$0xff]
      %v447 = vld [vmem:[%s1 + $0x90] sm:$0xff]
      %v448 = vld [vmem:[%s1 + $0xa0] sm:$0xff]
      %v449 = vld [vmem:[%s1 + $0xb0] sm:$0xff]
      %451 = vset.pattern.permute.xlu0 0
      %452 = vperm.xlu0 %451, %v446
      %v453 = vpop.permute.xlu0 %452
      %456 = vset.pattern.permute.xlu0 0
      %457 = vperm.xlu0 %456, %v447
      %v458 = vpop.permute.xlu0 %457
      %461 = vset.pattern.permute.xlu0 0
      %462 = vperm.xlu0 %461, %v448
      %v463 = vpop.permute.xlu0 %462
      %466 = vset.pattern.permute.xlu0 0
      %467 = vperm.xlu0 %466, %v449
      %v468 = vpop.permute.xlu0 %467
      %vm470 = vcmask 130048
      %v472 = vsel %vm470, %v442, 0
      %v475 = vsel %vm470, %v443, 0
      %v478 = vsel %vm470, %v444, 0
      %v481 = vsel %vm470, %v445, 0
      %483 = vmatprep.subr.mxu0 0.0
      %484 = vmatpush1.msra.mxu0 0.0
      %485 = vmatprep.subr.mxu0 0.0
      %486 = vmatpush1.msra.mxu0 0.0
      %487 = vmatprep.subr.mxu0 0.0
      %488 = vmatpush1.msra.mxu0 0.0
      %489 = vmatprep.subr.mxu0 0.0
      %490 = vmatpush1.msra.mxu0 0.0
      %491 = vmatprep.subr.mxu0 0.0
      %492 = vmatpush1.msra.mxu0 0.0
      %493 = vmatprep.subr.mxu0 0.0
      %494 = vmatpush1.msra.mxu0 0.0
      %495 = vmatprep.subr.mxu0 0.0
      %496 = vmatpush1.msra.mxu0 0.0
      %497 = vmatprep.subr.mxu0 0.0
      %498 = vmatpush1.msra.mxu0 0.0
      %499 = vmatprep.subr.mxu0 0.0
      %500 = vmatpush1.msra.mxu0 0.0
      %501 = vmatprep.subr.mxu0 0.0
      %502 = vmatpush1.msra.mxu0 0.0
      %503 = vmatprep.subr.mxu0 0.0
      %504 = vmatpush1.msra.mxu0 0.0
      %505 = vmatprep.subr.mxu0 0.0
      %506 = vmatpush1.msra.mxu0 0.0
      %507 = vmatprep.subr.mxu0 0.0
      %508 = vmatpush1.msra.mxu0 0.0
      %509 = vmatprep.subr.mxu0 0.0
      %510 = vmatpush1.msra.mxu0 0.0
      %511 = vmatprep.subr.mxu0 %v441
      %512 = vmatpush1.msra.mxu0 %v440
      %513 = vmatprep.subr.mxu0 %v439
      %514 = vmatpush1.msra.mxu0 %v438
      %515 = vmatprep.subr.mxu0 0.0
      %516 = vmatpush2.msra.mxu0 0.0
      %517 = vmatprep.subr.mxu0 0.0
      %518 = vmatpush2.msra.mxu0 0.0
      %519 = vmatprep.subr.mxu0 0.0
      %520 = vmatpush2.msra.mxu0 0.0
      %521 = vmatprep.subr.mxu0 0.0
      %522 = vmatpush2.msra.mxu0 0.0
      %523 = vmatprep.subr.mxu0 0.0
      %524 = vmatpush2.msra.mxu0 0.0
      %525 = vmatprep.subr.mxu0 0.0
      %526 = vmatpush2.msra.mxu0 0.0
      %527 = vmatprep.subr.mxu0 0.0
      %528 = vmatpush2.msra.mxu0 0.0
      %529 = vmatprep.subr.mxu0 0.0
      %530 = vmatpush2.msra.mxu0 0.0
      %531 = vmatprep.subr.mxu0 0.0
      %532 = vmatpush2.msra.mxu0 0.0
      %533 = vmatprep.subr.mxu0 0.0
      %534 = vmatpush2.msra.mxu0 0.0
      %535 = vmatprep.subr.mxu0 0.0
      %536 = vmatpush2.msra.mxu0 0.0
      %537 = vmatprep.subr.mxu0 0.0
      %538 = vmatpush2.msra.mxu0 0.0
      %539 = vmatprep.subr.mxu0 0.0
      %540 = vmatpush2.msra.mxu0 0.0
      %541 = vmatprep.subr.mxu0 0.0
      %542 = vmatpush2.msra.mxu0 0.0
      %543 = vmatprep.subr.mxu0 0.0
      %544 = vmatpush2.msra.mxu0 0.0
      %545 = vmatprep.subr.mxu0 0.0
      %546 = vmatpush2.msra.mxu0 0.0
      %547 = vmatprep.mubr.f32.mxu0 0.0
      %548 = vmatmul.mubr.f32.gmra.mxu0 %v472
      %v549 = vpop.f32.mrf.mxu0
      %v550 = vadd.f32 %v453, %v549
      %v551 = vpop.f32.mrf.mxu0
      %v552 = vadd.f32 %v453, %v551
      %553 = vmatprep.mubr.f32.mxu0 0.0
      %554 = vmatmul.mubr.f32.gmra.mxu0 %v475
      %v555 = vpop.f32.mrf.mxu0
      %v556 = vadd.f32 %v458, %v555
      %v557 = vpop.f32.mrf.mxu0
      %v558 = vadd.f32 %v458, %v557
      %559 = vmatprep.mubr.f32.mxu0 0.0
      %560 = vmatmul.mubr.f32.gmra.mxu0 %v478
      %v561 = vpop.f32.mrf.mxu0
      %v562 = vadd.f32 %v463, %v561
      %v563 = vpop.f32.mrf.mxu0
      %v564 = vadd.f32 %v463, %v563
      %565 = vmatprep.mubr.f32.mxu0 0.0
      %566 = vmatmul.mubr.f32.gmra.mxu0 %v481
      %v567 = vpop.f32.mrf.mxu0
      %v568 = vadd.f32 %v468, %v567
      %v569 = vpop.f32.mrf.mxu0
      %v570 = vadd.f32 %v468, %v569
      %571 = vdwg.mxu0
      %v572 = vld [vmem:[%s1 + $0xc0] sm:$0xff]
      %v573 = vld [vmem:[%s1 + $0xd0] sm:$0xff]
      %v574 = vld [vmem:[%s1 + $0xe0] sm:$0xff]
      %v575 = vld [vmem:[%s1 + $0xf0] sm:$0xff]
      %v576 = vld [vmem:[%s1 + $0x100] sm:$0xff]
      %v577 = vld [vmem:[%s1 + $0x110] sm:$0xff]
      %v578 = vld [vmem:[%s1 + $0x120] sm:$0xff]
      %v579 = vld [vmem:[%s1 + $0x130] sm:$0xff]
      %580 = vrot.lane.b32.xlu0 %v550, 17
      %v581 = vpop.permute.xlu0 %580
      %582 = vrot.lane.b32.xlu0 %v556, 17
      %v583 = vpop.permute.xlu0 %582
      %584 = vrot.lane.b32.xlu0 %v562, 17
      %v585 = vpop.permute.xlu0 %584
      %586 = vrot.lane.b32.xlu0 %v568, 17
      %v587 = vpop.permute.xlu0 %586
      %588 = vrot.lane.b32.xlu0 %v552, 17
      %v589 = vpop.permute.xlu0 %588
      %590 = vrot.lane.b32.xlu0 %v558, 17
      %v591 = vpop.permute.xlu0 %590
      %592 = vrot.lane.b32.xlu0 %v564, 17
      %v593 = vpop.permute.xlu0 %592
      %594 = vrot.lane.b32.xlu0 %v570, 17
      %v595 = vpop.permute.xlu0 %594
      %v596 = vsel %vm161, %v581, %v589
      %v597 = vsel %vm161, %v583, %v591
      %v598 = vsel %vm161, %v585, %v593
      %v599 = vsel %vm161, %v587, %v595
      %v600 = vsel %vm161, %v589, %v581
      %v601 = vsel %vm161, %v591, %v583
      %v602 = vsel %vm161, %v593, %v585
      %v603 = vsel %vm161, %v595, %v587
      %v604 = vmul.f32 %v600, %v182
      %v605 = vmul.f32 %v596, %v183
      %v606 = vmul.f32 %v601, %v182
      %v607 = vmul.f32 %v597, %v183
      %v608 = vmul.f32 %v602, %v182
      %v609 = vmul.f32 %v598, %v183
      %v610 = vmul.f32 %v603, %v182
      %v611 = vmul.f32 %v599, %v183
      %613 = vset.pattern.permute.xlu0 0
      %614 = vperm.xlu0 %613, %v572
      %v615 = vpop.permute.xlu0 %614
      %618 = vset.pattern.permute.xlu0 0
      %619 = vperm.xlu0 %618, %v573
      %v620 = vpop.permute.xlu0 %619
      %623 = vset.pattern.permute.xlu0 0
      %624 = vperm.xlu0 %623, %v574
      %v625 = vpop.permute.xlu0 %624
      %628 = vset.pattern.permute.xlu0 0
      %629 = vperm.xlu0 %628, %v575
      %v630 = vpop.permute.xlu0 %629
      %v632 = vmul.f32 %v604, %v615
      %v633 = vmul.f32 %v605, %v615
      %v634 = vmul.f32 %v606, %v620
      %v635 = vmul.f32 %v607, %v620
      %v636 = vmul.f32 %v608, %v625
      %v637 = vmul.f32 %v609, %v625
      %v638 = vmul.f32 %v610, %v630
      %v639 = vmul.f32 %v611, %v630
      %v640 = vadd.f32 %v632, 0.0
      %v641 = vadd.f32 %v633, 0.0
      %v642 = vadd.f32 %v634, 0.0
      %v643 = vadd.f32 %v635, 0.0
      %v644 = vadd.f32 %v636, 0.0
      %v645 = vadd.f32 %v637, 0.0
      %v646 = vadd.f32 %v638, 0.0
      %v647 = vadd.f32 %v639, 0.0
      %648 = vrot.lane.b32.xlu0 %v550, 16
      %v649 = vpop.permute.xlu0 %648
      %650 = vrot.lane.b32.xlu0 %v556, 16
      %v651 = vpop.permute.xlu0 %650
      %652 = vrot.lane.b32.xlu0 %v562, 16
      %v653 = vpop.permute.xlu0 %652
      %654 = vrot.lane.b32.xlu0 %v568, 16
      %v655 = vpop.permute.xlu0 %654
      %656 = vrot.lane.b32.xlu0 %v552, 16
      %v657 = vpop.permute.xlu0 %656
      %658 = vrot.lane.b32.xlu0 %v558, 16
      %v659 = vpop.permute.xlu0 %658
      %660 = vrot.lane.b32.xlu0 %v564, 16
      %v661 = vpop.permute.xlu0 %660
      %662 = vrot.lane.b32.xlu0 %v570, 16
      %v663 = vpop.permute.xlu0 %662
      %v664 = vsel %vm190, %v649, %v657
      %v665 = vsel %vm190, %v651, %v659
      %v666 = vsel %vm190, %v653, %v661
      %v667 = vsel %vm190, %v655, %v663
      %v668 = vsel %vm190, %v657, %v649
      %v669 = vsel %vm190, %v659, %v651
      %v670 = vsel %vm190, %v661, %v653
      %v671 = vsel %vm190, %v663, %v655
      %v672 = vmul.f32 %v668, %v201
      %v673 = vmul.f32 %v664, %v202
      %v674 = vmul.f32 %v669, %v201
      %v675 = vmul.f32 %v665, %v202
      %v676 = vmul.f32 %v670, %v201
      %v677 = vmul.f32 %v666, %v202
      %v678 = vmul.f32 %v671, %v201
      %v679 = vmul.f32 %v667, %v202
      %680 = vset.pattern.permute.xlu0 1
      %681 = vperm.xlu0 %680, %v572
      %v682 = vpop.permute.xlu0 %681
      %684 = vset.pattern.permute.xlu0 1
      %685 = vperm.xlu0 %684, %v573
      %v686 = vpop.permute.xlu0 %685
      %688 = vset.pattern.permute.xlu0 1
      %689 = vperm.xlu0 %688, %v574
      %v690 = vpop.permute.xlu0 %689
      %692 = vset.pattern.permute.xlu0 1
      %693 = vperm.xlu0 %692, %v575
      %v694 = vpop.permute.xlu0 %693
      %v696 = vmul.f32 %v672, %v682
      %v697 = vmul.f32 %v673, %v682
      %v698 = vmul.f32 %v674, %v686
      %v699 = vmul.f32 %v675, %v686
      %v700 = vmul.f32 %v676, %v690
      %v701 = vmul.f32 %v677, %v690
      %v702 = vmul.f32 %v678, %v694
      %v703 = vmul.f32 %v679, %v694
      %v704 = vadd.f32 %v640, %v696
      %v705 = vadd.f32 %v641, %v697
      %v706 = vadd.f32 %v642, %v698
      %v707 = vadd.f32 %v643, %v699
      %v708 = vadd.f32 %v644, %v700
      %v709 = vadd.f32 %v645, %v701
      %v710 = vadd.f32 %v646, %v702
      %v711 = vadd.f32 %v647, %v703
      %712 = vrot.lane.b32.xlu0 %v550, 15
      %v713 = vpop.permute.xlu0 %712
      %714 = vrot.lane.b32.xlu0 %v556, 15
      %v715 = vpop.permute.xlu0 %714
      %716 = vrot.lane.b32.xlu0 %v562, 15
      %v717 = vpop.permute.xlu0 %716
      %718 = vrot.lane.b32.xlu0 %v568, 15
      %v719 = vpop.permute.xlu0 %718
      %720 = vrot.lane.b32.xlu0 %v552, 15
      %v721 = vpop.permute.xlu0 %720
      %722 = vrot.lane.b32.xlu0 %v558, 15
      %v723 = vpop.permute.xlu0 %722
      %724 = vrot.lane.b32.xlu0 %v564, 15
      %v725 = vpop.permute.xlu0 %724
      %726 = vrot.lane.b32.xlu0 %v570, 15
      %v727 = vpop.permute.xlu0 %726
      %v728 = vsel %vm209, %v713, %v721
      %v729 = vsel %vm209, %v715, %v723
      %v730 = vsel %vm209, %v717, %v725
      %v731 = vsel %vm209, %v719, %v727
      %v732 = vsel %vm209, %v721, %v713
      %v733 = vsel %vm209, %v723, %v715
      %v734 = vsel %vm209, %v725, %v717
      %v735 = vsel %vm209, %v727, %v719
      %v736 = vmul.f32 %v732, %v222
      %v737 = vmul.f32 %v728, %v223
      %v738 = vmul.f32 %v733, %v222
      %v739 = vmul.f32 %v729, %v223
      %v740 = vmul.f32 %v734, %v222
      %v741 = vmul.f32 %v730, %v223
      %v742 = vmul.f32 %v735, %v222
      %v743 = vmul.f32 %v731, %v223
      %744 = vset.pattern.permute.xlu0 2
      %745 = vperm.xlu0 %744, %v572
      %v746 = vpop.permute.xlu0 %745
      %748 = vset.pattern.permute.xlu0 2
      %749 = vperm.xlu0 %748, %v573
      %v750 = vpop.permute.xlu0 %749
      %752 = vset.pattern.permute.xlu0 2
      %753 = vperm.xlu0 %752, %v574
      %v754 = vpop.permute.xlu0 %753
      %756 = vset.pattern.permute.xlu0 2
      %757 = vperm.xlu0 %756, %v575
      %v758 = vpop.permute.xlu0 %757
      %v760 = vmul.f32 %v736, %v746
      %v761 = vmul.f32 %v737, %v746
      %v762 = vmul.f32 %v738, %v750
      %v763 = vmul.f32 %v739, %v750
      %v764 = vmul.f32 %v740, %v754
      %v765 = vmul.f32 %v741, %v754
      %v766 = vmul.f32 %v742, %v758
      %v767 = vmul.f32 %v743, %v758
      %v768 = vadd.f32 %v704, %v760
      %v769 = vadd.f32 %v705, %v761
      %v770 = vadd.f32 %v706, %v762
      %v771 = vadd.f32 %v707, %v763
      %v772 = vadd.f32 %v708, %v764
      %v773 = vadd.f32 %v709, %v765
      %v774 = vadd.f32 %v710, %v766
      %v775 = vadd.f32 %v711, %v767
      %776 = vrot.lane.b32.xlu0 %v550, 1
      %v777 = vpop.permute.xlu0 %776
      %778 = vrot.lane.b32.xlu0 %v556, 1
      %v779 = vpop.permute.xlu0 %778
      %780 = vrot.lane.b32.xlu0 %v562, 1
      %v781 = vpop.permute.xlu0 %780
      %782 = vrot.lane.b32.xlu0 %v568, 1
      %v783 = vpop.permute.xlu0 %782
      %784 = vrot.lane.b32.xlu0 %v552, 1
      %v785 = vpop.permute.xlu0 %784
      %786 = vrot.lane.b32.xlu0 %v558, 1
      %v787 = vpop.permute.xlu0 %786
      %788 = vrot.lane.b32.xlu0 %v564, 1
      %v789 = vpop.permute.xlu0 %788
      %790 = vrot.lane.b32.xlu0 %v570, 1
      %v791 = vpop.permute.xlu0 %790
      %v792 = vsel %vm230, %v777, %v785
      %v793 = vsel %vm230, %v779, %v787
      %v794 = vsel %vm230, %v781, %v789
      %v795 = vsel %vm230, %v783, %v791
      %v796 = vsel %vm230, %v785, %v777
      %v797 = vsel %vm230, %v787, %v779
      %v798 = vsel %vm230, %v789, %v781
      %v799 = vsel %vm230, %v791, %v783
      %v800 = vmul.f32 %v796, %v243
      %v801 = vmul.f32 %v792, %v244
      %v802 = vmul.f32 %v797, %v243
      %v803 = vmul.f32 %v793, %v244
      %v804 = vmul.f32 %v798, %v243
      %v805 = vmul.f32 %v794, %v244
      %v806 = vmul.f32 %v799, %v243
      %v807 = vmul.f32 %v795, %v244
      %808 = vset.pattern.permute.xlu0 3
      %809 = vperm.xlu0 %808, %v572
      %v810 = vpop.permute.xlu0 %809
      %812 = vset.pattern.permute.xlu0 3
      %813 = vperm.xlu0 %812, %v573
      %v814 = vpop.permute.xlu0 %813
      %816 = vset.pattern.permute.xlu0 3
      %817 = vperm.xlu0 %816, %v574
      %v818 = vpop.permute.xlu0 %817
      %820 = vset.pattern.permute.xlu0 3
      %821 = vperm.xlu0 %820, %v575
      %v822 = vpop.permute.xlu0 %821
      %v824 = vmul.f32 %v800, %v810
      %v825 = vmul.f32 %v801, %v810
      %v826 = vmul.f32 %v802, %v814
      %v827 = vmul.f32 %v803, %v814
      %v828 = vmul.f32 %v804, %v818
      %v829 = vmul.f32 %v805, %v818
      %v830 = vmul.f32 %v806, %v822
      %v831 = vmul.f32 %v807, %v822
      %v832 = vadd.f32 %v768, %v824
      %v833 = vadd.f32 %v769, %v825
      %v834 = vadd.f32 %v770, %v826
      %v835 = vadd.f32 %v771, %v827
      %v836 = vadd.f32 %v772, %v828
      %v837 = vadd.f32 %v773, %v829
      %v838 = vadd.f32 %v774, %v830
      %v839 = vadd.f32 %v775, %v831
      %840 = vset.pattern.permute.xlu0 4
      %841 = vperm.xlu0 %840, %v572
      %v842 = vpop.permute.xlu0 %841
      %844 = vset.pattern.permute.xlu0 4
      %845 = vperm.xlu0 %844, %v573
      %v846 = vpop.permute.xlu0 %845
      %848 = vset.pattern.permute.xlu0 4
      %849 = vperm.xlu0 %848, %v574
      %v850 = vpop.permute.xlu0 %849
      %852 = vset.pattern.permute.xlu0 4
      %853 = vperm.xlu0 %852, %v575
      %v854 = vpop.permute.xlu0 %853
      %v856 = vmul.f32 %v550, %v842
      %v857 = vmul.f32 %v552, %v842
      %v858 = vmul.f32 %v556, %v846
      %v859 = vmul.f32 %v558, %v846
      %v860 = vmul.f32 %v562, %v850
      %v861 = vmul.f32 %v564, %v850
      %v862 = vmul.f32 %v568, %v854
      %v863 = vmul.f32 %v570, %v854
      %v864 = vadd.f32 %v832, %v856
      %v865 = vadd.f32 %v833, %v857
      %v866 = vadd.f32 %v834, %v858
      %v867 = vadd.f32 %v835, %v859
      %v868 = vadd.f32 %v836, %v860
      %v869 = vadd.f32 %v837, %v861
      %v870 = vadd.f32 %v838, %v862
      %v871 = vadd.f32 %v839, %v863
      %872 = vrot.lane.b32.xlu0 %v550, 127
      %v873 = vpop.permute.xlu0 %872
      %874 = vrot.lane.b32.xlu0 %v556, 127
      %v875 = vpop.permute.xlu0 %874
      %876 = vrot.lane.b32.xlu0 %v562, 127
      %v877 = vpop.permute.xlu0 %876
      %878 = vrot.lane.b32.xlu0 %v568, 127
      %v879 = vpop.permute.xlu0 %878
      %880 = vrot.lane.b32.xlu0 %v552, 127
      %v881 = vpop.permute.xlu0 %880
      %882 = vrot.lane.b32.xlu0 %v558, 127
      %v883 = vpop.permute.xlu0 %882
      %884 = vrot.lane.b32.xlu0 %v564, 127
      %v885 = vpop.permute.xlu0 %884
      %886 = vrot.lane.b32.xlu0 %v570, 127
      %v887 = vpop.permute.xlu0 %886
      %v888 = vsel %vm251, %v873, %v881
      %v889 = vsel %vm251, %v875, %v883
      %v890 = vsel %vm251, %v877, %v885
      %v891 = vsel %vm251, %v879, %v887
      %v892 = vsel %vm251, %v881, %v873
      %v893 = vsel %vm251, %v883, %v875
      %v894 = vsel %vm251, %v885, %v877
      %v895 = vsel %vm251, %v887, %v879
      %v896 = vmul.f32 %v888, %v258
      %v897 = vmul.f32 %v892, %v259
      %v898 = vmul.f32 %v889, %v258
      %v899 = vmul.f32 %v893, %v259
      %v900 = vmul.f32 %v890, %v258
      %v901 = vmul.f32 %v894, %v259
      %v902 = vmul.f32 %v891, %v258
      %v903 = vmul.f32 %v895, %v259
      %904 = vset.pattern.permute.xlu0 5
      %905 = vperm.xlu0 %904, %v572
      %v906 = vpop.permute.xlu0 %905
      %908 = vset.pattern.permute.xlu0 5
      %909 = vperm.xlu0 %908, %v573
      %v910 = vpop.permute.xlu0 %909
      %912 = vset.pattern.permute.xlu0 5
      %913 = vperm.xlu0 %912, %v574
      %v914 = vpop.permute.xlu0 %913
      %916 = vset.pattern.permute.xlu0 5
      %917 = vperm.xlu0 %916, %v575
      %v918 = vpop.permute.xlu0 %917
      %v920 = vmul.f32 %v896, %v906
      %v921 = vmul.f32 %v897, %v906
      %v922 = vmul.f32 %v898, %v910
      %v923 = vmul.f32 %v899, %v910
      %v924 = vmul.f32 %v900, %v914
      %v925 = vmul.f32 %v901, %v914
      %v926 = vmul.f32 %v902, %v918
      %v927 = vmul.f32 %v903, %v918
      %v928 = vadd.f32 %v864, %v920
      %v929 = vadd.f32 %v865, %v921
      %v930 = vadd.f32 %v866, %v922
      %v931 = vadd.f32 %v867, %v923
      %v932 = vadd.f32 %v868, %v924
      %v933 = vadd.f32 %v869, %v925
      %v934 = vadd.f32 %v870, %v926
      %v935 = vadd.f32 %v871, %v927
      %936 = vrot.lane.b32.xlu0 %v550, 113
      %v937 = vpop.permute.xlu0 %936
      %938 = vrot.lane.b32.xlu0 %v556, 113
      %v939 = vpop.permute.xlu0 %938
      %940 = vrot.lane.b32.xlu0 %v562, 113
      %v941 = vpop.permute.xlu0 %940
      %942 = vrot.lane.b32.xlu0 %v568, 113
      %v943 = vpop.permute.xlu0 %942
      %944 = vrot.lane.b32.xlu0 %v552, 113
      %v945 = vpop.permute.xlu0 %944
      %946 = vrot.lane.b32.xlu0 %v558, 113
      %v947 = vpop.permute.xlu0 %946
      %948 = vrot.lane.b32.xlu0 %v564, 113
      %v949 = vpop.permute.xlu0 %948
      %950 = vrot.lane.b32.xlu0 %v570, 113
      %v951 = vpop.permute.xlu0 %950
      %v952 = vsel %vm266, %v937, %v945
      %v953 = vsel %vm266, %v939, %v947
      %v954 = vsel %vm266, %v941, %v949
      %v955 = vsel %vm266, %v943, %v951
      %v956 = vsel %vm266, %v945, %v937
      %v957 = vsel %vm266, %v947, %v939
      %v958 = vsel %vm266, %v949, %v941
      %v959 = vsel %vm266, %v951, %v943
      %v960 = vmul.f32 %v952, %v281
      %v961 = vmul.f32 %v956, %v282
      %v962 = vmul.f32 %v953, %v281
      %v963 = vmul.f32 %v957, %v282
      %v964 = vmul.f32 %v954, %v281
      %v965 = vmul.f32 %v958, %v282
      %v966 = vmul.f32 %v955, %v281
      %v967 = vmul.f32 %v959, %v282
      %968 = vset.pattern.permute.xlu0 6
      %969 = vperm.xlu0 %968, %v572
      %v970 = vpop.permute.xlu0 %969
      %972 = vset.pattern.permute.xlu0 6
      %973 = vperm.xlu0 %972, %v573
      %v974 = vpop.permute.xlu0 %973
      %976 = vset.pattern.permute.xlu0 6
      %977 = vperm.xlu0 %976, %v574
      %v978 = vpop.permute.xlu0 %977
      %980 = vset.pattern.permute.xlu0 6
      %981 = vperm.xlu0 %980, %v575
      %v982 = vpop.permute.xlu0 %981
      %v984 = vmul.f32 %v960, %v970
      %v985 = vmul.f32 %v961, %v970
      %v986 = vmul.f32 %v962, %v974
      %v987 = vmul.f32 %v963, %v974
      %v988 = vmul.f32 %v964, %v978
      %v989 = vmul.f32 %v965, %v978
      %v990 = vmul.f32 %v966, %v982
      %v991 = vmul.f32 %v967, %v982
      %v992 = vadd.f32 %v928, %v984
      %v993 = vadd.f32 %v929, %v985
      %v994 = vadd.f32 %v930, %v986
      %v995 = vadd.f32 %v931, %v987
      %v996 = vadd.f32 %v932, %v988
      %v997 = vadd.f32 %v933, %v989
      %v998 = vadd.f32 %v934, %v990
      %v999 = vadd.f32 %v935, %v991
      %1000 = vrot.lane.b32.xlu0 %v550, 112
      %v1001 = vpop.permute.xlu0 %1000
      %1002 = vrot.lane.b32.xlu0 %v556, 112
      %v1003 = vpop.permute.xlu0 %1002
      %1004 = vrot.lane.b32.xlu0 %v562, 112
      %v1005 = vpop.permute.xlu0 %1004
      %1006 = vrot.lane.b32.xlu0 %v568, 112
      %v1007 = vpop.permute.xlu0 %1006
      %1008 = vrot.lane.b32.xlu0 %v552, 112
      %v1009 = vpop.permute.xlu0 %1008
      %1010 = vrot.lane.b32.xlu0 %v558, 112
      %v1011 = vpop.permute.xlu0 %1010
      %1012 = vrot.lane.b32.xlu0 %v564, 112
      %v1013 = vpop.permute.xlu0 %1012
      %1014 = vrot.lane.b32.xlu0 %v570, 112
      %v1015 = vpop.permute.xlu0 %1014
      %v1016 = vsel %vm289, %v1001, %v1009
      %v1017 = vsel %vm289, %v1003, %v1011
      %v1018 = vsel %vm289, %v1005, %v1013
      %v1019 = vsel %vm289, %v1007, %v1015
      %v1020 = vsel %vm289, %v1009, %v1001
      %v1021 = vsel %vm289, %v1011, %v1003
      %v1022 = vsel %vm289, %v1013, %v1005
      %v1023 = vsel %vm289, %v1015, %v1007
      %v1024 = vmul.f32 %v1016, %v296
      %v1025 = vmul.f32 %v1020, %v297
      %v1026 = vmul.f32 %v1017, %v296
      %v1027 = vmul.f32 %v1021, %v297
      %v1028 = vmul.f32 %v1018, %v296
      %v1029 = vmul.f32 %v1022, %v297
      %v1030 = vmul.f32 %v1019, %v296
      %v1031 = vmul.f32 %v1023, %v297
      %1032 = vset.pattern.permute.xlu0 7
      %1033 = vperm.xlu0 %1032, %v572
      %v1034 = vpop.permute.xlu0 %1033
      %1036 = vset.pattern.permute.xlu0 7
      %1037 = vperm.xlu0 %1036, %v573
      %v1038 = vpop.permute.xlu0 %1037
      %1040 = vset.pattern.permute.xlu0 7
      %1041 = vperm.xlu0 %1040, %v574
      %v1042 = vpop.permute.xlu0 %1041
      %1044 = vset.pattern.permute.xlu0 7
      %1045 = vperm.xlu0 %1044, %v575
      %v1046 = vpop.permute.xlu0 %1045
      %v1048 = vmul.f32 %v1024, %v1034
      %v1049 = vmul.f32 %v1025, %v1034
      %v1050 = vmul.f32 %v1026, %v1038
      %v1051 = vmul.f32 %v1027, %v1038
      %v1052 = vmul.f32 %v1028, %v1042
      %v1053 = vmul.f32 %v1029, %v1042
      %v1054 = vmul.f32 %v1030, %v1046
      %v1055 = vmul.f32 %v1031, %v1046
      %v1056 = vadd.f32 %v992, %v1048
      %v1057 = vadd.f32 %v993, %v1049
      %v1058 = vadd.f32 %v994, %v1050
      %v1059 = vadd.f32 %v995, %v1051
      %v1060 = vadd.f32 %v996, %v1052
      %v1061 = vadd.f32 %v997, %v1053
      %v1062 = vadd.f32 %v998, %v1054
      %v1063 = vadd.f32 %v999, %v1055
      %1064 = vrot.lane.b32.xlu0 %v550, 111
      %v1065 = vpop.permute.xlu0 %1064
      %1066 = vrot.lane.b32.xlu0 %v556, 111
      %v1067 = vpop.permute.xlu0 %1066
      %1068 = vrot.lane.b32.xlu0 %v562, 111
      %v1069 = vpop.permute.xlu0 %1068
      %1070 = vrot.lane.b32.xlu0 %v568, 111
      %v1071 = vpop.permute.xlu0 %1070
      %1072 = vrot.lane.b32.xlu0 %v552, 111
      %v1073 = vpop.permute.xlu0 %1072
      %1074 = vrot.lane.b32.xlu0 %v558, 111
      %v1075 = vpop.permute.xlu0 %1074
      %1076 = vrot.lane.b32.xlu0 %v564, 111
      %v1077 = vpop.permute.xlu0 %1076
      %1078 = vrot.lane.b32.xlu0 %v570, 111
      %v1079 = vpop.permute.xlu0 %1078
      %v1080 = vsel %vm304, %v1065, %v1073
      %v1081 = vsel %vm304, %v1067, %v1075
      %v1082 = vsel %vm304, %v1069, %v1077
      %v1083 = vsel %vm304, %v1071, %v1079
      %v1084 = vsel %vm304, %v1073, %v1065
      %v1085 = vsel %vm304, %v1075, %v1067
      %v1086 = vsel %vm304, %v1077, %v1069
      %v1087 = vsel %vm304, %v1079, %v1071
      %v1088 = vmul.f32 %v1080, %v311
      %v1089 = vmul.f32 %v1084, %v312
      %v1090 = vmul.f32 %v1081, %v311
      %v1091 = vmul.f32 %v1085, %v312
      %v1092 = vmul.f32 %v1082, %v311
      %v1093 = vmul.f32 %v1086, %v312
      %v1094 = vmul.f32 %v1083, %v311
      %v1095 = vmul.f32 %v1087, %v312
      %1096 = vset.pattern.permute.xlu0 8
      %1097 = vperm.xlu0 %1096, %v572
      %v1098 = vpop.permute.xlu0 %1097
      %1100 = vset.pattern.permute.xlu0 8
      %1101 = vperm.xlu0 %1100, %v573
      %v1102 = vpop.permute.xlu0 %1101
      %1104 = vset.pattern.permute.xlu0 8
      %1105 = vperm.xlu0 %1104, %v574
      %v1106 = vpop.permute.xlu0 %1105
      %1108 = vset.pattern.permute.xlu0 8
      %1109 = vperm.xlu0 %1108, %v575
      %v1110 = vpop.permute.xlu0 %1109
      %v1112 = vmul.f32 %v1088, %v1098
      %v1113 = vmul.f32 %v1089, %v1098
      %v1114 = vmul.f32 %v1090, %v1102
      %v1115 = vmul.f32 %v1091, %v1102
      %v1116 = vmul.f32 %v1092, %v1106
      %v1117 = vmul.f32 %v1093, %v1106
      %v1118 = vmul.f32 %v1094, %v1110
      %v1119 = vmul.f32 %v1095, %v1110
      %v1120 = vadd.f32 %v1056, %v1112
      %v1121 = vadd.f32 %v1057, %v1113
      %v1122 = vadd.f32 %v1058, %v1114
      %v1123 = vadd.f32 %v1059, %v1115
      %v1124 = vadd.f32 %v1060, %v1116
      %v1125 = vadd.f32 %v1061, %v1117
      %v1126 = vadd.f32 %v1062, %v1118
      %v1127 = vadd.f32 %v1063, %v1119
      %1129 = vset.pattern.permute.xlu0 0
      %1130 = vperm.xlu0 %1129, %v576
      %v1131 = vpop.permute.xlu0 %1130
      %1134 = vset.pattern.permute.xlu0 0
      %1135 = vperm.xlu0 %1134, %v577
      %v1136 = vpop.permute.xlu0 %1135
      %1139 = vset.pattern.permute.xlu0 0
      %1140 = vperm.xlu0 %1139, %v578
      %v1141 = vpop.permute.xlu0 %1140
      %1144 = vset.pattern.permute.xlu0 0
      %1145 = vperm.xlu0 %1144, %v579
      %v1146 = vpop.permute.xlu0 %1145
      %v1148 = vadd.f32 %v1120, %v1131
      %v1149 = vadd.f32 %v1121, %v1131
      %v1150 = vadd.f32 %v1122, %v1136
      %v1151 = vadd.f32 %v1123, %v1136
      %v1152 = vadd.f32 %v1124, %v1141
      %v1153 = vadd.f32 %v1125, %v1141
      %v1154 = vadd.f32 %v1126, %v1146
      %v1155 = vadd.f32 %v1127, %v1146
      %v1156 = vld [vmem:[%s1 + $0x140] sm:$0xff]
      %v1157 = vld [vmem:[%s1 + $0x150] sm:$0xff]
      %v1158 = vld [vmem:[%s1 + $0x160] sm:$0xff]
      %v1159 = vld [vmem:[%s1 + $0x170] sm:$0xff]
      %v1160 = vld [vmem:[%s1 + $0x180] sm:$0xff]
      %v1161 = vld [vmem:[%s1 + $0x190] sm:$0xff]
      %v1162 = vld [vmem:[%s1 + $0x1a0] sm:$0xff]
      %v1163 = vld [vmem:[%s1 + $0x1b0] sm:$0xff]
      %1164 = vrot.lane.b32.xlu0 %v1148, 17
      %v1165 = vpop.permute.xlu0 %1164
      %1166 = vrot.lane.b32.xlu0 %v1150, 17
      %v1167 = vpop.permute.xlu0 %1166
      %1168 = vrot.lane.b32.xlu0 %v1152, 17
      %v1169 = vpop.permute.xlu0 %1168
      %1170 = vrot.lane.b32.xlu0 %v1154, 17
      %v1171 = vpop.permute.xlu0 %1170
      %1172 = vrot.lane.b32.xlu0 %v1149, 17
      %v1173 = vpop.permute.xlu0 %1172
      %1174 = vrot.lane.b32.xlu0 %v1151, 17
      %v1175 = vpop.permute.xlu0 %1174
      %1176 = vrot.lane.b32.xlu0 %v1153, 17
      %v1177 = vpop.permute.xlu0 %1176
      %1178 = vrot.lane.b32.xlu0 %v1155, 17
      %v1179 = vpop.permute.xlu0 %1178
      %v1180 = vsel %vm161, %v1165, %v1173
      %v1181 = vsel %vm161, %v1167, %v1175
      %v1182 = vsel %vm161, %v1169, %v1177
      %v1183 = vsel %vm161, %v1171, %v1179
      %v1184 = vsel %vm161, %v1173, %v1165
      %v1185 = vsel %vm161, %v1175, %v1167
      %v1186 = vsel %vm161, %v1177, %v1169
      %v1187 = vsel %vm161, %v1179, %v1171
      %v1188 = vmul.f32 %v1184, %v182
      %v1189 = vmul.f32 %v1180, %v183
      %v1190 = vmul.f32 %v1185, %v182
      %v1191 = vmul.f32 %v1181, %v183
      %v1192 = vmul.f32 %v1186, %v182
      %v1193 = vmul.f32 %v1182, %v183
      %v1194 = vmul.f32 %v1187, %v182
      %v1195 = vmul.f32 %v1183, %v183
      %1197 = vset.pattern.permute.xlu0 0
      %1198 = vperm.xlu0 %1197, %v1156
      %v1199 = vpop.permute.xlu0 %1198
      %1202 = vset.pattern.permute.xlu0 0
      %1203 = vperm.xlu0 %1202, %v1157
      %v1204 = vpop.permute.xlu0 %1203
      %1207 = vset.pattern.permute.xlu0 0
      %1208 = vperm.xlu0 %1207, %v1158
      %v1209 = vpop.permute.xlu0 %1208
      %1212 = vset.pattern.permute.xlu0 0
      %1213 = vperm.xlu0 %1212, %v1159
      %v1214 = vpop.permute.xlu0 %1213
      %v1216 = vmul.f32 %v1188, %v1199
      %v1217 = vmul.f32 %v1189, %v1199
      %v1218 = vmul.f32 %v1190, %v1204
      %v1219 = vmul.f32 %v1191, %v1204
      %v1220 = vmul.f32 %v1192, %v1209
      %v1221 = vmul.f32 %v1193, %v1209
      %v1222 = vmul.f32 %v1194, %v1214
      %v1223 = vmul.f32 %v1195, %v1214
      %v1224 = vadd.f32 %v1216, 0.0
      %v1225 = vadd.f32 %v1217, 0.0
      %v1226 = vadd.f32 %v1218, 0.0
      %v1227 = vadd.f32 %v1219, 0.0
      %v1228 = vadd.f32 %v1220, 0.0
      %v1229 = vadd.f32 %v1221, 0.0
      %v1230 = vadd.f32 %v1222, 0.0
      %v1231 = vadd.f32 %v1223, 0.0
      %1232 = vrot.lane.b32.xlu0 %v1148, 16
      %v1233 = vpop.permute.xlu0 %1232
      %1234 = vrot.lane.b32.xlu0 %v1150, 16
      %v1235 = vpop.permute.xlu0 %1234
      %1236 = vrot.lane.b32.xlu0 %v1152, 16
      %v1237 = vpop.permute.xlu0 %1236
      %1238 = vrot.lane.b32.xlu0 %v1154, 16
      %v1239 = vpop.permute.xlu0 %1238
      %1240 = vrot.lane.b32.xlu0 %v1149, 16
      %v1241 = vpop.permute.xlu0 %1240
      %1242 = vrot.lane.b32.xlu0 %v1151, 16
      %v1243 = vpop.permute.xlu0 %1242
      %1244 = vrot.lane.b32.xlu0 %v1153, 16
      %v1245 = vpop.permute.xlu0 %1244
      %1246 = vrot.lane.b32.xlu0 %v1155, 16
      %v1247 = vpop.permute.xlu0 %1246
      %v1248 = vsel %vm190, %v1233, %v1241
      %v1249 = vsel %vm190, %v1235, %v1243
      %v1250 = vsel %vm190, %v1237, %v1245
      %v1251 = vsel %vm190, %v1239, %v1247
      %v1252 = vsel %vm190, %v1241, %v1233
      %v1253 = vsel %vm190, %v1243, %v1235
      %v1254 = vsel %vm190, %v1245, %v1237
      %v1255 = vsel %vm190, %v1247, %v1239
      %v1256 = vmul.f32 %v1252, %v201
      %v1257 = vmul.f32 %v1248, %v202
      %v1258 = vmul.f32 %v1253, %v201
      %v1259 = vmul.f32 %v1249, %v202
      %v1260 = vmul.f32 %v1254, %v201
      %v1261 = vmul.f32 %v1250, %v202
      %v1262 = vmul.f32 %v1255, %v201
      %v1263 = vmul.f32 %v1251, %v202
      %1264 = vset.pattern.permute.xlu0 1
      %1265 = vperm.xlu0 %1264, %v1156
      %v1266 = vpop.permute.xlu0 %1265
      %1268 = vset.pattern.permute.xlu0 1
      %1269 = vperm.xlu0 %1268, %v1157
      %v1270 = vpop.permute.xlu0 %1269
      %1272 = vset.pattern.permute.xlu0 1
      %1273 = vperm.xlu0 %1272, %v1158
      %v1274 = vpop.permute.xlu0 %1273
      %1276 = vset.pattern.permute.xlu0 1
      %1277 = vperm.xlu0 %1276, %v1159
      %v1278 = vpop.permute.xlu0 %1277
      %v1280 = vmul.f32 %v1256, %v1266
      %v1281 = vmul.f32 %v1257, %v1266
      %v1282 = vmul.f32 %v1258, %v1270
      %v1283 = vmul.f32 %v1259, %v1270
      %v1284 = vmul.f32 %v1260, %v1274
      %v1285 = vmul.f32 %v1261, %v1274
      %v1286 = vmul.f32 %v1262, %v1278
      %v1287 = vmul.f32 %v1263, %v1278
      %v1288 = vadd.f32 %v1224, %v1280
      %v1289 = vadd.f32 %v1225, %v1281
      %v1290 = vadd.f32 %v1226, %v1282
      %v1291 = vadd.f32 %v1227, %v1283
      %v1292 = vadd.f32 %v1228, %v1284
      %v1293 = vadd.f32 %v1229, %v1285
      %v1294 = vadd.f32 %v1230, %v1286
      %v1295 = vadd.f32 %v1231, %v1287
      %1296 = vrot.lane.b32.xlu0 %v1148, 15
      %v1297 = vpop.permute.xlu0 %1296
      %1298 = vrot.lane.b32.xlu0 %v1150, 15
      %v1299 = vpop.permute.xlu0 %1298
      %1300 = vrot.lane.b32.xlu0 %v1152, 15
      %v1301 = vpop.permute.xlu0 %1300
      %1302 = vrot.lane.b32.xlu0 %v1154, 15
      %v1303 = vpop.permute.xlu0 %1302
      %1304 = vrot.lane.b32.xlu0 %v1149, 15
      %v1305 = vpop.permute.xlu0 %1304
      %1306 = vrot.lane.b32.xlu0 %v1151, 15
      %v1307 = vpop.permute.xlu0 %1306
      %1308 = vrot.lane.b32.xlu0 %v1153, 15
      %v1309 = vpop.permute.xlu0 %1308
      %1310 = vrot.lane.b32.xlu0 %v1155, 15
      %v1311 = vpop.permute.xlu0 %1310
      %v1312 = vsel %vm209, %v1297, %v1305
      %v1313 = vsel %vm209, %v1299, %v1307
      %v1314 = vsel %vm209, %v1301, %v1309
      %v1315 = vsel %vm209, %v1303, %v1311
      %v1316 = vsel %vm209, %v1305, %v1297
      %v1317 = vsel %vm209, %v1307, %v1299
      %v1318 = vsel %vm209, %v1309, %v1301
      %v1319 = vsel %vm209, %v1311, %v1303
      %v1320 = vmul.f32 %v1316, %v222
      %v1321 = vmul.f32 %v1312, %v223
      %v1322 = vmul.f32 %v1317, %v222
      %v1323 = vmul.f32 %v1313, %v223
      %v1324 = vmul.f32 %v1318, %v222
      %v1325 = vmul.f32 %v1314, %v223
      %v1326 = vmul.f32 %v1319, %v222
      %v1327 = vmul.f32 %v1315, %v223
      %1328 = vset.pattern.permute.xlu0 2
      %1329 = vperm.xlu0 %1328, %v1156
      %v1330 = vpop.permute.xlu0 %1329
      %1332 = vset.pattern.permute.xlu0 2
      %1333 = vperm.xlu0 %1332, %v1157
      %v1334 = vpop.permute.xlu0 %1333
      %1336 = vset.pattern.permute.xlu0 2
      %1337 = vperm.xlu0 %1336, %v1158
      %v1338 = vpop.permute.xlu0 %1337
      %1340 = vset.pattern.permute.xlu0 2
      %1341 = vperm.xlu0 %1340, %v1159
      %v1342 = vpop.permute.xlu0 %1341
      %v1344 = vmul.f32 %v1320, %v1330
      %v1345 = vmul.f32 %v1321, %v1330
      %v1346 = vmul.f32 %v1322, %v1334
      %v1347 = vmul.f32 %v1323, %v1334
      %v1348 = vmul.f32 %v1324, %v1338
      %v1349 = vmul.f32 %v1325, %v1338
      %v1350 = vmul.f32 %v1326, %v1342
      %v1351 = vmul.f32 %v1327, %v1342
      %v1352 = vadd.f32 %v1288, %v1344
      %v1353 = vadd.f32 %v1289, %v1345
      %v1354 = vadd.f32 %v1290, %v1346
      %v1355 = vadd.f32 %v1291, %v1347
      %v1356 = vadd.f32 %v1292, %v1348
      %v1357 = vadd.f32 %v1293, %v1349
      %v1358 = vadd.f32 %v1294, %v1350
      %v1359 = vadd.f32 %v1295, %v1351
      %1360 = vrot.lane.b32.xlu0 %v1148, 1
      %v1361 = vpop.permute.xlu0 %1360
      %1362 = vrot.lane.b32.xlu0 %v1150, 1
      %v1363 = vpop.permute.xlu0 %1362
      %1364 = vrot.lane.b32.xlu0 %v1152, 1
      %v1365 = vpop.permute.xlu0 %1364
      %1366 = vrot.lane.b32.xlu0 %v1154, 1
      %v1367 = vpop.permute.xlu0 %1366
      %1368 = vrot.lane.b32.xlu0 %v1149, 1
      %v1369 = vpop.permute.xlu0 %1368
      %1370 = vrot.lane.b32.xlu0 %v1151, 1
      %v1371 = vpop.permute.xlu0 %1370
      %1372 = vrot.lane.b32.xlu0 %v1153, 1
      %v1373 = vpop.permute.xlu0 %1372
      %1374 = vrot.lane.b32.xlu0 %v1155, 1
      %v1375 = vpop.permute.xlu0 %1374
      %v1376 = vsel %vm230, %v1361, %v1369
      %v1377 = vsel %vm230, %v1363, %v1371
      %v1378 = vsel %vm230, %v1365, %v1373
      %v1379 = vsel %vm230, %v1367, %v1375
      %v1380 = vsel %vm230, %v1369, %v1361
      %v1381 = vsel %vm230, %v1371, %v1363
      %v1382 = vsel %vm230, %v1373, %v1365
      %v1383 = vsel %vm230, %v1375, %v1367
      %v1384 = vmul.f32 %v1380, %v243
      %v1385 = vmul.f32 %v1376, %v244
      %v1386 = vmul.f32 %v1381, %v243
      %v1387 = vmul.f32 %v1377, %v244
      %v1388 = vmul.f32 %v1382, %v243
      %v1389 = vmul.f32 %v1378, %v244
      %v1390 = vmul.f32 %v1383, %v243
      %v1391 = vmul.f32 %v1379, %v244
      %1392 = vset.pattern.permute.xlu0 3
      %1393 = vperm.xlu0 %1392, %v1156
      %v1394 = vpop.permute.xlu0 %1393
      %1396 = vset.pattern.permute.xlu0 3
      %1397 = vperm.xlu0 %1396, %v1157
      %v1398 = vpop.permute.xlu0 %1397
      %1400 = vset.pattern.permute.xlu0 3
      %1401 = vperm.xlu0 %1400, %v1158
      %v1402 = vpop.permute.xlu0 %1401
      %1404 = vset.pattern.permute.xlu0 3
      %1405 = vperm.xlu0 %1404, %v1159
      %v1406 = vpop.permute.xlu0 %1405
      %v1408 = vmul.f32 %v1384, %v1394
      %v1409 = vmul.f32 %v1385, %v1394
      %v1410 = vmul.f32 %v1386, %v1398
      %v1411 = vmul.f32 %v1387, %v1398
      %v1412 = vmul.f32 %v1388, %v1402
      %v1413 = vmul.f32 %v1389, %v1402
      %v1414 = vmul.f32 %v1390, %v1406
      %v1415 = vmul.f32 %v1391, %v1406
      %v1416 = vadd.f32 %v1352, %v1408
      %v1417 = vadd.f32 %v1353, %v1409
      %v1418 = vadd.f32 %v1354, %v1410
      %v1419 = vadd.f32 %v1355, %v1411
      %v1420 = vadd.f32 %v1356, %v1412
      %v1421 = vadd.f32 %v1357, %v1413
      %v1422 = vadd.f32 %v1358, %v1414
      %v1423 = vadd.f32 %v1359, %v1415
      %1424 = vset.pattern.permute.xlu0 4
      %1425 = vperm.xlu0 %1424, %v1156
      %v1426 = vpop.permute.xlu0 %1425
      %1428 = vset.pattern.permute.xlu0 4
      %1429 = vperm.xlu0 %1428, %v1157
      %v1430 = vpop.permute.xlu0 %1429
      %1432 = vset.pattern.permute.xlu0 4
      %1433 = vperm.xlu0 %1432, %v1158
      %v1434 = vpop.permute.xlu0 %1433
      %1436 = vset.pattern.permute.xlu0 4
      %1437 = vperm.xlu0 %1436, %v1159
      %v1438 = vpop.permute.xlu0 %1437
      %v1440 = vmul.f32 %v1148, %v1426
      %v1441 = vmul.f32 %v1149, %v1426
      %v1442 = vmul.f32 %v1150, %v1430
      %v1443 = vmul.f32 %v1151, %v1430
      %v1444 = vmul.f32 %v1152, %v1434
      %v1445 = vmul.f32 %v1153, %v1434
      %v1446 = vmul.f32 %v1154, %v1438
      %v1447 = vmul.f32 %v1155, %v1438
      %v1448 = vadd.f32 %v1416, %v1440
      %v1449 = vadd.f32 %v1417, %v1441
      %v1450 = vadd.f32 %v1418, %v1442
      %v1451 = vadd.f32 %v1419, %v1443
      %v1452 = vadd.f32 %v1420, %v1444
      %v1453 = vadd.f32 %v1421, %v1445
      %v1454 = vadd.f32 %v1422, %v1446
      %v1455 = vadd.f32 %v1423, %v1447
      %1456 = vrot.lane.b32.xlu0 %v1148, 127
      %v1457 = vpop.permute.xlu0 %1456
      %1458 = vrot.lane.b32.xlu0 %v1150, 127
      %v1459 = vpop.permute.xlu0 %1458
      %1460 = vrot.lane.b32.xlu0 %v1152, 127
      %v1461 = vpop.permute.xlu0 %1460
      %1462 = vrot.lane.b32.xlu0 %v1154, 127
      %v1463 = vpop.permute.xlu0 %1462
      %1464 = vrot.lane.b32.xlu0 %v1149, 127
      %v1465 = vpop.permute.xlu0 %1464
      %1466 = vrot.lane.b32.xlu0 %v1151, 127
      %v1467 = vpop.permute.xlu0 %1466
      %1468 = vrot.lane.b32.xlu0 %v1153, 127
      %v1469 = vpop.permute.xlu0 %1468
      %1470 = vrot.lane.b32.xlu0 %v1155, 127
      %v1471 = vpop.permute.xlu0 %1470
      %v1472 = vsel %vm251, %v1457, %v1465
      %v1473 = vsel %vm251, %v1459, %v1467
      %v1474 = vsel %vm251, %v1461, %v1469
      %v1475 = vsel %vm251, %v1463, %v1471
      %v1476 = vsel %vm251, %v1465, %v1457
      %v1477 = vsel %vm251, %v1467, %v1459
      %v1478 = vsel %vm251, %v1469, %v1461
      %v1479 = vsel %vm251, %v1471, %v1463
      %v1480 = vmul.f32 %v1472, %v258
      %v1481 = vmul.f32 %v1476, %v259
      %v1482 = vmul.f32 %v1473, %v258
      %v1483 = vmul.f32 %v1477, %v259
      %v1484 = vmul.f32 %v1474, %v258
      %v1485 = vmul.f32 %v1478, %v259
      %v1486 = vmul.f32 %v1475, %v258
      %v1487 = vmul.f32 %v1479, %v259
      %1488 = vset.pattern.permute.xlu0 5
      %1489 = vperm.xlu0 %1488, %v1156
      %v1490 = vpop.permute.xlu0 %1489
      %1492 = vset.pattern.permute.xlu0 5
      %1493 = vperm.xlu0 %1492, %v1157
      %v1494 = vpop.permute.xlu0 %1493
      %1496 = vset.pattern.permute.xlu0 5
      %1497 = vperm.xlu0 %1496, %v1158
      %v1498 = vpop.permute.xlu0 %1497
      %1500 = vset.pattern.permute.xlu0 5
      %1501 = vperm.xlu0 %1500, %v1159
      %v1502 = vpop.permute.xlu0 %1501
      %v1504 = vmul.f32 %v1480, %v1490
      %v1505 = vmul.f32 %v1481, %v1490
      %v1506 = vmul.f32 %v1482, %v1494
      %v1507 = vmul.f32 %v1483, %v1494
      %v1508 = vmul.f32 %v1484, %v1498
      %v1509 = vmul.f32 %v1485, %v1498
      %v1510 = vmul.f32 %v1486, %v1502
      %v1511 = vmul.f32 %v1487, %v1502
      %v1512 = vadd.f32 %v1448, %v1504
      %v1513 = vadd.f32 %v1449, %v1505
      %v1514 = vadd.f32 %v1450, %v1506
      %v1515 = vadd.f32 %v1451, %v1507
      %v1516 = vadd.f32 %v1452, %v1508
      %v1517 = vadd.f32 %v1453, %v1509
      %v1518 = vadd.f32 %v1454, %v1510
      %v1519 = vadd.f32 %v1455, %v1511
      %1520 = vrot.lane.b32.xlu0 %v1148, 113
      %v1521 = vpop.permute.xlu0 %1520
      %1522 = vrot.lane.b32.xlu0 %v1150, 113
      %v1523 = vpop.permute.xlu0 %1522
      %1524 = vrot.lane.b32.xlu0 %v1152, 113
      %v1525 = vpop.permute.xlu0 %1524
      %1526 = vrot.lane.b32.xlu0 %v1154, 113
      %v1527 = vpop.permute.xlu0 %1526
      %1528 = vrot.lane.b32.xlu0 %v1149, 113
      %v1529 = vpop.permute.xlu0 %1528
      %1530 = vrot.lane.b32.xlu0 %v1151, 113
      %v1531 = vpop.permute.xlu0 %1530
      %1532 = vrot.lane.b32.xlu0 %v1153, 113
      %v1533 = vpop.permute.xlu0 %1532
      %1534 = vrot.lane.b32.xlu0 %v1155, 113
      %v1535 = vpop.permute.xlu0 %1534
      %v1536 = vsel %vm266, %v1521, %v1529
      %v1537 = vsel %vm266, %v1523, %v1531
      %v1538 = vsel %vm266, %v1525, %v1533
      %v1539 = vsel %vm266, %v1527, %v1535
      %v1540 = vsel %vm266, %v1529, %v1521
      %v1541 = vsel %vm266, %v1531, %v1523
      %v1542 = vsel %vm266, %v1533, %v1525
      %v1543 = vsel %vm266, %v1535, %v1527
      %v1544 = vmul.f32 %v1536, %v281
      %v1545 = vmul.f32 %v1540, %v282
      %v1546 = vmul.f32 %v1537, %v281
      %v1547 = vmul.f32 %v1541, %v282
      %v1548 = vmul.f32 %v1538, %v281
      %v1549 = vmul.f32 %v1542, %v282
      %v1550 = vmul.f32 %v1539, %v281
      %v1551 = vmul.f32 %v1543, %v282
      %1552 = vset.pattern.permute.xlu0 6
      %1553 = vperm.xlu0 %1552, %v1156
      %v1554 = vpop.permute.xlu0 %1553
      %1556 = vset.pattern.permute.xlu0 6
      %1557 = vperm.xlu0 %1556, %v1157
      %v1558 = vpop.permute.xlu0 %1557
      %1560 = vset.pattern.permute.xlu0 6
      %1561 = vperm.xlu0 %1560, %v1158
      %v1562 = vpop.permute.xlu0 %1561
      %1564 = vset.pattern.permute.xlu0 6
      %1565 = vperm.xlu0 %1564, %v1159
      %v1566 = vpop.permute.xlu0 %1565
      %v1568 = vmul.f32 %v1544, %v1554
      %v1569 = vmul.f32 %v1545, %v1554
      %v1570 = vmul.f32 %v1546, %v1558
      %v1571 = vmul.f32 %v1547, %v1558
      %v1572 = vmul.f32 %v1548, %v1562
      %v1573 = vmul.f32 %v1549, %v1562
      %v1574 = vmul.f32 %v1550, %v1566
      %v1575 = vmul.f32 %v1551, %v1566
      %v1576 = vadd.f32 %v1512, %v1568
      %v1577 = vadd.f32 %v1513, %v1569
      %v1578 = vadd.f32 %v1514, %v1570
      %v1579 = vadd.f32 %v1515, %v1571
      %v1580 = vadd.f32 %v1516, %v1572
      %v1581 = vadd.f32 %v1517, %v1573
      %v1582 = vadd.f32 %v1518, %v1574
      %v1583 = vadd.f32 %v1519, %v1575
      %1584 = vrot.lane.b32.xlu0 %v1148, 112
      %v1585 = vpop.permute.xlu0 %1584
      %1586 = vrot.lane.b32.xlu0 %v1150, 112
      %v1587 = vpop.permute.xlu0 %1586
      %1588 = vrot.lane.b32.xlu0 %v1152, 112
      %v1589 = vpop.permute.xlu0 %1588
      %1590 = vrot.lane.b32.xlu0 %v1154, 112
      %v1591 = vpop.permute.xlu0 %1590
      %1592 = vrot.lane.b32.xlu0 %v1149, 112
      %v1593 = vpop.permute.xlu0 %1592
      %1594 = vrot.lane.b32.xlu0 %v1151, 112
      %v1595 = vpop.permute.xlu0 %1594
      %1596 = vrot.lane.b32.xlu0 %v1153, 112
      %v1597 = vpop.permute.xlu0 %1596
      %1598 = vrot.lane.b32.xlu0 %v1155, 112
      %v1599 = vpop.permute.xlu0 %1598
      %v1600 = vsel %vm289, %v1585, %v1593
      %v1601 = vsel %vm289, %v1587, %v1595
      %v1602 = vsel %vm289, %v1589, %v1597
      %v1603 = vsel %vm289, %v1591, %v1599
      %v1604 = vsel %vm289, %v1593, %v1585
      %v1605 = vsel %vm289, %v1595, %v1587
      %v1606 = vsel %vm289, %v1597, %v1589
      %v1607 = vsel %vm289, %v1599, %v1591
      %v1608 = vmul.f32 %v1600, %v296
      %v1609 = vmul.f32 %v1604, %v297
      %v1610 = vmul.f32 %v1601, %v296
      %v1611 = vmul.f32 %v1605, %v297
      %v1612 = vmul.f32 %v1602, %v296
      %v1613 = vmul.f32 %v1606, %v297
      %v1614 = vmul.f32 %v1603, %v296
      %v1615 = vmul.f32 %v1607, %v297
      %1616 = vset.pattern.permute.xlu0 7
      %1617 = vperm.xlu0 %1616, %v1156
      %v1618 = vpop.permute.xlu0 %1617
      %1620 = vset.pattern.permute.xlu0 7
      %1621 = vperm.xlu0 %1620, %v1157
      %v1622 = vpop.permute.xlu0 %1621
      %1624 = vset.pattern.permute.xlu0 7
      %1625 = vperm.xlu0 %1624, %v1158
      %v1626 = vpop.permute.xlu0 %1625
      %1628 = vset.pattern.permute.xlu0 7
      %1629 = vperm.xlu0 %1628, %v1159
      %v1630 = vpop.permute.xlu0 %1629
      %v1632 = vmul.f32 %v1608, %v1618
      %v1633 = vmul.f32 %v1609, %v1618
      %v1634 = vmul.f32 %v1610, %v1622
      %v1635 = vmul.f32 %v1611, %v1622
      %v1636 = vmul.f32 %v1612, %v1626
      %v1637 = vmul.f32 %v1613, %v1626
      %v1638 = vmul.f32 %v1614, %v1630
      %v1639 = vmul.f32 %v1615, %v1630
      %v1640 = vadd.f32 %v1576, %v1632
      %v1641 = vadd.f32 %v1577, %v1633
      %v1642 = vadd.f32 %v1578, %v1634
      %v1643 = vadd.f32 %v1579, %v1635
      %v1644 = vadd.f32 %v1580, %v1636
      %v1645 = vadd.f32 %v1581, %v1637
      %v1646 = vadd.f32 %v1582, %v1638
      %v1647 = vadd.f32 %v1583, %v1639
      %1648 = vrot.lane.b32.xlu0 %v1148, 111
      %v1649 = vpop.permute.xlu0 %1648
      %1650 = vrot.lane.b32.xlu0 %v1150, 111
      %v1651 = vpop.permute.xlu0 %1650
      %1652 = vrot.lane.b32.xlu0 %v1152, 111
      %v1653 = vpop.permute.xlu0 %1652
      %1654 = vrot.lane.b32.xlu0 %v1154, 111
      %v1655 = vpop.permute.xlu0 %1654
      %1656 = vrot.lane.b32.xlu0 %v1149, 111
      %v1657 = vpop.permute.xlu0 %1656
      %1658 = vrot.lane.b32.xlu0 %v1151, 111
      %v1659 = vpop.permute.xlu0 %1658
      %1660 = vrot.lane.b32.xlu0 %v1153, 111
      %v1661 = vpop.permute.xlu0 %1660
      %1662 = vrot.lane.b32.xlu0 %v1155, 111
      %v1663 = vpop.permute.xlu0 %1662
      %v1664 = vsel %vm304, %v1649, %v1657
      %v1665 = vsel %vm304, %v1651, %v1659
      %v1666 = vsel %vm304, %v1653, %v1661
      %v1667 = vsel %vm304, %v1655, %v1663
      %v1668 = vsel %vm304, %v1657, %v1649
      %v1669 = vsel %vm304, %v1659, %v1651
      %v1670 = vsel %vm304, %v1661, %v1653
      %v1671 = vsel %vm304, %v1663, %v1655
      %v1672 = vmul.f32 %v1664, %v311
      %v1673 = vmul.f32 %v1668, %v312
      %v1674 = vmul.f32 %v1665, %v311
      %v1675 = vmul.f32 %v1669, %v312
      %v1676 = vmul.f32 %v1666, %v311
      %v1677 = vmul.f32 %v1670, %v312
      %v1678 = vmul.f32 %v1667, %v311
      %v1679 = vmul.f32 %v1671, %v312
      %1680 = vset.pattern.permute.xlu0 8
      %1681 = vperm.xlu0 %1680, %v1156
      %v1682 = vpop.permute.xlu0 %1681
      %1684 = vset.pattern.permute.xlu0 8
      %1685 = vperm.xlu0 %1684, %v1157
      %v1686 = vpop.permute.xlu0 %1685
      %1688 = vset.pattern.permute.xlu0 8
      %1689 = vperm.xlu0 %1688, %v1158
      %v1690 = vpop.permute.xlu0 %1689
      %1692 = vset.pattern.permute.xlu0 8
      %1693 = vperm.xlu0 %1692, %v1159
      %v1694 = vpop.permute.xlu0 %1693
      %v1696 = vmul.f32 %v1672, %v1682
      %v1697 = vmul.f32 %v1673, %v1682
      %v1698 = vmul.f32 %v1674, %v1686
      %v1699 = vmul.f32 %v1675, %v1686
      %v1700 = vmul.f32 %v1676, %v1690
      %v1701 = vmul.f32 %v1677, %v1690
      %v1702 = vmul.f32 %v1678, %v1694
      %v1703 = vmul.f32 %v1679, %v1694
      %v1704 = vadd.f32 %v1640, %v1696
      %v1705 = vadd.f32 %v1641, %v1697
      %v1706 = vadd.f32 %v1642, %v1698
      %v1707 = vadd.f32 %v1643, %v1699
      %v1708 = vadd.f32 %v1644, %v1700
      %v1709 = vadd.f32 %v1645, %v1701
      %v1710 = vadd.f32 %v1646, %v1702
      %v1711 = vadd.f32 %v1647, %v1703
      %1713 = vset.pattern.permute.xlu0 0
      %1714 = vperm.xlu0 %1713, %v1160
      %v1715 = vpop.permute.xlu0 %1714
      %1718 = vset.pattern.permute.xlu0 0
      %1719 = vperm.xlu0 %1718, %v1161
      %v1720 = vpop.permute.xlu0 %1719
      %1723 = vset.pattern.permute.xlu0 0
      %1724 = vperm.xlu0 %1723, %v1162
      %v1725 = vpop.permute.xlu0 %1724
      %1728 = vset.pattern.permute.xlu0 0
      %1729 = vperm.xlu0 %1728, %v1163
      %v1730 = vpop.permute.xlu0 %1729
      %v1732 = vadd.f32 %v1704, %v1715
      %v1733 = vadd.f32 %v1705, %v1715
      %v1734 = vadd.f32 %v1706, %v1720
      %v1735 = vadd.f32 %v1707, %v1720
      %v1736 = vadd.f32 %v1708, %v1725
      %v1737 = vadd.f32 %v1709, %v1725
      %v1738 = vadd.f32 %v1710, %v1730
      %v1739 = vadd.f32 %v1711, %v1730
      %v1740 = vmul.f32 %v1732, 0.5
      %v1741 = vmul.f32 %v1733, 0.5
      %v1742 = vmul.f32 %v1734, 0.5
      %v1743 = vmul.f32 %v1735, 0.5
      %v1744 = vmul.f32 %v1736, 0.5
      %v1745 = vmul.f32 %v1737, 0.5
      %v1746 = vmul.f32 %v1738, 0.5
      %v1747 = vmul.f32 %v1739, 0.5
      %v1748 = vmul.f32 %v1732, 0.70710677
      %v1749 = vmul.f32 %v1733, 0.70710677
      %v1750 = vmul.f32 %v1734, 0.70710677
      %v1751 = vmul.f32 %v1735, 0.70710677
      %v1752 = vmul.f32 %v1736, 0.70710677
      %v1753 = vmul.f32 %v1737, 0.70710677
      %v1754 = vmul.f32 %v1738, 0.70710677
      %v1755 = vmul.f32 %v1739, 0.70710677
      %v1756 = vand.u32 2147483647, %v1748
      %v1757 = vand.u32 2147483647, %v1749
      %v1758 = vand.u32 2147483647, %v1750
      %v1759 = vand.u32 2147483647, %v1751
      %v1760 = vand.u32 2147483647, %v1752
      %v1761 = vand.u32 2147483647, %v1753
      %v1762 = vand.u32 2147483647, %v1754
      %v1763 = vand.u32 2147483647, %v1755
      %v1764 = vmul.f32 %v1756, 0.3275911
      %v1765 = vmul.f32 %v1757, 0.3275911
      %v1766 = vmul.f32 %v1758, 0.3275911
      %v1767 = vmul.f32 %v1759, 0.3275911
      %v1768 = vmul.f32 %v1760, 0.3275911
      %v1769 = vmul.f32 %v1761, 0.3275911
      %v1770 = vmul.f32 %v1762, 0.3275911
      %v1771 = vmul.f32 %v1763, 0.3275911
      %v1772 = vadd.f32 %v1764, 1.0
      %v1773 = vadd.f32 %v1765, 1.0
      %v1774 = vadd.f32 %v1766, 1.0
      %v1775 = vadd.f32 %v1767, 1.0
      %v1776 = vadd.f32 %v1768, 1.0
      %v1777 = vadd.f32 %v1769, 1.0
      %v1778 = vadd.f32 %v1770, 1.0
      %v1779 = vadd.f32 %v1771, 1.0
      %v1780 = vrcp.pop %v1772
      %v1781 = vmul.f32 1.0, %v1780
      %v1782 = vrcp.pop %v1773
      %v1783 = vmul.f32 1.0, %v1782
      %v1784 = vrcp.pop %v1774
      %v1785 = vmul.f32 1.0, %v1784
      %v1786 = vrcp.pop %v1775
      %v1787 = vmul.f32 1.0, %v1786
      %v1788 = vrcp.pop %v1776
      %v1789 = vmul.f32 1.0, %v1788
      %v1790 = vrcp.pop %v1777
      %v1791 = vmul.f32 1.0, %v1790
      %v1792 = vrcp.pop %v1778
      %v1793 = vmul.f32 1.0, %v1792
      %v1794 = vrcp.pop %v1779
      %v1795 = vmul.f32 1.0, %v1794
      %v1796 = vmul.f32 %v1781, 1.0614054
      %v1797 = vmul.f32 %v1783, 1.0614054
      %v1798 = vmul.f32 %v1785, 1.0614054
      %v1799 = vmul.f32 %v1787, 1.0614054
      %v1800 = vmul.f32 %v1789, 1.0614054
      %v1801 = vmul.f32 %v1791, 1.0614054
      %v1802 = vmul.f32 %v1793, 1.0614054
      %v1803 = vmul.f32 %v1795, 1.0614054
      %v1804 = vadd.f32 %v1796, -1.4531521
      %v1805 = vadd.f32 %v1797, -1.4531521
      %v1806 = vadd.f32 %v1798, -1.4531521
      %v1807 = vadd.f32 %v1799, -1.4531521
      %v1808 = vadd.f32 %v1800, -1.4531521
      %v1809 = vadd.f32 %v1801, -1.4531521
      %v1810 = vadd.f32 %v1802, -1.4531521
      %v1811 = vadd.f32 %v1803, -1.4531521
      %v1812 = vmul.f32 %v1804, %v1781
      %v1813 = vmul.f32 %v1805, %v1783
      %v1814 = vmul.f32 %v1806, %v1785
      %v1815 = vmul.f32 %v1807, %v1787
      %v1816 = vmul.f32 %v1808, %v1789
      %v1817 = vmul.f32 %v1809, %v1791
      %v1818 = vmul.f32 %v1810, %v1793
      %v1819 = vmul.f32 %v1811, %v1795
      %v1820 = vadd.f32 %v1812, 1.4214138
      %v1821 = vadd.f32 %v1813, 1.4214138
      %v1822 = vadd.f32 %v1814, 1.4214138
      %v1823 = vadd.f32 %v1815, 1.4214138
      %v1824 = vadd.f32 %v1816, 1.4214138
      %v1825 = vadd.f32 %v1817, 1.4214138
      %v1826 = vadd.f32 %v1818, 1.4214138
      %v1827 = vadd.f32 %v1819, 1.4214138
      %v1828 = vmul.f32 %v1820, %v1781
      %v1829 = vmul.f32 %v1821, %v1783
      %v1830 = vmul.f32 %v1822, %v1785
      %v1831 = vmul.f32 %v1823, %v1787
      %v1832 = vmul.f32 %v1824, %v1789
      %v1833 = vmul.f32 %v1825, %v1791
      %v1834 = vmul.f32 %v1826, %v1793
      %v1835 = vmul.f32 %v1827, %v1795
      %v1836 = vadd.f32 %v1828, -0.28449672
      %v1837 = vadd.f32 %v1829, -0.28449672
      %v1838 = vadd.f32 %v1830, -0.28449672
      %v1839 = vadd.f32 %v1831, -0.28449672
      %v1840 = vadd.f32 %v1832, -0.28449672
      %v1841 = vadd.f32 %v1833, -0.28449672
      %v1842 = vadd.f32 %v1834, -0.28449672
      %v1843 = vadd.f32 %v1835, -0.28449672
      %v1844 = vmul.f32 %v1836, %v1781
      %v1845 = vmul.f32 %v1837, %v1783
      %v1846 = vmul.f32 %v1838, %v1785
      %v1847 = vmul.f32 %v1839, %v1787
      %v1848 = vmul.f32 %v1840, %v1789
      %v1849 = vmul.f32 %v1841, %v1791
      %v1850 = vmul.f32 %v1842, %v1793
      %v1851 = vmul.f32 %v1843, %v1795
      %v1852 = vadd.f32 %v1844, 0.2548296
      %v1853 = vadd.f32 %v1845, 0.2548296
      %v1854 = vadd.f32 %v1846, 0.2548296
      %v1855 = vadd.f32 %v1847, 0.2548296
      %v1856 = vadd.f32 %v1848, 0.2548296
      %v1857 = vadd.f32 %v1849, 0.2548296
      %v1858 = vadd.f32 %v1850, 0.2548296
      %v1859 = vadd.f32 %v1851, 0.2548296
      %v1860 = vmul.f32 %v1852, %v1781
      %v1861 = vmul.f32 %v1853, %v1783
      %v1862 = vmul.f32 %v1854, %v1785
      %v1863 = vmul.f32 %v1855, %v1787
      %v1864 = vmul.f32 %v1856, %v1789
      %v1865 = vmul.f32 %v1857, %v1791
      %v1866 = vmul.f32 %v1858, %v1793
      %v1867 = vmul.f32 %v1859, %v1795
      %v1868 = vsub.f32 0.0, %v1756
      %v1869 = vsub.f32 0.0, %v1757
      %v1870 = vsub.f32 0.0, %v1758
      %v1871 = vsub.f32 0.0, %v1759
      %v1872 = vsub.f32 0.0, %v1760
      %v1873 = vsub.f32 0.0, %v1761
      %v1874 = vsub.f32 0.0, %v1762
      %v1875 = vsub.f32 0.0, %v1763
      %v1876 = vmul.f32 %v1868, %v1756
      %v1877 = vmul.f32 %v1869, %v1757
      %v1878 = vmul.f32 %v1870, %v1758
      %v1879 = vmul.f32 %v1871, %v1759
      %v1880 = vmul.f32 %v1872, %v1760
      %v1881 = vmul.f32 %v1873, %v1761
      %v1882 = vmul.f32 %v1874, %v1762
      %v1883 = vmul.f32 %v1875, %v1763
      %v1884 = vmul.f32 %v1876, 1.442695
      %v1885 = vpow.pop %v1884
      %v1886 = vmul.f32 %v1877, 1.442695
      %v1887 = vpow.pop %v1886
      %v1888 = vmul.f32 %v1878, 1.442695
      %v1889 = vpow.pop %v1888
      %v1890 = vmul.f32 %v1879, 1.442695
      %v1891 = vpow.pop %v1890
      %v1892 = vmul.f32 %v1880, 1.442695
      %v1893 = vpow.pop %v1892
      %v1894 = vmul.f32 %v1881, 1.442695
      %v1895 = vpow.pop %v1894
      %v1896 = vmul.f32 %v1882, 1.442695
      %v1897 = vpow.pop %v1896
      %v1898 = vmul.f32 %v1883, 1.442695
      %v1899 = vpow.pop %v1898
      %v1900 = vmul.f32 %v1860, %v1885
      %v1901 = vmul.f32 %v1861, %v1887
      %v1902 = vmul.f32 %v1862, %v1889
      %v1903 = vmul.f32 %v1863, %v1891
      %v1904 = vmul.f32 %v1864, %v1893
      %v1905 = vmul.f32 %v1865, %v1895
      %v1906 = vmul.f32 %v1866, %v1897
      %v1907 = vmul.f32 %v1867, %v1899
      %v1908 = vsub.f32 1.0, %v1900
      %v1909 = vsub.f32 1.0, %v1901
      %v1910 = vsub.f32 1.0, %v1902
      %v1911 = vsub.f32 1.0, %v1903
      %v1912 = vsub.f32 1.0, %v1904
      %v1913 = vsub.f32 1.0, %v1905
      %v1914 = vsub.f32 1.0, %v1906
      %v1915 = vsub.f32 1.0, %v1907
      %vm1916 = vcmp.ge.f32.partialorder %v1748, 0.0
      %vm1917 = vcmp.ge.f32.partialorder %v1749, 0.0
      %vm1918 = vcmp.ge.f32.partialorder %v1750, 0.0
      %vm1919 = vcmp.ge.f32.partialorder %v1751, 0.0
      %vm1920 = vcmp.ge.f32.partialorder %v1752, 0.0
      %vm1921 = vcmp.ge.f32.partialorder %v1753, 0.0
      %vm1922 = vcmp.ge.f32.partialorder %v1754, 0.0
      %vm1923 = vcmp.ge.f32.partialorder %v1755, 0.0
      %v1924 = vsub.f32 0.0, %v1908
      %v1925 = vsub.f32 0.0, %v1909
      %v1926 = vsub.f32 0.0, %v1910
      %v1927 = vsub.f32 0.0, %v1911
      %v1928 = vsub.f32 0.0, %v1912
      %v1929 = vsub.f32 0.0, %v1913
      %v1930 = vsub.f32 0.0, %v1914
      %v1931 = vsub.f32 0.0, %v1915
      %v1932 = vsel %vm1916, %v1908, %v1924
      %v1933 = vsel %vm1917, %v1909, %v1925
      %v1934 = vsel %vm1918, %v1910, %v1926
      %v1935 = vsel %vm1919, %v1911, %v1927
      %v1936 = vsel %vm1920, %v1912, %v1928
      %v1937 = vsel %vm1921, %v1913, %v1929
      %v1938 = vsel %vm1922, %v1914, %v1930
      %v1939 = vsel %vm1923, %v1915, %v1931
      %v1940 = vadd.f32 %v1932, 1.0
      %v1941 = vadd.f32 %v1933, 1.0
      %v1942 = vadd.f32 %v1934, 1.0
      %v1943 = vadd.f32 %v1935, 1.0
      %v1944 = vadd.f32 %v1936, 1.0
      %v1945 = vadd.f32 %v1937, 1.0
      %v1946 = vadd.f32 %v1938, 1.0
      %v1947 = vadd.f32 %v1939, 1.0
      %v1948 = vmul.f32 %v1740, %v1940
      %v1949 = vmul.f32 %v1741, %v1941
      %v1950 = vmul.f32 %v1742, %v1942
      %v1951 = vmul.f32 %v1743, %v1943
      %v1952 = vmul.f32 %v1744, %v1944
      %v1953 = vmul.f32 %v1745, %v1945
      %v1954 = vmul.f32 %v1746, %v1946
      %v1955 = vmul.f32 %v1747, %v1947
      %v1956 = vadd.f32 %v1948, %v1949
      %1957 = vadd.xlane.f32.xlu0 %v1956
      %v1958 = vpop.xlane.xlu0 %1957
      %v1959 = vadd.f32 %v1950, %v1951
      %1960 = vadd.xlane.f32.xlu0 %v1959
      %v1961 = vpop.xlane.xlu0 %1960
      %v1962 = vadd.f32 %v1952, %v1953
      %1963 = vadd.xlane.f32.xlu0 %v1962
      %v1964 = vpop.xlane.xlu0 %1963
      %v1965 = vadd.f32 %v1954, %v1955
      %1966 = vadd.xlane.f32.xlu0 %v1965
      %v1967 = vpop.xlane.xlu0 %1966
      %v1968 = vmul.f32 %v1958, %v415
      %v1969 = vmul.f32 %v1961, %v415
      %v1970 = vmul.f32 %v1964, %v415
      %v1971 = vmul.f32 %v1967, %v415
      %v1972 = vld [vmem:[%s1 + $0x1c0] sm:$0xff]
      %v1973 = vld [vmem:[%s1 + $0x1d0] sm:$0xff]
      %v1974 = vld [vmem:[%s1 + $0x1e0] sm:$0xff]
      %v1975 = vld [vmem:[%s1 + $0x1f0] sm:$0xff]
      %v1976 = vld [vmem:[%s1 + $0x200] sm:$0xff]
      %v1977 = vld [vmem:[%s1 + $0x210] sm:$0xff]
      %v1978 = vld [vmem:[%s1 + $0x220] sm:$0xff]
      %v1979 = vld [vmem:[%s1 + $0x230] sm:$0xff]
      %vm1980 = vcmask 261120
      %v1982 = vsel %vm1980, %v1972, 0
      %v1985 = vsel %vm1980, %v1973, 0
      %v1988 = vsel %vm1980, %v1974, 0
      %v1991 = vsel %vm1980, %v1975, 0
      %1993 = vmatprep.subr.mxu0 0.0
      %1994 = vmatpush1.msra.mxu0 0.0
      %1995 = vmatprep.subr.mxu0 0.0
      %1996 = vmatpush1.msra.mxu0 0.0
      %1997 = vmatprep.subr.mxu0 0.0
      %1998 = vmatpush1.msra.mxu0 0.0
      %1999 = vmatprep.subr.mxu0 0.0
      %2000 = vmatpush1.msra.mxu0 0.0
      %2001 = vmatprep.subr.mxu0 0.0
      %2002 = vmatpush1.msra.mxu0 0.0
      %2003 = vmatprep.subr.mxu0 0.0
      %2004 = vmatpush1.msra.mxu0 0.0
      %2005 = vmatprep.subr.mxu0 0.0
      %2006 = vmatpush1.msra.mxu0 0.0
      %2007 = vmatprep.subr.mxu0 0.0
      %2008 = vmatpush1.msra.mxu0 0.0
      %2009 = vmatprep.subr.mxu0 0.0
      %2010 = vmatpush1.msra.mxu0 0.0
      %2011 = vmatprep.subr.mxu0 0.0
      %2012 = vmatpush1.msra.mxu0 0.0
      %2013 = vmatprep.subr.mxu0 0.0
      %2014 = vmatpush1.msra.mxu0 0.0
      %2015 = vmatprep.subr.mxu0 0.0
      %2016 = vmatpush1.msra.mxu0 0.0
      %2017 = vmatprep.subr.mxu0 0.0
      %2018 = vmatpush1.msra.mxu0 %v1971
      %2019 = vmatprep.subr.mxu0 0.0
      %2020 = vmatpush1.msra.mxu0 %v1970
      %2021 = vmatprep.subr.mxu0 0.0
      %2022 = vmatpush1.msra.mxu0 %v1969
      %2023 = vmatprep.subr.mxu0 0.0
      %2024 = vmatpush1.msra.mxu0 %v1968
      %2025 = vmatprep.subr.mxu0 0.0
      %2026 = vmatpush2.msra.mxu0 0.0
      %2027 = vmatprep.subr.mxu0 0.0
      %2028 = vmatpush2.msra.mxu0 0.0
      %2029 = vmatprep.subr.mxu0 0.0
      %2030 = vmatpush2.msra.mxu0 0.0
      %2031 = vmatprep.subr.mxu0 0.0
      %2032 = vmatpush2.msra.mxu0 0.0
      %2033 = vmatprep.subr.mxu0 0.0
      %2034 = vmatpush2.msra.mxu0 0.0
      %2035 = vmatprep.subr.mxu0 0.0
      %2036 = vmatpush2.msra.mxu0 0.0
      %2037 = vmatprep.subr.mxu0 0.0
      %2038 = vmatpush2.msra.mxu0 0.0
      %2039 = vmatprep.subr.mxu0 0.0
      %2040 = vmatpush2.msra.mxu0 0.0
      %2041 = vmatprep.subr.mxu0 0.0
      %2042 = vmatpush2.msra.mxu0 0.0
      %2043 = vmatprep.subr.mxu0 0.0
      %2044 = vmatpush2.msra.mxu0 0.0
      %2045 = vmatprep.subr.mxu0 0.0
      %2046 = vmatpush2.msra.mxu0 0.0
      %2047 = vmatprep.subr.mxu0 0.0
      %2048 = vmatpush2.msra.mxu0 0.0
      %2049 = vmatprep.subr.mxu0 0.0
      %2050 = vmatpush2.msra.mxu0 0.0
      %2051 = vmatprep.subr.mxu0 0.0
      %2052 = vmatpush2.msra.mxu0 0.0
      %2053 = vmatprep.subr.mxu0 0.0
      %2054 = vmatpush2.msra.mxu0 0.0
      %2055 = vmatprep.subr.mxu0 0.0
      %2056 = vmatpush2.msra.mxu0 0.0
      %2057 = vmatprep.mubr.f32.mxu0 0.0
      %2058 = vmatmul.mubr.f32.gmra.mxu0 %v1982
      %v2059 = vpop.f32.mrf.mxu0
      %v2060 = vadd.f32 %v1976, %v2059
      %v2061 = vpop.f32.mrf.mxu0
      %2062 = vmatprep.mubr.f32.mxu0 0.0
      %2063 = vmatmul.mubr.f32.gmra.mxu0 %v1985
      %v2064 = vpop.f32.mrf.mxu0
      %v2065 = vadd.f32 %v1977, %v2064
      %v2066 = vpop.f32.mrf.mxu0
      %2067 = vmatprep.mubr.f32.mxu0 0.0
      %2068 = vmatmul.mubr.f32.gmra.mxu0 %v1988
      %v2069 = vpop.f32.mrf.mxu0
      %v2070 = vadd.f32 %v1978, %v2069
      %v2071 = vpop.f32.mrf.mxu0
      %2072 = vmatprep.mubr.f32.mxu0 0.0
      %2073 = vmatmul.mubr.f32.gmra.mxu0 %v1991
      %v2074 = vpop.f32.mrf.mxu0
      %v2075 = vadd.f32 %v1979, %v2074
      %v2076 = vpop.f32.mrf.mxu0
      %2077 = vdwg.mxu0
      %2079 = vset.pattern.permute.xlu0 0
      %2080 = vperm.xlu0 %2079, %v2060
      %v2081 = vpop.permute.xlu0 %2080
      %2084 = vset.pattern.permute.xlu0 0
      %2085 = vperm.xlu0 %2084, %v2065
      %v2086 = vpop.permute.xlu0 %2085
      %2089 = vset.pattern.permute.xlu0 0
      %2090 = vperm.xlu0 %2089, %v2070
      %v2091 = vpop.permute.xlu0 %2090
      %2094 = vset.pattern.permute.xlu0 0
      %2095 = vperm.xlu0 %2094, %v2075
      %v2096 = vpop.permute.xlu0 %2095
      %v2098 = vmul.f32 %v2081, %v1948
      %v2099 = vmul.f32 %v2081, %v1949
      %v2100 = vmul.f32 %v2086, %v1950
      %v2101 = vmul.f32 %v2086, %v1951
      %v2102 = vmul.f32 %v2091, %v1952
      %v2103 = vmul.f32 %v2091, %v1953
      %v2104 = vmul.f32 %v2096, %v1954
      %v2105 = vmul.f32 %v2096, %v1955
      %v2106 = vmax.f32 %v2098, %v2102
      %v2107 = vmax.f32 %v2100, %v2104
      %v2108 = vmax.f32 %v2106, %v2107
      %v2109 = vrot.slane %v2108, 4
      %v2110 = vmax.f32 %v2108, %v2109
      %v2111 = vrot.slane %v2110, 2
      %v2112 = vmax.f32 %v2110, %v2111
      %v2113 = vrot.slane %v2112, 1
      %v2114 = vmax.f32 %v2112, %v2113
      %v2115 = vmax.f32 %v2099, %v2103
      %v2116 = vmax.f32 %v2101, %v2105
      %v2117 = vmax.f32 %v2115, %v2116
      %v2118 = vrot.slane %v2117, 4
      %v2119 = vmax.f32 %v2117, %v2118
      %v2120 = vrot.slane %v2119, 2
      %v2121 = vmax.f32 %v2119, %v2120
      %v2122 = vrot.slane %v2121, 1
      %v2123 = vmax.f32 %v2121, %v2122
      %v2124 = vadd.f32 %v2098, %v2100
      %v2125 = vadd.f32 %v2124, %v2102
      %v2126 = vadd.f32 %v2125, %v2104
      %v2127 = vrot.slane %v2126, 4
      %v2128 = vadd.f32 %v2126, %v2127
      %v2129 = vrot.slane %v2128, 2
      %v2130 = vadd.f32 %v2128, %v2129
      %v2131 = vrot.slane %v2130, 1
      %v2132 = vadd.f32 %v2130, %v2131
      %v2133 = vadd.f32 %v2099, %v2101
      %v2134 = vadd.f32 %v2133, %v2103
      %v2135 = vadd.f32 %v2134, %v2105
      %v2136 = vrot.slane %v2135, 4
      %v2137 = vadd.f32 %v2135, %v2136
      %v2138 = vrot.slane %v2137, 2
      %v2139 = vadd.f32 %v2137, %v2138
      %v2140 = vrot.slane %v2139, 1
      %v2141 = vadd.f32 %v2139, %v2140
      %v2142 = vrcp.pop 32.0
      %v2143 = vmul.f32 %v2132, %v2142
      %v2144 = vmul.f32 %v2141, %v2142
      %v2145 = vlaneseq
      %v2146 = vshrl.u32 %v2145, 7
      %vm2147 = vcmp.eq.s32.totalorder %v2146, 0
      %v2148 = vsel %vm2147, %v2114, %v2143
      %v2149 = vsel %vm2147, %v2123, %v2144
      %v2150 = vld [vmem:[%s1 + $0x240] sm:$0x3]
      %v2151 = vld [vmem:[%s1 + $0x250] sm:$0x3]
      %2152 = vrot.lane.b32.xlu0 %v2148, 34
      %v2153 = vpop.permute.xlu0 %2152
      %2154 = vrot.lane.b32.xlu0 %v2149, 34
      %v2155 = vpop.permute.xlu0 %2154
      %vm2156 = vcmp.lt.s32.totalorder %v147, 34
      %v2157 = vsel %vm2156, %v2153, %v2155
      %v2158 = vsel %vm2156, %v2155, %v2153
      %v2159 = vadd.s32 %v149, 4294967294
      %v2160 = vadd.s32 %v150, 4294967294
      %vm2161 = vcmp.ge.s32.totalorder %v2159, 0
      %vm2162 = vcmp.ge.s32.totalorder %v2160, 0
      %vm2163 = vcmp.lt.s32.totalorder %v2159, 16
      %vm2164 = vcmp.lt.s32.totalorder %v2160, 16
      %vm2165 = vmand %vm2161, %vm2163
      %vm2166 = vmand %vm2162, %vm2164
      %v2167 = vadd.s32 %v151, 4294967294
      %v2168 = vadd.s32 %v152, 4294967294
      %vm2169 = vcmp.ge.s32.totalorder %v2167, 0
      %vm2170 = vcmp.ge.s32.totalorder %v2168, 0
      %vm2171 = vmand %vm2165, %vm2169
      %vm2172 = vmand %vm2166, %vm2170
      %vm2173 = vcmp.lt.s32.totalorder %v2167, 16
      %vm2174 = vcmp.lt.s32.totalorder %v2168, 16
      %vm2175 = vmand %vm2171, %vm2173
      %vm2176 = vmand %vm2172, %vm2174
      %v2177 = vsel %vm2175, 1.0, 0.0
      %v2178 = vsel %vm2176, 1.0, 0.0
      %v2179 = vmul.f32 %v2158, %v2177
      %v2180 = vmul.f32 %v2157, %v2178
      %2182 = vset.pattern.permute.xlu0 0
      %2183 = vperm.xlu0 %2182, %v2150
      %v2184 = vpop.permute.xlu0 %2183
      %v2186 = vmul.f32 %v2179, %v2184
      %v2187 = vmul.f32 %v2180, %v2184
      %v2188 = vadd.f32 %v2186, 0.0
      %v2189 = vadd.f32 %v2187, 0.0
      %2190 = vrot.lane.b32.xlu0 %v2148, 33
      %v2191 = vpop.permute.xlu0 %2190
      %2192 = vrot.lane.b32.xlu0 %v2149, 33
      %v2193 = vpop.permute.xlu0 %2192
      %vm2194 = vcmp.lt.s32.totalorder %v147, 33
      %v2195 = vsel %vm2194, %v2191, %v2193
      %v2196 = vsel %vm2194, %v2193, %v2191
      %vm2197 = vmand %vm2165, %vm174
      %vm2198 = vmand %vm2166, %vm175
      %vm2199 = vmand %vm2197, %vm178
      %vm2200 = vmand %vm2198, %vm179
      %v2201 = vsel %vm2199, 1.0, 0.0
      %v2202 = vsel %vm2200, 1.0, 0.0
      %v2203 = vmul.f32 %v2196, %v2201
      %v2204 = vmul.f32 %v2195, %v2202
      %2205 = vset.pattern.permute.xlu0 1
      %2206 = vperm.xlu0 %2205, %v2150
      %v2207 = vpop.permute.xlu0 %2206
      %v2209 = vmul.f32 %v2203, %v2207
      %v2210 = vmul.f32 %v2204, %v2207
      %v2211 = vadd.f32 %v2188, %v2209
      %v2212 = vadd.f32 %v2189, %v2210
      %2213 = vrot.lane.b32.xlu0 %v2148, 32
      %v2214 = vpop.permute.xlu0 %2213
      %2215 = vrot.lane.b32.xlu0 %v2149, 32
      %v2216 = vpop.permute.xlu0 %2215
      %vm2217 = vcmp.lt.s32.totalorder %v147, 32
      %v2218 = vsel %vm2217, %v2214, %v2216
      %v2219 = vsel %vm2217, %v2216, %v2214
      %vm2220 = vmand %vm2165, %vm193
      %vm2221 = vmand %vm2166, %vm194
      %vm2222 = vmand %vm2220, %vm197
      %vm2223 = vmand %vm2221, %vm198
      %v2224 = vsel %vm2222, 1.0, 0.0
      %v2225 = vsel %vm2223, 1.0, 0.0
      %v2226 = vmul.f32 %v2219, %v2224
      %v2227 = vmul.f32 %v2218, %v2225
      %2228 = vset.pattern.permute.xlu0 2
      %2229 = vperm.xlu0 %2228, %v2150
      %v2230 = vpop.permute.xlu0 %2229
      %v2232 = vmul.f32 %v2226, %v2230
      %v2233 = vmul.f32 %v2227, %v2230
      %v2234 = vadd.f32 %v2211, %v2232
      %v2235 = vadd.f32 %v2212, %v2233
      %2236 = vrot.lane.b32.xlu0 %v2148, 31
      %v2237 = vpop.permute.xlu0 %2236
      %2238 = vrot.lane.b32.xlu0 %v2149, 31
      %v2239 = vpop.permute.xlu0 %2238
      %vm2240 = vcmp.lt.s32.totalorder %v147, 31
      %v2241 = vsel %vm2240, %v2237, %v2239
      %v2242 = vsel %vm2240, %v2239, %v2237
      %vm2243 = vmand %vm2165, %vm214
      %vm2244 = vmand %vm2166, %vm215
      %vm2245 = vmand %vm2243, %vm218
      %vm2246 = vmand %vm2244, %vm219
      %v2247 = vsel %vm2245, 1.0, 0.0
      %v2248 = vsel %vm2246, 1.0, 0.0
      %v2249 = vmul.f32 %v2242, %v2247
      %v2250 = vmul.f32 %v2241, %v2248
      %2251 = vset.pattern.permute.xlu0 3
      %2252 = vperm.xlu0 %2251, %v2150
      %v2253 = vpop.permute.xlu0 %2252
      %v2255 = vmul.f32 %v2249, %v2253
      %v2256 = vmul.f32 %v2250, %v2253
      %v2257 = vadd.f32 %v2234, %v2255
      %v2258 = vadd.f32 %v2235, %v2256
      %2259 = vrot.lane.b32.xlu0 %v2148, 30
      %v2260 = vpop.permute.xlu0 %2259
      %2261 = vrot.lane.b32.xlu0 %v2149, 30
      %v2262 = vpop.permute.xlu0 %2261
      %vm2263 = vcmp.lt.s32.totalorder %v147, 30
      %v2264 = vsel %vm2263, %v2260, %v2262
      %v2265 = vsel %vm2263, %v2262, %v2260
      %v2266 = vadd.s32 %v151, 2
      %v2267 = vadd.s32 %v152, 2
      %vm2268 = vcmp.ge.s32.totalorder %v2266, 0
      %vm2269 = vcmp.ge.s32.totalorder %v2267, 0
      %vm2270 = vmand %vm2165, %vm2268
      %vm2271 = vmand %vm2166, %vm2269
      %vm2272 = vcmp.lt.s32.totalorder %v2266, 16
      %vm2273 = vcmp.lt.s32.totalorder %v2267, 16
      %vm2274 = vmand %vm2270, %vm2272
      %vm2275 = vmand %vm2271, %vm2273
      %v2276 = vsel %vm2274, 1.0, 0.0
      %v2277 = vsel %vm2275, 1.0, 0.0
      %v2278 = vmul.f32 %v2265, %v2276
      %v2279 = vmul.f32 %v2264, %v2277
      %2280 = vset.pattern.permute.xlu0 4
      %2281 = vperm.xlu0 %2280, %v2150
      %v2282 = vpop.permute.xlu0 %2281
      %v2284 = vmul.f32 %v2278, %v2282
      %v2285 = vmul.f32 %v2279, %v2282
      %v2286 = vadd.f32 %v2257, %v2284
      %v2287 = vadd.f32 %v2258, %v2285
      %2288 = vrot.lane.b32.xlu0 %v2148, 18
      %v2289 = vpop.permute.xlu0 %2288
      %2290 = vrot.lane.b32.xlu0 %v2149, 18
      %v2291 = vpop.permute.xlu0 %2290
      %vm2292 = vcmp.lt.s32.totalorder %v147, 18
      %v2293 = vsel %vm2292, %v2289, %v2291
      %v2294 = vsel %vm2292, %v2291, %v2289
      %vm2295 = vmand %vm170, %vm2169
      %vm2296 = vmand %vm171, %vm2170
      %vm2297 = vmand %vm2295, %vm2173
      %vm2298 = vmand %vm2296, %vm2174
      %v2299 = vsel %vm2297, 1.0, 0.0
      %v2300 = vsel %vm2298, 1.0, 0.0
      %v2301 = vmul.f32 %v2294, %v2299
      %v2302 = vmul.f32 %v2293, %v2300
      %2303 = vset.pattern.permute.xlu0 5
      %2304 = vperm.xlu0 %2303, %v2150
      %v2305 = vpop.permute.xlu0 %2304
      %v2307 = vmul.f32 %v2301, %v2305
      %v2308 = vmul.f32 %v2302, %v2305
      %v2309 = vadd.f32 %v2286, %v2307
      %v2310 = vadd.f32 %v2287, %v2308
      %2311 = vrot.lane.b32.xlu0 %v2148, 17
      %v2312 = vpop.permute.xlu0 %2311
      %2313 = vrot.lane.b32.xlu0 %v2149, 17
      %v2314 = vpop.permute.xlu0 %2313
      %v2315 = vsel %vm161, %v2312, %v2314
      %v2316 = vsel %vm161, %v2314, %v2312
      %v2317 = vmul.f32 %v2316, %v182
      %v2318 = vmul.f32 %v2315, %v183
      %2319 = vset.pattern.permute.xlu0 6
      %2320 = vperm.xlu0 %2319, %v2150
      %v2321 = vpop.permute.xlu0 %2320
      %v2323 = vmul.f32 %v2317, %v2321
      %v2324 = vmul.f32 %v2318, %v2321
      %v2325 = vadd.f32 %v2309, %v2323
      %v2326 = vadd.f32 %v2310, %v2324
      %2327 = vrot.lane.b32.xlu0 %v2148, 16
      %v2328 = vpop.permute.xlu0 %2327
      %2329 = vrot.lane.b32.xlu0 %v2149, 16
      %v2330 = vpop.permute.xlu0 %2329
      %v2331 = vsel %vm190, %v2328, %v2330
      %v2332 = vsel %vm190, %v2330, %v2328
      %v2333 = vmul.f32 %v2332, %v201
      %v2334 = vmul.f32 %v2331, %v202
      %2335 = vset.pattern.permute.xlu0 7
      %2336 = vperm.xlu0 %2335, %v2150
      %v2337 = vpop.permute.xlu0 %2336
      %v2339 = vmul.f32 %v2333, %v2337
      %v2340 = vmul.f32 %v2334, %v2337
      %v2341 = vadd.f32 %v2325, %v2339
      %v2342 = vadd.f32 %v2326, %v2340
      %2343 = vrot.lane.b32.xlu0 %v2148, 15
      %v2344 = vpop.permute.xlu0 %2343
      %2345 = vrot.lane.b32.xlu0 %v2149, 15
      %v2346 = vpop.permute.xlu0 %2345
      %v2347 = vsel %vm209, %v2344, %v2346
      %v2348 = vsel %vm209, %v2346, %v2344
      %v2349 = vmul.f32 %v2348, %v222
      %v2350 = vmul.f32 %v2347, %v223
      %2351 = vset.pattern.permute.xlu0 8
      %2352 = vperm.xlu0 %2351, %v2150
      %v2353 = vpop.permute.xlu0 %2352
      %v2355 = vmul.f32 %v2349, %v2353
      %v2356 = vmul.f32 %v2350, %v2353
      %v2357 = vadd.f32 %v2341, %v2355
      %v2358 = vadd.f32 %v2342, %v2356
      %2359 = vrot.lane.b32.xlu0 %v2148, 14
      %v2360 = vpop.permute.xlu0 %2359
      %2361 = vrot.lane.b32.xlu0 %v2149, 14
      %v2362 = vpop.permute.xlu0 %2361
      %vm2363 = vcmp.lt.s32.totalorder %v147, 14
      %v2364 = vsel %vm2363, %v2360, %v2362
      %v2365 = vsel %vm2363, %v2362, %v2360
      %vm2366 = vmand %vm170, %vm2268
      %vm2367 = vmand %vm171, %vm2269
      %vm2368 = vmand %vm2366, %vm2272
      %vm2369 = vmand %vm2367, %vm2273
      %v2370 = vsel %vm2368, 1.0, 0.0
      %v2371 = vsel %vm2369, 1.0, 0.0
      %v2372 = vmul.f32 %v2365, %v2370
      %v2373 = vmul.f32 %v2364, %v2371
      %2374 = vset.pattern.permute.xlu0 9
      %2375 = vperm.xlu0 %2374, %v2150
      %v2376 = vpop.permute.xlu0 %2375
      %v2378 = vmul.f32 %v2372, %v2376
      %v2379 = vmul.f32 %v2373, %v2376
      %v2380 = vadd.f32 %v2357, %v2378
      %v2381 = vadd.f32 %v2358, %v2379
      %2382 = vrot.lane.b32.xlu0 %v2148, 2
      %v2383 = vpop.permute.xlu0 %2382
      %2384 = vrot.lane.b32.xlu0 %v2149, 2
      %v2385 = vpop.permute.xlu0 %2384
      %vm2386 = vcmp.lt.s32.totalorder %v147, 2
      %v2387 = vsel %vm2386, %v2383, %v2385
      %v2388 = vsel %vm2386, %v2385, %v2383
      %vm2389 = vmand %vm237, %vm2169
      %vm2390 = vmand %vm238, %vm2170
      %vm2391 = vmand %vm2389, %vm2173
      %vm2392 = vmand %vm2390, %vm2174
      %v2393 = vsel %vm2391, 1.0, 0.0
      %v2394 = vsel %vm2392, 1.0, 0.0
      %v2395 = vmul.f32 %v2388, %v2393
      %v2396 = vmul.f32 %v2387, %v2394
      %2397 = vset.pattern.permute.xlu0 10
      %2398 = vperm.xlu0 %2397, %v2150
      %v2399 = vpop.permute.xlu0 %2398
      %v2401 = vmul.f32 %v2395, %v2399
      %v2402 = vmul.f32 %v2396, %v2399
      %v2403 = vadd.f32 %v2380, %v2401
      %v2404 = vadd.f32 %v2381, %v2402
      %2405 = vrot.lane.b32.xlu0 %v2148, 1
      %v2406 = vpop.permute.xlu0 %2405
      %2407 = vrot.lane.b32.xlu0 %v2149, 1
      %v2408 = vpop.permute.xlu0 %2407
      %v2409 = vsel %vm230, %v2406, %v2408
      %v2410 = vsel %vm230, %v2408, %v2406
      %v2411 = vmul.f32 %v2410, %v243
      %v2412 = vmul.f32 %v2409, %v244
      %2413 = vset.pattern.permute.xlu0 11
      %2414 = vperm.xlu0 %2413, %v2150
      %v2415 = vpop.permute.xlu0 %2414
      %v2417 = vmul.f32 %v2411, %v2415
      %v2418 = vmul.f32 %v2412, %v2415
      %v2419 = vadd.f32 %v2403, %v2417
      %v2420 = vadd.f32 %v2404, %v2418
      %2421 = vset.pattern.permute.xlu0 12
      %2422 = vperm.xlu0 %2421, %v2150
      %v2423 = vpop.permute.xlu0 %2422
      %v2425 = vmul.f32 %v2148, %v2423
      %v2426 = vmul.f32 %v2149, %v2423
      %v2427 = vadd.f32 %v2419, %v2425
      %v2428 = vadd.f32 %v2420, %v2426
      %2429 = vrot.lane.b32.xlu0 %v2148, 127
      %v2430 = vpop.permute.xlu0 %2429
      %2431 = vrot.lane.b32.xlu0 %v2149, 127
      %v2432 = vpop.permute.xlu0 %2431
      %v2433 = vsel %vm251, %v2430, %v2432
      %v2434 = vsel %vm251, %v2432, %v2430
      %v2435 = vmul.f32 %v2433, %v258
      %v2436 = vmul.f32 %v2434, %v259
      %2437 = vset.pattern.permute.xlu0 13
      %2438 = vperm.xlu0 %2437, %v2150
      %v2439 = vpop.permute.xlu0 %2438
      %v2441 = vmul.f32 %v2435, %v2439
      %v2442 = vmul.f32 %v2436, %v2439
      %v2443 = vadd.f32 %v2427, %v2441
      %v2444 = vadd.f32 %v2428, %v2442
      %2445 = vrot.lane.b32.xlu0 %v2148, 126
      %v2446 = vpop.permute.xlu0 %2445
      %2447 = vrot.lane.b32.xlu0 %v2149, 126
      %v2448 = vpop.permute.xlu0 %2447
      %vm2449 = vcmp.lt.s32.totalorder %v147, 126
      %v2450 = vsel %vm2449, %v2446, %v2448
      %v2451 = vsel %vm2449, %v2448, %v2446
      %vm2452 = vmand %vm237, %vm2268
      %vm2453 = vmand %vm238, %vm2269
      %vm2454 = vmand %vm2452, %vm2272
      %vm2455 = vmand %vm2453, %vm2273
      %v2456 = vsel %vm2454, 1.0, 0.0
      %v2457 = vsel %vm2455, 1.0, 0.0
      %v2458 = vmul.f32 %v2450, %v2456
      %v2459 = vmul.f32 %v2451, %v2457
      %2460 = vset.pattern.permute.xlu0 14
      %2461 = vperm.xlu0 %2460, %v2150
      %v2462 = vpop.permute.xlu0 %2461
      %v2464 = vmul.f32 %v2458, %v2462
      %v2465 = vmul.f32 %v2459, %v2462
      %v2466 = vadd.f32 %v2443, %v2464
      %v2467 = vadd.f32 %v2444, %v2465
      %2468 = vrot.lane.b32.xlu0 %v2148, 114
      %v2469 = vpop.permute.xlu0 %2468
      %2470 = vrot.lane.b32.xlu0 %v2149, 114
      %v2471 = vpop.permute.xlu0 %2470
      %vm2472 = vcmp.lt.s32.totalorder %v147, 114
      %v2473 = vsel %vm2472, %v2469, %v2471
      %v2474 = vsel %vm2472, %v2471, %v2469
      %vm2475 = vmand %vm275, %vm2169
      %vm2476 = vmand %vm276, %vm2170
      %vm2477 = vmand %vm2475, %vm2173
      %vm2478 = vmand %vm2476, %vm2174
      %v2479 = vsel %vm2477, 1.0, 0.0
      %v2480 = vsel %vm2478, 1.0, 0.0
      %v2481 = vmul.f32 %v2473, %v2479
      %v2482 = vmul.f32 %v2474, %v2480
      %2483 = vset.pattern.permute.xlu0 15
      %2484 = vperm.xlu0 %2483, %v2150
      %v2485 = vpop.permute.xlu0 %2484
      %v2487 = vmul.f32 %v2481, %v2485
      %v2488 = vmul.f32 %v2482, %v2485
      %v2489 = vadd.f32 %v2466, %v2487
      %v2490 = vadd.f32 %v2467, %v2488
      %2491 = vrot.lane.b32.xlu0 %v2148, 113
      %v2492 = vpop.permute.xlu0 %2491
      %2493 = vrot.lane.b32.xlu0 %v2149, 113
      %v2494 = vpop.permute.xlu0 %2493
      %v2495 = vsel %vm266, %v2492, %v2494
      %v2496 = vsel %vm266, %v2494, %v2492
      %v2497 = vmul.f32 %v2495, %v281
      %v2498 = vmul.f32 %v2496, %v282
      %2499 = vset.pattern.permute.xlu0 16
      %2500 = vperm.xlu0 %2499, %v2150
      %v2501 = vpop.permute.xlu0 %2500
      %v2503 = vmul.f32 %v2497, %v2501
      %v2504 = vmul.f32 %v2498, %v2501
      %v2505 = vadd.f32 %v2489, %v2503
      %v2506 = vadd.f32 %v2490, %v2504
      %2507 = vrot.lane.b32.xlu0 %v2148, 112
      %v2508 = vpop.permute.xlu0 %2507
      %2509 = vrot.lane.b32.xlu0 %v2149, 112
      %v2510 = vpop.permute.xlu0 %2509
      %v2511 = vsel %vm289, %v2508, %v2510
      %v2512 = vsel %vm289, %v2510, %v2508
      %v2513 = vmul.f32 %v2511, %v296
      %v2514 = vmul.f32 %v2512, %v297
      %2515 = vset.pattern.permute.xlu0 17
      %2516 = vperm.xlu0 %2515, %v2150
      %v2517 = vpop.permute.xlu0 %2516
      %v2519 = vmul.f32 %v2513, %v2517
      %v2520 = vmul.f32 %v2514, %v2517
      %v2521 = vadd.f32 %v2505, %v2519
      %v2522 = vadd.f32 %v2506, %v2520
      %2523 = vrot.lane.b32.xlu0 %v2148, 111
      %v2524 = vpop.permute.xlu0 %2523
      %2525 = vrot.lane.b32.xlu0 %v2149, 111
      %v2526 = vpop.permute.xlu0 %2525
      %v2527 = vsel %vm304, %v2524, %v2526
      %v2528 = vsel %vm304, %v2526, %v2524
      %v2529 = vmul.f32 %v2527, %v311
      %v2530 = vmul.f32 %v2528, %v312
      %2531 = vset.pattern.permute.xlu0 18
      %2532 = vperm.xlu0 %2531, %v2150
      %v2533 = vpop.permute.xlu0 %2532
      %v2535 = vmul.f32 %v2529, %v2533
      %v2536 = vmul.f32 %v2530, %v2533
      %v2537 = vadd.f32 %v2521, %v2535
      %v2538 = vadd.f32 %v2522, %v2536
      %2539 = vrot.lane.b32.xlu0 %v2148, 110
      %v2540 = vpop.permute.xlu0 %2539
      %2541 = vrot.lane.b32.xlu0 %v2149, 110
      %v2542 = vpop.permute.xlu0 %2541
      %vm2543 = vcmp.lt.s32.totalorder %v147, 110
      %v2544 = vsel %vm2543, %v2540, %v2542
      %v2545 = vsel %vm2543, %v2542, %v2540
      %vm2546 = vmand %vm275, %vm2268
      %vm2547 = vmand %vm276, %vm2269
      %vm2548 = vmand %vm2546, %vm2272
      %vm2549 = vmand %vm2547, %vm2273
      %v2550 = vsel %vm2548, 1.0, 0.0
      %v2551 = vsel %vm2549, 1.0, 0.0
      %v2552 = vmul.f32 %v2544, %v2550
      %v2553 = vmul.f32 %v2545, %v2551
      %2554 = vset.pattern.permute.xlu0 19
      %2555 = vperm.xlu0 %2554, %v2150
      %v2556 = vpop.permute.xlu0 %2555
      %v2558 = vmul.f32 %v2552, %v2556
      %v2559 = vmul.f32 %v2553, %v2556
      %v2560 = vadd.f32 %v2537, %v2558
      %v2561 = vadd.f32 %v2538, %v2559
      %2562 = vrot.lane.b32.xlu0 %v2148, 98
      %v2563 = vpop.permute.xlu0 %2562
      %2564 = vrot.lane.b32.xlu0 %v2149, 98
      %v2565 = vpop.permute.xlu0 %2564
      %vm2566 = vcmp.lt.s32.totalorder %v147, 98
      %v2567 = vsel %vm2566, %v2563, %v2565
      %v2568 = vsel %vm2566, %v2565, %v2563
      %v2569 = vadd.s32 %v149, 2
      %v2570 = vadd.s32 %v150, 2
      %vm2571 = vcmp.ge.s32.totalorder %v2569, 0
      %vm2572 = vcmp.ge.s32.totalorder %v2570, 0
      %vm2573 = vcmp.lt.s32.totalorder %v2569, 16
      %vm2574 = vcmp.lt.s32.totalorder %v2570, 16
      %vm2575 = vmand %vm2571, %vm2573
      %vm2576 = vmand %vm2572, %vm2574
      %vm2577 = vmand %vm2575, %vm2169
      %vm2578 = vmand %vm2576, %vm2170
      %vm2579 = vmand %vm2577, %vm2173
      %vm2580 = vmand %vm2578, %vm2174
      %v2581 = vsel %vm2579, 1.0, 0.0
      %v2582 = vsel %vm2580, 1.0, 0.0
      %v2583 = vmul.f32 %v2567, %v2581
      %v2584 = vmul.f32 %v2568, %v2582
      %2585 = vset.pattern.permute.xlu0 20
      %2586 = vperm.xlu0 %2585, %v2150
      %v2587 = vpop.permute.xlu0 %2586
      %v2589 = vmul.f32 %v2583, %v2587
      %v2590 = vmul.f32 %v2584, %v2587
      %v2591 = vadd.f32 %v2560, %v2589
      %v2592 = vadd.f32 %v2561, %v2590
      %2593 = vrot.lane.b32.xlu0 %v2148, 97
      %v2594 = vpop.permute.xlu0 %2593
      %2595 = vrot.lane.b32.xlu0 %v2149, 97
      %v2596 = vpop.permute.xlu0 %2595
      %vm2597 = vcmp.lt.s32.totalorder %v147, 97
      %v2598 = vsel %vm2597, %v2594, %v2596
      %v2599 = vsel %vm2597, %v2596, %v2594
      %vm2600 = vmand %vm2575, %vm174
      %vm2601 = vmand %vm2576, %vm175
      %vm2602 = vmand %vm2600, %vm178
      %vm2603 = vmand %vm2601, %vm179
      %v2604 = vsel %vm2602, 1.0, 0.0
      %v2605 = vsel %vm2603, 1.0, 0.0
      %v2606 = vmul.f32 %v2598, %v2604
      %v2607 = vmul.f32 %v2599, %v2605
      %2608 = vset.pattern.permute.xlu0 21
      %2609 = vperm.xlu0 %2608, %v2150
      %v2610 = vpop.permute.xlu0 %2609
      %v2612 = vmul.f32 %v2606, %v2610
      %v2613 = vmul.f32 %v2607, %v2610
      %v2614 = vadd.f32 %v2591, %v2612
      %v2615 = vadd.f32 %v2592, %v2613
      %2616 = vrot.lane.b32.xlu0 %v2148, 96
      %v2617 = vpop.permute.xlu0 %2616
      %2618 = vrot.lane.b32.xlu0 %v2149, 96
      %v2619 = vpop.permute.xlu0 %2618
      %vm2620 = vcmp.lt.s32.totalorder %v147, 96
      %v2621 = vsel %vm2620, %v2617, %v2619
      %v2622 = vsel %vm2620, %v2619, %v2617
      %vm2623 = vmand %vm2575, %vm193
      %vm2624 = vmand %vm2576, %vm194
      %vm2625 = vmand %vm2623, %vm197
      %vm2626 = vmand %vm2624, %vm198
      %v2627 = vsel %vm2625, 1.0, 0.0
      %v2628 = vsel %vm2626, 1.0, 0.0
      %v2629 = vmul.f32 %v2621, %v2627
      %v2630 = vmul.f32 %v2622, %v2628
      %2631 = vset.pattern.permute.xlu0 22
      %2632 = vperm.xlu0 %2631, %v2150
      %v2633 = vpop.permute.xlu0 %2632
      %v2635 = vmul.f32 %v2629, %v2633
      %v2636 = vmul.f32 %v2630, %v2633
      %v2637 = vadd.f32 %v2614, %v2635
      %v2638 = vadd.f32 %v2615, %v2636
      %2639 = vrot.lane.b32.xlu0 %v2148, 95
      %v2640 = vpop.permute.xlu0 %2639
      %2641 = vrot.lane.b32.xlu0 %v2149, 95
      %v2642 = vpop.permute.xlu0 %2641
      %vm2643 = vcmp.lt.s32.totalorder %v147, 95
      %v2644 = vsel %vm2643, %v2640, %v2642
      %v2645 = vsel %vm2643, %v2642, %v2640
      %vm2646 = vmand %vm2575, %vm214
      %vm2647 = vmand %vm2576, %vm215
      %vm2648 = vmand %vm2646, %vm218
      %vm2649 = vmand %vm2647, %vm219
      %v2650 = vsel %vm2648, 1.0, 0.0
      %v2651 = vsel %vm2649, 1.0, 0.0
      %v2652 = vmul.f32 %v2644, %v2650
      %v2653 = vmul.f32 %v2645, %v2651
      %2654 = vset.pattern.permute.xlu0 23
      %2655 = vperm.xlu0 %2654, %v2150
      %v2656 = vpop.permute.xlu0 %2655
      %v2658 = vmul.f32 %v2652, %v2656
      %v2659 = vmul.f32 %v2653, %v2656
      %v2660 = vadd.f32 %v2637, %v2658
      %v2661 = vadd.f32 %v2638, %v2659
      %2662 = vrot.lane.b32.xlu0 %v2148, 94
      %v2663 = vpop.permute.xlu0 %2662
      %2664 = vrot.lane.b32.xlu0 %v2149, 94
      %v2665 = vpop.permute.xlu0 %2664
      %vm2666 = vcmp.lt.s32.totalorder %v147, 94
      %v2667 = vsel %vm2666, %v2663, %v2665
      %v2668 = vsel %vm2666, %v2665, %v2663
      %vm2669 = vmand %vm2575, %vm2268
      %vm2670 = vmand %vm2576, %vm2269
      %vm2671 = vmand %vm2669, %vm2272
      %vm2672 = vmand %vm2670, %vm2273
      %v2673 = vsel %vm2671, 1.0, 0.0
      %v2674 = vsel %vm2672, 1.0, 0.0
      %v2675 = vmul.f32 %v2667, %v2673
      %v2676 = vmul.f32 %v2668, %v2674
      %2677 = vset.pattern.permute.xlu0 24
      %2678 = vperm.xlu0 %2677, %v2150
      %v2679 = vpop.permute.xlu0 %2678
      %v2681 = vmul.f32 %v2675, %v2679
      %v2682 = vmul.f32 %v2676, %v2679
      %v2683 = vadd.f32 %v2660, %v2681
      %v2684 = vadd.f32 %v2661, %v2682
      %2686 = vset.pattern.permute.xlu0 0
      %2687 = vperm.xlu0 %2686, %v2151
      %v2688 = vpop.permute.xlu0 %2687
      %v2690 = vadd.f32 %v2683, %v2688
      %v2691 = vadd.f32 %v2684, %v2688
      %v2692 = vld [vmem:[%s1 + $0x260] sm:$0x3]
      %v2693 = vld [vmem:[%s1 + $0x270] sm:$0x3]
      %2694 = vrot.lane.b32.xlu0 %v2690, 102
      %v2695 = vpop.permute.xlu0 %2694
      %2696 = vrot.lane.b32.xlu0 %v2691, 102
      %v2697 = vpop.permute.xlu0 %2696
      %vm2698 = vcmp.lt.s32.totalorder %v147, 102
      %v2699 = vsel %vm2698, %v2695, %v2697
      %v2700 = vsel %vm2698, %v2697, %v2695
      %v2701 = vadd.s32 %v149, 4294967290
      %v2702 = vadd.s32 %v150, 4294967290
      %vm2703 = vcmp.ge.s32.totalorder %v2701, 0
      %vm2704 = vcmp.ge.s32.totalorder %v2702, 0
      %vm2705 = vcmp.lt.s32.totalorder %v2701, 16
      %vm2706 = vcmp.lt.s32.totalorder %v2702, 16
      %vm2707 = vmand %vm2703, %vm2705
      %vm2708 = vmand %vm2704, %vm2706
      %v2709 = vadd.s32 %v151, 4294967290
      %v2710 = vadd.s32 %v152, 4294967290
      %vm2711 = vcmp.ge.s32.totalorder %v2709, 0
      %vm2712 = vcmp.ge.s32.totalorder %v2710, 0
      %vm2713 = vmand %vm2707, %vm2711
      %vm2714 = vmand %vm2708, %vm2712
      %vm2715 = vcmp.lt.s32.totalorder %v2709, 16
      %vm2716 = vcmp.lt.s32.totalorder %v2710, 16
      %vm2717 = vmand %vm2713, %vm2715
      %vm2718 = vmand %vm2714, %vm2716
      %v2719 = vsel %vm2717, 1.0, 0.0
      %v2720 = vsel %vm2718, 1.0, 0.0
      %v2721 = vmul.f32 %v2700, %v2719
      %v2722 = vmul.f32 %v2699, %v2720
      %2724 = vset.pattern.permute.xlu0 0
      %2725 = vperm.xlu0 %2724, %v2692
      %v2726 = vpop.permute.xlu0 %2725
      %v2728 = vmul.f32 %v2721, %v2726
      %v2729 = vmul.f32 %v2722, %v2726
      %v2730 = vadd.f32 %v2728, 0.0
      %v2731 = vadd.f32 %v2729, 0.0
      %2732 = vrot.lane.b32.xlu0 %v2690, 99
      %v2733 = vpop.permute.xlu0 %2732
      %2734 = vrot.lane.b32.xlu0 %v2691, 99
      %v2735 = vpop.permute.xlu0 %2734
      %vm2736 = vcmp.lt.s32.totalorder %v147, 99
      %v2737 = vsel %vm2736, %v2733, %v2735
      %v2738 = vsel %vm2736, %v2735, %v2733
      %v2739 = vadd.s32 %v151, 4294967293
      %v2740 = vadd.s32 %v152, 4294967293
      %vm2741 = vcmp.ge.s32.totalorder %v2739, 0
      %vm2742 = vcmp.ge.s32.totalorder %v2740, 0
      %vm2743 = vmand %vm2707, %vm2741
      %vm2744 = vmand %vm2708, %vm2742
      %vm2745 = vcmp.lt.s32.totalorder %v2739, 16
      %vm2746 = vcmp.lt.s32.totalorder %v2740, 16
      %vm2747 = vmand %vm2743, %vm2745
      %vm2748 = vmand %vm2744, %vm2746
      %v2749 = vsel %vm2747, 1.0, 0.0
      %v2750 = vsel %vm2748, 1.0, 0.0
      %v2751 = vmul.f32 %v2738, %v2749
      %v2752 = vmul.f32 %v2737, %v2750
      %2753 = vset.pattern.permute.xlu0 1
      %2754 = vperm.xlu0 %2753, %v2692
      %v2755 = vpop.permute.xlu0 %2754
      %v2757 = vmul.f32 %v2751, %v2755
      %v2758 = vmul.f32 %v2752, %v2755
      %v2759 = vadd.f32 %v2730, %v2757
      %v2760 = vadd.f32 %v2731, %v2758
      %2761 = vrot.lane.b32.xlu0 %v2690, 96
      %v2762 = vpop.permute.xlu0 %2761
      %2763 = vrot.lane.b32.xlu0 %v2691, 96
      %v2764 = vpop.permute.xlu0 %2763
      %v2765 = vsel %vm2620, %v2762, %v2764
      %v2766 = vsel %vm2620, %v2764, %v2762
      %vm2767 = vmand %vm2707, %vm193
      %vm2768 = vmand %vm2708, %vm194
      %vm2769 = vmand %vm2767, %vm197
      %vm2770 = vmand %vm2768, %vm198
      %v2771 = vsel %vm2769, 1.0, 0.0
      %v2772 = vsel %vm2770, 1.0, 0.0
      %v2773 = vmul.f32 %v2766, %v2771
      %v2774 = vmul.f32 %v2765, %v2772
      %2775 = vset.pattern.permute.xlu0 2
      %2776 = vperm.xlu0 %2775, %v2692
      %v2777 = vpop.permute.xlu0 %2776
      %v2779 = vmul.f32 %v2773, %v2777
      %v2780 = vmul.f32 %v2774, %v2777
      %v2781 = vadd.f32 %v2759, %v2779
      %v2782 = vadd.f32 %v2760, %v2780
      %2783 = vrot.lane.b32.xlu0 %v2690, 93
      %v2784 = vpop.permute.xlu0 %2783
      %2785 = vrot.lane.b32.xlu0 %v2691, 93
      %v2786 = vpop.permute.xlu0 %2785
      %vm2787 = vcmp.lt.s32.totalorder %v147, 93
      %v2788 = vsel %vm2787, %v2784, %v2786
      %v2789 = vsel %vm2787, %v2786, %v2784
      %v2790 = vadd.s32 %v151, 3
      %v2791 = vadd.s32 %v152, 3
      %vm2792 = vcmp.ge.s32.totalorder %v2790, 0
      %vm2793 = vcmp.ge.s32.totalorder %v2791, 0
      %vm2794 = vmand %vm2707, %vm2792
      %vm2795 = vmand %vm2708, %vm2793
      %vm2796 = vcmp.lt.s32.totalorder %v2790, 16
      %vm2797 = vcmp.lt.s32.totalorder %v2791, 16
      %vm2798 = vmand %vm2794, %vm2796
      %vm2799 = vmand %vm2795, %vm2797
      %v2800 = vsel %vm2798, 1.0, 0.0
      %v2801 = vsel %vm2799, 1.0, 0.0
      %v2802 = vmul.f32 %v2789, %v2800
      %v2803 = vmul.f32 %v2788, %v2801
      %2804 = vset.pattern.permute.xlu0 3
      %2805 = vperm.xlu0 %2804, %v2692
      %v2806 = vpop.permute.xlu0 %2805
      %v2808 = vmul.f32 %v2802, %v2806
      %v2809 = vmul.f32 %v2803, %v2806
      %v2810 = vadd.f32 %v2781, %v2808
      %v2811 = vadd.f32 %v2782, %v2809
      %2812 = vrot.lane.b32.xlu0 %v2690, 90
      %v2813 = vpop.permute.xlu0 %2812
      %2814 = vrot.lane.b32.xlu0 %v2691, 90
      %v2815 = vpop.permute.xlu0 %2814
      %vm2816 = vcmp.lt.s32.totalorder %v147, 90
      %v2817 = vsel %vm2816, %v2813, %v2815
      %v2818 = vsel %vm2816, %v2815, %v2813
      %v2819 = vadd.s32 %v151, 6
      %v2820 = vadd.s32 %v152, 6
      %vm2821 = vcmp.ge.s32.totalorder %v2819, 0
      %vm2822 = vcmp.ge.s32.totalorder %v2820, 0
      %vm2823 = vmand %vm2707, %vm2821
      %vm2824 = vmand %vm2708, %vm2822
      %vm2825 = vcmp.lt.s32.totalorder %v2819, 16
      %vm2826 = vcmp.lt.s32.totalorder %v2820, 16
      %vm2827 = vmand %vm2823, %vm2825
      %vm2828 = vmand %vm2824, %vm2826
      %v2829 = vsel %vm2827, 1.0, 0.0
      %v2830 = vsel %vm2828, 1.0, 0.0
      %v2831 = vmul.f32 %v2818, %v2829
      %v2832 = vmul.f32 %v2817, %v2830
      %2833 = vset.pattern.permute.xlu0 4
      %2834 = vperm.xlu0 %2833, %v2692
      %v2835 = vpop.permute.xlu0 %2834
      %v2837 = vmul.f32 %v2831, %v2835
      %v2838 = vmul.f32 %v2832, %v2835
      %v2839 = vadd.f32 %v2810, %v2837
      %v2840 = vadd.f32 %v2811, %v2838
      %2841 = vrot.lane.b32.xlu0 %v2690, 54
      %v2842 = vpop.permute.xlu0 %2841
      %2843 = vrot.lane.b32.xlu0 %v2691, 54
      %v2844 = vpop.permute.xlu0 %2843
      %vm2845 = vcmp.lt.s32.totalorder %v147, 54
      %v2846 = vsel %vm2845, %v2842, %v2844
      %v2847 = vsel %vm2845, %v2844, %v2842
      %v2848 = vadd.s32 %v149, 4294967293
      %v2849 = vadd.s32 %v150, 4294967293
      %vm2850 = vcmp.ge.s32.totalorder %v2848, 0
      %vm2851 = vcmp.ge.s32.totalorder %v2849, 0
      %vm2852 = vcmp.lt.s32.totalorder %v2848, 16
      %vm2853 = vcmp.lt.s32.totalorder %v2849, 16
      %vm2854 = vmand %vm2850, %vm2852
      %vm2855 = vmand %vm2851, %vm2853
      %vm2856 = vmand %vm2854, %vm2711
      %vm2857 = vmand %vm2855, %vm2712
      %vm2858 = vmand %vm2856, %vm2715
      %vm2859 = vmand %vm2857, %vm2716
      %v2860 = vsel %vm2858, 1.0, 0.0
      %v2861 = vsel %vm2859, 1.0, 0.0
      %v2862 = vmul.f32 %v2847, %v2860
      %v2863 = vmul.f32 %v2846, %v2861
      %2864 = vset.pattern.permute.xlu0 5
      %2865 = vperm.xlu0 %2864, %v2692
      %v2866 = vpop.permute.xlu0 %2865
      %v2868 = vmul.f32 %v2862, %v2866
      %v2869 = vmul.f32 %v2863, %v2866
      %v2870 = vadd.f32 %v2839, %v2868
      %v2871 = vadd.f32 %v2840, %v2869
      %2872 = vrot.lane.b32.xlu0 %v2690, 51
      %v2873 = vpop.permute.xlu0 %2872
      %2874 = vrot.lane.b32.xlu0 %v2691, 51
      %v2875 = vpop.permute.xlu0 %2874
      %vm2876 = vcmp.lt.s32.totalorder %v147, 51
      %v2877 = vsel %vm2876, %v2873, %v2875
      %v2878 = vsel %vm2876, %v2875, %v2873
      %vm2879 = vmand %vm2854, %vm2741
      %vm2880 = vmand %vm2855, %vm2742
      %vm2881 = vmand %vm2879, %vm2745
      %vm2882 = vmand %vm2880, %vm2746
      %v2883 = vsel %vm2881, 1.0, 0.0
      %v2884 = vsel %vm2882, 1.0, 0.0
      %v2885 = vmul.f32 %v2878, %v2883
      %v2886 = vmul.f32 %v2877, %v2884
      %2887 = vset.pattern.permute.xlu0 6
      %2888 = vperm.xlu0 %2887, %v2692
      %v2889 = vpop.permute.xlu0 %2888
      %v2891 = vmul.f32 %v2885, %v2889
      %v2892 = vmul.f32 %v2886, %v2889
      %v2893 = vadd.f32 %v2870, %v2891
      %v2894 = vadd.f32 %v2871, %v2892
      %2895 = vrot.lane.b32.xlu0 %v2690, 48
      %v2896 = vpop.permute.xlu0 %2895
      %2897 = vrot.lane.b32.xlu0 %v2691, 48
      %v2898 = vpop.permute.xlu0 %2897
      %vm2899 = vcmp.lt.s32.totalorder %v147, 48
      %v2900 = vsel %vm2899, %v2896, %v2898
      %v2901 = vsel %vm2899, %v2898, %v2896
      %vm2902 = vmand %vm2854, %vm193
      %vm2903 = vmand %vm2855, %vm194
      %vm2904 = vmand %vm2902, %vm197
      %vm2905 = vmand %vm2903, %vm198
      %v2906 = vsel %vm2904, 1.0, 0.0
      %v2907 = vsel %vm2905, 1.0, 0.0
      %v2908 = vmul.f32 %v2901, %v2906
      %v2909 = vmul.f32 %v2900, %v2907
      %2910 = vset.pattern.permute.xlu0 7
      %2911 = vperm.xlu0 %2910, %v2692
      %v2912 = vpop.permute.xlu0 %2911
      %v2914 = vmul.f32 %v2908, %v2912
      %v2915 = vmul.f32 %v2909, %v2912
      %v2916 = vadd.f32 %v2893, %v2914
      %v2917 = vadd.f32 %v2894, %v2915
      %2918 = vrot.lane.b32.xlu0 %v2690, 45
      %v2919 = vpop.permute.xlu0 %2918
      %2920 = vrot.lane.b32.xlu0 %v2691, 45
      %v2921 = vpop.permute.xlu0 %2920
      %vm2922 = vcmp.lt.s32.totalorder %v147, 45
      %v2923 = vsel %vm2922, %v2919, %v2921
      %v2924 = vsel %vm2922, %v2921, %v2919
      %vm2925 = vmand %vm2854, %vm2792
      %vm2926 = vmand %vm2855, %vm2793
      %vm2927 = vmand %vm2925, %vm2796
      %vm2928 = vmand %vm2926, %vm2797
      %v2929 = vsel %vm2927, 1.0, 0.0
      %v2930 = vsel %vm2928, 1.0, 0.0
      %v2931 = vmul.f32 %v2924, %v2929
      %v2932 = vmul.f32 %v2923, %v2930
      %2933 = vset.pattern.permute.xlu0 8
      %2934 = vperm.xlu0 %2933, %v2692
      %v2935 = vpop.permute.xlu0 %2934
      %v2937 = vmul.f32 %v2931, %v2935
      %v2938 = vmul.f32 %v2932, %v2935
      %v2939 = vadd.f32 %v2916, %v2937
      %v2940 = vadd.f32 %v2917, %v2938
      %2941 = vrot.lane.b32.xlu0 %v2690, 42
      %v2942 = vpop.permute.xlu0 %2941
      %2943 = vrot.lane.b32.xlu0 %v2691, 42
      %v2944 = vpop.permute.xlu0 %2943
      %vm2945 = vcmp.lt.s32.totalorder %v147, 42
      %v2946 = vsel %vm2945, %v2942, %v2944
      %v2947 = vsel %vm2945, %v2944, %v2942
      %vm2948 = vmand %vm2854, %vm2821
      %vm2949 = vmand %vm2855, %vm2822
      %vm2950 = vmand %vm2948, %vm2825
      %vm2951 = vmand %vm2949, %vm2826
      %v2952 = vsel %vm2950, 1.0, 0.0
      %v2953 = vsel %vm2951, 1.0, 0.0
      %v2954 = vmul.f32 %v2947, %v2952
      %v2955 = vmul.f32 %v2946, %v2953
      %2956 = vset.pattern.permute.xlu0 9
      %2957 = vperm.xlu0 %2956, %v2692
      %v2958 = vpop.permute.xlu0 %2957
      %v2960 = vmul.f32 %v2954, %v2958
      %v2961 = vmul.f32 %v2955, %v2958
      %v2962 = vadd.f32 %v2939, %v2960
      %v2963 = vadd.f32 %v2940, %v2961
      %2964 = vrot.lane.b32.xlu0 %v2690, 6
      %v2965 = vpop.permute.xlu0 %2964
      %2966 = vrot.lane.b32.xlu0 %v2691, 6
      %v2967 = vpop.permute.xlu0 %2966
      %vm2968 = vcmp.lt.s32.totalorder %v147, 6
      %v2969 = vsel %vm2968, %v2965, %v2967
      %v2970 = vsel %vm2968, %v2967, %v2965
      %vm2971 = vmand %vm237, %vm2711
      %vm2972 = vmand %vm238, %vm2712
      %vm2973 = vmand %vm2971, %vm2715
      %vm2974 = vmand %vm2972, %vm2716
      %v2975 = vsel %vm2973, 1.0, 0.0
      %v2976 = vsel %vm2974, 1.0, 0.0
      %v2977 = vmul.f32 %v2970, %v2975
      %v2978 = vmul.f32 %v2969, %v2976
      %2979 = vset.pattern.permute.xlu0 10
      %2980 = vperm.xlu0 %2979, %v2692
      %v2981 = vpop.permute.xlu0 %2980
      %v2983 = vmul.f32 %v2977, %v2981
      %v2984 = vmul.f32 %v2978, %v2981
      %v2985 = vadd.f32 %v2962, %v2983
      %v2986 = vadd.f32 %v2963, %v2984
      %2987 = vrot.lane.b32.xlu0 %v2690, 3
      %v2988 = vpop.permute.xlu0 %2987
      %2989 = vrot.lane.b32.xlu0 %v2691, 3
      %v2990 = vpop.permute.xlu0 %2989
      %vm2991 = vcmp.lt.s32.totalorder %v147, 3
      %v2992 = vsel %vm2991, %v2988, %v2990
      %v2993 = vsel %vm2991, %v2990, %v2988
      %vm2994 = vmand %vm237, %vm2741
      %vm2995 = vmand %vm238, %vm2742
      %vm2996 = vmand %vm2994, %vm2745
      %vm2997 = vmand %vm2995, %vm2746
      %v2998 = vsel %vm2996, 1.0, 0.0
      %v2999 = vsel %vm2997, 1.0, 0.0
      %v3000 = vmul.f32 %v2993, %v2998
      %v3001 = vmul.f32 %v2992, %v2999
      %3002 = vset.pattern.permute.xlu0 11
      %3003 = vperm.xlu0 %3002, %v2692
      %v3004 = vpop.permute.xlu0 %3003
      %v3006 = vmul.f32 %v3000, %v3004
      %v3007 = vmul.f32 %v3001, %v3004
      %v3008 = vadd.f32 %v2985, %v3006
      %v3009 = vadd.f32 %v2986, %v3007
      %3010 = vset.pattern.permute.xlu0 12
      %3011 = vperm.xlu0 %3010, %v2692
      %v3012 = vpop.permute.xlu0 %3011
      %v3014 = vmul.f32 %v2690, %v3012
      %v3015 = vmul.f32 %v2691, %v3012
      %v3016 = vadd.f32 %v3008, %v3014
      %v3017 = vadd.f32 %v3009, %v3015
      %3018 = vrot.lane.b32.xlu0 %v2690, 125
      %v3019 = vpop.permute.xlu0 %3018
      %3020 = vrot.lane.b32.xlu0 %v2691, 125
      %v3021 = vpop.permute.xlu0 %3020
      %vm3022 = vcmp.lt.s32.totalorder %v147, 125
      %v3023 = vsel %vm3022, %v3019, %v3021
      %v3024 = vsel %vm3022, %v3021, %v3019
      %vm3025 = vmand %vm237, %vm2792
      %vm3026 = vmand %vm238, %vm2793
      %vm3027 = vmand %vm3025, %vm2796
      %vm3028 = vmand %vm3026, %vm2797
      %v3029 = vsel %vm3027, 1.0, 0.0
      %v3030 = vsel %vm3028, 1.0, 0.0
      %v3031 = vmul.f32 %v3023, %v3029
      %v3032 = vmul.f32 %v3024, %v3030
      %3033 = vset.pattern.permute.xlu0 13
      %3034 = vperm.xlu0 %3033, %v2692
      %v3035 = vpop.permute.xlu0 %3034
      %v3037 = vmul.f32 %v3031, %v3035
      %v3038 = vmul.f32 %v3032, %v3035
      %v3039 = vadd.f32 %v3016, %v3037
      %v3040 = vadd.f32 %v3017, %v3038
      %3041 = vrot.lane.b32.xlu0 %v2690, 122
      %v3042 = vpop.permute.xlu0 %3041
      %3043 = vrot.lane.b32.xlu0 %v2691, 122
      %v3044 = vpop.permute.xlu0 %3043
      %vm3045 = vcmp.lt.s32.totalorder %v147, 122
      %v3046 = vsel %vm3045, %v3042, %v3044
      %v3047 = vsel %vm3045, %v3044, %v3042
      %vm3048 = vmand %vm237, %vm2821
      %vm3049 = vmand %vm238, %vm2822
      %vm3050 = vmand %vm3048, %vm2825
      %vm3051 = vmand %vm3049, %vm2826
      %v3052 = vsel %vm3050, 1.0, 0.0
      %v3053 = vsel %vm3051, 1.0, 0.0
      %v3054 = vmul.f32 %v3046, %v3052
      %v3055 = vmul.f32 %v3047, %v3053
      %3056 = vset.pattern.permute.xlu0 14
      %3057 = vperm.xlu0 %3056, %v2692
      %v3058 = vpop.permute.xlu0 %3057
      %v3060 = vmul.f32 %v3054, %v3058
      %v3061 = vmul.f32 %v3055, %v3058
      %v3062 = vadd.f32 %v3039, %v3060
      %v3063 = vadd.f32 %v3040, %v3061
      %3064 = vrot.lane.b32.xlu0 %v2690, 86
      %v3065 = vpop.permute.xlu0 %3064
      %3066 = vrot.lane.b32.xlu0 %v2691, 86
      %v3067 = vpop.permute.xlu0 %3066
      %vm3068 = vcmp.lt.s32.totalorder %v147, 86
      %v3069 = vsel %vm3068, %v3065, %v3067
      %v3070 = vsel %vm3068, %v3067, %v3065
      %v3071 = vadd.s32 %v149, 3
      %v3072 = vadd.s32 %v150, 3
      %vm3073 = vcmp.ge.s32.totalorder %v3071, 0
      %vm3074 = vcmp.ge.s32.totalorder %v3072, 0
      %vm3075 = vcmp.lt.s32.totalorder %v3071, 16
      %vm3076 = vcmp.lt.s32.totalorder %v3072, 16
      %vm3077 = vmand %vm3073, %vm3075
      %vm3078 = vmand %vm3074, %vm3076
      %vm3079 = vmand %vm3077, %vm2711
      %vm3080 = vmand %vm3078, %vm2712
      %vm3081 = vmand %vm3079, %vm2715
      %vm3082 = vmand %vm3080, %vm2716
      %v3083 = vsel %vm3081, 1.0, 0.0
      %v3084 = vsel %vm3082, 1.0, 0.0
      %v3085 = vmul.f32 %v3069, %v3083
      %v3086 = vmul.f32 %v3070, %v3084
      %3087 = vset.pattern.permute.xlu0 15
      %3088 = vperm.xlu0 %3087, %v2692
      %v3089 = vpop.permute.xlu0 %3088
      %v3091 = vmul.f32 %v3085, %v3089
      %v3092 = vmul.f32 %v3086, %v3089
      %v3093 = vadd.f32 %v3062, %v3091
      %v3094 = vadd.f32 %v3063, %v3092
      %3095 = vrot.lane.b32.xlu0 %v2690, 83
      %v3096 = vpop.permute.xlu0 %3095
      %3097 = vrot.lane.b32.xlu0 %v2691, 83
      %v3098 = vpop.permute.xlu0 %3097
      %vm3099 = vcmp.lt.s32.totalorder %v147, 83
      %v3100 = vsel %vm3099, %v3096, %v3098
      %v3101 = vsel %vm3099, %v3098, %v3096
      %vm3102 = vmand %vm3077, %vm2741
      %vm3103 = vmand %vm3078, %vm2742
      %vm3104 = vmand %vm3102, %vm2745
      %vm3105 = vmand %vm3103, %vm2746
      %v3106 = vsel %vm3104, 1.0, 0.0
      %v3107 = vsel %vm3105, 1.0, 0.0
      %v3108 = vmul.f32 %v3100, %v3106
      %v3109 = vmul.f32 %v3101, %v3107
      %3110 = vset.pattern.permute.xlu0 16
      %3111 = vperm.xlu0 %3110, %v2692
      %v3112 = vpop.permute.xlu0 %3111
      %v3114 = vmul.f32 %v3108, %v3112
      %v3115 = vmul.f32 %v3109, %v3112
      %v3116 = vadd.f32 %v3093, %v3114
      %v3117 = vadd.f32 %v3094, %v3115
      %3118 = vrot.lane.b32.xlu0 %v2690, 80
      %v3119 = vpop.permute.xlu0 %3118
      %3120 = vrot.lane.b32.xlu0 %v2691, 80
      %v3121 = vpop.permute.xlu0 %3120
      %vm3122 = vcmp.lt.s32.totalorder %v147, 80
      %v3123 = vsel %vm3122, %v3119, %v3121
      %v3124 = vsel %vm3122, %v3121, %v3119
      %vm3125 = vmand %vm3077, %vm193
      %vm3126 = vmand %vm3078, %vm194
      %vm3127 = vmand %vm3125, %vm197
      %vm3128 = vmand %vm3126, %vm198
      %v3129 = vsel %vm3127, 1.0, 0.0
      %v3130 = vsel %vm3128, 1.0, 0.0
      %v3131 = vmul.f32 %v3123, %v3129
      %v3132 = vmul.f32 %v3124, %v3130
      %3133 = vset.pattern.permute.xlu0 17
      %3134 = vperm.xlu0 %3133, %v2692
      %v3135 = vpop.permute.xlu0 %3134
      %v3137 = vmul.f32 %v3131, %v3135
      %v3138 = vmul.f32 %v3132, %v3135
      %v3139 = vadd.f32 %v3116, %v3137
      %v3140 = vadd.f32 %v3117, %v3138
      %3141 = vrot.lane.b32.xlu0 %v2690, 77
      %v3142 = vpop.permute.xlu0 %3141
      %3143 = vrot.lane.b32.xlu0 %v2691, 77
      %v3144 = vpop.permute.xlu0 %3143
      %vm3145 = vcmp.lt.s32.totalorder %v147, 77
      %v3146 = vsel %vm3145, %v3142, %v3144
      %v3147 = vsel %vm3145, %v3144, %v3142
      %vm3148 = vmand %vm3077, %vm2792
      %vm3149 = vmand %vm3078, %vm2793
      %vm3150 = vmand %vm3148, %vm2796
      %vm3151 = vmand %vm3149, %vm2797
      %v3152 = vsel %vm3150, 1.0, 0.0
      %v3153 = vsel %vm3151, 1.0, 0.0
      %v3154 = vmul.f32 %v3146, %v3152
      %v3155 = vmul.f32 %v3147, %v3153
      %3156 = vset.pattern.permute.xlu0 18
      %3157 = vperm.xlu0 %3156, %v2692
      %v3158 = vpop.permute.xlu0 %3157
      %v3160 = vmul.f32 %v3154, %v3158
      %v3161 = vmul.f32 %v3155, %v3158
      %v3162 = vadd.f32 %v3139, %v3160
      %v3163 = vadd.f32 %v3140, %v3161
      %3164 = vrot.lane.b32.xlu0 %v2690, 74
      %v3165 = vpop.permute.xlu0 %3164
      %3166 = vrot.lane.b32.xlu0 %v2691, 74
      %v3167 = vpop.permute.xlu0 %3166
      %vm3168 = vcmp.lt.s32.totalorder %v147, 74
      %v3169 = vsel %vm3168, %v3165, %v3167
      %v3170 = vsel %vm3168, %v3167, %v3165
      %vm3171 = vmand %vm3077, %vm2821
      %vm3172 = vmand %vm3078, %vm2822
      %vm3173 = vmand %vm3171, %vm2825
      %vm3174 = vmand %vm3172, %vm2826
      %v3175 = vsel %vm3173, 1.0, 0.0
      %v3176 = vsel %vm3174, 1.0, 0.0
      %v3177 = vmul.f32 %v3169, %v3175
      %v3178 = vmul.f32 %v3170, %v3176
      %3179 = vset.pattern.permute.xlu0 19
      %3180 = vperm.xlu0 %3179, %v2692
      %v3181 = vpop.permute.xlu0 %3180
      %v3183 = vmul.f32 %v3177, %v3181
      %v3184 = vmul.f32 %v3178, %v3181
      %v3185 = vadd.f32 %v3162, %v3183
      %v3186 = vadd.f32 %v3163, %v3184
      %3187 = vrot.lane.b32.xlu0 %v2690, 38
      %v3188 = vpop.permute.xlu0 %3187
      %3189 = vrot.lane.b32.xlu0 %v2691, 38
      %v3190 = vpop.permute.xlu0 %3189
      %vm3191 = vcmp.lt.s32.totalorder %v147, 38
      %v3192 = vsel %vm3191, %v3188, %v3190
      %v3193 = vsel %vm3191, %v3190, %v3188
      %v3194 = vadd.s32 %v149, 6
      %v3195 = vadd.s32 %v150, 6
      %vm3196 = vcmp.ge.s32.totalorder %v3194, 0
      %vm3197 = vcmp.ge.s32.totalorder %v3195, 0
      %vm3198 = vcmp.lt.s32.totalorder %v3194, 16
      %vm3199 = vcmp.lt.s32.totalorder %v3195, 16
      %vm3200 = vmand %vm3196, %vm3198
      %vm3201 = vmand %vm3197, %vm3199
      %vm3202 = vmand %vm3200, %vm2711
      %vm3203 = vmand %vm3201, %vm2712
      %vm3204 = vmand %vm3202, %vm2715
      %vm3205 = vmand %vm3203, %vm2716
      %v3206 = vsel %vm3204, 1.0, 0.0
      %v3207 = vsel %vm3205, 1.0, 0.0
      %v3208 = vmul.f32 %v3192, %v3206
      %v3209 = vmul.f32 %v3193, %v3207
      %3210 = vset.pattern.permute.xlu0 20
      %3211 = vperm.xlu0 %3210, %v2692
      %v3212 = vpop.permute.xlu0 %3211
      %v3214 = vmul.f32 %v3208, %v3212
      %v3215 = vmul.f32 %v3209, %v3212
      %v3216 = vadd.f32 %v3185, %v3214
      %v3217 = vadd.f32 %v3186, %v3215
      %3218 = vrot.lane.b32.xlu0 %v2690, 35
      %v3219 = vpop.permute.xlu0 %3218
      %3220 = vrot.lane.b32.xlu0 %v2691, 35
      %v3221 = vpop.permute.xlu0 %3220
      %vm3222 = vcmp.lt.s32.totalorder %v147, 35
      %v3223 = vsel %vm3222, %v3219, %v3221
      %v3224 = vsel %vm3222, %v3221, %v3219
      %vm3225 = vmand %vm3200, %vm2741
      %vm3226 = vmand %vm3201, %vm2742
      %vm3227 = vmand %vm3225, %vm2745
      %vm3228 = vmand %vm3226, %vm2746
      %v3229 = vsel %vm3227, 1.0, 0.0
      %v3230 = vsel %vm3228, 1.0, 0.0
      %v3231 = vmul.f32 %v3223, %v3229
      %v3232 = vmul.f32 %v3224, %v3230
      %3233 = vset.pattern.permute.xlu0 21
      %3234 = vperm.xlu0 %3233, %v2692
      %v3235 = vpop.permute.xlu0 %3234
      %v3237 = vmul.f32 %v3231, %v3235
      %v3238 = vmul.f32 %v3232, %v3235
      %v3239 = vadd.f32 %v3216, %v3237
      %v3240 = vadd.f32 %v3217, %v3238
      %3241 = vrot.lane.b32.xlu0 %v2690, 32
      %v3242 = vpop.permute.xlu0 %3241
      %3243 = vrot.lane.b32.xlu0 %v2691, 32
      %v3244 = vpop.permute.xlu0 %3243
      %v3245 = vsel %vm2217, %v3242, %v3244
      %v3246 = vsel %vm2217, %v3244, %v3242
      %vm3247 = vmand %vm3200, %vm193
      %vm3248 = vmand %vm3201, %vm194
      %vm3249 = vmand %vm3247, %vm197
      %vm3250 = vmand %vm3248, %vm198
      %v3251 = vsel %vm3249, 1.0, 0.0
      %v3252 = vsel %vm3250, 1.0, 0.0
      %v3253 = vmul.f32 %v3245, %v3251
      %v3254 = vmul.f32 %v3246, %v3252
      %3255 = vset.pattern.permute.xlu0 22
      %3256 = vperm.xlu0 %3255, %v2692
      %v3257 = vpop.permute.xlu0 %3256
      %v3259 = vmul.f32 %v3253, %v3257
      %v3260 = vmul.f32 %v3254, %v3257
      %v3261 = vadd.f32 %v3239, %v3259
      %v3262 = vadd.f32 %v3240, %v3260
      %3263 = vrot.lane.b32.xlu0 %v2690, 29
      %v3264 = vpop.permute.xlu0 %3263
      %3265 = vrot.lane.b32.xlu0 %v2691, 29
      %v3266 = vpop.permute.xlu0 %3265
      %vm3267 = vcmp.lt.s32.totalorder %v147, 29
      %v3268 = vsel %vm3267, %v3264, %v3266
      %v3269 = vsel %vm3267, %v3266, %v3264
      %vm3270 = vmand %vm3200, %vm2792
      %vm3271 = vmand %vm3201, %vm2793
      %vm3272 = vmand %vm3270, %vm2796
      %vm3273 = vmand %vm3271, %vm2797
      %v3274 = vsel %vm3272, 1.0, 0.0
      %v3275 = vsel %vm3273, 1.0, 0.0
      %v3276 = vmul.f32 %v3268, %v3274
      %v3277 = vmul.f32 %v3269, %v3275
      %3278 = vset.pattern.permute.xlu0 23
      %3279 = vperm.xlu0 %3278, %v2692
      %v3280 = vpop.permute.xlu0 %3279
      %v3282 = vmul.f32 %v3276, %v3280
      %v3283 = vmul.f32 %v3277, %v3280
      %v3284 = vadd.f32 %v3261, %v3282
      %v3285 = vadd.f32 %v3262, %v3283
      %3286 = vrot.lane.b32.xlu0 %v2690, 26
      %v3287 = vpop.permute.xlu0 %3286
      %3288 = vrot.lane.b32.xlu0 %v2691, 26
      %v3289 = vpop.permute.xlu0 %3288
      %vm3290 = vcmp.lt.s32.totalorder %v147, 26
      %v3291 = vsel %vm3290, %v3287, %v3289
      %v3292 = vsel %vm3290, %v3289, %v3287
      %vm3293 = vmand %vm3200, %vm2821
      %vm3294 = vmand %vm3201, %vm2822
      %vm3295 = vmand %vm3293, %vm2825
      %vm3296 = vmand %vm3294, %vm2826
      %v3297 = vsel %vm3295, 1.0, 0.0
      %v3298 = vsel %vm3296, 1.0, 0.0
      %v3299 = vmul.f32 %v3291, %v3297
      %v3300 = vmul.f32 %v3292, %v3298
      %3301 = vset.pattern.permute.xlu0 24
      %3302 = vperm.xlu0 %3301, %v2692
      %v3303 = vpop.permute.xlu0 %3302
      %v3305 = vmul.f32 %v3299, %v3303
      %v3306 = vmul.f32 %v3300, %v3303
      %v3307 = vadd.f32 %v3284, %v3305
      %v3308 = vadd.f32 %v3285, %v3306
      %3310 = vset.pattern.permute.xlu0 0
      %3311 = vperm.xlu0 %3310, %v2693
      %v3312 = vpop.permute.xlu0 %3311
      %v3314 = vadd.f32 %v3307, %v3312
      %v3315 = vadd.f32 %v3308, %v3312
      %v3316 = vld [vmem:[%s1 + $0x280] ss:$0 sm:$0xff]
      %v3317 = vld [vmem:[%s1 + $0x290] ss:$0 sm:$0xff]
      %3319 = vset.pattern.permute.xlu0 0
      %3320 = vperm.xlu0 %3319, %v3317
      %v3321 = vpop.permute.xlu0 %3320
      %vm3323 = vcmask 15360
      %v3325 = vsel %vm3323, %v3316, 0
      %vm3327 = vcmask 1041408
      %v3329 = vsel %vm3327, %v3314, 0
      %v3332 = vsel %vm3327, %v3315, 0
      %3334 = vmatprep.subr.mxu0 0.0
      %3335 = vmatpush1.msra.mxu0 0.0
      %3336 = vmatprep.subr.mxu0 0.0
      %3337 = vmatpush1.msra.mxu0 0.0
      %3338 = vmatprep.subr.mxu0 0.0
      %3339 = vmatpush1.msra.mxu0 0.0
      %3340 = vmatprep.subr.mxu0 0.0
      %3341 = vmatpush1.msra.mxu0 0.0
      %3342 = vmatprep.subr.mxu0 0.0
      %3343 = vmatpush1.msra.mxu0 0.0
      %3344 = vmatprep.subr.mxu0 0.0
      %3345 = vmatpush1.msra.mxu0 0.0
      %3346 = vmatprep.subr.mxu0 0.0
      %3347 = vmatpush1.msra.mxu0 0.0
      %3348 = vmatprep.subr.mxu0 0.0
      %3349 = vmatpush1.msra.mxu0 0.0
      %3350 = vmatprep.subr.mxu0 0.0
      %3351 = vmatpush1.msra.mxu0 0.0
      %3352 = vmatprep.subr.mxu0 0.0
      %3353 = vmatpush1.msra.mxu0 0.0
      %3354 = vmatprep.subr.mxu0 0.0
      %3355 = vmatpush1.msra.mxu0 0.0
      %3356 = vmatprep.subr.mxu0 0.0
      %3357 = vmatpush1.msra.mxu0 0.0
      %3358 = vmatprep.subr.mxu0 0.0
      %3359 = vmatpush1.msra.mxu0 0.0
      %3360 = vmatprep.subr.mxu0 0.0
      %3361 = vmatpush1.msra.mxu0 0.0
      %3362 = vmatprep.subr.mxu0 0.0
      %3363 = vmatpush1.msra.mxu0 0.0
      %3364 = vmatprep.subr.mxu0 %v3332
      %3365 = vmatpush1.msra.mxu0 %v3329
      %3366 = vmatprep.subr.mxu0 0.0
      %3367 = vmatpush2.msra.mxu0 0.0
      %3368 = vmatprep.subr.mxu0 0.0
      %3369 = vmatpush2.msra.mxu0 0.0
      %3370 = vmatprep.subr.mxu0 0.0
      %3371 = vmatpush2.msra.mxu0 0.0
      %3372 = vmatprep.subr.mxu0 0.0
      %3373 = vmatpush2.msra.mxu0 0.0
      %3374 = vmatprep.subr.mxu0 0.0
      %3375 = vmatpush2.msra.mxu0 0.0
      %3376 = vmatprep.subr.mxu0 0.0
      %3377 = vmatpush2.msra.mxu0 0.0
      %3378 = vmatprep.subr.mxu0 0.0
      %3379 = vmatpush2.msra.mxu0 0.0
      %3380 = vmatprep.subr.mxu0 0.0
      %3381 = vmatpush2.msra.mxu0 0.0
      %3382 = vmatprep.subr.mxu0 0.0
      %3383 = vmatpush2.msra.mxu0 0.0
      %3384 = vmatprep.subr.mxu0 0.0
      %3385 = vmatpush2.msra.mxu0 0.0
      %3386 = vmatprep.subr.mxu0 0.0
      %3387 = vmatpush2.msra.mxu0 0.0
      %3388 = vmatprep.subr.mxu0 0.0
      %3389 = vmatpush2.msra.mxu0 0.0
      %3390 = vmatprep.subr.mxu0 0.0
      %3391 = vmatpush2.msra.mxu0 0.0
      %3392 = vmatprep.subr.mxu0 0.0
      %3393 = vmatpush2.msra.mxu0 0.0
      %3394 = vmatprep.subr.mxu0 0.0
      %3395 = vmatpush2.msra.mxu0 0.0
      %3396 = vmatprep.subr.mxu0 0.0
      %3397 = vmatpush2.msra.mxu0 0.0
      %3398 = vmatprep.mubr.f32.mxu0 0.0
      %3399 = vmatmul.mubr.f32.gmra.mxu0 %v3325
      %v3400 = vpop.f32.mrf.mxu0
      %v3401 = vadd.f32 %v3321, %v3400
      %v3402 = vpop.f32.mrf.mxu0
      %v3403 = vadd.f32 %v3321, %v3402
      %3404 = vdwg.mxu0
      %v3405 = vlaneseq
      %v3406 = vshrl.u32 %v3405, 7
      %v3407 = vsub.s32 0, %v3406
      %v3408 = vrot.slane %v3401, %v3407
      %v3409 = vlaneseq
      %v3410 = vshrl.u32 %v3409, 7
      %v3411 = vsub.s32 0, %v3410
      %v3412 = vrot.slane %v3403, %v3411
      %v3413 = vmul.f32 %v3408, %v2098
      %v3414 = vmul.f32 %v3412, %v2099
      %v3415 = vmul.f32 %v3408, %v2100
      %v3416 = vmul.f32 %v3412, %v2101
      %v3417 = vmul.f32 %v3408, %v2102
      %v3418 = vmul.f32 %v3412, %v2103
      %v3419 = vmul.f32 %v3408, %v2104
      %v3420 = vmul.f32 %v3412, %v2105
      %v3421 = vadd.f32 %v3413, %v3414
      %3422 = vadd.xlane.f32.xlu0 %v3421
      %v3423 = vpop.xlane.xlu0 %3422
      %v3424 = vadd.f32 %v3415, %v3416
      %3425 = vadd.xlane.f32.xlu0 %v3424
      %v3426 = vpop.xlane.xlu0 %3425
      %v3427 = vadd.f32 %v3417, %v3418
      %3428 = vadd.xlane.f32.xlu0 %v3427
      %v3429 = vpop.xlane.xlu0 %3428
      %v3430 = vadd.f32 %v3419, %v3420
      %3431 = vadd.xlane.f32.xlu0 %v3430
      %v3432 = vpop.xlane.xlu0 %3431
      %v3433 = vmul.f32 %v3423, %v415
      %v3434 = vmul.f32 %v3426, %v415
      %v3435 = vmul.f32 %v3429, %v415
      %v3436 = vmul.f32 %v3432, %v415
      %v3437 = vsub.f32 %v3413, %v3433
      %v3438 = vsub.f32 %v3414, %v3433
      %v3439 = vsub.f32 %v3415, %v3434
      %v3440 = vsub.f32 %v3416, %v3434
      %v3441 = vsub.f32 %v3417, %v3435
      %v3442 = vsub.f32 %v3418, %v3435
      %v3443 = vsub.f32 %v3419, %v3436
      %v3444 = vsub.f32 %v3420, %v3436
      %v3445 = vmul.f32 %v3437, %v3437
      %v3446 = vmul.f32 %v3438, %v3438
      %v3447 = vmul.f32 %v3439, %v3439
      %v3448 = vmul.f32 %v3440, %v3440
      %v3449 = vmul.f32 %v3441, %v3441
      %v3450 = vmul.f32 %v3442, %v3442
      %v3451 = vmul.f32 %v3443, %v3443
      %v3452 = vmul.f32 %v3444, %v3444
      %v3453 = vadd.f32 %v3445, %v3446
      %3454 = vadd.xlane.f32.xlu0 %v3453
      %v3455 = vpop.xlane.xlu0 %3454
      %v3456 = vadd.f32 %v3447, %v3448
      %3457 = vadd.xlane.f32.xlu0 %v3456
      %v3458 = vpop.xlane.xlu0 %3457
      %v3459 = vadd.f32 %v3449, %v3450
      %3460 = vadd.xlane.f32.xlu0 %v3459
      %v3461 = vpop.xlane.xlu0 %3460
      %v3462 = vadd.f32 %v3451, %v3452
      %3463 = vadd.xlane.f32.xlu0 %v3462
      %v3464 = vpop.xlane.xlu0 %3463
      %v3465 = vmul.f32 %v3455, %v415
      %v3466 = vmul.f32 %v3458, %v415
      %v3467 = vmul.f32 %v3461, %v415
      %v3468 = vmul.f32 %v3464, %v415
      %v3469 = vadd.f32 %v3465, 1e-05
      %v3470 = vadd.f32 %v3466, 1e-05
      %v3471 = vadd.f32 %v3467, 1e-05
      %v3472 = vadd.f32 %v3468, 1e-05
      %v3473 = vrsqrt.pop %v3469
      %v3474 = vrsqrt.pop %v3470
      %v3475 = vrsqrt.pop %v3471
      %v3476 = vrsqrt.pop %v3472
      %v3477 = vmul.f32 %v3437, %v3473
      %v3478 = vmul.f32 %v3438, %v3473
      %v3479 = vmul.f32 %v3439, %v3474
      %v3480 = vmul.f32 %v3440, %v3474
      %v3481 = vmul.f32 %v3441, %v3475
      %v3482 = vmul.f32 %v3442, %v3475
      %v3483 = vmul.f32 %v3443, %v3476
      %v3484 = vmul.f32 %v3444, %v3476
      %v3485 = vld [vmem:[%s1 + $0x2a0] sm:$0xff]
      %v3486 = vld [vmem:[%s1 + $0x2b0] sm:$0xff]
      %v3487 = vld [vmem:[%s1 + $0x2c0] sm:$0xff]
      %v3488 = vld [vmem:[%s1 + $0x2d0] sm:$0xff]
      %v3489 = vld [vmem:[%s1 + $0x2e0] sm:$0xff]
      %v3490 = vld [vmem:[%s1 + $0x2f0] sm:$0xff]
      %v3491 = vld [vmem:[%s1 + $0x300] sm:$0xff]
      %v3492 = vld [vmem:[%s1 + $0x310] sm:$0xff]
      %3494 = vset.pattern.permute.xlu0 0
      %3495 = vperm.xlu0 %3494, %v3489
      %v3496 = vpop.permute.xlu0 %3495
      %3499 = vset.pattern.permute.xlu0 0
      %3500 = vperm.xlu0 %3499, %v3490
      %v3501 = vpop.permute.xlu0 %3500
      %3504 = vset.pattern.permute.xlu0 0
      %3505 = vperm.xlu0 %3504, %v3491
      %v3506 = vpop.permute.xlu0 %3505
      %3509 = vset.pattern.permute.xlu0 0
      %3510 = vperm.xlu0 %3509, %v3492
      %v3511 = vpop.permute.xlu0 %3510
      %v3514 = vsel %vm1980, %v3485, 0
      %v3517 = vsel %vm1980, %v3486, 0
      %v3520 = vsel %vm1980, %v3487, 0
      %v3523 = vsel %vm1980, %v3488, 0
      %3525 = vmatprep.subr.mxu0 0.0
      %3526 = vmatpush1.msra.mxu0 0.0
      %3527 = vmatprep.subr.mxu0 0.0
      %3528 = vmatpush1.msra.mxu0 0.0
      %3529 = vmatprep.subr.mxu0 0.0
      %3530 = vmatpush1.msra.mxu0 0.0
      %3531 = vmatprep.subr.mxu0 0.0
      %3532 = vmatpush1.msra.mxu0 0.0
      %3533 = vmatprep.subr.mxu0 0.0
      %3534 = vmatpush1.msra.mxu0 0.0
      %3535 = vmatprep.subr.mxu0 0.0
      %3536 = vmatpush1.msra.mxu0 0.0
      %3537 = vmatprep.subr.mxu0 0.0
      %3538 = vmatpush1.msra.mxu0 0.0
      %3539 = vmatprep.subr.mxu0 0.0
      %3540 = vmatpush1.msra.mxu0 0.0
      %3541 = vmatprep.subr.mxu0 0.0
      %3542 = vmatpush1.msra.mxu0 0.0
      %3543 = vmatprep.subr.mxu0 0.0
      %3544 = vmatpush1.msra.mxu0 0.0
      %3545 = vmatprep.subr.mxu0 0.0
      %3546 = vmatpush1.msra.mxu0 0.0
      %3547 = vmatprep.subr.mxu0 0.0
      %3548 = vmatpush1.msra.mxu0 0.0
      %3549 = vmatprep.subr.mxu0 %v3484
      %3550 = vmatpush1.msra.mxu0 %v3483
      %3551 = vmatprep.subr.mxu0 %v3482
      %3552 = vmatpush1.msra.mxu0 %v3481
      %3553 = vmatprep.subr.mxu0 %v3480
      %3554 = vmatpush1.msra.mxu0 %v3479
      %3555 = vmatprep.subr.mxu0 %v3478
      %3556 = vmatpush1.msra.mxu0 %v3477
      %3557 = vmatprep.subr.mxu0 0.0
      %3558 = vmatpush2.msra.mxu0 0.0
      %3559 = vmatprep.subr.mxu0 0.0
      %3560 = vmatpush2.msra.mxu0 0.0
      %3561 = vmatprep.subr.mxu0 0.0
      %3562 = vmatpush2.msra.mxu0 0.0
      %3563 = vmatprep.subr.mxu0 0.0
      %3564 = vmatpush2.msra.mxu0 0.0
      %3565 = vmatprep.subr.mxu0 0.0
      %3566 = vmatpush2.msra.mxu0 0.0
      %3567 = vmatprep.subr.mxu0 0.0
      %3568 = vmatpush2.msra.mxu0 0.0
      %3569 = vmatprep.subr.mxu0 0.0
      %3570 = vmatpush2.msra.mxu0 0.0
      %3571 = vmatprep.subr.mxu0 0.0
      %3572 = vmatpush2.msra.mxu0 0.0
      %3573 = vmatprep.subr.mxu0 0.0
      %3574 = vmatpush2.msra.mxu0 0.0
      %3575 = vmatprep.subr.mxu0 0.0
      %3576 = vmatpush2.msra.mxu0 0.0
      %3577 = vmatprep.subr.mxu0 0.0
      %3578 = vmatpush2.msra.mxu0 0.0
      %3579 = vmatprep.subr.mxu0 0.0
      %3580 = vmatpush2.msra.mxu0 0.0
      %3581 = vmatprep.subr.mxu0 0.0
      %3582 = vmatpush2.msra.mxu0 0.0
      %3583 = vmatprep.subr.mxu0 0.0
      %3584 = vmatpush2.msra.mxu0 0.0
      %3585 = vmatprep.subr.mxu0 0.0
      %3586 = vmatpush2.msra.mxu0 0.0
      %3587 = vmatprep.subr.mxu0 0.0
      %3588 = vmatpush2.msra.mxu0 0.0
      %3589 = vmatprep.mubr.f32.mxu0 0.0
      %3590 = vmatmul.mubr.f32.gmra.mxu0 %v3514
      %v3591 = vpop.f32.mrf.mxu0
      %v3592 = vadd.f32 %v3496, %v3591
      %v3593 = vpop.f32.mrf.mxu0
      %v3594 = vadd.f32 %v3496, %v3593
      %3595 = vmatprep.mubr.f32.mxu0 0.0
      %3596 = vmatmul.mubr.f32.gmra.mxu0 %v3517
      %v3597 = vpop.f32.mrf.mxu0
      %v3598 = vadd.f32 %v3501, %v3597
      %v3599 = vpop.f32.mrf.mxu0
      %v3600 = vadd.f32 %v3501, %v3599
      %3601 = vmatprep.mubr.f32.mxu0 0.0
      %3602 = vmatmul.mubr.f32.gmra.mxu0 %v3520
      %v3603 = vpop.f32.mrf.mxu0
      %v3604 = vadd.f32 %v3506, %v3603
      %v3605 = vpop.f32.mrf.mxu0
      %v3606 = vadd.f32 %v3506, %v3605
      %3607 = vmatprep.mubr.f32.mxu0 0.0
      %3608 = vmatmul.mubr.f32.gmra.mxu0 %v3523
      %v3609 = vpop.f32.mrf.mxu0
      %v3610 = vadd.f32 %v3511, %v3609
      %v3611 = vpop.f32.mrf.mxu0
      %v3612 = vadd.f32 %v3511, %v3611
      %3613 = vdwg.mxu0
      %v3614 = vmul.f32 %v3592, 0.5
      %v3615 = vmul.f32 %v3594, 0.5
      %v3616 = vmul.f32 %v3598, 0.5
      %v3617 = vmul.f32 %v3600, 0.5
      %v3618 = vmul.f32 %v3604, 0.5
      %v3619 = vmul.f32 %v3606, 0.5
      %v3620 = vmul.f32 %v3610, 0.5
      %v3621 = vmul.f32 %v3612, 0.5
      %v3622 = vmul.f32 %v3592, 0.70710677
      %v3623 = vmul.f32 %v3594, 0.70710677
      %v3624 = vmul.f32 %v3598, 0.70710677
      %v3625 = vmul.f32 %v3600, 0.70710677
      %v3626 = vmul.f32 %v3604, 0.70710677
      %v3627 = vmul.f32 %v3606, 0.70710677
      %v3628 = vmul.f32 %v3610, 0.70710677
      %v3629 = vmul.f32 %v3612, 0.70710677
      %v3630 = vand.u32 2147483647, %v3622
      %v3631 = vand.u32 2147483647, %v3623
      %v3632 = vand.u32 2147483647, %v3624
      %v3633 = vand.u32 2147483647, %v3625
      %v3634 = vand.u32 2147483647, %v3626
      %v3635 = vand.u32 2147483647, %v3627
      %v3636 = vand.u32 2147483647, %v3628
      %v3637 = vand.u32 2147483647, %v3629
      %v3638 = vmul.f32 %v3630, 0.3275911
      %v3639 = vmul.f32 %v3631, 0.3275911
      %v3640 = vmul.f32 %v3632, 0.3275911
      %v3641 = vmul.f32 %v3633, 0.3275911
      %v3642 = vmul.f32 %v3634, 0.3275911
      %v3643 = vmul.f32 %v3635, 0.3275911
      %v3644 = vmul.f32 %v3636, 0.3275911
      %v3645 = vmul.f32 %v3637, 0.3275911
      %v3646 = vadd.f32 %v3638, 1.0
      %v3647 = vadd.f32 %v3639, 1.0
      %v3648 = vadd.f32 %v3640, 1.0
      %v3649 = vadd.f32 %v3641, 1.0
      %v3650 = vadd.f32 %v3642, 1.0
      %v3651 = vadd.f32 %v3643, 1.0
      %v3652 = vadd.f32 %v3644, 1.0
      %v3653 = vadd.f32 %v3645, 1.0
      %v3654 = vrcp.pop %v3646
      %v3655 = vmul.f32 1.0, %v3654
      %v3656 = vrcp.pop %v3647
      %v3657 = vmul.f32 1.0, %v3656
      %v3658 = vrcp.pop %v3648
      %v3659 = vmul.f32 1.0, %v3658
      %v3660 = vrcp.pop %v3649
      %v3661 = vmul.f32 1.0, %v3660
      %v3662 = vrcp.pop %v3650
      %v3663 = vmul.f32 1.0, %v3662
      %v3664 = vrcp.pop %v3651
      %v3665 = vmul.f32 1.0, %v3664
      %v3666 = vrcp.pop %v3652
      %v3667 = vmul.f32 1.0, %v3666
      %v3668 = vrcp.pop %v3653
      %v3669 = vmul.f32 1.0, %v3668
      %v3670 = vmul.f32 %v3655, 1.0614054
      %v3671 = vmul.f32 %v3657, 1.0614054
      %v3672 = vmul.f32 %v3659, 1.0614054
      %v3673 = vmul.f32 %v3661, 1.0614054
      %v3674 = vmul.f32 %v3663, 1.0614054
      %v3675 = vmul.f32 %v3665, 1.0614054
      %v3676 = vmul.f32 %v3667, 1.0614054
      %v3677 = vmul.f32 %v3669, 1.0614054
      %v3678 = vadd.f32 %v3670, -1.4531521
      %v3679 = vadd.f32 %v3671, -1.4531521
      %v3680 = vadd.f32 %v3672, -1.4531521
      %v3681 = vadd.f32 %v3673, -1.4531521
      %v3682 = vadd.f32 %v3674, -1.4531521
      %v3683 = vadd.f32 %v3675, -1.4531521
      %v3684 = vadd.f32 %v3676, -1.4531521
      %v3685 = vadd.f32 %v3677, -1.4531521
      %v3686 = vmul.f32 %v3678, %v3655
      %v3687 = vmul.f32 %v3679, %v3657
      %v3688 = vmul.f32 %v3680, %v3659
      %v3689 = vmul.f32 %v3681, %v3661
      %v3690 = vmul.f32 %v3682, %v3663
      %v3691 = vmul.f32 %v3683, %v3665
      %v3692 = vmul.f32 %v3684, %v3667
      %v3693 = vmul.f32 %v3685, %v3669
      %v3694 = vadd.f32 %v3686, 1.4214138
      %v3695 = vadd.f32 %v3687, 1.4214138
      %v3696 = vadd.f32 %v3688, 1.4214138
      %v3697 = vadd.f32 %v3689, 1.4214138
      %v3698 = vadd.f32 %v3690, 1.4214138
      %v3699 = vadd.f32 %v3691, 1.4214138
      %v3700 = vadd.f32 %v3692, 1.4214138
      %v3701 = vadd.f32 %v3693, 1.4214138
      %v3702 = vmul.f32 %v3694, %v3655
      %v3703 = vmul.f32 %v3695, %v3657
      %v3704 = vmul.f32 %v3696, %v3659
      %v3705 = vmul.f32 %v3697, %v3661
      %v3706 = vmul.f32 %v3698, %v3663
      %v3707 = vmul.f32 %v3699, %v3665
      %v3708 = vmul.f32 %v3700, %v3667
      %v3709 = vmul.f32 %v3701, %v3669
      %v3710 = vadd.f32 %v3702, -0.28449672
      %v3711 = vadd.f32 %v3703, -0.28449672
      %v3712 = vadd.f32 %v3704, -0.28449672
      %v3713 = vadd.f32 %v3705, -0.28449672
      %v3714 = vadd.f32 %v3706, -0.28449672
      %v3715 = vadd.f32 %v3707, -0.28449672
      %v3716 = vadd.f32 %v3708, -0.28449672
      %v3717 = vadd.f32 %v3709, -0.28449672
      %v3718 = vmul.f32 %v3710, %v3655
      %v3719 = vmul.f32 %v3711, %v3657
      %v3720 = vmul.f32 %v3712, %v3659
      %v3721 = vmul.f32 %v3713, %v3661
      %v3722 = vmul.f32 %v3714, %v3663
      %v3723 = vmul.f32 %v3715, %v3665
      %v3724 = vmul.f32 %v3716, %v3667
      %v3725 = vmul.f32 %v3717, %v3669
      %v3726 = vadd.f32 %v3718, 0.2548296
      %v3727 = vadd.f32 %v3719, 0.2548296
      %v3728 = vadd.f32 %v3720, 0.2548296
      %v3729 = vadd.f32 %v3721, 0.2548296
      %v3730 = vadd.f32 %v3722, 0.2548296
      %v3731 = vadd.f32 %v3723, 0.2548296
      %v3732 = vadd.f32 %v3724, 0.2548296
      %v3733 = vadd.f32 %v3725, 0.2548296
      %v3734 = vmul.f32 %v3726, %v3655
      %v3735 = vmul.f32 %v3727, %v3657
      %v3736 = vmul.f32 %v3728, %v3659
      %v3737 = vmul.f32 %v3729, %v3661
      %v3738 = vmul.f32 %v3730, %v3663
      %v3739 = vmul.f32 %v3731, %v3665
      %v3740 = vmul.f32 %v3732, %v3667
      %v3741 = vmul.f32 %v3733, %v3669
      %v3742 = vsub.f32 0.0, %v3630
      %v3743 = vsub.f32 0.0, %v3631
      %v3744 = vsub.f32 0.0, %v3632
      %v3745 = vsub.f32 0.0, %v3633
      %v3746 = vsub.f32 0.0, %v3634
      %v3747 = vsub.f32 0.0, %v3635
      %v3748 = vsub.f32 0.0, %v3636
      %v3749 = vsub.f32 0.0, %v3637
      %v3750 = vmul.f32 %v3742, %v3630
      %v3751 = vmul.f32 %v3743, %v3631
      %v3752 = vmul.f32 %v3744, %v3632
      %v3753 = vmul.f32 %v3745, %v3633
      %v3754 = vmul.f32 %v3746, %v3634
      %v3755 = vmul.f32 %v3747, %v3635
      %v3756 = vmul.f32 %v3748, %v3636
      %v3757 = vmul.f32 %v3749, %v3637
      %v3758 = vmul.f32 %v3750, 1.442695
      %v3759 = vpow.pop %v3758
      %v3760 = vmul.f32 %v3751, 1.442695
      %v3761 = vpow.pop %v3760
      %v3762 = vmul.f32 %v3752, 1.442695
      %v3763 = vpow.pop %v3762
      %v3764 = vmul.f32 %v3753, 1.442695
      %v3765 = vpow.pop %v3764
      %v3766 = vmul.f32 %v3754, 1.442695
      %v3767 = vpow.pop %v3766
      %v3768 = vmul.f32 %v3755, 1.442695
      %v3769 = vpow.pop %v3768
      %v3770 = vmul.f32 %v3756, 1.442695
      %v3771 = vpow.pop %v3770
      %v3772 = vmul.f32 %v3757, 1.442695
      %v3773 = vpow.pop %v3772
      %v3774 = vmul.f32 %v3734, %v3759
      %v3775 = vmul.f32 %v3735, %v3761
      %v3776 = vmul.f32 %v3736, %v3763
      %v3777 = vmul.f32 %v3737, %v3765
      %v3778 = vmul.f32 %v3738, %v3767
      %v3779 = vmul.f32 %v3739, %v3769
      %v3780 = vmul.f32 %v3740, %v3771
      %v3781 = vmul.f32 %v3741, %v3773
      %v3782 = vsub.f32 1.0, %v3774
      %v3783 = vsub.f32 1.0, %v3775
      %v3784 = vsub.f32 1.0, %v3776
      %v3785 = vsub.f32 1.0, %v3777
      %v3786 = vsub.f32 1.0, %v3778
      %v3787 = vsub.f32 1.0, %v3779
      %v3788 = vsub.f32 1.0, %v3780
      %v3789 = vsub.f32 1.0, %v3781
      %vm3790 = vcmp.ge.f32.partialorder %v3622, 0.0
      %vm3791 = vcmp.ge.f32.partialorder %v3623, 0.0
      %vm3792 = vcmp.ge.f32.partialorder %v3624, 0.0
      %vm3793 = vcmp.ge.f32.partialorder %v3625, 0.0
      %vm3794 = vcmp.ge.f32.partialorder %v3626, 0.0
      %vm3795 = vcmp.ge.f32.partialorder %v3627, 0.0
      %vm3796 = vcmp.ge.f32.partialorder %v3628, 0.0
      %vm3797 = vcmp.ge.f32.partialorder %v3629, 0.0
      %v3798 = vsub.f32 0.0, %v3782
      %v3799 = vsub.f32 0.0, %v3783
      %v3800 = vsub.f32 0.0, %v3784
      %v3801 = vsub.f32 0.0, %v3785
      %v3802 = vsub.f32 0.0, %v3786
      %v3803 = vsub.f32 0.0, %v3787
      %v3804 = vsub.f32 0.0, %v3788
      %v3805 = vsub.f32 0.0, %v3789
      %v3806 = vsel %vm3790, %v3782, %v3798
      %v3807 = vsel %vm3791, %v3783, %v3799
      %v3808 = vsel %vm3792, %v3784, %v3800
      %v3809 = vsel %vm3793, %v3785, %v3801
      %v3810 = vsel %vm3794, %v3786, %v3802
      %v3811 = vsel %vm3795, %v3787, %v3803
      %v3812 = vsel %vm3796, %v3788, %v3804
      %v3813 = vsel %vm3797, %v3789, %v3805
      %v3814 = vadd.f32 %v3806, 1.0
      %v3815 = vadd.f32 %v3807, 1.0
      %v3816 = vadd.f32 %v3808, 1.0
      %v3817 = vadd.f32 %v3809, 1.0
      %v3818 = vadd.f32 %v3810, 1.0
      %v3819 = vadd.f32 %v3811, 1.0
      %v3820 = vadd.f32 %v3812, 1.0
      %v3821 = vadd.f32 %v3813, 1.0
      %v3822 = vmul.f32 %v3614, %v3814
      %v3823 = vmul.f32 %v3615, %v3815
      %v3824 = vmul.f32 %v3616, %v3816
      %v3825 = vmul.f32 %v3617, %v3817
      %v3826 = vmul.f32 %v3618, %v3818
      %v3827 = vmul.f32 %v3619, %v3819
      %v3828 = vmul.f32 %v3620, %v3820
      %v3829 = vmul.f32 %v3621, %v3821
      %v3830 = vld [vmem:[%s1 + $0x320] sm:$0xff]
      %v3831 = vld [vmem:[%s1 + $0x330] sm:$0xff]
      %v3832 = vld [vmem:[%s1 + $0x340] sm:$0xff]
      %v3833 = vld [vmem:[%s1 + $0x350] sm:$0xff]
      %3835 = vset.pattern.permute.xlu0 0
      %3836 = vperm.xlu0 %3835, %v3832
      %v3837 = vpop.permute.xlu0 %3836
      %3840 = vset.pattern.permute.xlu0 0
      %3841 = vperm.xlu0 %3840, %v3833
      %v3842 = vpop.permute.xlu0 %3841
      %v3845 = vsel %vm1980, %v3830, 0
      %v3848 = vsel %vm1980, %v3831, 0
      %3850 = vmatprep.subr.mxu0 0.0
      %3851 = vmatpush1.msra.mxu0 0.0
      %3852 = vmatprep.subr.mxu0 0.0
      %3853 = vmatpush1.msra.mxu0 0.0
      %3854 = vmatprep.subr.mxu0 0.0
      %3855 = vmatpush1.msra.mxu0 0.0
      %3856 = vmatprep.subr.mxu0 0.0
      %3857 = vmatpush1.msra.mxu0 0.0
      %3858 = vmatprep.subr.mxu0 0.0
      %3859 = vmatpush1.msra.mxu0 0.0
      %3860 = vmatprep.subr.mxu0 0.0
      %3861 = vmatpush1.msra.mxu0 0.0
      %3862 = vmatprep.subr.mxu0 0.0
      %3863 = vmatpush1.msra.mxu0 0.0
      %3864 = vmatprep.subr.mxu0 0.0
      %3865 = vmatpush1.msra.mxu0 0.0
      %3866 = vmatprep.subr.mxu0 0.0
      %3867 = vmatpush1.msra.mxu0 0.0
      %3868 = vmatprep.subr.mxu0 0.0
      %3869 = vmatpush1.msra.mxu0 0.0
      %3870 = vmatprep.subr.mxu0 0.0
      %3871 = vmatpush1.msra.mxu0 0.0
      %3872 = vmatprep.subr.mxu0 0.0
      %3873 = vmatpush1.msra.mxu0 0.0
      %3874 = vmatprep.subr.mxu0 %v3829
      %3875 = vmatpush1.msra.mxu0 %v3828
      %3876 = vmatprep.subr.mxu0 %v3827
      %3877 = vmatpush1.msra.mxu0 %v3826
      %3878 = vmatprep.subr.mxu0 %v3825
      %3879 = vmatpush1.msra.mxu0 %v3824
      %3880 = vmatprep.subr.mxu0 %v3823
      %3881 = vmatpush1.msra.mxu0 %v3822
      %3882 = vmatprep.subr.mxu0 0.0
      %3883 = vmatpush2.msra.mxu0 0.0
      %3884 = vmatprep.subr.mxu0 0.0
      %3885 = vmatpush2.msra.mxu0 0.0
      %3886 = vmatprep.subr.mxu0 0.0
      %3887 = vmatpush2.msra.mxu0 0.0
      %3888 = vmatprep.subr.mxu0 0.0
      %3889 = vmatpush2.msra.mxu0 0.0
      %3890 = vmatprep.subr.mxu0 0.0
      %3891 = vmatpush2.msra.mxu0 0.0
      %3892 = vmatprep.subr.mxu0 0.0
      %3893 = vmatpush2.msra.mxu0 0.0
      %3894 = vmatprep.subr.mxu0 0.0
      %3895 = vmatpush2.msra.mxu0 0.0
      %3896 = vmatprep.subr.mxu0 0.0
      %3897 = vmatpush2.msra.mxu0 0.0
      %3898 = vmatprep.subr.mxu0 0.0
      %3899 = vmatpush2.msra.mxu0 0.0
      %3900 = vmatprep.subr.mxu0 0.0
      %3901 = vmatpush2.msra.mxu0 0.0
      %3902 = vmatprep.subr.mxu0 0.0
      %3903 = vmatpush2.msra.mxu0 0.0
      %3904 = vmatprep.subr.mxu0 0.0
      %3905 = vmatpush2.msra.mxu0 0.0
      %3906 = vmatprep.subr.mxu0 0.0
      %3907 = vmatpush2.msra.mxu0 0.0
      %3908 = vmatprep.subr.mxu0 0.0
      %3909 = vmatpush2.msra.mxu0 0.0
      %3910 = vmatprep.subr.mxu0 0.0
      %3911 = vmatpush2.msra.mxu0 0.0
      %3912 = vmatprep.subr.mxu0 0.0
      %3913 = vmatpush2.msra.mxu0 0.0
      %3914 = vmatprep.mubr.f32.mxu0 0.0
      %3915 = vmatmul.mubr.f32.gmra.mxu0 %v3845
      %v3916 = vpop.f32.mrf.mxu0
      %v3917 = vadd.f32 %v3837, %v3916
      %v3918 = vpop.f32.mrf.mxu0
      %v3919 = vadd.f32 %v3837, %v3918
      %3920 = vmatprep.mubr.f32.mxu0 0.0
      %3921 = vmatmul.mubr.f32.gmra.mxu0 %v3848
      %v3922 = vpop.f32.mrf.mxu0
      %v3923 = vadd.f32 %v3842, %v3922
      %v3924 = vpop.f32.mrf.mxu0
      %v3925 = vadd.f32 %v3842, %v3924
      %3926 = vdwg.mxu0
      %v3927 = vld [vmem:[%s1 + $0x360] sm:$0xff]
      %v3928 = vld [vmem:[%s1 + $0x370] sm:$0xff]
      %3930 = vset.pattern.permute.xlu0 0
      %3931 = vperm.xlu0 %3930, %v3927
      %v3932 = vpop.permute.xlu0 %3931
      %3935 = vset.pattern.permute.xlu0 0
      %3936 = vperm.xlu0 %3935, %v3928
      %v3937 = vpop.permute.xlu0 %3936
      %v3939 = vmul.f32 %v3917, %v3932
      %v3940 = vmul.f32 %v3919, %v3932
      %v3941 = vmul.f32 %v3923, %v3937
      %v3942 = vmul.f32 %v3925, %v3937
      %v3943 = vadd.f32 %v399, %v3939
      %v3944 = vadd.f32 %v401, %v3940
      %v3945 = vadd.f32 %v405, %v3941
      %v3946 = vadd.f32 %v407, %v3942
      %v3947 = vld [vmem:[%s1 + $0x380] sm:$0x7]
      %v3948 = vld [vmem:[%s1 + $0x388] sm:$0x7]
      %v3949 = vld [vmem:[%s1 + $0x390] sm:$0x7]
      %3950 = vrot.lane.b32.xlu0 %v3943, 17
      %v3951 = vpop.permute.xlu0 %3950
      %3952 = vrot.lane.b32.xlu0 %v3945, 17
      %v3953 = vpop.permute.xlu0 %3952
      %3954 = vrot.lane.b32.xlu0 %v3944, 17
      %v3955 = vpop.permute.xlu0 %3954
      %3956 = vrot.lane.b32.xlu0 %v3946, 17
      %v3957 = vpop.permute.xlu0 %3956
      %v3958 = vsel %vm161, %v3951, %v3955
      %v3959 = vsel %vm161, %v3953, %v3957
      %v3960 = vsel %vm161, %v3955, %v3951
      %v3961 = vsel %vm161, %v3957, %v3953
      %v3962 = vmul.f32 %v3960, %v182
      %v3963 = vmul.f32 %v3958, %v183
      %v3964 = vmul.f32 %v3961, %v182
      %v3965 = vmul.f32 %v3959, %v183
      %3966 = vrot.lane.b32.xlu0 %v3943, 16
      %v3967 = vpop.permute.xlu0 %3966
      %3968 = vrot.lane.b32.xlu0 %v3945, 16
      %v3969 = vpop.permute.xlu0 %3968
      %3970 = vrot.lane.b32.xlu0 %v3944, 16
      %v3971 = vpop.permute.xlu0 %3970
      %3972 = vrot.lane.b32.xlu0 %v3946, 16
      %v3973 = vpop.permute.xlu0 %3972
      %v3974 = vsel %vm190, %v3967, %v3971
      %v3975 = vsel %vm190, %v3969, %v3973
      %v3976 = vsel %vm190, %v3971, %v3967
      %v3977 = vsel %vm190, %v3973, %v3969
      %v3978 = vmul.f32 %v3976, %v201
      %v3979 = vmul.f32 %v3974, %v202
      %v3980 = vmul.f32 %v3977, %v201
      %v3981 = vmul.f32 %v3975, %v202
      %3982 = vrot.lane.b32.xlu0 %v3943, 15
      %v3983 = vpop.permute.xlu0 %3982
      %3984 = vrot.lane.b32.xlu0 %v3945, 15
      %v3985 = vpop.permute.xlu0 %3984
      %3986 = vrot.lane.b32.xlu0 %v3944, 15
      %v3987 = vpop.permute.xlu0 %3986
      %3988 = vrot.lane.b32.xlu0 %v3946, 15
      %v3989 = vpop.permute.xlu0 %3988
      %v3990 = vsel %vm209, %v3983, %v3987
      %v3991 = vsel %vm209, %v3985, %v3989
      %v3992 = vsel %vm209, %v3987, %v3983
      %v3993 = vsel %vm209, %v3989, %v3985
      %v3994 = vmul.f32 %v3992, %v222
      %v3995 = vmul.f32 %v3990, %v223
      %v3996 = vmul.f32 %v3993, %v222
      %v3997 = vmul.f32 %v3991, %v223
      %3998 = vrot.lane.b32.xlu0 %v3943, 1
      %v3999 = vpop.permute.xlu0 %3998
      %4000 = vrot.lane.b32.xlu0 %v3945, 1
      %v4001 = vpop.permute.xlu0 %4000
      %4002 = vrot.lane.b32.xlu0 %v3944, 1
      %v4003 = vpop.permute.xlu0 %4002
      %4004 = vrot.lane.b32.xlu0 %v3946, 1
      %v4005 = vpop.permute.xlu0 %4004
      %v4006 = vsel %vm230, %v3999, %v4003
      %v4007 = vsel %vm230, %v4001, %v4005
      %v4008 = vsel %vm230, %v4003, %v3999
      %v4009 = vsel %vm230, %v4005, %v4001
      %v4010 = vmul.f32 %v4008, %v243
      %v4011 = vmul.f32 %v4006, %v244
      %v4012 = vmul.f32 %v4009, %v243
      %v4013 = vmul.f32 %v4007, %v244
      %4014 = vrot.lane.b32.xlu0 %v3943, 127
      %v4015 = vpop.permute.xlu0 %4014
      %4016 = vrot.lane.b32.xlu0 %v3945, 127
      %v4017 = vpop.permute.xlu0 %4016
      %4018 = vrot.lane.b32.xlu0 %v3944, 127
      %v4019 = vpop.permute.xlu0 %4018
      %4020 = vrot.lane.b32.xlu0 %v3946, 127
      %v4021 = vpop.permute.xlu0 %4020
      %v4022 = vsel %vm251, %v4015, %v4019
      %v4023 = vsel %vm251, %v4017, %v4021
      %v4024 = vsel %vm251, %v4019, %v4015
      %v4025 = vsel %vm251, %v4021, %v4017
      %v4026 = vmul.f32 %v4022, %v258
      %v4027 = vmul.f32 %v4024, %v259
      %v4028 = vmul.f32 %v4023, %v258
      %v4029 = vmul.f32 %v4025, %v259
      %4030 = vrot.lane.b32.xlu0 %v3943, 113
      %v4031 = vpop.permute.xlu0 %4030
      %4032 = vrot.lane.b32.xlu0 %v3945, 113
      %v4033 = vpop.permute.xlu0 %4032
      %4034 = vrot.lane.b32.xlu0 %v3944, 113
      %v4035 = vpop.permute.xlu0 %4034
      %4036 = vrot.lane.b32.xlu0 %v3946, 113
      %v4037 = vpop.permute.xlu0 %4036
      %v4038 = vsel %vm266, %v4031, %v4035
      %v4039 = vsel %vm266, %v4033, %v4037
      %v4040 = vsel %vm266, %v4035, %v4031
      %v4041 = vsel %vm266, %v4037, %v4033
      %v4042 = vmul.f32 %v4038, %v281
      %v4043 = vmul.f32 %v4040, %v282
      %v4044 = vmul.f32 %v4039, %v281
      %v4045 = vmul.f32 %v4041, %v282
      %4046 = vrot.lane.b32.xlu0 %v3943, 112
      %v4047 = vpop.permute.xlu0 %4046
      %4048 = vrot.lane.b32.xlu0 %v3945, 112
      %v4049 = vpop.permute.xlu0 %4048
      %4050 = vrot.lane.b32.xlu0 %v3944, 112
      %v4051 = vpop.permute.xlu0 %4050
      %4052 = vrot.lane.b32.xlu0 %v3946, 112
      %v4053 = vpop.permute.xlu0 %4052
      %v4054 = vsel %vm289, %v4047, %v4051
      %v4055 = vsel %vm289, %v4049, %v4053
      %v4056 = vsel %vm289, %v4051, %v4047
      %v4057 = vsel %vm289, %v4053, %v4049
      %v4058 = vmul.f32 %v4054, %v296
      %v4059 = vmul.f32 %v4056, %v297
      %v4060 = vmul.f32 %v4055, %v296
      %v4061 = vmul.f32 %v4057, %v297
      %4062 = vrot.lane.b32.xlu0 %v3943, 111
      %v4063 = vpop.permute.xlu0 %4062
      %4064 = vrot.lane.b32.xlu0 %v3945, 111
      %v4065 = vpop.permute.xlu0 %4064
      %4066 = vrot.lane.b32.xlu0 %v3944, 111
      %v4067 = vpop.permute.xlu0 %4066
      %4068 = vrot.lane.b32.xlu0 %v3946, 111
      %v4069 = vpop.permute.xlu0 %4068
      %v4070 = vsel %vm304, %v4063, %v4067
      %v4071 = vsel %vm304, %v4065, %v4069
      %v4072 = vsel %vm304, %v4067, %v4063
      %v4073 = vsel %vm304, %v4069, %v4065
      %v4074 = vmul.f32 %v4070, %v311
      %v4075 = vmul.f32 %v4072, %v312
      %v4076 = vmul.f32 %v4071, %v311
      %v4077 = vmul.f32 %v4073, %v312
      %4079 = vset.pattern.permute.xlu0 0
      %4080 = vperm.xlu0 %4079, %v3949
      %v4081 = vpop.permute.xlu0 %4080
      %v4084 = vsel %vm470, %v3948, 0
      %4086 = vmatprep.subr.mxu0 %v4061
      %4087 = vmatpush1.msra.mxu0 %v4060
      %4088 = vmatprep.subr.mxu0 %v4059
      %4089 = vmatpush1.msra.mxu0 %v4058
      %4090 = vmatprep.subr.mxu0 %v4045
      %4091 = vmatpush1.msra.mxu0 %v4044
      %4092 = vmatprep.subr.mxu0 %v4043
      %4093 = vmatpush1.msra.mxu0 %v4042
      %4094 = vmatprep.subr.mxu0 %v4029
      %4095 = vmatpush1.msra.mxu0 %v4028
      %4096 = vmatprep.subr.mxu0 %v4027
      %4097 = vmatpush1.msra.mxu0 %v4026
      %4098 = vmatprep.subr.mxu0 %v3946
      %4099 = vmatpush1.msra.mxu0 %v3945
      %4100 = vmatprep.subr.mxu0 %v3944
      %4101 = vmatpush1.msra.mxu0 %v3943
      %4102 = vmatprep.subr.mxu0 %v4013
      %4103 = vmatpush1.msra.mxu0 %v4012
      %4104 = vmatprep.subr.mxu0 %v4011
      %4105 = vmatpush1.msra.mxu0 %v4010
      %4106 = vmatprep.subr.mxu0 %v3997
      %4107 = vmatpush1.msra.mxu0 %v3996
      %4108 = vmatprep.subr.mxu0 %v3995
      %4109 = vmatpush1.msra.mxu0 %v3994
      %4110 = vmatprep.subr.mxu0 %v3981
      %4111 = vmatpush1.msra.mxu0 %v3980
      %4112 = vmatprep.subr.mxu0 %v3979
      %4113 = vmatpush1.msra.mxu0 %v3978
      %4114 = vmatprep.subr.mxu0 %v3965
      %4115 = vmatpush1.msra.mxu0 %v3964
      %4116 = vmatprep.subr.mxu0 %v3963
      %4117 = vmatpush1.msra.mxu0 %v3962
      %4118 = vmatprep.subr.mxu0 0.0
      %4119 = vmatpush2.msra.mxu0 0.0
      %4120 = vmatprep.subr.mxu0 0.0
      %4121 = vmatpush2.msra.mxu0 0.0
      %4122 = vmatprep.subr.mxu0 0.0
      %4123 = vmatpush2.msra.mxu0 0.0
      %4124 = vmatprep.subr.mxu0 0.0
      %4125 = vmatpush2.msra.mxu0 0.0
      %4126 = vmatprep.subr.mxu0 0.0
      %4127 = vmatpush2.msra.mxu0 0.0
      %4128 = vmatprep.subr.mxu0 0.0
      %4129 = vmatpush2.msra.mxu0 0.0
      %4130 = vmatprep.subr.mxu0 0.0
      %4131 = vmatpush2.msra.mxu0 0.0
      %4132 = vmatprep.subr.mxu0 0.0
      %4133 = vmatpush2.msra.mxu0 0.0
      %4134 = vmatprep.subr.mxu0 0.0
      %4135 = vmatpush2.msra.mxu0 0.0
      %4136 = vmatprep.subr.mxu0 0.0
      %4137 = vmatpush2.msra.mxu0 0.0
      %4138 = vmatprep.subr.mxu0 0.0
      %4139 = vmatpush2.msra.mxu0 0.0
      %4140 = vmatprep.subr.mxu0 0.0
      %4141 = vmatpush2.msra.mxu0 0.0
      %4142 = vmatprep.subr.mxu0 0.0
      %4143 = vmatpush2.msra.mxu0 0.0
      %4144 = vmatprep.subr.mxu0 0.0
      %4145 = vmatpush2.msra.mxu0 0.0
      %4146 = vmatprep.subr.mxu0 %v4077
      %4147 = vmatpush2.msra.mxu0 %v4076
      %4148 = vmatprep.subr.mxu0 %v4075
      %4149 = vmatpush2.msra.mxu0 %v4074
      %4150 = vmatprep.mubr.f32.mxu0 %v4084
      %4151 = vmatmul.mubr.f32.gmra.mxu0 %v3947
      %v4152 = vpop.f32.mrf.mxu0
      %v4153 = vadd.f32 %v4081, %v4152
      %v4154 = vpop.f32.mrf.mxu0
      %v4155 = vadd.f32 %v4081, %v4154
      %4156 = vdwg.mxu0
      %v4157 = vadd.f32 %v4153, %v144
      %v4158 = vadd.f32 %v4155, %v145
      %v4159 = vmax.f32 %v4157, -1.0
      %v4160 = vmax.f32 %v4158, -1.0
      %v4161 = vmin.f32 %v4159, 1.0
      %v4162 = vmin.f32 %v4160, 1.0
      %v4165 = vcombine.low %v4161, %v4162
      %4167 = vst [vmem:[%s143] sm:$0x77] %v4165
      %p4168 = scmp.lt.s32.totalorder %s13, 1
      %s4169 = scalar_select %p4168, %s13, 1
      %s4170 = smul.addr %s4169, 2
      %s4171 = smul.addr %s4170, 4
      %s4172 = scalar_lea.vmem %s2, %s4171
      // Predicated region
      $region29: #{spnet_md_forward.1} parent=27 // pred_check
        %p4173 = pneg %p78
      $region30: #{spnet_md_forward.1} parent=27 // pred_check_branch
        %4175 = sbr.rel (%p4173) target = $region32
      $region31: #{spnet_md_forward.1} parent=27 // pred_region
        _
      $region32: #{spnet_md_forward.1} parent=27 // pred_fallthru
        _
    $region28: #{spnet_md_forward.1} parent=5 // pred_fallthru
      _
    %p4176 = scmp.le.s32.totalorder 2, %s8
    // Predicated region
    $region33: #{spnet_md_forward.1} parent=5 // pred_check
      %p4177 = pneg %p4176
    $region34: #{spnet_md_forward.1} parent=5 // pred_check_branch
      %4179 = sbr.rel (%p4177) target = $region36
    $region35: #{spnet_md_forward.1} parent=5 // pred_region
      %s4180 = ssub.s32 %s8, 2
      // Predicated region
      $region37: #{spnet_md_forward.1} parent=35 // pred_check
        %p4181 = pneg %p84
      $region38: #{spnet_md_forward.1} parent=35 // pred_check_branch
        %4183 = sbr.rel (%p4181) target = $region40
      $region39: #{spnet_md_forward.1} parent=35 // pred_region
        %p4184 = scmp.lt.s32.totalorder %s14, 1
        %s4185 = scalar_select %p4184, %s14, 1
        %s4186 = smul.addr %s4185, 2
        %s4187 = smul.addr %s4186, 4
        %s4188 = scalar_lea.vmem %s2, %s4187
      $region40: #{spnet_md_forward.1} parent=35 // pred_fallthru
        _
    $region36: #{spnet_md_forward.1} parent=5 // pred_fallthru
      _
  $region6: #{spnet_md_forward.1} parent=0 // loop_footer
    %s12 = sadd.s32 1, %s8
  $region7: #{spnet_md_forward.1} parent=0 // loop_footer_branch
    %7 = sbr.rel target = $region3
  $region8: #{spnet_md_forward.1} parent=0 // loop_exit
    _

</llo_original>
